<compile_context>
chip_gen: v7x
topology: tpu7x:2x2x1
jax: 0.10.0
libtpu: 0.0.40
codegen_flags: <defaults>
</compile_context>

<pallas_src>
import math

import jax
import jax.numpy as jnp
from jax.experimental import pallas as pl
from jax.experimental.pallas import tpu as pltpu


_EPS = 1e-3                      # BatchNorm2d eps in the reference module
_VMEM_LIMIT = 32 * 1024 * 1024   # explicit scoped-VMEM limit (fits v5e/v6e/v7x)
_LPAD = 8                        # sublane-aligned left halo offset of the conv scratch


def _round_up(x, m):
    return ((x + m - 1) // m) * m


# --------------------------- fused 1x1 branches ----------------------------- #

def _make_fused_1x1_kernel(tm, M, Cin, Cb, needs_mask):
    """Three BN+ReLU+1x1-conv branches fused; one lane-dense (tm, 3*Cb) store.

    Also emits per-tile partial (sum, sum_sq) of the output so downstream BN stats
    never re-read the slab from HBM.
    """
    def kernel(x_ref, scale_ref, shift_ref, w_ref, o_ref, stats_ref):
        x = x_ref[...]                                            # (tm, Cin) f32
        outs = []
        for b in range(3):
            y = jnp.maximum(x * scale_ref[b:b + 1, :] + shift_ref[b:b + 1, :], 0.0)
            outs.append(jnp.dot(y.astype(jnp.bfloat16), w_ref[b],
                                preferred_element_type=jnp.float32))
        out = jnp.concatenate(outs, axis=-1)                      # (tm, 3*Cb) in-register

        if needs_mask:
            # Ragged tail tile: garbage rows are store-masked anyway, but must not
            # pollute the emitted statistics.
            rows = pl.program_id(0) * tm + jax.lax.broadcasted_iota(
                jnp.int32, (tm, 1), 0)
            out = jnp.where(rows < M, out, 0.0)

        o_ref[...] = out.astype(o_ref.dtype)
        s = jnp.sum(out, axis=0, keepdims=True)                   # (1, 3*Cb)
        ss = jnp.sum(out * out, axis=0, keepdims=True)
        stats_ref[0] = jnp.concatenate([s, ss], axis=0)           # (2, 3*Cb)

    return kernel


def fused_1x1_branches(x2d, scales, shifts, w_stack):
    """x2d: (M, Cin) f32; scales/shifts: (3, Cin) f32; w_stack: (3, Cin, Cb) bf16.

    Returns (slab (M, 3*Cb) f32, stats (2, 3*Cb) f32 = [col sums, col sums of squares]).
    """
    M, Cin = x2d.shape
    nb, _, Cb = w_stack.shape
    Ctot = nb * Cb

    # Mem-bound: use a large row tile (per-step pipeline overhead ~0.35us) but keep the
    # grid >= 2 so both v7x TensorCores get work.  VMEM (double-buffered) is
    # 2*tm*(Cin+Ctot)*4 B -- only a few MiB even at Cin=384, far under the scoped limit.
    tm_target = 1024
    if M >= 2 * tm_target:
        tm = tm_target
    else:
        tm = min(_round_up(M, 8), max(8, _round_up(pl.cdiv(M, 2), 8)))
    grid = pl.cdiv(M, tm)
    needs_mask = (M % tm) != 0

    flops = 2 * M * Cin * Ctot + 6 * M * Cin
    bytes_accessed = 4 * M * (Cin + Ctot) + 2 * nb * Cin * Cb + 4 * grid * 2 * Ctot

    out, stats = pl.pallas_call(
        _make_fused_1x1_kernel(tm, M, Cin, Cb, needs_mask),
        out_shape=(jax.ShapeDtypeStruct((M, Ctot), x2d.dtype),
                   jax.ShapeDtypeStruct((grid, 2, Ctot), jnp.float32)),
        grid=(grid,),
        in_specs=[
            pl.BlockSpec((tm, Cin), lambda i: (i, 0)),
            pl.BlockSpec((3, Cin), lambda i: (0, 0)),
            pl.BlockSpec((3, Cin), lambda i: (0, 0)),
            pl.BlockSpec((3, Cin, Cb), lambda i: (0, 0, 0)),
        ],
        out_specs=(pl.BlockSpec((tm, Ctot), lambda i: (i, 0)),
                   pl.BlockSpec((1, 2, Ctot), lambda i: (i, 0, 0))),
        compiler_params=pltpu.CompilerParams(
            dimension_semantics=("parallel",),
            vmem_limit_bytes=_VMEM_LIMIT),
        cost_estimate=pl.CostEstimate(flops=flops, transcendentals=0,
                                      bytes_accessed=bytes_accessed),
    )(x2d, scales, shifts, w_stack)
    return out, jnp.sum(stats, axis=0)


# --------------------------- fused BN+ReLU+3x3 conv -------------------------- #

def _make_bn_relu_conv3x3_kernel(H, W, Cin, Cout, emit_stats):
    """Fused BN+ReLU+3x3 'same' conv, one image per grid step.

    The zero-padded activation lives in a VMEM scratch (interior stored sublane-aligned
    at column _LPAD); the conv is 3 MXU matmuls (one per kernel row) with contraction
    depth K = 3*Cin over per-row im2col patches built in-register, accumulated in vregs.
    """
    WP = W + 2 * _LPAD

    def kernel(x_ref, scale_ref, shift_ref, w_ref, o_ref, *rest):
        if emit_stats:
            stats_ref, ypad_ref = rest
        else:
            (ypad_ref,) = rest
            stats_ref = None

        # Zero only the halo ring the taps actually read (rows 0 and H+1, columns
        # _LPAD-1 and _LPAD+W).  Done every step (4 tiny stores): the interior is fully
        # overwritten each step, and with a 'parallel' grid axis each TensorCore has its
        # own scratch instance, so an init gated on program_id==0 would be wrong.
        zrow = jnp.zeros((1, WP, Cin), jnp.float32)
        ypad_ref[0:1, :, :] = zrow
        ypad_ref[H + 1:H + 2, :, :] = zrow
        zcol = jnp.zeros((H + 2, 1, Cin), jnp.float32)
        ypad_ref[:, _LPAD - 1:_LPAD, :] = zcol
        ypad_ref[:, _LPAD + W:_LPAD + W + 1, :] = zcol

        x = x_ref[0]                                              # (H, W, Cin)
        scale = scale_ref[...].reshape(1, 1, Cin)
        shift = shift_ref[...].reshape(1, 1, Cin)
        y = jnp.maximum(x * scale + shift, 0.0)
        ypad_ref[1:H + 1, _LPAD:_LPAD + W, :] = y                 # aligned interior store

        acc = None
        for ki in range(3):
            # Per-kernel-row im2col patch: 3 kj-shifted windows concatenated along
            # lanes -> a single deep (K = 3*Cin) MXU contraction per ki.
            taps = [
                ypad_ref[ki:ki + H, _LPAD - 1 + kj:_LPAD - 1 + kj + W, :]
                .reshape(H * W, Cin)
                for kj in range(3)
            ]
            patch = jnp.concatenate(taps, axis=-1)                # (H*W, 3*Cin)
            d = jnp.dot(patch.astype(jnp.bfloat16), w_ref[ki],
                        preferred_element_type=jnp.float32)
            acc = d if acc is None else acc + d                   # register accumulation
        o_ref[0] = acc.astype(o_ref.dtype)

        if emit_stats:
            # Partial BN stats of this image's output (consumed by the next conv's BN).
            s = jnp.sum(acc, axis=0, keepdims=True)               # (1, Cout)
            ss = jnp.sum(acc * acc, axis=0, keepdims=True)
            stats_ref[0] = jnp.concatenate([s, ss], axis=0)       # (2, Cout)

    return kernel


def bn_relu_conv3x3(x_nhwc, mean, var, gamma, beta, weight, *, emit_stats=False):
    """iconv2D(k=3, pad=1): BN (batch stats supplied) -> ReLU -> Conv2d(bias=False).

    If emit_stats, also returns (2, Cout) [sum, sum_sq] of the output over all pixels.
    """
    N, H, W, Cin = x_nhwc.shape
    Cout = weight.shape[0]

    inv_std = jax.lax.rsqrt(var + _EPS)
    scale = (gamma * inv_std).reshape(1, Cin).astype(jnp.float32)
    shift = (beta - mean * gamma * inv_std).reshape(1, Cin).astype(jnp.float32)

    # (Cout, Cin, 3, 3) -> (ki, kj, Cin, Cout) -> (3, 3*Cin, Cout); bf16 MXU operands.
    w = jnp.transpose(weight, (2, 3, 1, 0)).reshape(3, 3 * Cin, Cout).astype(jnp.bfloat16)

    flops = 2 * N * H * W * 9 * Cin * Cout + 3 * N * H * W * Cin
    bytes_accessed = 4 * N * H * W * (Cin + Cout) + 2 * 9 * Cin * Cout

    out_shape = [jax.ShapeDtypeStruct((N, H * W, Cout), x_nhwc.dtype)]
    out_specs = [pl.BlockSpec((1, H * W, Cout), lambda n: (n, 0, 0))]
    if emit_stats:
        out_shape.append(jax.ShapeDtypeStruct((N, 2, Cout), jnp.float32))
        out_specs.append(pl.BlockSpec((1, 2, Cout), lambda n: (n, 0, 0)))

    res = pl.pallas_call(
        _make_bn_relu_conv3x3_kernel(H, W, Cin, Cout, emit_stats),
        out_shape=tuple(out_shape) if emit_stats else out_shape[0],
        grid=(N,),
        in_specs=[
            pl.BlockSpec((1, H, W, Cin), lambda n: (n, 0, 0, 0)),
            pl.BlockSpec((1, Cin), lambda n: (0, 0)),
            pl.BlockSpec((1, Cin), lambda n: (0, 0)),
            pl.BlockSpec((3, 3 * Cin, Cout), lambda n: (0, 0, 0)),
        ],
        out_specs=tuple(out_specs) if emit_stats else out_specs[0],
        scratch_shapes=[
            pltpu.VMEM((H + 2, W + 2 * _LPAD, Cin), jnp.float32),  # padded activation
        ],
        compiler_params=pltpu.CompilerParams(
            dimension_semantics=("parallel",),
            vmem_limit_bytes=_VMEM_LIMIT),
        cost_estimate=pl.CostEstimate(flops=flops, transcendentals=0,
                                      bytes_accessed=bytes_accessed),
    )(x_nhwc, scale, shift, w)

    if emit_stats:
        out, stats = res
        return out.reshape(N, H, W, Cout), jnp.sum(stats, axis=0)
    return res.reshape(N, H, W, Cout)


# ------------------------------- parameters --------------------------------- #

def xavier_uniform(key, cout, cin, kh, kw, dtype=jnp.float32):
    fan_in = cin * kh * kw
    fan_out = cout * kh * kw
    bound = math.sqrt(6.0 / (fan_in + fan_out))
    return jax.random.uniform(key, (cout, cin, kh, kw), dtype=dtype,
                              minval=-bound, maxval=bound)


def init_iconv(key, cin, cout, k):
    # BatchNorm2d affine init: gamma = 1, beta = 0 (PyTorch default).
    # Kernel size / padding are static module structure, NOT traced params.
    return {
        "gamma": jnp.ones((cin,), jnp.float32),
        "beta": jnp.zeros((cin,), jnp.float32),
        "weight": xavier_uniform(key, cout, cin, k, k),
    }


def init_inception_a(key, input_size):
    ks = jax.random.split(key, 6)
    return {
        "B11_1x1": init_iconv(ks[0], input_size, 32, 1),
        "B21_1x1": init_iconv(ks[1], input_size, 32, 1),
        "B22_3x3": init_iconv(ks[2], 32, 32, 3),
        "B31_1x1": init_iconv(ks[3], input_size, 32, 1),
        "B32_3x3": init_iconv(ks[4], 32, 48, 3),
        "B33_3x3": init_iconv(ks[5], 48, 64, 3),
    }


# ------------------------------- InceptionA --------------------------------- #

_BRANCH_1X1 = ("B11_1x1", "B21_1x1", "B31_1x1")


def _inception_a_forward(params, x_nchw):
    x = jnp.transpose(x_nchw, (0, 2, 3, 1))                        # NCHW -> NHWC
    N, H, W, Cin = x.shape
    M = N * H * W
    x2d = x.reshape(M, Cin)

    # Input BN stats: two-pass form (exactly matches the reference; no E[x^2]-E[x]^2
    # cancellation).  The module input is the only tensor whose stats must be computed
    # in XLA -- every intermediate's stats are emitted by its producer kernel.
    mean = jnp.mean(x2d, axis=0)
    var = jnp.mean(jnp.square(x2d - mean), axis=0)
    inv_std = jax.lax.rsqrt(var + _EPS)

    gammas = jnp.stack([params[k]["gamma"] for k in _BRANCH_1X1])  # (3, Cin)
    betas = jnp.stack([params[k]["beta"] for k in _BRANCH_1X1])
    scales = (gammas * inv_std).astype(jnp.float32)
    shifts = (betas - mean * gammas * inv_std).astype(jnp.float32)

    cb = params[_BRANCH_1X1[0]]["weight"].shape[0]                 # 32
    w1 = jnp.stack([params[k]["weight"][:, :, 0, 0].T
                    for k in _BRANCH_1X1]).astype(jnp.bfloat16)    # (3, Cin, 32)

    slab, s96 = fused_1x1_branches(x2d, scales, shifts, w1)        # (M, 96), (2, 96)
    mean96 = s96[0] / M
    var96 = jnp.maximum(s96[1] / M - mean96 * mean96, 0.0)

    x1 = slab[:, 0 * cb:1 * cb].reshape(N, H, W, cb)               # B11 -> concat
    x2 = slab[:, 1 * cb:2 * cb].reshape(N, H, W, cb)               # B21 -> B22
    x3 = slab[:, 2 * cb:3 * cb].reshape(N, H, W, cb)               # B31 -> B32

    p = params["B22_3x3"]
    x2 = bn_relu_conv3x3(x2, mean96[cb:2 * cb], var96[cb:2 * cb],
                         p["gamma"], p["beta"], p["weight"])       # (N, H, W, 32)

    p = params["B32_3x3"]
    x3, s48 = bn_relu_conv3x3(x3, mean96[2 * cb:3 * cb], var96[2 * cb:3 * cb],
                              p["gamma"], p["beta"], p["weight"],
                              emit_stats=True)                     # (N, H, W, 48)
    mean48 = s48[0] / M
    var48 = jnp.maximum(s48[1] / M - mean48 * mean48, 0.0)

    p = params["B33_3x3"]
    x3 = bn_relu_conv3x3(x3, mean48, var48,
                         p["gamma"], p["beta"], p["weight"])       # (N, H, W, 64)

    # TODO(synk): the final channel concat + NHWC->NCHW transpose (and the slab column
    # slices feeding B22/B32) stay in XLA glue; folding them into the kernels needs
    # column-offset out_specs + input_output_aliases.
    out = jnp.concatenate([x1, x2, x3, x], axis=-1)                # 32+32+64+Cin ch
    return jnp.transpose(out, (0, 3, 1, 2))                        # NHWC -> NCHW


inception_a_forward = jax.jit(_inception_a_forward)


# ------------------------- pure-JAX reference (check) ------------------------ #

def _iconv_ref(x_nhwc, gamma, beta, weight, padding):
    mean = jnp.mean(x_nhwc, axis=(0, 1, 2))
    var = jnp.mean(jnp.square(x_nhwc - mean), axis=(0, 1, 2))
    y = jnp.maximum((x_nhwc - mean) * jax.lax.rsqrt(var + _EPS) * gamma + beta, 0.0)
    return jax.lax.conv_general_dilated(
        y, jnp.transpose(weight, (2, 3, 1, 0)),
        window_strides=(1, 1), padding=[(padding, padding)] * 2,
        dimension_numbers=("NHWC", "HWIO", "NHWC"),
        precision=jax.lax.Precision.HIGHEST)


def _inception_a_reference(params, x_nchw):
    x = jnp.transpose(x_nchw, (0, 2, 3, 1))
    g = lambda k: (params[k]["gamma"], params[k]["beta"], params[k]["weight"])
    x1 = _iconv_ref(x, *g("B11_1x1"), 0)
    x2 = _iconv_ref(x, *g("B21_1x1"), 0)
    x2 = _iconv_ref(x2, *g("B22_3x3"), 1)
    x3 = _iconv_ref(x, *g("B31_1x1"), 0)
    x3 = _iconv_ref(x3, *g("B32_3x3"), 1)
    x3 = _iconv_ref(x3, *g("B33_3x3"), 1)
    out = jnp.concatenate([x1, x2, x3, x], axis=-1)
    return jnp.transpose(out, (0, 3, 1, 2))


inception_a_reference = jax.jit(_inception_a_reference)


# ---------------------------------- main ------------------------------------ #

if __name__ == "__main__":
    key = jax.random.PRNGKey(0)
    k_params, k_x = jax.random.split(key)

    N, C, H, W = 2, 4, 16, 16
    params = init_inception_a(k_params, input_size=C)
    x = jax.random.normal(k_x, (N, C, H, W), dtype=jnp.float32)

    out = jax.block_until_ready(inception_a_forward(params, x))

    expected_shape = (N, 32 + 32 + 64 + C, H, W)
    assert out.shape == expected_shape, (out.shape, expected_shape)
    assert bool(jnp.all(jnp.isfinite(out)))

    ref = jax.block_until_ready(inception_a_reference(params, x))
    # Residual (pass-through) channels must match exactly; conv branches tolerate
    # bf16-MXU roundoff accumulated over up to three stacked convs.
    resid_err = float(jnp.max(jnp.abs(out[:, 128:] - ref[:, 128:])))
    max_err = float(jnp.max(jnp.abs(out - ref)))
    assert resid_err < 1e-6, f"residual-branch error: {resid_err}"
    assert max_err < 1e-1, f"max abs error vs reference: {max_err}"

    print("KERNEL_OK")
</pallas_src>

<mosaic_0001>
module attributes {stable_mosaic.version = 11 : i64} {
  func.func @kernel(%arg0: i32, %arg1: memref<256x4xf32, #tpu.memory_space<vmem>>, %arg2: memref<3x4xf32, #tpu.memory_space<vmem>>, %arg3: memref<3x4xf32, #tpu.memory_space<vmem>>, %arg4: memref<3x4x32xbf16, #tpu.memory_space<vmem>>, %arg5: memref<256x96xf32, #tpu.memory_space<vmem>>, %arg6: memref<1x2x96xf32, #tpu.memory_space<vmem>>) attributes {dimension_semantics = [#tpu.dimension_semantics<parallel>], iteration_bounds = array<i64: 2>, scalar_prefetch = 0 : i64, scratch_operands = 0 : i64, tpu.core_type = #tpu.core_type<tc>, window_params = [{transform_indices = @transform_0, window_bounds = array<i64: 256, 4>}, {pipeline_mode = #tpu.pipeline_mode<synchronous>, transform_indices = @transform_1, window_bounds = array<i64: 3, 4>}, {pipeline_mode = #tpu.pipeline_mode<synchronous>, transform_indices = @transform_2, window_bounds = array<i64: 3, 4>}, {pipeline_mode = #tpu.pipeline_mode<synchronous>, transform_indices = @transform_3, window_bounds = array<i64: 3, 4, 32>}, {transform_indices = @transform_4, window_bounds = array<i64: 256, 96>}, {transform_indices = @transform_5, window_bounds = array<i64: 1, 2, 96>}]} {
    %c0 = arith.constant 0 : index
    %c0_0 = arith.constant 0 : index
    %0 = vector.load %arg1[%c0, %c0_0] : memref<256x4xf32, #tpu.memory_space<vmem>>, vector<256x4xf32>
    %c0_1 = arith.constant 0 : index
    %c0_2 = arith.constant 0 : index
    %1 = vector.load %arg2[%c0_1, %c0_2] : memref<3x4xf32, #tpu.memory_space<vmem>>, vector<1x4xf32>
    %2 = vector.broadcast %1 : vector<1x4xf32> to vector<256x4xf32>
    %3 = arith.mulf %0, %2 : vector<256x4xf32>
    %c0_3 = arith.constant 0 : index
    %c0_4 = arith.constant 0 : index
    %4 = vector.load %arg3[%c0_3, %c0_4] : memref<3x4xf32, #tpu.memory_space<vmem>>, vector<1x4xf32>
    %5 = vector.broadcast %4 : vector<1x4xf32> to vector<256x4xf32>
    %6 = arith.addf %3, %5 : vector<256x4xf32>
    %cst = arith.constant 0.000000e+00 : f32
    %7 = vector.broadcast %cst : f32 to vector<256x4xf32>
    %8 = arith.maximumf %6, %7 : vector<256x4xf32>
    %9 = arith.truncf %8 : vector<256x4xf32> to vector<256x4xbf16>
    %c0_5 = arith.constant 0 : index
    %c0_6 = arith.constant 0 : index
    %c0_7 = arith.constant 0 : index
    %10 = vector.load %arg4[%c0_5, %c0_6, %c0_7] : memref<3x4x32xbf16, #tpu.memory_space<vmem>>, vector<1x4x32xbf16>
    %11 = vector.shape_cast %10 : vector<1x4x32xbf16> to vector<4x32xbf16>
    %cst_8 = arith.constant dense<0.000000e+00> : vector<256x32xf32>
    %12 = tpu.matmul %9, %11, %cst_8 {dimension_numbers = #tpu.dot_dimension_numbers<[1], [0], [0], [1], [0, 0, 1, 1], [], []>} : vector<256x4xbf16>, vector<4x32xbf16>, vector<256x32xf32> -> vector<256x32xf32>
    %c1 = arith.constant 1 : index
    %c0_9 = arith.constant 0 : index
    %13 = vector.load %arg2[%c1, %c0_9] : memref<3x4xf32, #tpu.memory_space<vmem>>, vector<1x4xf32>
    %14 = vector.broadcast %13 : vector<1x4xf32> to vector<256x4xf32>
    %15 = arith.mulf %0, %14 : vector<256x4xf32>
    %c1_10 = arith.constant 1 : index
    %c0_11 = arith.constant 0 : index
    %16 = vector.load %arg3[%c1_10, %c0_11] : memref<3x4xf32, #tpu.memory_space<vmem>>, vector<1x4xf32>
    %17 = vector.broadcast %16 : vector<1x4xf32> to vector<256x4xf32>
    %18 = arith.addf %15, %17 : vector<256x4xf32>
    %cst_12 = arith.constant 0.000000e+00 : f32
    %19 = vector.broadcast %cst_12 : f32 to vector<256x4xf32>
    %20 = arith.maximumf %18, %19 : vector<256x4xf32>
    %21 = arith.truncf %20 : vector<256x4xf32> to vector<256x4xbf16>
    %c1_13 = arith.constant 1 : index
    %c0_14 = arith.constant 0 : index
    %c0_15 = arith.constant 0 : index
    %22 = vector.load %arg4[%c1_13, %c0_14, %c0_15] : memref<3x4x32xbf16, #tpu.memory_space<vmem>>, vector<1x4x32xbf16>
    %23 = vector.shape_cast %22 : vector<1x4x32xbf16> to vector<4x32xbf16>
    %cst_16 = arith.constant dense<0.000000e+00> : vector<256x32xf32>
    %24 = tpu.matmul %21, %23, %cst_16 {dimension_numbers = #tpu.dot_dimension_numbers<[1], [0], [0], [1], [0, 0, 1, 1], [], []>} : vector<256x4xbf16>, vector<4x32xbf16>, vector<256x32xf32> -> vector<256x32xf32>
    %c2 = arith.constant 2 : index
    %c0_17 = arith.constant 0 : index
    %25 = vector.load %arg2[%c2, %c0_17] : memref<3x4xf32, #tpu.memory_space<vmem>>, vector<1x4xf32>
    %26 = vector.broadcast %25 : vector<1x4xf32> to vector<256x4xf32>
    %27 = arith.mulf %0, %26 : vector<256x4xf32>
    %c2_18 = arith.constant 2 : index
    %c0_19 = arith.constant 0 : index
    %28 = vector.load %arg3[%c2_18, %c0_19] : memref<3x4xf32, #tpu.memory_space<vmem>>, vector<1x4xf32>
    %29 = vector.broadcast %28 : vector<1x4xf32> to vector<256x4xf32>
    %30 = arith.addf %27, %29 : vector<256x4xf32>
    %cst_20 = arith.constant 0.000000e+00 : f32
    %31 = vector.broadcast %cst_20 : f32 to vector<256x4xf32>
    %32 = arith.maximumf %30, %31 : vector<256x4xf32>
    %33 = arith.truncf %32 : vector<256x4xf32> to vector<256x4xbf16>
    %c2_21 = arith.constant 2 : index
    %c0_22 = arith.constant 0 : index
    %c0_23 = arith.constant 0 : index
    %34 = vector.load %arg4[%c2_21, %c0_22, %c0_23] : memref<3x4x32xbf16, #tpu.memory_space<vmem>>, vector<1x4x32xbf16>
    %35 = vector.shape_cast %34 : vector<1x4x32xbf16> to vector<4x32xbf16>
    %cst_24 = arith.constant dense<0.000000e+00> : vector<256x32xf32>
    %36 = tpu.matmul %33, %35, %cst_24 {dimension_numbers = #tpu.dot_dimension_numbers<[1], [0], [0], [1], [0, 0, 1, 1], [], []>} : vector<256x4xbf16>, vector<4x32xbf16>, vector<256x32xf32> -> vector<256x32xf32>
    %37 = tpu.concatenate %12, %24, %36 in 1 : vector<256x32xf32>, vector<256x32xf32>, vector<256x32xf32> -> vector<256x96xf32>
    %c0_25 = arith.constant 0 : index
    %c0_26 = arith.constant 0 : index
    %38 = vector.load %arg5[%c0_25, %c0_26] : memref<256x96xf32, #tpu.memory_space<vmem>>, vector<256x96xf32>
    tpu.vector_store %arg5[%c0_25, %c0_26], %37 {strides = array<i32>} : memref<256x96xf32, #tpu.memory_space<vmem>>, vector<256x96xf32>,
    %cst_27 = arith.constant dense<0.000000e+00> : vector<96xf32>
    %39 = vector.multi_reduction <add>, %37, %cst_27 [0] : vector<256x96xf32> to vector<96xf32>
    %40 = vector.shape_cast %39 : vector<96xf32> to vector<1x96xf32>
    %41 = arith.mulf %37, %37 : vector<256x96xf32>
    %cst_28 = arith.constant dense<0.000000e+00> : vector<96xf32>
    %42 = vector.multi_reduction <add>, %41, %cst_28 [0] : vector<256x96xf32> to vector<96xf32>
    %43 = vector.shape_cast %42 : vector<96xf32> to vector<1x96xf32>
    %44 = tpu.concatenate %40, %43 in 0 : vector<1x96xf32>, vector<1x96xf32> -> vector<2x96xf32>
    %c0_29 = arith.constant 0 : index
    %c0_30 = arith.constant 0 : index
    %c0_31 = arith.constant 0 : index
    %45 = vector.load %arg6[%c0_29, %c0_30, %c0_31] : memref<1x2x96xf32, #tpu.memory_space<vmem>>, vector<1x2x96xf32>
    %46 = vector.shape_cast %45 : vector<1x2x96xf32> to vector<2x96xf32>
    %47 = vector.shape_cast %44 : vector<2x96xf32> to vector<1x2x96xf32>
    tpu.vector_store %arg6[%c0_29, %c0_30, %c0_31], %47 {strides = array<i32>} : memref<1x2x96xf32, #tpu.memory_space<vmem>>, vector<1x2x96xf32>,
    return
  }
  func.func @transform_0(%arg0: i32) -> (i32, i32) {
    %c0_i32 = arith.constant 0 : i32
    %c0_i32_0 = arith.constant 0 : i32
    return %arg0, %c0_i32 : i32, i32
  }
  func.func @transform_1(%arg0: i32) -> (i32, i32) {
    %c0_i32 = arith.constant 0 : i32
    %c0_i32_0 = arith.constant 0 : i32
    %c0_i32_1 = arith.constant 0 : i32
    return %c0_i32, %c0_i32_0 : i32, i32
  }
  func.func @transform_2(%arg0: i32) -> (i32, i32) {
    %c0_i32 = arith.constant 0 : i32
    %c0_i32_0 = arith.constant 0 : i32
    %c0_i32_1 = arith.constant 0 : i32
    return %c0_i32, %c0_i32_0 : i32, i32
  }
  func.func @transform_3(%arg0: i32) -> (i32, i32, i32) {
    %c0_i32 = arith.constant 0 : i32
    %c0_i32_0 = arith.constant 0 : i32
    %c0_i32_1 = arith.constant 0 : i32
    %c0_i32_2 = arith.constant 0 : i32
    return %c0_i32, %c0_i32_0, %c0_i32_1 : i32, i32, i32
  }
  func.func @transform_4(%arg0: i32) -> (i32, i32) {
    %c0_i32 = arith.constant 0 : i32
    %c0_i32_0 = arith.constant 0 : i32
    return %arg0, %c0_i32 : i32, i32
  }
  func.func @transform_5(%arg0: i32) -> (i32, i32, i32) {
    %c0_i32 = arith.constant 0 : i32
    %c0_i32_0 = arith.constant 0 : i32
    %c0_i32_1 = arith.constant 0 : i32
    return %arg0, %c0_i32, %c0_i32_0 : i32, i32, i32
  }
}

module attributes {stable_mosaic.version = 11 : i64} {
  func.func @kernel(%arg0: i32, %arg1: memref<1x16x16x32xf32, #tpu.memory_space<vmem>>, %arg2: memref<1x32xf32, #tpu.memory_space<vmem>>, %arg3: memref<1x32xf32, #tpu.memory_space<vmem>>, %arg4: memref<3x96x32xbf16, #tpu.memory_space<vmem>>, %arg5: memref<1x256x32xf32, #tpu.memory_space<vmem>>, %arg6: memref<18x32x32xf32, #tpu.memory_space<vmem>>) attributes {dimension_semantics = [#tpu.dimension_semantics<parallel>], iteration_bounds = array<i64: 2>, scalar_prefetch = 0 : i64, scratch_operands = 1 : i64, tpu.core_type = #tpu.core_type<tc>, window_params = [{transform_indices = @transform_0, window_bounds = array<i64: 1, 16, 16, 32>}, {pipeline_mode = #tpu.pipeline_mode<synchronous>, transform_indices = @transform_1, window_bounds = array<i64: 1, 32>}, {pipeline_mode = #tpu.pipeline_mode<synchronous>, transform_indices = @transform_2, window_bounds = array<i64: 1, 32>}, {pipeline_mode = #tpu.pipeline_mode<synchronous>, transform_indices = @transform_3, window_bounds = array<i64: 3, 96, 32>}, {transform_indices = @transform_4, window_bounds = array<i64: 1, 256, 32>}]} {
    %cst = arith.constant 0.000000e+00 : f32
    %0 = vector.broadcast %cst : f32 to vector<1x32x32xf32>
    %c0 = arith.constant 0 : index
    %c0_0 = arith.constant 0 : index
    %c0_1 = arith.constant 0 : index
    %1 = vector.load %arg6[%c0, %c0_0, %c0_1] : memref<18x32x32xf32, #tpu.memory_space<vmem>>, vector<1x32x32xf32>
    tpu.vector_store %arg6[%c0, %c0_0, %c0_1], %0 {strides = array<i32>} : memref<18x32x32xf32, #tpu.memory_space<vmem>>, vector<1x32x32xf32>,
    %c17 = arith.constant 17 : index
    %c0_2 = arith.constant 0 : index
    %c0_3 = arith.constant 0 : index
    %2 = vector.load %arg6[%c17, %c0_2, %c0_3] : memref<18x32x32xf32, #tpu.memory_space<vmem>>, vector<1x32x32xf32>
    tpu.vector_store %arg6[%c17, %c0_2, %c0_3], %0 {strides = array<i32>} : memref<18x32x32xf32, #tpu.memory_space<vmem>>, vector<1x32x32xf32>,
    %cst_4 = arith.constant 0.000000e+00 : f32
    %3 = vector.broadcast %cst_4 : f32 to vector<18x1x32xf32>
    %c0_5 = arith.constant 0 : index
    %c7 = arith.constant 7 : index
    %c0_6 = arith.constant 0 : index
    %4 = vector.load %arg6[%c0_5, %c7, %c0_6] : memref<18x32x32xf32, #tpu.memory_space<vmem>>, vector<18x1x32xf32>
    tpu.vector_store %arg6[%c0_5, %c7, %c0_6], %3 {strides = array<i32>} : memref<18x32x32xf32, #tpu.memory_space<vmem>>, vector<18x1x32xf32>,
    %c0_7 = arith.constant 0 : index
    %c24 = arith.constant 24 : index
    %c0_8 = arith.constant 0 : index
    %5 = vector.load %arg6[%c0_7, %c24, %c0_8] : memref<18x32x32xf32, #tpu.memory_space<vmem>>, vector<18x1x32xf32>
    tpu.vector_store %arg6[%c0_7, %c24, %c0_8], %3 {strides = array<i32>} : memref<18x32x32xf32, #tpu.memory_space<vmem>>, vector<18x1x32xf32>,
    %c0_9 = arith.constant 0 : index
    %c0_10 = arith.constant 0 : index
    %c0_11 = arith.constant 0 : index
    %c0_12 = arith.constant 0 : index
    %6 = vector.load %arg1[%c0_9, %c0_10, %c0_11, %c0_12] : memref<1x16x16x32xf32, #tpu.memory_space<vmem>>, vector<1x16x16x32xf32>
    %7 = vector.shape_cast %6 : vector<1x16x16x32xf32> to vector<16x16x32xf32>
    %c0_13 = arith.constant 0 : index
    %c0_14 = arith.constant 0 : index
    %8 = vector.load %arg2[%c0_13, %c0_14] : memref<1x32xf32, #tpu.memory_space<vmem>>, vector<1x32xf32>
    %9 = vector.shape_cast %8 : vector<1x32xf32> to vector<1x1x32xf32>
    %c0_15 = arith.constant 0 : index
    %c0_16 = arith.constant 0 : index
    %10 = vector.load %arg3[%c0_15, %c0_16] : memref<1x32xf32, #tpu.memory_space<vmem>>, vector<1x32xf32>
    %11 = vector.shape_cast %10 : vector<1x32xf32> to vector<1x1x32xf32>
    %12 = vector.broadcast %9 : vector<1x1x32xf32> to vector<16x16x32xf32>
    %13 = arith.mulf %7, %12 : vector<16x16x32xf32>
    %14 = vector.broadcast %11 : vector<1x1x32xf32> to vector<16x16x32xf32>
    %15 = arith.addf %13, %14 : vector<16x16x32xf32>
    %cst_17 = arith.constant 0.000000e+00 : f32
    %16 = vector.broadcast %cst_17 : f32 to vector<16x16x32xf32>
    %17 = arith.maximumf %15, %16 : vector<16x16x32xf32>
    %c1 = arith.constant 1 : index
    %c8 = arith.constant 8 : index
    %c0_18 = arith.constant 0 : index
    %18 = vector.load %arg6[%c1, %c8, %c0_18] : memref<18x32x32xf32, #tpu.memory_space<vmem>>, vector<16x16x32xf32>
    tpu.vector_store %arg6[%c1, %c8, %c0_18], %17 {strides = array<i32>} : memref<18x32x32xf32, #tpu.memory_space<vmem>>, vector<16x16x32xf32>,
    %c0_19 = arith.constant 0 : index
    %c7_20 = arith.constant 7 : index
    %c0_21 = arith.constant 0 : index
    %19 = vector.load %arg6[%c0_19, %c7_20, %c0_21] : memref<18x32x32xf32, #tpu.memory_space<vmem>>, vector<16x16x32xf32>
    %20 = vector.shape_cast %19 : vector<16x16x32xf32> to vector<256x32xf32>
    %c0_22 = arith.constant 0 : index
    %c8_23 = arith.constant 8 : index
    %c0_24 = arith.constant 0 : index
    %21 = vector.load %arg6[%c0_22, %c8_23, %c0_24] : memref<18x32x32xf32, #tpu.memory_space<vmem>>, vector<16x16x32xf32>
    %22 = vector.shape_cast %21 : vector<16x16x32xf32> to vector<256x32xf32>
    %c0_25 = arith.constant 0 : index
    %c9 = arith.constant 9 : index
    %c0_26 = arith.constant 0 : index
    %23 = vector.load %arg6[%c0_25, %c9, %c0_26] : memref<18x32x32xf32, #tpu.memory_space<vmem>>, vector<16x16x32xf32>
    %24 = vector.shape_cast %23 : vector<16x16x32xf32> to vector<256x32xf32>
    %25 = tpu.concatenate %20, %22, %24 in 1 : vector<256x32xf32>, vector<256x32xf32>, vector<256x32xf32> -> vector<256x96xf32>
    %26 = arith.truncf %25 : vector<256x96xf32> to vector<256x96xbf16>
    %c0_27 = arith.constant 0 : index
    %c0_28 = arith.constant 0 : index
    %c0_29 = arith.constant 0 : index
    %27 = vector.load %arg4[%c0_27, %c0_28, %c0_29] : memref<3x96x32xbf16, #tpu.memory_space<vmem>>, vector<1x96x32xbf16>
    %28 = vector.shape_cast %27 : vector<1x96x32xbf16> to vector<96x32xbf16>
    %cst_30 = arith.constant dense<0.000000e+00> : vector<256x32xf32>
    %29 = tpu.matmul %26, %28, %cst_30 {dimension_numbers = #tpu.dot_dimension_numbers<[1], [0], [0], [1], [0, 0, 1, 1], [], []>} : vector<256x96xbf16>, vector<96x32xbf16>, vector<256x32xf32> -> vector<256x32xf32>
    %c1_31 = arith.constant 1 : index
    %c7_32 = arith.constant 7 : index
    %c0_33 = arith.constant 0 : index
    %30 = vector.load %arg6[%c1_31, %c7_32, %c0_33] : memref<18x32x32xf32, #tpu.memory_space<vmem>>, vector<16x16x32xf32>
    %31 = vector.shape_cast %30 : vector<16x16x32xf32> to vector<256x32xf32>
    %c1_34 = arith.constant 1 : index
    %c8_35 = arith.constant 8 : index
    %c0_36 = arith.constant 0 : index
    %32 = vector.load %arg6[%c1_34, %c8_35, %c0_36] : memref<18x32x32xf32, #tpu.memory_space<vmem>>, vector<16x16x32xf32>
    %33 = vector.shape_cast %32 : vector<16x16x32xf32> to vector<256x32xf32>
    %c1_37 = arith.constant 1 : index
    %c9_38 = arith.constant 9 : index
    %c0_39 = arith.constant 0 : index
    %34 = vector.load %arg6[%c1_37, %c9_38, %c0_39] : memref<18x32x32xf32, #tpu.memory_space<vmem>>, vector<16x16x32xf32>
    %35 = vector.shape_cast %34 : vector<16x16x32xf32> to vector<256x32xf32>
    %36 = tpu.concatenate %31, %33, %35 in 1 : vector<256x32xf32>, vector<256x32xf32>, vector<256x32xf32> -> vector<256x96xf32>
    %37 = arith.truncf %36 : vector<256x96xf32> to vector<256x96xbf16>
    %c1_40 = arith.constant 1 : index
    %c0_41 = arith.constant 0 : index
    %c0_42 = arith.constant 0 : index
    %38 = vector.load %arg4[%c1_40, %c0_41, %c0_42] : memref<3x96x32xbf16, #tpu.memory_space<vmem>>, vector<1x96x32xbf16>
    %39 = vector.shape_cast %38 : vector<1x96x32xbf16> to vector<96x32xbf16>
    %cst_43 = arith.constant dense<0.000000e+00> : vector<256x32xf32>
    %40 = tpu.matmul %37, %39, %cst_43 {dimension_numbers = #tpu.dot_dimension_numbers<[1], [0], [0], [1], [0, 0, 1, 1], [], []>} : vector<256x96xbf16>, vector<96x32xbf16>, vector<256x32xf32> -> vector<256x32xf32>
    %41 = arith.addf %29, %40 : vector<256x32xf32>
    %c2 = arith.constant 2 : index
    %c7_44 = arith.constant 7 : index
    %c0_45 = arith.constant 0 : index
    %42 = vector.load %arg6[%c2, %c7_44, %c0_45] : memref<18x32x32xf32, #tpu.memory_space<vmem>>, vector<16x16x32xf32>
    %43 = vector.shape_cast %42 : vector<16x16x32xf32> to vector<256x32xf32>
    %c2_46 = arith.constant 2 : index
    %c8_47 = arith.constant 8 : index
    %c0_48 = arith.constant 0 : index
    %44 = vector.load %arg6[%c2_46, %c8_47, %c0_48] : memref<18x32x32xf32, #tpu.memory_space<vmem>>, vector<16x16x32xf32>
    %45 = vector.shape_cast %44 : vector<16x16x32xf32> to vector<256x32xf32>
    %c2_49 = arith.constant 2 : index
    %c9_50 = arith.constant 9 : index
    %c0_51 = arith.constant 0 : index
    %46 = vector.load %arg6[%c2_49, %c9_50, %c0_51] : memref<18x32x32xf32, #tpu.memory_space<vmem>>, vector<16x16x32xf32>
    %47 = vector.shape_cast %46 : vector<16x16x32xf32> to vector<256x32xf32>
    %48 = tpu.concatenate %43, %45, %47 in 1 : vector<256x32xf32>, vector<256x32xf32>, vector<256x32xf32> -> vector<256x96xf32>
    %49 = arith.truncf %48 : vector<256x96xf32> to vector<256x96xbf16>
    %c2_52 = arith.constant 2 : index
    %c0_53 = arith.constant 0 : index
    %c0_54 = arith.constant 0 : index
    %50 = vector.load %arg4[%c2_52, %c0_53, %c0_54] : memref<3x96x32xbf16, #tpu.memory_space<vmem>>, vector<1x96x32xbf16>
    %51 = vector.shape_cast %50 : vector<1x96x32xbf16> to vector<96x32xbf16>
    %cst_55 = arith.constant dense<0.000000e+00> : vector<256x32xf32>
    %52 = tpu.matmul %49, %51, %cst_55 {dimension_numbers = #tpu.dot_dimension_numbers<[1], [0], [0], [1], [0, 0, 1, 1], [], []>} : vector<256x96xbf16>, vector<96x32xbf16>, vector<256x32xf32> -> vector<256x32xf32>
    %53 = arith.addf %41, %52 : vector<256x32xf32>
    %c0_56 = arith.constant 0 : index
    %c0_57 = arith.constant 0 : index
    %c0_58 = arith.constant 0 : index
    %54 = vector.load %arg5[%c0_56, %c0_57, %c0_58] : memref<1x256x32xf32, #tpu.memory_space<vmem>>, vector<1x256x32xf32>
    %55 = vector.shape_cast %54 : vector<1x256x32xf32> to vector<256x32xf32>
    %56 = vector.shape_cast %53 : vector<256x32xf32> to vector<1x256x32xf32>
    tpu.vector_store %arg5[%c0_56, %c0_57, %c0_58], %56 {strides = array<i32>} : memref<1x256x32xf32, #tpu.memory_space<vmem>>, vector<1x256x32xf32>,
    return
  }
  func.func @transform_0(%arg0: i32) -> (i32, i32, i32, i32) {
    %c0_i32 = arith.constant 0 : i32
    %c0_i32_0 = arith.constant 0 : i32
    %c0_i32_1 = arith.constant 0 : i32
    %c0_i32_2 = arith.constant 0 : i32
    return %arg0, %c0_i32, %c0_i32_0, %c0_i32_1 : i32, i32, i32, i32
  }
  func.func @transform_1(%arg0: i32) -> (i32, i32) {
    %c0_i32 = arith.constant 0 : i32
    %c0_i32_0 = arith.constant 0 : i32
    %c0_i32_1 = arith.constant 0 : i32
    return %c0_i32, %c0_i32_0 : i32, i32
  }
  func.func @transform_2(%arg0: i32) -> (i32, i32) {
    %c0_i32 = arith.constant 0 : i32
    %c0_i32_0 = arith.constant 0 : i32
    %c0_i32_1 = arith.constant 0 : i32
    return %c0_i32, %c0_i32_0 : i32, i32
  }
  func.func @transform_3(%arg0: i32) -> (i32, i32, i32) {
    %c0_i32 = arith.constant 0 : i32
    %c0_i32_0 = arith.constant 0 : i32
    %c0_i32_1 = arith.constant 0 : i32
    %c0_i32_2 = arith.constant 0 : i32
    return %c0_i32, %c0_i32_0, %c0_i32_1 : i32, i32, i32
  }
  func.func @transform_4(%arg0: i32) -> (i32, i32, i32) {
    %c0_i32 = arith.constant 0 : i32
    %c0_i32_0 = arith.constant 0 : i32
    %c0_i32_1 = arith.constant 0 : i32
    return %arg0, %c0_i32, %c0_i32_0 : i32, i32, i32
  }
}

module attributes {stable_mosaic.version = 11 : i64} {
  func.func @kernel(%arg0: i32, %arg1: memref<1x16x16x32xf32, #tpu.memory_space<vmem>>, %arg2: memref<1x32xf32, #tpu.memory_space<vmem>>, %arg3: memref<1x32xf32, #tpu.memory_space<vmem>>, %arg4: memref<3x96x48xbf16, #tpu.memory_space<vmem>>, %arg5: memref<1x256x48xf32, #tpu.memory_space<vmem>>, %arg6: memref<1x2x48xf32, #tpu.memory_space<vmem>>, %arg7: memref<18x32x32xf32, #tpu.memory_space<vmem>>) attributes {dimension_semantics = [#tpu.dimension_semantics<parallel>], iteration_bounds = array<i64: 2>, scalar_prefetch = 0 : i64, scratch_operands = 1 : i64, tpu.core_type = #tpu.core_type<tc>, window_params = [{transform_indices = @transform_0, window_bounds = array<i64: 1, 16, 16, 32>}, {pipeline_mode = #tpu.pipeline_mode<synchronous>, transform_indices = @transform_1, window_bounds = array<i64: 1, 32>}, {pipeline_mode = #tpu.pipeline_mode<synchronous>, transform_indices = @transform_2, window_bounds = array<i64: 1, 32>}, {pipeline_mode = #tpu.pipeline_mode<synchronous>, transform_indices = @transform_3, window_bounds = array<i64: 3, 96, 48>}, {transform_indices = @transform_4, window_bounds = array<i64: 1, 256, 48>}, {transform_indices = @transform_5, window_bounds = array<i64: 1, 2, 48>}]} {
    %cst = arith.constant 0.000000e+00 : f32
    %0 = vector.broadcast %cst : f32 to vector<1x32x32xf32>
    %c0 = arith.constant 0 : index
    %c0_0 = arith.constant 0 : index
    %c0_1 = arith.constant 0 : index
    %1 = vector.load %arg7[%c0, %c0_0, %c0_1] : memref<18x32x32xf32, #tpu.memory_space<vmem>>, vector<1x32x32xf32>
    tpu.vector_store %arg7[%c0, %c0_0, %c0_1], %0 {strides = array<i32>} : memref<18x32x32xf32, #tpu.memory_space<vmem>>, vector<1x32x32xf32>,
    %c17 = arith.constant 17 : index
    %c0_2 = arith.constant 0 : index
    %c0_3 = arith.constant 0 : index
    %2 = vector.load %arg7[%c17, %c0_2, %c0_3] : memref<18x32x32xf32, #tpu.memory_space<vmem>>, vector<1x32x32xf32>
    tpu.vector_store %arg7[%c17, %c0_2, %c0_3], %0 {strides = array<i32>} : memref<18x32x32xf32, #tpu.memory_space<vmem>>, vector<1x32x32xf32>,
    %cst_4 = arith.constant 0.000000e+00 : f32
    %3 = vector.broadcast %cst_4 : f32 to vector<18x1x32xf32>
    %c0_5 = arith.constant 0 : index
    %c7 = arith.constant 7 : index
    %c0_6 = arith.constant 0 : index
    %4 = vector.load %arg7[%c0_5, %c7, %c0_6] : memref<18x32x32xf32, #tpu.memory_space<vmem>>, vector<18x1x32xf32>
    tpu.vector_store %arg7[%c0_5, %c7, %c0_6], %3 {strides = array<i32>} : memref<18x32x32xf32, #tpu.memory_space<vmem>>, vector<18x1x32xf32>,
    %c0_7 = arith.constant 0 : index
    %c24 = arith.constant 24 : index
    %c0_8 = arith.constant 0 : index
    %5 = vector.load %arg7[%c0_7, %c24, %c0_8] : memref<18x32x32xf32, #tpu.memory_space<vmem>>, vector<18x1x32xf32>
    tpu.vector_store %arg7[%c0_7, %c24, %c0_8], %3 {strides = array<i32>} : memref<18x32x32xf32, #tpu.memory_space<vmem>>, vector<18x1x32xf32>,
    %c0_9 = arith.constant 0 : index
    %c0_10 = arith.constant 0 : index
    %c0_11 = arith.constant 0 : index
    %c0_12 = arith.constant 0 : index
    %6 = vector.load %arg1[%c0_9, %c0_10, %c0_11, %c0_12] : memref<1x16x16x32xf32, #tpu.memory_space<vmem>>, vector<1x16x16x32xf32>
    %7 = vector.shape_cast %6 : vector<1x16x16x32xf32> to vector<16x16x32xf32>
    %c0_13 = arith.constant 0 : index
    %c0_14 = arith.constant 0 : index
    %8 = vector.load %arg2[%c0_13, %c0_14] : memref<1x32xf32, #tpu.memory_space<vmem>>, vector<1x32xf32>
    %9 = vector.shape_cast %8 : vector<1x32xf32> to vector<1x1x32xf32>
    %c0_15 = arith.constant 0 : index
    %c0_16 = arith.constant 0 : index
    %10 = vector.load %arg3[%c0_15, %c0_16] : memref<1x32xf32, #tpu.memory_space<vmem>>, vector<1x32xf32>
    %11 = vector.shape_cast %10 : vector<1x32xf32> to vector<1x1x32xf32>
    %12 = vector.broadcast %9 : vector<1x1x32xf32> to vector<16x16x32xf32>
    %13 = arith.mulf %7, %12 : vector<16x16x32xf32>
    %14 = vector.broadcast %11 : vector<1x1x32xf32> to vector<16x16x32xf32>
    %15 = arith.addf %13, %14 : vector<16x16x32xf32>
    %cst_17 = arith.constant 0.000000e+00 : f32
    %16 = vector.broadcast %cst_17 : f32 to vector<16x16x32xf32>
    %17 = arith.maximumf %15, %16 : vector<16x16x32xf32>
    %c1 = arith.constant 1 : index
    %c8 = arith.constant 8 : index
    %c0_18 = arith.constant 0 : index
    %18 = vector.load %arg7[%c1, %c8, %c0_18] : memref<18x32x32xf32, #tpu.memory_space<vmem>>, vector<16x16x32xf32>
    tpu.vector_store %arg7[%c1, %c8, %c0_18], %17 {strides = array<i32>} : memref<18x32x32xf32, #tpu.memory_space<vmem>>, vector<16x16x32xf32>,
    %c0_19 = arith.constant 0 : index
    %c7_20 = arith.constant 7 : index
    %c0_21 = arith.constant 0 : index
    %19 = vector.load %arg7[%c0_19, %c7_20, %c0_21] : memref<18x32x32xf32, #tpu.memory_space<vmem>>, vector<16x16x32xf32>
    %20 = vector.shape_cast %19 : vector<16x16x32xf32> to vector<256x32xf32>
    %c0_22 = arith.constant 0 : index
    %c8_23 = arith.constant 8 : index
    %c0_24 = arith.constant 0 : index
    %21 = vector.load %arg7[%c0_22, %c8_23, %c0_24] : memref<18x32x32xf32, #tpu.memory_space<vmem>>, vector<16x16x32xf32>
    %22 = vector.shape_cast %21 : vector<16x16x32xf32> to vector<256x32xf32>
    %c0_25 = arith.constant 0 : index
    %c9 = arith.constant 9 : index
    %c0_26 = arith.constant 0 : index
    %23 = vector.load %arg7[%c0_25, %c9, %c0_26] : memref<18x32x32xf32, #tpu.memory_space<vmem>>, vector<16x16x32xf32>
    %24 = vector.shape_cast %23 : vector<16x16x32xf32> to vector<256x32xf32>
    %25 = tpu.concatenate %20, %22, %24 in 1 : vector<256x32xf32>, vector<256x32xf32>, vector<256x32xf32> -> vector<256x96xf32>
    %26 = arith.truncf %25 : vector<256x96xf32> to vector<256x96xbf16>
    %c0_27 = arith.constant 0 : index
    %c0_28 = arith.constant 0 : index
    %c0_29 = arith.constant 0 : index
    %27 = vector.load %arg4[%c0_27, %c0_28, %c0_29] : memref<3x96x48xbf16, #tpu.memory_space<vmem>>, vector<1x96x48xbf16>
    %28 = vector.shape_cast %27 : vector<1x96x48xbf16> to vector<96x48xbf16>
    %cst_30 = arith.constant dense<0.000000e+00> : vector<256x48xf32>
    %29 = tpu.matmul %26, %28, %cst_30 {dimension_numbers = #tpu.dot_dimension_numbers<[1], [0], [0], [1], [0, 0, 1, 1], [], []>} : vector<256x96xbf16>, vector<96x48xbf16>, vector<256x48xf32> -> vector<256x48xf32>
    %c1_31 = arith.constant 1 : index
    %c7_32 = arith.constant 7 : index
    %c0_33 = arith.constant 0 : index
    %30 = vector.load %arg7[%c1_31, %c7_32, %c0_33] : memref<18x32x32xf32, #tpu.memory_space<vmem>>, vector<16x16x32xf32>
    %31 = vector.shape_cast %30 : vector<16x16x32xf32> to vector<256x32xf32>
    %c1_34 = arith.constant 1 : index
    %c8_35 = arith.constant 8 : index
    %c0_36 = arith.constant 0 : index
    %32 = vector.load %arg7[%c1_34, %c8_35, %c0_36] : memref<18x32x32xf32, #tpu.memory_space<vmem>>, vector<16x16x32xf32>
    %33 = vector.shape_cast %32 : vector<16x16x32xf32> to vector<256x32xf32>
    %c1_37 = arith.constant 1 : index
    %c9_38 = arith.constant 9 : index
    %c0_39 = arith.constant 0 : index
    %34 = vector.load %arg7[%c1_37, %c9_38, %c0_39] : memref<18x32x32xf32, #tpu.memory_space<vmem>>, vector<16x16x32xf32>
    %35 = vector.shape_cast %34 : vector<16x16x32xf32> to vector<256x32xf32>
    %36 = tpu.concatenate %31, %33, %35 in 1 : vector<256x32xf32>, vector<256x32xf32>, vector<256x32xf32> -> vector<256x96xf32>
    %37 = arith.truncf %36 : vector<256x96xf32> to vector<256x96xbf16>
    %c1_40 = arith.constant 1 : index
    %c0_41 = arith.constant 0 : index
    %c0_42 = arith.constant 0 : index
    %38 = vector.load %arg4[%c1_40, %c0_41, %c0_42] : memref<3x96x48xbf16, #tpu.memory_space<vmem>>, vector<1x96x48xbf16>
    %39 = vector.shape_cast %38 : vector<1x96x48xbf16> to vector<96x48xbf16>
    %cst_43 = arith.constant dense<0.000000e+00> : vector<256x48xf32>
    %40 = tpu.matmul %37, %39, %cst_43 {dimension_numbers = #tpu.dot_dimension_numbers<[1], [0], [0], [1], [0, 0, 1, 1], [], []>} : vector<256x96xbf16>, vector<96x48xbf16>, vector<256x48xf32> -> vector<256x48xf32>
    %41 = arith.addf %29, %40 : vector<256x48xf32>
    %c2 = arith.constant 2 : index
    %c7_44 = arith.constant 7 : index
    %c0_45 = arith.constant 0 : index
    %42 = vector.load %arg7[%c2, %c7_44, %c0_45] : memref<18x32x32xf32, #tpu.memory_space<vmem>>, vector<16x16x32xf32>
    %43 = vector.shape_cast %42 : vector<16x16x32xf32> to vector<256x32xf32>
    %c2_46 = arith.constant 2 : index
    %c8_47 = arith.constant 8 : index
    %c0_48 = arith.constant 0 : index
    %44 = vector.load %arg7[%c2_46, %c8_47, %c0_48] : memref<18x32x32xf32, #tpu.memory_space<vmem>>, vector<16x16x32xf32>
    %45 = vector.shape_cast %44 : vector<16x16x32xf32> to vector<256x32xf32>
    %c2_49 = arith.constant 2 : index
    %c9_50 = arith.constant 9 : index
    %c0_51 = arith.constant 0 : index
    %46 = vector.load %arg7[%c2_49, %c9_50, %c0_51] : memref<18x32x32xf32, #tpu.memory_space<vmem>>, vector<16x16x32xf32>
    %47 = vector.shape_cast %46 : vector<16x16x32xf32> to vector<256x32xf32>
    %48 = tpu.concatenate %43, %45, %47 in 1 : vector<256x32xf32>, vector<256x32xf32>, vector<256x32xf32> -> vector<256x96xf32>
    %49 = arith.truncf %48 : vector<256x96xf32> to vector<256x96xbf16>
    %c2_52 = arith.constant 2 : index
    %c0_53 = arith.constant 0 : index
    %c0_54 = arith.constant 0 : index
    %50 = vector.load %arg4[%c2_52, %c0_53, %c0_54] : memref<3x96x48xbf16, #tpu.memory_space<vmem>>, vector<1x96x48xbf16>
    %51 = vector.shape_cast %50 : vector<1x96x48xbf16> to vector<96x48xbf16>
    %cst_55 = arith.constant dense<0.000000e+00> : vector<256x48xf32>
    %52 = tpu.matmul %49, %51, %cst_55 {dimension_numbers = #tpu.dot_dimension_numbers<[1], [0], [0], [1], [0, 0, 1, 1], [], []>} : vector<256x96xbf16>, vector<96x48xbf16>, vector<256x48xf32> -> vector<256x48xf32>
    %53 = arith.addf %41, %52 : vector<256x48xf32>
    %c0_56 = arith.constant 0 : index
    %c0_57 = arith.constant 0 : index
    %c0_58 = arith.constant 0 : index
    %54 = vector.load %arg5[%c0_56, %c0_57, %c0_58] : memref<1x256x48xf32, #tpu.memory_space<vmem>>, vector<1x256x48xf32>
    %55 = vector.shape_cast %54 : vector<1x256x48xf32> to vector<256x48xf32>
    %56 = vector.shape_cast %53 : vector<256x48xf32> to vector<1x256x48xf32>
    tpu.vector_store %arg5[%c0_56, %c0_57, %c0_58], %56 {strides = array<i32>} : memref<1x256x48xf32, #tpu.memory_space<vmem>>, vector<1x256x48xf32>,
    %cst_59 = arith.constant dense<0.000000e+00> : vector<48xf32>
    %57 = vector.multi_reduction <add>, %53, %cst_59 [0] : vector<256x48xf32> to vector<48xf32>
    %58 = vector.shape_cast %57 : vector<48xf32> to vector<1x48xf32>
    %59 = arith.mulf %53, %53 : vector<256x48xf32>
    %cst_60 = arith.constant dense<0.000000e+00> : vector<48xf32>
    %60 = vector.multi_reduction <add>, %59, %cst_60 [0] : vector<256x48xf32> to vector<48xf32>
    %61 = vector.shape_cast %60 : vector<48xf32> to vector<1x48xf32>
    %62 = tpu.concatenate %58, %61 in 0 : vector<1x48xf32>, vector<1x48xf32> -> vector<2x48xf32>
    %c0_61 = arith.constant 0 : index
    %c0_62 = arith.constant 0 : index
    %c0_63 = arith.constant 0 : index
    %63 = vector.load %arg6[%c0_61, %c0_62, %c0_63] : memref<1x2x48xf32, #tpu.memory_space<vmem>>, vector<1x2x48xf32>
    %64 = vector.shape_cast %63 : vector<1x2x48xf32> to vector<2x48xf32>
    %65 = vector.shape_cast %62 : vector<2x48xf32> to vector<1x2x48xf32>
    tpu.vector_store %arg6[%c0_61, %c0_62, %c0_63], %65 {strides = array<i32>} : memref<1x2x48xf32, #tpu.memory_space<vmem>>, vector<1x2x48xf32>,
    return
  }
  func.func @transform_0(%arg0: i32) -> (i32, i32, i32, i32) {
    %c0_i32 = arith.constant 0 : i32
    %c0_i32_0 = arith.constant 0 : i32
    %c0_i32_1 = arith.constant 0 : i32
    %c0_i32_2 = arith.constant 0 : i32
    return %arg0, %c0_i32, %c0_i32_0, %c0_i32_1 : i32, i32, i32, i32
  }
  func.func @transform_1(%arg0: i32) -> (i32, i32) {
    %c0_i32 = arith.constant 0 : i32
    %c0_i32_0 = arith.constant 0 : i32
    %c0_i32_1 = arith.constant 0 : i32
    return %c0_i32, %c0_i32_0 : i32, i32
  }
  func.func @transform_2(%arg0: i32) -> (i32, i32) {
    %c0_i32 = arith.constant 0 : i32
    %c0_i32_0 = arith.constant 0 : i32
    %c0_i32_1 = arith.constant 0 : i32
    return %c0_i32, %c0_i32_0 : i32, i32
  }
  func.func @transform_3(%arg0: i32) -> (i32, i32, i32) {
    %c0_i32 = arith.constant 0 : i32
    %c0_i32_0 = arith.constant 0 : i32
    %c0_i32_1 = arith.constant 0 : i32
    %c0_i32_2 = arith.constant 0 : i32
    return %c0_i32, %c0_i32_0, %c0_i32_1 : i32, i32, i32
  }
  func.func @transform_4(%arg0: i32) -> (i32, i32, i32) {
    %c0_i32 = arith.constant 0 : i32
    %c0_i32_0 = arith.constant 0 : i32
    %c0_i32_1 = arith.constant 0 : i32
    return %arg0, %c0_i32, %c0_i32_0 : i32, i32, i32
  }
  func.func @transform_5(%arg0: i32) -> (i32, i32, i32) {
    %c0_i32 = arith.constant 0 : i32
    %c0_i32_0 = arith.constant 0 : i32
    %c0_i32_1 = arith.constant 0 : i32
    return %arg0, %c0_i32, %c0_i32_0 : i32, i32, i32
  }
}

module attributes {stable_mosaic.version = 11 : i64} {
  func.func @kernel(%arg0: i32, %arg1: memref<1x16x16x48xf32, #tpu.memory_space<vmem>>, %arg2: memref<1x48xf32, #tpu.memory_space<vmem>>, %arg3: memref<1x48xf32, #tpu.memory_space<vmem>>, %arg4: memref<3x144x64xbf16, #tpu.memory_space<vmem>>, %arg5: memref<1x256x64xf32, #tpu.memory_space<vmem>>, %arg6: memref<18x32x48xf32, #tpu.memory_space<vmem>>) attributes {dimension_semantics = [#tpu.dimension_semantics<parallel>], iteration_bounds = array<i64: 2>, scalar_prefetch = 0 : i64, scratch_operands = 1 : i64, tpu.core_type = #tpu.core_type<tc>, window_params = [{transform_indices = @transform_0, window_bounds = array<i64: 1, 16, 16, 48>}, {pipeline_mode = #tpu.pipeline_mode<synchronous>, transform_indices = @transform_1, window_bounds = array<i64: 1, 48>}, {pipeline_mode = #tpu.pipeline_mode<synchronous>, transform_indices = @transform_2, window_bounds = array<i64: 1, 48>}, {pipeline_mode = #tpu.pipeline_mode<synchronous>, transform_indices = @transform_3, window_bounds = array<i64: 3, 144, 64>}, {transform_indices = @transform_4, window_bounds = array<i64: 1, 256, 64>}]} {
    %cst = arith.constant 0.000000e+00 : f32
    %0 = vector.broadcast %cst : f32 to vector<1x32x48xf32>
    %c0 = arith.constant 0 : index
    %c0_0 = arith.constant 0 : index
    %c0_1 = arith.constant 0 : index
    %1 = vector.load %arg6[%c0, %c0_0, %c0_1] : memref<18x32x48xf32, #tpu.memory_space<vmem>>, vector<1x32x48xf32>
    tpu.vector_store %arg6[%c0, %c0_0, %c0_1], %0 {strides = array<i32>} : memref<18x32x48xf32, #tpu.memory_space<vmem>>, vector<1x32x48xf32>,
    %c17 = arith.constant 17 : index
    %c0_2 = arith.constant 0 : index
    %c0_3 = arith.constant 0 : index
    %2 = vector.load %arg6[%c17, %c0_2, %c0_3] : memref<18x32x48xf32, #tpu.memory_space<vmem>>, vector<1x32x48xf32>
    tpu.vector_store %arg6[%c17, %c0_2, %c0_3], %0 {strides = array<i32>} : memref<18x32x48xf32, #tpu.memory_space<vmem>>, vector<1x32x48xf32>,
    %cst_4 = arith.constant 0.000000e+00 : f32
    %3 = vector.broadcast %cst_4 : f32 to vector<18x1x48xf32>
    %c0_5 = arith.constant 0 : index
    %c7 = arith.constant 7 : index
    %c0_6 = arith.constant 0 : index
    %4 = vector.load %arg6[%c0_5, %c7, %c0_6] : memref<18x32x48xf32, #tpu.memory_space<vmem>>, vector<18x1x48xf32>
    tpu.vector_store %arg6[%c0_5, %c7, %c0_6], %3 {strides = array<i32>} : memref<18x32x48xf32, #tpu.memory_space<vmem>>, vector<18x1x48xf32>,
    %c0_7 = arith.constant 0 : index
    %c24 = arith.constant 24 : index
    %c0_8 = arith.constant 0 : index
    %5 = vector.load %arg6[%c0_7, %c24, %c0_8] : memref<18x32x48xf32, #tpu.memory_space<vmem>>, vector<18x1x48xf32>
    tpu.vector_store %arg6[%c0_7, %c24, %c0_8], %3 {strides = array<i32>} : memref<18x32x48xf32, #tpu.memory_space<vmem>>, vector<18x1x48xf32>,
    %c0_9 = arith.constant 0 : index
    %c0_10 = arith.constant 0 : index
    %c0_11 = arith.constant 0 : index
    %c0_12 = arith.constant 0 : index
    %6 = vector.load %arg1[%c0_9, %c0_10, %c0_11, %c0_12] : memref<1x16x16x48xf32, #tpu.memory_space<vmem>>, vector<1x16x16x48xf32>
    %7 = vector.shape_cast %6 : vector<1x16x16x48xf32> to vector<16x16x48xf32>
    %c0_13 = arith.constant 0 : index
    %c0_14 = arith.constant 0 : index
    %8 = vector.load %arg2[%c0_13, %c0_14] : memref<1x48xf32, #tpu.memory_space<vmem>>, vector<1x48xf32>
    %9 = vector.shape_cast %8 : vector<1x48xf32> to vector<1x1x48xf32>
    %c0_15 = arith.constant 0 : index
    %c0_16 = arith.constant 0 : index
    %10 = vector.load %arg3[%c0_15, %c0_16] : memref<1x48xf32, #tpu.memory_space<vmem>>, vector<1x48xf32>
    %11 = vector.shape_cast %10 : vector<1x48xf32> to vector<1x1x48xf32>
    %12 = vector.broadcast %9 : vector<1x1x48xf32> to vector<16x16x48xf32>
    %13 = arith.mulf %7, %12 : vector<16x16x48xf32>
    %14 = vector.broadcast %11 : vector<1x1x48xf32> to vector<16x16x48xf32>
    %15 = arith.addf %13, %14 : vector<16x16x48xf32>
    %cst_17 = arith.constant 0.000000e+00 : f32
    %16 = vector.broadcast %cst_17 : f32 to vector<16x16x48xf32>
    %17 = arith.maximumf %15, %16 : vector<16x16x48xf32>
    %c1 = arith.constant 1 : index
    %c8 = arith.constant 8 : index
    %c0_18 = arith.constant 0 : index
    %18 = vector.load %arg6[%c1, %c8, %c0_18] : memref<18x32x48xf32, #tpu.memory_space<vmem>>, vector<16x16x48xf32>
    tpu.vector_store %arg6[%c1, %c8, %c0_18], %17 {strides = array<i32>} : memref<18x32x48xf32, #tpu.memory_space<vmem>>, vector<16x16x48xf32>,
    %c0_19 = arith.constant 0 : index
    %c7_20 = arith.constant 7 : index
    %c0_21 = arith.constant 0 : index
    %19 = vector.load %arg6[%c0_19, %c7_20, %c0_21] : memref<18x32x48xf32, #tpu.memory_space<vmem>>, vector<16x16x48xf32>
    %20 = vector.shape_cast %19 : vector<16x16x48xf32> to vector<256x48xf32>
    %c0_22 = arith.constant 0 : index
    %c8_23 = arith.constant 8 : index
    %c0_24 = arith.constant 0 : index
    %21 = vector.load %arg6[%c0_22, %c8_23, %c0_24] : memref<18x32x48xf32, #tpu.memory_space<vmem>>, vector<16x16x48xf32>
    %22 = vector.shape_cast %21 : vector<16x16x48xf32> to vector<256x48xf32>
    %c0_25 = arith.constant 0 : index
    %c9 = arith.constant 9 : index
    %c0_26 = arith.constant 0 : index
    %23 = vector.load %arg6[%c0_25, %c9, %c0_26] : memref<18x32x48xf32, #tpu.memory_space<vmem>>, vector<16x16x48xf32>
    %24 = vector.shape_cast %23 : vector<16x16x48xf32> to vector<256x48xf32>
    %25 = tpu.concatenate %20, %22, %24 in 1 : vector<256x48xf32>, vector<256x48xf32>, vector<256x48xf32> -> vector<256x144xf32>
    %26 = arith.truncf %25 : vector<256x144xf32> to vector<256x144xbf16>
    %c0_27 = arith.constant 0 : index
    %c0_28 = arith.constant 0 : index
    %c0_29 = arith.constant 0 : index
    %27 = vector.load %arg4[%c0_27, %c0_28, %c0_29] : memref<3x144x64xbf16, #tpu.memory_space<vmem>>, vector<1x144x64xbf16>
    %28 = vector.shape_cast %27 : vector<1x144x64xbf16> to vector<144x64xbf16>
    %cst_30 = arith.constant dense<0.000000e+00> : vector<256x64xf32>
    %29 = tpu.matmul %26, %28, %cst_30 {dimension_numbers = #tpu.dot_dimension_numbers<[1], [0], [0], [1], [0, 0, 1, 1], [], []>} : vector<256x144xbf16>, vector<144x64xbf16>, vector<256x64xf32> -> vector<256x64xf32>
    %c1_31 = arith.constant 1 : index
    %c7_32 = arith.constant 7 : index
    %c0_33 = arith.constant 0 : index
    %30 = vector.load %arg6[%c1_31, %c7_32, %c0_33] : memref<18x32x48xf32, #tpu.memory_space<vmem>>, vector<16x16x48xf32>
    %31 = vector.shape_cast %30 : vector<16x16x48xf32> to vector<256x48xf32>
    %c1_34 = arith.constant 1 : index
    %c8_35 = arith.constant 8 : index
    %c0_36 = arith.constant 0 : index
    %32 = vector.load %arg6[%c1_34, %c8_35, %c0_36] : memref<18x32x48xf32, #tpu.memory_space<vmem>>, vector<16x16x48xf32>
    %33 = vector.shape_cast %32 : vector<16x16x48xf32> to vector<256x48xf32>
    %c1_37 = arith.constant 1 : index
    %c9_38 = arith.constant 9 : index
    %c0_39 = arith.constant 0 : index
    %34 = vector.load %arg6[%c1_37, %c9_38, %c0_39] : memref<18x32x48xf32, #tpu.memory_space<vmem>>, vector<16x16x48xf32>
    %35 = vector.shape_cast %34 : vector<16x16x48xf32> to vector<256x48xf32>
    %36 = tpu.concatenate %31, %33, %35 in 1 : vector<256x48xf32>, vector<256x48xf32>, vector<256x48xf32> -> vector<256x144xf32>
    %37 = arith.truncf %36 : vector<256x144xf32> to vector<256x144xbf16>
    %c1_40 = arith.constant 1 : index
    %c0_41 = arith.constant 0 : index
    %c0_42 = arith.constant 0 : index
    %38 = vector.load %arg4[%c1_40, %c0_41, %c0_42] : memref<3x144x64xbf16, #tpu.memory_space<vmem>>, vector<1x144x64xbf16>
    %39 = vector.shape_cast %38 : vector<1x144x64xbf16> to vector<144x64xbf16>
    %cst_43 = arith.constant dense<0.000000e+00> : vector<256x64xf32>
    %40 = tpu.matmul %37, %39, %cst_43 {dimension_numbers = #tpu.dot_dimension_numbers<[1], [0], [0], [1], [0, 0, 1, 1], [], []>} : vector<256x144xbf16>, vector<144x64xbf16>, vector<256x64xf32> -> vector<256x64xf32>
    %41 = arith.addf %29, %40 : vector<256x64xf32>
    %c2 = arith.constant 2 : index
    %c7_44 = arith.constant 7 : index
    %c0_45 = arith.constant 0 : index
    %42 = vector.load %arg6[%c2, %c7_44, %c0_45] : memref<18x32x48xf32, #tpu.memory_space<vmem>>, vector<16x16x48xf32>
    %43 = vector.shape_cast %42 : vector<16x16x48xf32> to vector<256x48xf32>
    %c2_46 = arith.constant 2 : index
    %c8_47 = arith.constant 8 : index
    %c0_48 = arith.constant 0 : index
    %44 = vector.load %arg6[%c2_46, %c8_47, %c0_48] : memref<18x32x48xf32, #tpu.memory_space<vmem>>, vector<16x16x48xf32>
    %45 = vector.shape_cast %44 : vector<16x16x48xf32> to vector<256x48xf32>
    %c2_49 = arith.constant 2 : index
    %c9_50 = arith.constant 9 : index
    %c0_51 = arith.constant 0 : index
    %46 = vector.load %arg6[%c2_49, %c9_50, %c0_51] : memref<18x32x48xf32, #tpu.memory_space<vmem>>, vector<16x16x48xf32>
    %47 = vector.shape_cast %46 : vector<16x16x48xf32> to vector<256x48xf32>
    %48 = tpu.concatenate %43, %45, %47 in 1 : vector<256x48xf32>, vector<256x48xf32>, vector<256x48xf32> -> vector<256x144xf32>
    %49 = arith.truncf %48 : vector<256x144xf32> to vector<256x144xbf16>
    %c2_52 = arith.constant 2 : index
    %c0_53 = arith.constant 0 : index
    %c0_54 = arith.constant 0 : index
    %50 = vector.load %arg4[%c2_52, %c0_53, %c0_54] : memref<3x144x64xbf16, #tpu.memory_space<vmem>>, vector<1x144x64xbf16>
    %51 = vector.shape_cast %50 : vector<1x144x64xbf16> to vector<144x64xbf16>
    %cst_55 = arith.constant dense<0.000000e+00> : vector<256x64xf32>
    %52 = tpu.matmul %49, %51, %cst_55 {dimension_numbers = #tpu.dot_dimension_numbers<[1], [0], [0], [1], [0, 0, 1, 1], [], []>} : vector<256x144xbf16>, vector<144x64xbf16>, vector<256x64xf32> -> vector<256x64xf32>
    %53 = arith.addf %41, %52 : vector<256x64xf32>
    %c0_56 = arith.constant 0 : index
    %c0_57 = arith.constant 0 : index
    %c0_58 = arith.constant 0 : index
    %54 = vector.load %arg5[%c0_56, %c0_57, %c0_58] : memref<1x256x64xf32, #tpu.memory_space<vmem>>, vector<1x256x64xf32>
    %55 = vector.shape_cast %54 : vector<1x256x64xf32> to vector<256x64xf32>
    %56 = vector.shape_cast %53 : vector<256x64xf32> to vector<1x256x64xf32>
    tpu.vector_store %arg5[%c0_56, %c0_57, %c0_58], %56 {strides = array<i32>} : memref<1x256x64xf32, #tpu.memory_space<vmem>>, vector<1x256x64xf32>,
    return
  }
  func.func @transform_0(%arg0: i32) -> (i32, i32, i32, i32) {
    %c0_i32 = arith.constant 0 : i32
    %c0_i32_0 = arith.constant 0 : i32
    %c0_i32_1 = arith.constant 0 : i32
    %c0_i32_2 = arith.constant 0 : i32
    return %arg0, %c0_i32, %c0_i32_0, %c0_i32_1 : i32, i32, i32, i32
  }
  func.func @transform_1(%arg0: i32) -> (i32, i32) {
    %c0_i32 = arith.constant 0 : i32
    %c0_i32_0 = arith.constant 0 : i32
    %c0_i32_1 = arith.constant 0 : i32
    return %c0_i32, %c0_i32_0 : i32, i32
  }
  func.func @transform_2(%arg0: i32) -> (i32, i32) {
    %c0_i32 = arith.constant 0 : i32
    %c0_i32_0 = arith.constant 0 : i32
    %c0_i32_1 = arith.constant 0 : i32
    return %c0_i32, %c0_i32_0 : i32, i32
  }
  func.func @transform_3(%arg0: i32) -> (i32, i32, i32) {
    %c0_i32 = arith.constant 0 : i32
    %c0_i32_0 = arith.constant 0 : i32
    %c0_i32_1 = arith.constant 0 : i32
    %c0_i32_2 = arith.constant 0 : i32
    return %c0_i32, %c0_i32_0, %c0_i32_1 : i32, i32, i32
  }
  func.func @transform_4(%arg0: i32) -> (i32, i32, i32) {
    %c0_i32 = arith.constant 0 : i32
    %c0_i32_0 = arith.constant 0 : i32
    %c0_i32_1 = arith.constant 0 : i32
    return %arg0, %c0_i32, %c0_i32_0 : i32, i32, i32
  }
}

</mosaic_0001>

<llo_original>
// kernel: _inception_a_forward.4
$region0: #{_inception_a_forward.4}
  #allocation0 [shape = 'u32[]', space=smem, size = 0x4, offset = 0x4, fixed_abs, tag = 'smem constant byte address 0x4 - core index']
  #allocation1 [shape = 'u32[144,128]{1,0:T(1,128)}', space=vmem, size = 0x12000, scoped, tag = 'internal scratch']
  %s0 = inlined_call_operand.vmem [shape: f32[512,4], index: 0, kind: input, shape index: {}]
  %s1 = inlined_call_operand.vmem [shape: f32[3,4], index: 1, kind: input, shape index: {}]
  %s2 = inlined_call_operand.vmem [shape: f32[3,4], index: 2, kind: input, shape index: {}]
  %s3 = inlined_call_operand.vmem [shape: bf16[3,4,32], index: 3, kind: input, shape index: {}]
  %s4 = inlined_call_operand.vmem [shape: f32[512,96], index: 4, kind: output, shape index: {0}]
  %s5 = inlined_call_operand.vmem [shape: f32[2,2,96], index: 5, kind: output, shape index: {1}]
  %6 = xla_tuple %s4, %s5
  %s7 = sld [smem:[#allocation0]]
  $region57: #{_inception_a_forward.4} parent=0
    _
  %s9 = ssub.s32 1, %s7
  %s10 = scalar_select 0, %s9, %s7
  loop: start=0, step=1, limit=4
  $region2: #{_inception_a_forward.4} parent=0 // loop_pre_header
    _
  $region3: #{_inception_a_forward.4} parent=0 // loop_header
    %s12 = sphi 0, %s16
    %p13 = scmp.ge.s32.totalorder %s12, 4
    %s22 = sphi 0, %s24
    %s25 = sphi 0, %s22
    %s26 = sphi 0, %s25
    %s42 = sphi 0, %s26
    %s46 = sphi 0, %s46
    %s48 = sphi 0, %s46
    %s49 = sphi 0, %s48
    %s63 = sphi 0, %s49
    %s67 = sphi 0, %s67
    %s69 = sphi 0, %s67
    %s70 = sphi 0, %s69
    %s84 = sphi 0, %s70
    %s88 = sphi 0, %s88
    %s90 = sphi 0, %s88
    %s91 = sphi 0, %s90
    %s105 = sphi 0, %s91
    %s111 = sphi 0, %s113
    %s114 = sphi 0, %s111
    %s115 = sphi 0, %s114
    %s131 = sphi 0, %s115
    %s137 = sphi 0, %s139
    %s140 = sphi 0, %s137
    %s141 = sphi 0, %s140
    %s157 = sphi 0, %s141
  $region4: #{_inception_a_forward.4} parent=0 // loop_header_branch
    %15 = sbr.rel (%p13) target = $region8
  $region5: #{_inception_a_forward.4} parent=0 // loop_body
    %s17 = ssub.s32 %s12, 1
    %s18 = ssub.s32 %s12, 2
    %s19 = sadd.s32 %s12, 1
    %s20 = ssub.s32 %s12, %s19
    %p21 = scmp.eq.s32.totalorder %s20, 0
    %s23 = sadd.s32 %s22, 1
    %s24 = scalar_select %p21, %s22, %s23
    %p27 = pneg %p21
    %p28 = scmp.eq.s32.totalorder %s12, 1
    %p29 = por %p27, %p28
    %p30 = scmp.ne.s32.totalorder %s22, %s25
    %p31 = scmp.eq.s32.totalorder %s12, 0
    %p32 = por %p30, %p31
    %p33 = scmp.ne.s32.totalorder %s22, %s25
    %p34 = scmp.eq.s32.totalorder %s17, 1
    %p35 = por %p33, %p34
    %p36 = scmp.ne.s32.totalorder %s25, %s26
    %p37 = scmp.eq.s32.totalorder %s17, 0
    %p38 = por %p36, %p37
    %p39 = scmp.ne.s32.totalorder %s25, %s26
    %p40 = scmp.eq.s32.totalorder %s18, 1
    %p41 = por %p39, %p40
    %p43 = scmp.ne.s32.totalorder %s26, %s42
    %p44 = scmp.eq.s32.totalorder %s18, 0
    %p45 = por %p43, %p44
    %s47 = sadd.s32 %s46, 1
    %p50 = scmp.eq.s32.totalorder %s12, 1
    %p51 = scmp.ne.s32.totalorder %s46, %s48
    %p52 = scmp.eq.s32.totalorder %s12, 0
    %p53 = por %p51, %p52
    %p54 = scmp.ne.s32.totalorder %s46, %s48
    %p55 = scmp.eq.s32.totalorder %s17, 1
    %p56 = por %p54, %p55
    %p57 = scmp.ne.s32.totalorder %s48, %s49
    %p58 = scmp.eq.s32.totalorder %s17, 0
    %p59 = por %p57, %p58
    %p60 = scmp.ne.s32.totalorder %s48, %s49
    %p61 = scmp.eq.s32.totalorder %s18, 1
    %p62 = por %p60, %p61
    %p64 = scmp.ne.s32.totalorder %s49, %s63
    %p65 = scmp.eq.s32.totalorder %s18, 0
    %p66 = por %p64, %p65
    %s68 = sadd.s32 %s67, 1
    %p71 = scmp.eq.s32.totalorder %s12, 1
    %p72 = scmp.ne.s32.totalorder %s67, %s69
    %p73 = scmp.eq.s32.totalorder %s12, 0
    %p74 = por %p72, %p73
    %p75 = scmp.ne.s32.totalorder %s67, %s69
    %p76 = scmp.eq.s32.totalorder %s17, 1
    %p77 = por %p75, %p76
    %p78 = scmp.ne.s32.totalorder %s69, %s70
    %p79 = scmp.eq.s32.totalorder %s17, 0
    %p80 = por %p78, %p79
    %p81 = scmp.ne.s32.totalorder %s69, %s70
    %p82 = scmp.eq.s32.totalorder %s18, 1
    %p83 = por %p81, %p82
    %p85 = scmp.ne.s32.totalorder %s70, %s84
    %p86 = scmp.eq.s32.totalorder %s18, 0
    %p87 = por %p85, %p86
    %s89 = sadd.s32 %s88, 1
    %p92 = scmp.eq.s32.totalorder %s12, 1
    %p93 = scmp.ne.s32.totalorder %s88, %s90
    %p94 = scmp.eq.s32.totalorder %s12, 0
    %p95 = por %p93, %p94
    %p96 = scmp.ne.s32.totalorder %s88, %s90
    %p97 = scmp.eq.s32.totalorder %s17, 1
    %p98 = por %p96, %p97
    %p99 = scmp.ne.s32.totalorder %s90, %s91
    %p100 = scmp.eq.s32.totalorder %s17, 0
    %p101 = por %p99, %p100
    %p102 = scmp.ne.s32.totalorder %s90, %s91
    %p103 = scmp.eq.s32.totalorder %s18, 1
    %p104 = por %p102, %p103
    %p106 = scmp.ne.s32.totalorder %s91, %s105
    %p107 = scmp.eq.s32.totalorder %s18, 0
    %p108 = por %p106, %p107
    %s109 = ssub.s32 %s12, %s19
    %p110 = scmp.eq.s32.totalorder %s109, 0
    %s112 = sadd.s32 %s111, 1
    %s113 = scalar_select %p110, %s111, %s112
    %p116 = pneg %p110
    %p117 = scmp.eq.s32.totalorder %s12, 1
    %p118 = por %p116, %p117
    %p119 = scmp.ne.s32.totalorder %s111, %s114
    %p120 = scmp.eq.s32.totalorder %s12, 0
    %p121 = por %p119, %p120
    %p122 = scmp.ne.s32.totalorder %s111, %s114
    %p123 = scmp.eq.s32.totalorder %s17, 1
    %p124 = por %p122, %p123
    %p125 = scmp.ne.s32.totalorder %s114, %s115
    %p126 = scmp.eq.s32.totalorder %s17, 0
    %p127 = por %p125, %p126
    %p128 = scmp.ne.s32.totalorder %s114, %s115
    %p129 = scmp.eq.s32.totalorder %s18, 1
    %p130 = por %p128, %p129
    %p132 = scmp.ne.s32.totalorder %s115, %s131
    %p133 = scmp.eq.s32.totalorder %s18, 0
    %p134 = por %p132, %p133
    %s135 = ssub.s32 %s12, %s19
    %p136 = scmp.eq.s32.totalorder %s135, 0
    %s138 = sadd.s32 %s137, 1
    %s139 = scalar_select %p136, %s137, %s138
    %p142 = pneg %p136
    %p143 = scmp.eq.s32.totalorder %s12, 1
    %p144 = por %p142, %p143
    %p145 = scmp.ne.s32.totalorder %s137, %s140
    %p146 = scmp.eq.s32.totalorder %s12, 0
    %p147 = por %p145, %p146
    %p148 = scmp.ne.s32.totalorder %s137, %s140
    %p149 = scmp.eq.s32.totalorder %s17, 1
    %p150 = por %p148, %p149
    %p151 = scmp.ne.s32.totalorder %s140, %s141
    %p152 = scmp.eq.s32.totalorder %s17, 0
    %p153 = por %p151, %p152
    %p154 = scmp.ne.s32.totalorder %s140, %s141
    %p155 = scmp.eq.s32.totalorder %s18, 1
    %p156 = por %p154, %p155
    %p158 = scmp.ne.s32.totalorder %s141, %s157
    %p159 = scmp.eq.s32.totalorder %s18, 0
    %p160 = por %p158, %p159
    %p161 = scmp.le.s32.totalorder 1, %s12
    %p162 = scmp.lt.s32.totalorder %s12, 3
    %p163 = pnand %p161, %p162
    %p164 = pneg %p163
    // Predicated region
    $region9: #{_inception_a_forward.4} parent=5 // pred_check
      _
    $region10: #{_inception_a_forward.4} parent=5 // pred_check_branch
      %166 = sbr.rel (%p163) target = $region12
    $region11: #{_inception_a_forward.4} parent=5 // pred_region
      %s167 = ssub.s32 %s12, 1
      // Predicated region
      $region13: #{_inception_a_forward.4} parent=11 // pred_check
        %p168 = pneg %p59
      $region14: #{_inception_a_forward.4} parent=11 // pred_check_branch
        %170 = sbr.rel (%p168) target = $region16
      $region15: #{_inception_a_forward.4} parent=11 // pred_region
        _
      $region16: #{_inception_a_forward.4} parent=11 // pred_fallthru
        _
      // Predicated region
      $region17: #{_inception_a_forward.4} parent=11 // pred_check
        %p171 = pneg %p80
      $region18: #{_inception_a_forward.4} parent=11 // pred_check_branch
        %173 = sbr.rel (%p171) target = $region20
      $region19: #{_inception_a_forward.4} parent=11 // pred_region
        _
      $region20: #{_inception_a_forward.4} parent=11 // pred_fallthru
        _
      // Predicated region
      $region21: #{_inception_a_forward.4} parent=11 // pred_check
        %p174 = pneg %p101
      $region22: #{_inception_a_forward.4} parent=11 // pred_check_branch
        %176 = sbr.rel (%p174) target = $region24
      $region23: #{_inception_a_forward.4} parent=11 // pred_region
        _
      $region24: #{_inception_a_forward.4} parent=11 // pred_fallthru
        _
    $region12: #{_inception_a_forward.4} parent=5 // pred_fallthru
      _
    %p177 = scmp.lt.s32.totalorder %s12, 2
    // Predicated region
    $region25: #{_inception_a_forward.4} parent=5 // pred_check
      %p178 = pneg %p177
    $region26: #{_inception_a_forward.4} parent=5 // pred_check_branch
      %180 = sbr.rel (%p178) target = $region28
    $region27: #{_inception_a_forward.4} parent=5 // pred_region
      // Predicated region
      $region29: #{_inception_a_forward.4} parent=27 // pred_check
        %p181 = pneg %p32
      $region30: #{_inception_a_forward.4} parent=27 // pred_check_branch
        %183 = sbr.rel (%p181) target = $region32
      $region31: #{_inception_a_forward.4} parent=27 // pred_region
        %s184 = smul.u32 32, %s12
        %p185 = scmp.lt.s32.totalorder %s184, 63
        %s186 = scalar_select %p185, %s184, 63
        %s187 = smul.addr %s186, 8
        %s188 = scalar_lea.vmem %s0, %s187
        %s189 = smul.u32 32, %s12
      $region32: #{_inception_a_forward.4} parent=27 // pred_fallthru
        _
    $region28: #{_inception_a_forward.4} parent=5 // pred_fallthru
      _
    %p190 = scmp.le.s32.totalorder 1, %s12
    %p191 = scmp.lt.s32.totalorder %s12, 3
    %p192 = pnand %p190, %p191
    %p193 = pneg %p192
    // Predicated region
    $region33: #{_inception_a_forward.4} parent=5 // pred_check
      _
    $region34: #{_inception_a_forward.4} parent=5 // pred_check_branch
      %195 = sbr.rel (%p192) target = $region36
    $region35: #{_inception_a_forward.4} parent=5 // pred_region
      %s196 = ssub.s32 %s12, 1
      %s197 = smul.u32 32, %s17
      %p198 = scmp.lt.s32.totalorder %s197, 63
      %s199 = scalar_select %p198, %s197, 63
      %s200 = smul.addr %s199, 8
      %s201 = scalar_lea.vmem %s0, %s200
      %p202 = pneg %p38
      %p203 = pneg %p35
      %p204 = pneg %p59
      %p205 = pneg %p56
      %p206 = pneg %p80
      %p207 = pneg %p77
      %p208 = pneg %p101
      %p209 = pneg %p98
      %p210 = pneg %p127
      %p211 = pneg %p124
      %s212 = smul.u32 32, %s17
      %p213 = scmp.lt.s32.totalorder %s212, 63
      %s214 = scalar_select %p213, %s212, 63
      %s215 = smul.addr %s214, 8
      %s216 = scalar_lea.vmem %s4, %s215
      %p217 = pneg %p153
      %p218 = pneg %p150
      %p219 = scmp.lt.s32.totalorder %s17, 1
      %s220 = scalar_select %p219, %s17, 1
      %s221 = smul.addr %s220, 2
      %s222 = scalar_lea.vmem %s5, %s221
      %s223 = smul.u32 32, %s17
      %p224 = scmp.lt.s32.totalorder %s223, 63
      %s225 = scalar_select %p224, %s223, 63
      %s226 = smul.addr %s225, 8
      %s227 = scalar_lea.vmem %s0, %s226
      %s228 = smul.u32 32, %s17
      %s229 = smul.u32 32, %s17
      %p230 = scmp.lt.s32.totalorder %s229, 63
      %s231 = scalar_select %p230, %s229, 63
      %s232 = smul.addr %s231, 8
      %s233 = scalar_lea.vmem %s4, %s232
      %s234 = smul.u32 32, %s17
      %p235 = scmp.lt.s32.totalorder %s17, 1
      %s236 = scalar_select %p235, %s17, 1
      %s237 = smul.addr %s236, 2
      %s238 = scalar_lea.vmem %s5, %s237
      %v240 = vld [vmem:[%s227] sm:$0xff]
      %v241 = vld [vmem:[%s227 + $0x8] sm:$0xff]
      %v242 = vld [vmem:[%s227 + $0x10] sm:$0xff]
      %v243 = vld [vmem:[%s227 + $0x18] sm:$0xff]
      %v244 = vld [vmem:[%s227 + $0x20] sm:$0xff]
      %v245 = vld [vmem:[%s227 + $0x28] sm:$0xff]
      %v246 = vld [vmem:[%s227 + $0x30] sm:$0xff]
      %v247 = vld [vmem:[%s227 + $0x38] sm:$0xff]
      %v248 = vld [vmem:[%s227 + $0x40] sm:$0xff]
      %v249 = vld [vmem:[%s227 + $0x48] sm:$0xff]
      %v250 = vld [vmem:[%s227 + $0x50] sm:$0xff]
      %v251 = vld [vmem:[%s227 + $0x58] sm:$0xff]
      %v252 = vld [vmem:[%s227 + $0x60] sm:$0xff]
      %v253 = vld [vmem:[%s227 + $0x68] sm:$0xff]
      %v254 = vld [vmem:[%s227 + $0x70] sm:$0xff]
      %v255 = vld [vmem:[%s227 + $0x78] sm:$0xff]
      %v256 = vld [vmem:[%s227 + $0x80] sm:$0xff]
      %v257 = vld [vmem:[%s227 + $0x88] sm:$0xff]
      %v258 = vld [vmem:[%s227 + $0x90] sm:$0xff]
      %v259 = vld [vmem:[%s227 + $0x98] sm:$0xff]
      %v260 = vld [vmem:[%s227 + $0xa0] sm:$0xff]
      %v261 = vld [vmem:[%s227 + $0xa8] sm:$0xff]
      %v262 = vld [vmem:[%s227 + $0xb0] sm:$0xff]
      %v263 = vld [vmem:[%s227 + $0xb8] sm:$0xff]
      %v264 = vld [vmem:[%s227 + $0xc0] sm:$0xff]
      %v265 = vld [vmem:[%s227 + $0xc8] sm:$0xff]
      %v266 = vld [vmem:[%s227 + $0xd0] sm:$0xff]
      %v267 = vld [vmem:[%s227 + $0xd8] sm:$0xff]
      %v268 = vld [vmem:[%s227 + $0xe0] sm:$0xff]
      %v269 = vld [vmem:[%s227 + $0xe8] sm:$0xff]
      %v270 = vld [vmem:[%s227 + $0xf0] sm:$0xff]
      %v271 = vld [vmem:[%s227 + $0xf8] sm:$0xff]
      %v272 = vld [vmem:[%s1] sm:$0x1]
      %v273 = vlaneseq
      %v274 = vshrl.u32 %v273, 7
      %v275 = vsub.s32 0, %v274
      %v276 = vrot.slane %v272, %v275
      %v277 = vmul.f32 %v240, %v276
      %v278 = vmul.f32 %v241, %v276
      %v279 = vmul.f32 %v242, %v276
      %v280 = vmul.f32 %v243, %v276
      %v281 = vmul.f32 %v244, %v276
      %v282 = vmul.f32 %v245, %v276
      %v283 = vmul.f32 %v246, %v276
      %v284 = vmul.f32 %v247, %v276
      %v285 = vmul.f32 %v248, %v276
      %v286 = vmul.f32 %v249, %v276
      %v287 = vmul.f32 %v250, %v276
      %v288 = vmul.f32 %v251, %v276
      %v289 = vmul.f32 %v252, %v276
      %v290 = vmul.f32 %v253, %v276
      %v291 = vmul.f32 %v254, %v276
      %v292 = vmul.f32 %v255, %v276
      %v293 = vmul.f32 %v256, %v276
      %v294 = vmul.f32 %v257, %v276
      %v295 = vmul.f32 %v258, %v276
      %v296 = vmul.f32 %v259, %v276
      %v297 = vmul.f32 %v260, %v276
      %v298 = vmul.f32 %v261, %v276
      %v299 = vmul.f32 %v262, %v276
      %v300 = vmul.f32 %v263, %v276
      %v301 = vmul.f32 %v264, %v276
      %v302 = vmul.f32 %v265, %v276
      %v303 = vmul.f32 %v266, %v276
      %v304 = vmul.f32 %v267, %v276
      %v305 = vmul.f32 %v268, %v276
      %v306 = vmul.f32 %v269, %v276
      %v307 = vmul.f32 %v270, %v276
      %v308 = vmul.f32 %v271, %v276
      %v309 = vld [vmem:[%s2] sm:$0x1]
      %v310 = vlaneseq
      %v311 = vshrl.u32 %v310, 7
      %v312 = vsub.s32 0, %v311
      %v313 = vrot.slane %v309, %v312
      %v314 = vadd.f32 %v277, %v313
      %v315 = vadd.f32 %v278, %v313
      %v316 = vadd.f32 %v279, %v313
      %v317 = vadd.f32 %v280, %v313
      %v318 = vadd.f32 %v281, %v313
      %v319 = vadd.f32 %v282, %v313
      %v320 = vadd.f32 %v283, %v313
      %v321 = vadd.f32 %v284, %v313
      %v322 = vadd.f32 %v285, %v313
      %v323 = vadd.f32 %v286, %v313
      %v324 = vadd.f32 %v287, %v313
      %v325 = vadd.f32 %v288, %v313
      %v326 = vadd.f32 %v289, %v313
      %v327 = vadd.f32 %v290, %v313
      %v328 = vadd.f32 %v291, %v313
      %v329 = vadd.f32 %v292, %v313
      %v330 = vadd.f32 %v293, %v313
      %v331 = vadd.f32 %v294, %v313
      %v332 = vadd.f32 %v295, %v313
      %v333 = vadd.f32 %v296, %v313
      %v334 = vadd.f32 %v297, %v313
      %v335 = vadd.f32 %v298, %v313
      %v336 = vadd.f32 %v299, %v313
      %v337 = vadd.f32 %v300, %v313
      %v338 = vadd.f32 %v301, %v313
      %v339 = vadd.f32 %v302, %v313
      %v340 = vadd.f32 %v303, %v313
      %v341 = vadd.f32 %v304, %v313
      %v342 = vadd.f32 %v305, %v313
      %v343 = vadd.f32 %v306, %v313
      %v344 = vadd.f32 %v307, %v313
      %v345 = vadd.f32 %v308, %v313
      %v346 = vmax.f32 %v314, 0.0
      %v347 = vmax.f32 %v315, 0.0
      %v348 = vmax.f32 %v316, 0.0
      %v349 = vmax.f32 %v317, 0.0
      %v350 = vmax.f32 %v318, 0.0
      %v351 = vmax.f32 %v319, 0.0
      %v352 = vmax.f32 %v320, 0.0
      %v353 = vmax.f32 %v321, 0.0
      %v354 = vmax.f32 %v322, 0.0
      %v355 = vmax.f32 %v323, 0.0
      %v356 = vmax.f32 %v324, 0.0
      %v357 = vmax.f32 %v325, 0.0
      %v358 = vmax.f32 %v326, 0.0
      %v359 = vmax.f32 %v327, 0.0
      %v360 = vmax.f32 %v328, 0.0
      %v361 = vmax.f32 %v329, 0.0
      %v362 = vmax.f32 %v330, 0.0
      %v363 = vmax.f32 %v331, 0.0
      %v364 = vmax.f32 %v332, 0.0
      %v365 = vmax.f32 %v333, 0.0
      %v366 = vmax.f32 %v334, 0.0
      %v367 = vmax.f32 %v335, 0.0
      %v368 = vmax.f32 %v336, 0.0
      %v369 = vmax.f32 %v337, 0.0
      %v370 = vmax.f32 %v338, 0.0
      %v371 = vmax.f32 %v339, 0.0
      %v372 = vmax.f32 %v340, 0.0
      %v373 = vmax.f32 %v341, 0.0
      %v374 = vmax.f32 %v342, 0.0
      %v375 = vmax.f32 %v343, 0.0
      %v376 = vmax.f32 %v344, 0.0
      %v377 = vmax.f32 %v345, 0.0
      %v378 = vpack.c.bf16 %v347, %v346
      %v379 = vpack.c.bf16 %v349, %v348
      %v380 = vpack.c.bf16 %v351, %v350
      %v381 = vpack.c.bf16 %v353, %v352
      %v382 = vpack.c.bf16 %v355, %v354
      %v383 = vpack.c.bf16 %v357, %v356
      %v384 = vpack.c.bf16 %v359, %v358
      %v385 = vpack.c.bf16 %v361, %v360
      %v386 = vpack.c.bf16 %v363, %v362
      %v387 = vpack.c.bf16 %v365, %v364
      %v388 = vpack.c.bf16 %v367, %v366
      %v389 = vpack.c.bf16 %v369, %v368
      %v390 = vpack.c.bf16 %v371, %v370
      %v391 = vpack.c.bf16 %v373, %v372
      %v392 = vpack.c.bf16 %v375, %v374
      %v393 = vpack.c.bf16 %v377, %v376
      %v394 = vld [vmem:[%s3] sm:$0x3]
      %vm395 = vcmask 31744
      %v397 = vsel %vm395, %v378, 0
      %v400 = vsel %vm395, %v379, 0
      %v403 = vsel %vm395, %v380, 0
      %v406 = vsel %vm395, %v381, 0
      %v409 = vsel %vm395, %v382, 0
      %v412 = vsel %vm395, %v383, 0
      %v415 = vsel %vm395, %v384, 0
      %v418 = vsel %vm395, %v385, 0
      %v421 = vsel %vm395, %v386, 0
      %v424 = vsel %vm395, %v387, 0
      %v427 = vsel %vm395, %v388, 0
      %v430 = vsel %vm395, %v389, 0
      %v433 = vsel %vm395, %v390, 0
      %v436 = vsel %vm395, %v391, 0
      %v439 = vsel %vm395, %v392, 0
      %v442 = vsel %vm395, %v393, 0
      %vm444 = vcmask 1041408
      %v446 = vsel %vm444, %v394, 0
      %448 = vmatprep.subr.bf16.mxu0 0
      %449 = vmatpush1.bf16.msra.mxu0 %v446
      %450 = vmatprep.subr.bf16.mxu0 0
      %451 = vmatpush1.bf16.msra.mxu0 0
      %452 = vmatprep.subr.bf16.mxu0 0
      %453 = vmatpush1.bf16.msra.mxu0 0
      %454 = vmatprep.subr.bf16.mxu0 0
      %455 = vmatpush1.bf16.msra.mxu0 0
      %456 = vmatprep.subr.bf16.mxu0 0
      %457 = vmatpush1.bf16.msra.mxu0 0
      %458 = vmatprep.subr.bf16.mxu0 0
      %459 = vmatpush1.bf16.msra.mxu0 0
      %460 = vmatprep.subr.bf16.mxu0 0
      %461 = vmatpush1.bf16.msra.mxu0 0
      %462 = vmatprep.subr.bf16.mxu0 0
      %463 = vmatpush1.bf16.msra.mxu0 0
      %464 = vmatprep.subr.bf16.mxu0 0
      %465 = vmatpush1.bf16.msra.mxu0 0
      %466 = vmatprep.subr.bf16.mxu0 0
      %467 = vmatpush1.bf16.msra.mxu0 0
      %468 = vmatprep.subr.bf16.mxu0 0
      %469 = vmatpush1.bf16.msra.mxu0 0
      %470 = vmatprep.subr.bf16.mxu0 0
      %471 = vmatpush1.bf16.msra.mxu0 0
      %472 = vmatprep.subr.bf16.mxu0 0
      %473 = vmatpush1.bf16.msra.mxu0 0
      %474 = vmatprep.subr.bf16.mxu0 0
      %475 = vmatpush1.bf16.msra.mxu0 0
      %476 = vmatprep.subr.bf16.mxu0 0
      %477 = vmatpush1.bf16.msra.mxu0 0
      %478 = vmatprep.subr.bf16.mxu0 0
      %479 = vmatpush1.bf16.msra.mxu0 0
      %480 = vmatprep.mubr.bf16.mxu0 0
      %481 = vmatmul.mubr.bf16.gmra.mrb[0].mxu0 %v397
      %v482 = vpop.f32.mrb[0].mxu0
      %v483 = vadd.f32 0.0, %v482
      %v484 = vpop.f32.mrb[0].mxu0
      %v485 = vpop.f32.mrb[0].mxu0
      %v486 = vadd.f32 0.0, %v485
      %v487 = vpop.f32.mrb[0].mxu0
      %488 = vmatprep.mubr.bf16.mxu0 0
      %489 = vmatmul.mubr.bf16.gmra.mrb[0].mxu0 %v400
      %v490 = vpop.f32.mrb[0].mxu0
      %v491 = vadd.f32 0.0, %v490
      %v492 = vpop.f32.mrb[0].mxu0
      %v493 = vpop.f32.mrb[0].mxu0
      %v494 = vadd.f32 0.0, %v493
      %v495 = vpop.f32.mrb[0].mxu0
      %496 = vmatprep.mubr.bf16.mxu0 0
      %497 = vmatmul.mubr.bf16.gmra.mrb[0].mxu0 %v403
      %v498 = vpop.f32.mrb[0].mxu0
      %v499 = vadd.f32 0.0, %v498
      %v500 = vpop.f32.mrb[0].mxu0
      %v501 = vpop.f32.mrb[0].mxu0
      %v502 = vadd.f32 0.0, %v501
      %v503 = vpop.f32.mrb[0].mxu0
      %504 = vmatprep.mubr.bf16.mxu0 0
      %505 = vmatmul.mubr.bf16.gmra.mrb[0].mxu0 %v406
      %v506 = vpop.f32.mrb[0].mxu0
      %v507 = vadd.f32 0.0, %v506
      %v508 = vpop.f32.mrb[0].mxu0
      %v509 = vpop.f32.mrb[0].mxu0
      %v510 = vadd.f32 0.0, %v509
      %v511 = vpop.f32.mrb[0].mxu0
      %512 = vmatprep.mubr.bf16.mxu0 0
      %513 = vmatmul.mubr.bf16.gmra.mrb[0].mxu0 %v409
      %v514 = vpop.f32.mrb[0].mxu0
      %v515 = vadd.f32 0.0, %v514
      %v516 = vpop.f32.mrb[0].mxu0
      %v517 = vpop.f32.mrb[0].mxu0
      %v518 = vadd.f32 0.0, %v517
      %v519 = vpop.f32.mrb[0].mxu0
      %520 = vmatprep.mubr.bf16.mxu0 0
      %521 = vmatmul.mubr.bf16.gmra.mrb[0].mxu0 %v412
      %v522 = vpop.f32.mrb[0].mxu0
      %v523 = vadd.f32 0.0, %v522
      %v524 = vpop.f32.mrb[0].mxu0
      %v525 = vpop.f32.mrb[0].mxu0
      %v526 = vadd.f32 0.0, %v525
      %v527 = vpop.f32.mrb[0].mxu0
      %528 = vmatprep.mubr.bf16.mxu0 0
      %529 = vmatmul.mubr.bf16.gmra.mrb[0].mxu0 %v415
      %v530 = vpop.f32.mrb[0].mxu0
      %v531 = vadd.f32 0.0, %v530
      %v532 = vpop.f32.mrb[0].mxu0
      %v533 = vpop.f32.mrb[0].mxu0
      %v534 = vadd.f32 0.0, %v533
      %v535 = vpop.f32.mrb[0].mxu0
      %536 = vmatprep.mubr.bf16.mxu0 0
      %537 = vmatmul.mubr.bf16.gmra.mrb[0].mxu0 %v418
      %v538 = vpop.f32.mrb[0].mxu0
      %v539 = vadd.f32 0.0, %v538
      %v540 = vpop.f32.mrb[0].mxu0
      %v541 = vpop.f32.mrb[0].mxu0
      %v542 = vadd.f32 0.0, %v541
      %v543 = vpop.f32.mrb[0].mxu0
      %544 = vmatprep.mubr.bf16.mxu0 0
      %545 = vmatmul.mubr.bf16.gmra.mrb[0].mxu0 %v421
      %v546 = vpop.f32.mrb[0].mxu0
      %v547 = vadd.f32 0.0, %v546
      %v548 = vpop.f32.mrb[0].mxu0
      %v549 = vpop.f32.mrb[0].mxu0
      %v550 = vadd.f32 0.0, %v549
      %v551 = vpop.f32.mrb[0].mxu0
      %552 = vmatprep.mubr.bf16.mxu0 0
      %553 = vmatmul.mubr.bf16.gmra.mrb[0].mxu0 %v424
      %v554 = vpop.f32.mrb[0].mxu0
      %v555 = vadd.f32 0.0, %v554
      %v556 = vpop.f32.mrb[0].mxu0
      %v557 = vpop.f32.mrb[0].mxu0
      %v558 = vadd.f32 0.0, %v557
      %v559 = vpop.f32.mrb[0].mxu0
      %560 = vmatprep.mubr.bf16.mxu0 0
      %561 = vmatmul.mubr.bf16.gmra.mrb[0].mxu0 %v427
      %v562 = vpop.f32.mrb[0].mxu0
      %v563 = vadd.f32 0.0, %v562
      %v564 = vpop.f32.mrb[0].mxu0
      %v565 = vpop.f32.mrb[0].mxu0
      %v566 = vadd.f32 0.0, %v565
      %v567 = vpop.f32.mrb[0].mxu0
      %568 = vmatprep.mubr.bf16.mxu0 0
      %569 = vmatmul.mubr.bf16.gmra.mrb[0].mxu0 %v430
      %v570 = vpop.f32.mrb[0].mxu0
      %v571 = vadd.f32 0.0, %v570
      %v572 = vpop.f32.mrb[0].mxu0
      %v573 = vpop.f32.mrb[0].mxu0
      %v574 = vadd.f32 0.0, %v573
      %v575 = vpop.f32.mrb[0].mxu0
      %576 = vmatprep.mubr.bf16.mxu0 0
      %577 = vmatmul.mubr.bf16.gmra.mrb[0].mxu0 %v433
      %v578 = vpop.f32.mrb[0].mxu0
      %v579 = vadd.f32 0.0, %v578
      %v580 = vpop.f32.mrb[0].mxu0
      %v581 = vpop.f32.mrb[0].mxu0
      %v582 = vadd.f32 0.0, %v581
      %v583 = vpop.f32.mrb[0].mxu0
      %584 = vmatprep.mubr.bf16.mxu0 0
      %585 = vmatmul.mubr.bf16.gmra.mrb[0].mxu0 %v436
      %v586 = vpop.f32.mrb[0].mxu0
      %v587 = vadd.f32 0.0, %v586
      %v588 = vpop.f32.mrb[0].mxu0
      %v589 = vpop.f32.mrb[0].mxu0
      %v590 = vadd.f32 0.0, %v589
      %v591 = vpop.f32.mrb[0].mxu0
      %592 = vmatprep.mubr.bf16.mxu0 0
      %593 = vmatmul.mubr.bf16.gmra.mrb[0].mxu0 %v439
      %v594 = vpop.f32.mrb[0].mxu0
      %v595 = vadd.f32 0.0, %v594
      %v596 = vpop.f32.mrb[0].mxu0
      %v597 = vpop.f32.mrb[0].mxu0
      %v598 = vadd.f32 0.0, %v597
      %v599 = vpop.f32.mrb[0].mxu0
      %600 = vmatprep.mubr.bf16.mxu0 0
      %601 = vmatmul.mubr.bf16.gmra.mrb[0].mxu0 %v442
      %v602 = vpop.f32.mrb[0].mxu0
      %v603 = vadd.f32 0.0, %v602
      %v604 = vpop.f32.mrb[0].mxu0
      %v605 = vpop.f32.mrb[0].mxu0
      %v606 = vadd.f32 0.0, %v605
      %v607 = vpop.f32.mrb[0].mxu0
      %608 = vdwg.mxu0
      %v609 = vld [vmem:[%s1 + $0x1] sm:$0x1]
      %v610 = vlaneseq
      %v611 = vshrl.u32 %v610, 7
      %v612 = vsub.s32 0, %v611
      %v613 = vrot.slane %v609, %v612
      %v614 = vmul.f32 %v240, %v613
      %v615 = vmul.f32 %v241, %v613
      %v616 = vmul.f32 %v242, %v613
      %v617 = vmul.f32 %v243, %v613
      %v618 = vmul.f32 %v244, %v613
      %v619 = vmul.f32 %v245, %v613
      %v620 = vmul.f32 %v246, %v613
      %v621 = vmul.f32 %v247, %v613
      %v622 = vmul.f32 %v248, %v613
      %v623 = vmul.f32 %v249, %v613
      %v624 = vmul.f32 %v250, %v613
      %v625 = vmul.f32 %v251, %v613
      %v626 = vmul.f32 %v252, %v613
      %v627 = vmul.f32 %v253, %v613
      %v628 = vmul.f32 %v254, %v613
      %v629 = vmul.f32 %v255, %v613
      %v630 = vmul.f32 %v256, %v613
      %v631 = vmul.f32 %v257, %v613
      %v632 = vmul.f32 %v258, %v613
      %v633 = vmul.f32 %v259, %v613
      %v634 = vmul.f32 %v260, %v613
      %v635 = vmul.f32 %v261, %v613
      %v636 = vmul.f32 %v262, %v613
      %v637 = vmul.f32 %v263, %v613
      %v638 = vmul.f32 %v264, %v613
      %v639 = vmul.f32 %v265, %v613
      %v640 = vmul.f32 %v266, %v613
      %v641 = vmul.f32 %v267, %v613
      %v642 = vmul.f32 %v268, %v613
      %v643 = vmul.f32 %v269, %v613
      %v644 = vmul.f32 %v270, %v613
      %v645 = vmul.f32 %v271, %v613
      %v646 = vld [vmem:[%s2 + $0x1] sm:$0x1]
      %v647 = vlaneseq
      %v648 = vshrl.u32 %v647, 7
      %v649 = vsub.s32 0, %v648
      %v650 = vrot.slane %v646, %v649
      %v651 = vadd.f32 %v614, %v650
      %v652 = vadd.f32 %v615, %v650
      %v653 = vadd.f32 %v616, %v650
      %v654 = vadd.f32 %v617, %v650
      %v655 = vadd.f32 %v618, %v650
      %v656 = vadd.f32 %v619, %v650
      %v657 = vadd.f32 %v620, %v650
      %v658 = vadd.f32 %v621, %v650
      %v659 = vadd.f32 %v622, %v650
      %v660 = vadd.f32 %v623, %v650
      %v661 = vadd.f32 %v624, %v650
      %v662 = vadd.f32 %v625, %v650
      %v663 = vadd.f32 %v626, %v650
      %v664 = vadd.f32 %v627, %v650
      %v665 = vadd.f32 %v628, %v650
      %v666 = vadd.f32 %v629, %v650
      %v667 = vadd.f32 %v630, %v650
      %v668 = vadd.f32 %v631, %v650
      %v669 = vadd.f32 %v632, %v650
      %v670 = vadd.f32 %v633, %v650
      %v671 = vadd.f32 %v634, %v650
      %v672 = vadd.f32 %v635, %v650
      %v673 = vadd.f32 %v636, %v650
      %v674 = vadd.f32 %v637, %v650
      %v675 = vadd.f32 %v638, %v650
      %v676 = vadd.f32 %v639, %v650
      %v677 = vadd.f32 %v640, %v650
      %v678 = vadd.f32 %v641, %v650
      %v679 = vadd.f32 %v642, %v650
      %v680 = vadd.f32 %v643, %v650
      %v681 = vadd.f32 %v644, %v650
      %v682 = vadd.f32 %v645, %v650
      %v683 = vmax.f32 %v651, 0.0
      %v684 = vmax.f32 %v652, 0.0
      %v685 = vmax.f32 %v653, 0.0
      %v686 = vmax.f32 %v654, 0.0
      %v687 = vmax.f32 %v655, 0.0
      %v688 = vmax.f32 %v656, 0.0
      %v689 = vmax.f32 %v657, 0.0
      %v690 = vmax.f32 %v658, 0.0
      %v691 = vmax.f32 %v659, 0.0
      %v692 = vmax.f32 %v660, 0.0
      %v693 = vmax.f32 %v661, 0.0
      %v694 = vmax.f32 %v662, 0.0
      %v695 = vmax.f32 %v663, 0.0
      %v696 = vmax.f32 %v664, 0.0
      %v697 = vmax.f32 %v665, 0.0
      %v698 = vmax.f32 %v666, 0.0
      %v699 = vmax.f32 %v667, 0.0
      %v700 = vmax.f32 %v668, 0.0
      %v701 = vmax.f32 %v669, 0.0
      %v702 = vmax.f32 %v670, 0.0
      %v703 = vmax.f32 %v671, 0.0
      %v704 = vmax.f32 %v672, 0.0
      %v705 = vmax.f32 %v673, 0.0
      %v706 = vmax.f32 %v674, 0.0
      %v707 = vmax.f32 %v675, 0.0
      %v708 = vmax.f32 %v676, 0.0
      %v709 = vmax.f32 %v677, 0.0
      %v710 = vmax.f32 %v678, 0.0
      %v711 = vmax.f32 %v679, 0.0
      %v712 = vmax.f32 %v680, 0.0
      %v713 = vmax.f32 %v681, 0.0
      %v714 = vmax.f32 %v682, 0.0
      %v715 = vpack.c.bf16 %v684, %v683
      %v716 = vpack.c.bf16 %v686, %v685
      %v717 = vpack.c.bf16 %v688, %v687
      %v718 = vpack.c.bf16 %v690, %v689
      %v719 = vpack.c.bf16 %v692, %v691
      %v720 = vpack.c.bf16 %v694, %v693
      %v721 = vpack.c.bf16 %v696, %v695
      %v722 = vpack.c.bf16 %v698, %v697
      %v723 = vpack.c.bf16 %v700, %v699
      %v724 = vpack.c.bf16 %v702, %v701
      %v725 = vpack.c.bf16 %v704, %v703
      %v726 = vpack.c.bf16 %v706, %v705
      %v727 = vpack.c.bf16 %v708, %v707
      %v728 = vpack.c.bf16 %v710, %v709
      %v729 = vpack.c.bf16 %v712, %v711
      %v730 = vpack.c.bf16 %v714, %v713
      %s731 = scalar_lea.vmem %s3, 2
      %v732 = vld [vmem:[%s731] sm:$0x3]
      %v734 = vsel %vm395, %v715, 0
      %v737 = vsel %vm395, %v716, 0
      %v740 = vsel %vm395, %v717, 0
      %v743 = vsel %vm395, %v718, 0
      %v746 = vsel %vm395, %v719, 0
      %v749 = vsel %vm395, %v720, 0
      %v752 = vsel %vm395, %v721, 0
      %v755 = vsel %vm395, %v722, 0
      %v758 = vsel %vm395, %v723, 0
      %v761 = vsel %vm395, %v724, 0
      %v764 = vsel %vm395, %v725, 0
      %v767 = vsel %vm395, %v726, 0
      %v770 = vsel %vm395, %v727, 0
      %v773 = vsel %vm395, %v728, 0
      %v776 = vsel %vm395, %v729, 0
      %v779 = vsel %vm395, %v730, 0
      %v782 = vsel %vm444, %v732, 0
      %784 = vmatprep.subr.bf16.mxu0 0
      %785 = vmatpush1.bf16.msra.mxu0 %v782
      %786 = vmatprep.subr.bf16.mxu0 0
      %787 = vmatpush1.bf16.msra.mxu0 0
      %788 = vmatprep.subr.bf16.mxu0 0
      %789 = vmatpush1.bf16.msra.mxu0 0
      %790 = vmatprep.subr.bf16.mxu0 0
      %791 = vmatpush1.bf16.msra.mxu0 0
      %792 = vmatprep.subr.bf16.mxu0 0
      %793 = vmatpush1.bf16.msra.mxu0 0
      %794 = vmatprep.subr.bf16.mxu0 0
      %795 = vmatpush1.bf16.msra.mxu0 0
      %796 = vmatprep.subr.bf16.mxu0 0
      %797 = vmatpush1.bf16.msra.mxu0 0
      %798 = vmatprep.subr.bf16.mxu0 0
      %799 = vmatpush1.bf16.msra.mxu0 0
      %800 = vmatprep.subr.bf16.mxu0 0
      %801 = vmatpush1.bf16.msra.mxu0 0
      %802 = vmatprep.subr.bf16.mxu0 0
      %803 = vmatpush1.bf16.msra.mxu0 0
      %804 = vmatprep.subr.bf16.mxu0 0
      %805 = vmatpush1.bf16.msra.mxu0 0
      %806 = vmatprep.subr.bf16.mxu0 0
      %807 = vmatpush1.bf16.msra.mxu0 0
      %808 = vmatprep.subr.bf16.mxu0 0
      %809 = vmatpush1.bf16.msra.mxu0 0
      %810 = vmatprep.subr.bf16.mxu0 0
      %811 = vmatpush1.bf16.msra.mxu0 0
      %812 = vmatprep.subr.bf16.mxu0 0
      %813 = vmatpush1.bf16.msra.mxu0 0
      %814 = vmatprep.subr.bf16.mxu0 0
      %815 = vmatpush1.bf16.msra.mxu0 0
      %816 = vmatprep.mubr.bf16.mxu0 0
      %817 = vmatmul.mubr.bf16.gmra.mrb[0].mxu0 %v734
      %v818 = vpop.f32.mrb[0].mxu0
      %v819 = vadd.f32 0.0, %v818
      %v820 = vpop.f32.mrb[0].mxu0
      %v821 = vpop.f32.mrb[0].mxu0
      %v822 = vadd.f32 0.0, %v821
      %v823 = vpop.f32.mrb[0].mxu0
      %824 = vmatprep.mubr.bf16.mxu0 0
      %825 = vmatmul.mubr.bf16.gmra.mrb[0].mxu0 %v737
      %v826 = vpop.f32.mrb[0].mxu0
      %v827 = vadd.f32 0.0, %v826
      %v828 = vpop.f32.mrb[0].mxu0
      %v829 = vpop.f32.mrb[0].mxu0
      %v830 = vadd.f32 0.0, %v829
      %v831 = vpop.f32.mrb[0].mxu0
      %832 = vmatprep.mubr.bf16.mxu0 0
      %833 = vmatmul.mubr.bf16.gmra.mrb[0].mxu0 %v740
      %v834 = vpop.f32.mrb[0].mxu0
      %v835 = vadd.f32 0.0, %v834
      %v836 = vpop.f32.mrb[0].mxu0
      %v837 = vpop.f32.mrb[0].mxu0
      %v838 = vadd.f32 0.0, %v837
      %v839 = vpop.f32.mrb[0].mxu0
      %840 = vmatprep.mubr.bf16.mxu0 0
      %841 = vmatmul.mubr.bf16.gmra.mrb[0].mxu0 %v743
      %v842 = vpop.f32.mrb[0].mxu0
      %v843 = vadd.f32 0.0, %v842
      %v844 = vpop.f32.mrb[0].mxu0
      %v845 = vpop.f32.mrb[0].mxu0
      %v846 = vadd.f32 0.0, %v845
      %v847 = vpop.f32.mrb[0].mxu0
      %848 = vmatprep.mubr.bf16.mxu0 0
      %849 = vmatmul.mubr.bf16.gmra.mrb[0].mxu0 %v746
      %v850 = vpop.f32.mrb[0].mxu0
      %v851 = vadd.f32 0.0, %v850
      %v852 = vpop.f32.mrb[0].mxu0
      %v853 = vpop.f32.mrb[0].mxu0
      %v854 = vadd.f32 0.0, %v853
      %v855 = vpop.f32.mrb[0].mxu0
      %856 = vmatprep.mubr.bf16.mxu0 0
      %857 = vmatmul.mubr.bf16.gmra.mrb[0].mxu0 %v749
      %v858 = vpop.f32.mrb[0].mxu0
      %v859 = vadd.f32 0.0, %v858
      %v860 = vpop.f32.mrb[0].mxu0
      %v861 = vpop.f32.mrb[0].mxu0
      %v862 = vadd.f32 0.0, %v861
      %v863 = vpop.f32.mrb[0].mxu0
      %864 = vmatprep.mubr.bf16.mxu0 0
      %865 = vmatmul.mubr.bf16.gmra.mrb[0].mxu0 %v752
      %v866 = vpop.f32.mrb[0].mxu0
      %v867 = vadd.f32 0.0, %v866
      %v868 = vpop.f32.mrb[0].mxu0
      %v869 = vpop.f32.mrb[0].mxu0
      %v870 = vadd.f32 0.0, %v869
      %v871 = vpop.f32.mrb[0].mxu0
      %872 = vmatprep.mubr.bf16.mxu0 0
      %873 = vmatmul.mubr.bf16.gmra.mrb[0].mxu0 %v755
      %v874 = vpop.f32.mrb[0].mxu0
      %v875 = vadd.f32 0.0, %v874
      %v876 = vpop.f32.mrb[0].mxu0
      %v877 = vpop.f32.mrb[0].mxu0
      %v878 = vadd.f32 0.0, %v877
      %v879 = vpop.f32.mrb[0].mxu0
      %880 = vmatprep.mubr.bf16.mxu0 0
      %881 = vmatmul.mubr.bf16.gmra.mrb[0].mxu0 %v758
      %v882 = vpop.f32.mrb[0].mxu0
      %v883 = vadd.f32 0.0, %v882
      %v884 = vpop.f32.mrb[0].mxu0
      %v885 = vpop.f32.mrb[0].mxu0
      %v886 = vadd.f32 0.0, %v885
      %v887 = vpop.f32.mrb[0].mxu0
      %888 = vmatprep.mubr.bf16.mxu0 0
      %889 = vmatmul.mubr.bf16.gmra.mrb[0].mxu0 %v761
      %v890 = vpop.f32.mrb[0].mxu0
      %v891 = vadd.f32 0.0, %v890
      %v892 = vpop.f32.mrb[0].mxu0
      %v893 = vpop.f32.mrb[0].mxu0
      %v894 = vadd.f32 0.0, %v893
      %v895 = vpop.f32.mrb[0].mxu0
      %896 = vmatprep.mubr.bf16.mxu0 0
      %897 = vmatmul.mubr.bf16.gmra.mrb[0].mxu0 %v764
      %v898 = vpop.f32.mrb[0].mxu0
      %v899 = vadd.f32 0.0, %v898
      %v900 = vpop.f32.mrb[0].mxu0
      %v901 = vpop.f32.mrb[0].mxu0
      %v902 = vadd.f32 0.0, %v901
      %v903 = vpop.f32.mrb[0].mxu0
      %904 = vmatprep.mubr.bf16.mxu0 0
      %905 = vmatmul.mubr.bf16.gmra.mrb[0].mxu0 %v767
      %v906 = vpop.f32.mrb[0].mxu0
      %v907 = vadd.f32 0.0, %v906
      %v908 = vpop.f32.mrb[0].mxu0
      %v909 = vpop.f32.mrb[0].mxu0
      %v910 = vadd.f32 0.0, %v909
      %v911 = vpop.f32.mrb[0].mxu0
      %912 = vmatprep.mubr.bf16.mxu0 0
      %913 = vmatmul.mubr.bf16.gmra.mrb[0].mxu0 %v770
      %v914 = vpop.f32.mrb[0].mxu0
      %v915 = vadd.f32 0.0, %v914
      %v916 = vpop.f32.mrb[0].mxu0
      %v917 = vpop.f32.mrb[0].mxu0
      %v918 = vadd.f32 0.0, %v917
      %v919 = vpop.f32.mrb[0].mxu0
      %920 = vmatprep.mubr.bf16.mxu0 0
      %921 = vmatmul.mubr.bf16.gmra.mrb[0].mxu0 %v773
      %v922 = vpop.f32.mrb[0].mxu0
      %v923 = vadd.f32 0.0, %v922
      %v924 = vpop.f32.mrb[0].mxu0
      %v925 = vpop.f32.mrb[0].mxu0
      %v926 = vadd.f32 0.0, %v925
      %v927 = vpop.f32.mrb[0].mxu0
      %928 = vmatprep.mubr.bf16.mxu0 0
      %929 = vmatmul.mubr.bf16.gmra.mrb[0].mxu0 %v776
      %v930 = vpop.f32.mrb[0].mxu0
      %v931 = vadd.f32 0.0, %v930
      %v932 = vpop.f32.mrb[0].mxu0
      %v933 = vpop.f32.mrb[0].mxu0
      %v934 = vadd.f32 0.0, %v933
      %v935 = vpop.f32.mrb[0].mxu0
      %936 = vmatprep.mubr.bf16.mxu0 0
      %937 = vmatmul.mubr.bf16.gmra.mrb[0].mxu0 %v779
      %v938 = vpop.f32.mrb[0].mxu0
      %v939 = vadd.f32 0.0, %v938
      %v940 = vpop.f32.mrb[0].mxu0
      %v941 = vpop.f32.mrb[0].mxu0
      %v942 = vadd.f32 0.0, %v941
      %v943 = vpop.f32.mrb[0].mxu0
      %944 = vdwg.mxu0
      %v945 = vld [vmem:[%s1 + $0x2] sm:$0x1]
      %v946 = vlaneseq
      %v947 = vshrl.u32 %v946, 7
      %v948 = vsub.s32 0, %v947
      %v949 = vrot.slane %v945, %v948
      %v950 = vmul.f32 %v240, %v949
      %v951 = vmul.f32 %v241, %v949
      %v952 = vmul.f32 %v242, %v949
      %v953 = vmul.f32 %v243, %v949
      %v954 = vmul.f32 %v244, %v949
      %v955 = vmul.f32 %v245, %v949
      %v956 = vmul.f32 %v246, %v949
      %v957 = vmul.f32 %v247, %v949
      %v958 = vmul.f32 %v248, %v949
      %v959 = vmul.f32 %v249, %v949
      %v960 = vmul.f32 %v250, %v949
      %v961 = vmul.f32 %v251, %v949
      %v962 = vmul.f32 %v252, %v949
      %v963 = vmul.f32 %v253, %v949
      %v964 = vmul.f32 %v254, %v949
      %v965 = vmul.f32 %v255, %v949
      %v966 = vmul.f32 %v256, %v949
      %v967 = vmul.f32 %v257, %v949
      %v968 = vmul.f32 %v258, %v949
      %v969 = vmul.f32 %v259, %v949
      %v970 = vmul.f32 %v260, %v949
      %v971 = vmul.f32 %v261, %v949
      %v972 = vmul.f32 %v262, %v949
      %v973 = vmul.f32 %v263, %v949
      %v974 = vmul.f32 %v264, %v949
      %v975 = vmul.f32 %v265, %v949
      %v976 = vmul.f32 %v266, %v949
      %v977 = vmul.f32 %v267, %v949
      %v978 = vmul.f32 %v268, %v949
      %v979 = vmul.f32 %v269, %v949
      %v980 = vmul.f32 %v270, %v949
      %v981 = vmul.f32 %v271, %v949
      %v982 = vld [vmem:[%s2 + $0x2] sm:$0x1]
      %v983 = vlaneseq
      %v984 = vshrl.u32 %v983, 7
      %v985 = vsub.s32 0, %v984
      %v986 = vrot.slane %v982, %v985
      %v987 = vadd.f32 %v950, %v986
      %v988 = vadd.f32 %v951, %v986
      %v989 = vadd.f32 %v952, %v986
      %v990 = vadd.f32 %v953, %v986
      %v991 = vadd.f32 %v954, %v986
      %v992 = vadd.f32 %v955, %v986
      %v993 = vadd.f32 %v956, %v986
      %v994 = vadd.f32 %v957, %v986
      %v995 = vadd.f32 %v958, %v986
      %v996 = vadd.f32 %v959, %v986
      %v997 = vadd.f32 %v960, %v986
      %v998 = vadd.f32 %v961, %v986
      %v999 = vadd.f32 %v962, %v986
      %v1000 = vadd.f32 %v963, %v986
      %v1001 = vadd.f32 %v964, %v986
      %v1002 = vadd.f32 %v965, %v986
      %v1003 = vadd.f32 %v966, %v986
      %v1004 = vadd.f32 %v967, %v986
      %v1005 = vadd.f32 %v968, %v986
      %v1006 = vadd.f32 %v969, %v986
      %v1007 = vadd.f32 %v970, %v986
      %v1008 = vadd.f32 %v971, %v986
      %v1009 = vadd.f32 %v972, %v986
      %v1010 = vadd.f32 %v973, %v986
      %v1011 = vadd.f32 %v974, %v986
      %v1012 = vadd.f32 %v975, %v986
      %v1013 = vadd.f32 %v976, %v986
      %v1014 = vadd.f32 %v977, %v986
      %v1015 = vadd.f32 %v978, %v986
      %v1016 = vadd.f32 %v979, %v986
      %v1017 = vadd.f32 %v980, %v986
      %v1018 = vadd.f32 %v981, %v986
      %v1019 = vmax.f32 %v987, 0.0
      %v1020 = vmax.f32 %v988, 0.0
      %v1021 = vmax.f32 %v989, 0.0
      %v1022 = vmax.f32 %v990, 0.0
      %v1023 = vmax.f32 %v991, 0.0
      %v1024 = vmax.f32 %v992, 0.0
      %v1025 = vmax.f32 %v993, 0.0
      %v1026 = vmax.f32 %v994, 0.0
      %v1027 = vmax.f32 %v995, 0.0
      %v1028 = vmax.f32 %v996, 0.0
      %v1029 = vmax.f32 %v997, 0.0
      %v1030 = vmax.f32 %v998, 0.0
      %v1031 = vmax.f32 %v999, 0.0
      %v1032 = vmax.f32 %v1000, 0.0
      %v1033 = vmax.f32 %v1001, 0.0
      %v1034 = vmax.f32 %v1002, 0.0
      %v1035 = vmax.f32 %v1003, 0.0
      %v1036 = vmax.f32 %v1004, 0.0
      %v1037 = vmax.f32 %v1005, 0.0
      %v1038 = vmax.f32 %v1006, 0.0
      %v1039 = vmax.f32 %v1007, 0.0
      %v1040 = vmax.f32 %v1008, 0.0
      %v1041 = vmax.f32 %v1009, 0.0
      %v1042 = vmax.f32 %v1010, 0.0
      %v1043 = vmax.f32 %v1011, 0.0
      %v1044 = vmax.f32 %v1012, 0.0
      %v1045 = vmax.f32 %v1013, 0.0
      %v1046 = vmax.f32 %v1014, 0.0
      %v1047 = vmax.f32 %v1015, 0.0
      %v1048 = vmax.f32 %v1016, 0.0
      %v1049 = vmax.f32 %v1017, 0.0
      %v1050 = vmax.f32 %v1018, 0.0
      %v1051 = vpack.c.bf16 %v1020, %v1019
      %v1052 = vpack.c.bf16 %v1022, %v1021
      %v1053 = vpack.c.bf16 %v1024, %v1023
      %v1054 = vpack.c.bf16 %v1026, %v1025
      %v1055 = vpack.c.bf16 %v1028, %v1027
      %v1056 = vpack.c.bf16 %v1030, %v1029
      %v1057 = vpack.c.bf16 %v1032, %v1031
      %v1058 = vpack.c.bf16 %v1034, %v1033
      %v1059 = vpack.c.bf16 %v1036, %v1035
      %v1060 = vpack.c.bf16 %v1038, %v1037
      %v1061 = vpack.c.bf16 %v1040, %v1039
      %v1062 = vpack.c.bf16 %v1042, %v1041
      %v1063 = vpack.c.bf16 %v1044, %v1043
      %v1064 = vpack.c.bf16 %v1046, %v1045
      %v1065 = vpack.c.bf16 %v1048, %v1047
      %v1066 = vpack.c.bf16 %v1050, %v1049
      %s1067 = scalar_lea.vmem %s3, 4
      %v1068 = vld [vmem:[%s1067] sm:$0x3]
      %v1070 = vsel %vm395, %v1051, 0
      %v1073 = vsel %vm395, %v1052, 0
      %v1076 = vsel %vm395, %v1053, 0
      %v1079 = vsel %vm395, %v1054, 0
      %v1082 = vsel %vm395, %v1055, 0
      %v1085 = vsel %vm395, %v1056, 0
      %v1088 = vsel %vm395, %v1057, 0
      %v1091 = vsel %vm395, %v1058, 0
      %v1094 = vsel %vm395, %v1059, 0
      %v1097 = vsel %vm395, %v1060, 0
      %v1100 = vsel %vm395, %v1061, 0
      %v1103 = vsel %vm395, %v1062, 0
      %v1106 = vsel %vm395, %v1063, 0
      %v1109 = vsel %vm395, %v1064, 0
      %v1112 = vsel %vm395, %v1065, 0
      %v1115 = vsel %vm395, %v1066, 0
      %v1118 = vsel %vm444, %v1068, 0
      %1120 = vmatprep.subr.bf16.mxu0 0
      %1121 = vmatpush1.bf16.msra.mxu0 %v1118
      %1122 = vmatprep.subr.bf16.mxu0 0
      %1123 = vmatpush1.bf16.msra.mxu0 0
      %1124 = vmatprep.subr.bf16.mxu0 0
      %1125 = vmatpush1.bf16.msra.mxu0 0
      %1126 = vmatprep.subr.bf16.mxu0 0
      %1127 = vmatpush1.bf16.msra.mxu0 0
      %1128 = vmatprep.subr.bf16.mxu0 0
      %1129 = vmatpush1.bf16.msra.mxu0 0
      %1130 = vmatprep.subr.bf16.mxu0 0
      %1131 = vmatpush1.bf16.msra.mxu0 0
      %1132 = vmatprep.subr.bf16.mxu0 0
      %1133 = vmatpush1.bf16.msra.mxu0 0
      %1134 = vmatprep.subr.bf16.mxu0 0
      %1135 = vmatpush1.bf16.msra.mxu0 0
      %1136 = vmatprep.subr.bf16.mxu0 0
      %1137 = vmatpush1.bf16.msra.mxu0 0
      %1138 = vmatprep.subr.bf16.mxu0 0
      %1139 = vmatpush1.bf16.msra.mxu0 0
      %1140 = vmatprep.subr.bf16.mxu0 0
      %1141 = vmatpush1.bf16.msra.mxu0 0
      %1142 = vmatprep.subr.bf16.mxu0 0
      %1143 = vmatpush1.bf16.msra.mxu0 0
      %1144 = vmatprep.subr.bf16.mxu0 0
      %1145 = vmatpush1.bf16.msra.mxu0 0
      %1146 = vmatprep.subr.bf16.mxu0 0
      %1147 = vmatpush1.bf16.msra.mxu0 0
      %1148 = vmatprep.subr.bf16.mxu0 0
      %1149 = vmatpush1.bf16.msra.mxu0 0
      %1150 = vmatprep.subr.bf16.mxu0 0
      %1151 = vmatpush1.bf16.msra.mxu0 0
      %1152 = vmatprep.mubr.bf16.mxu0 0
      %1153 = vmatmul.mubr.bf16.gmra.mrb[0].mxu0 %v1070
      %v1154 = vpop.f32.mrb[0].mxu0
      %v1155 = vadd.f32 0.0, %v1154
      %v1156 = vpop.f32.mrb[0].mxu0
      %v1157 = vpop.f32.mrb[0].mxu0
      %v1158 = vadd.f32 0.0, %v1157
      %v1159 = vpop.f32.mrb[0].mxu0
      %1160 = vmatprep.mubr.bf16.mxu0 0
      %1161 = vmatmul.mubr.bf16.gmra.mrb[0].mxu0 %v1073
      %v1162 = vpop.f32.mrb[0].mxu0
      %v1163 = vadd.f32 0.0, %v1162
      %v1164 = vpop.f32.mrb[0].mxu0
      %v1165 = vpop.f32.mrb[0].mxu0
      %v1166 = vadd.f32 0.0, %v1165
      %v1167 = vpop.f32.mrb[0].mxu0
      %1168 = vmatprep.mubr.bf16.mxu0 0
      %1169 = vmatmul.mubr.bf16.gmra.mrb[0].mxu0 %v1076
      %v1170 = vpop.f32.mrb[0].mxu0
      %v1171 = vadd.f32 0.0, %v1170
      %v1172 = vpop.f32.mrb[0].mxu0
      %v1173 = vpop.f32.mrb[0].mxu0
      %v1174 = vadd.f32 0.0, %v1173
      %v1175 = vpop.f32.mrb[0].mxu0
      %1176 = vmatprep.mubr.bf16.mxu0 0
      %1177 = vmatmul.mubr.bf16.gmra.mrb[0].mxu0 %v1079
      %v1178 = vpop.f32.mrb[0].mxu0
      %v1179 = vadd.f32 0.0, %v1178
      %v1180 = vpop.f32.mrb[0].mxu0
      %v1181 = vpop.f32.mrb[0].mxu0
      %v1182 = vadd.f32 0.0, %v1181
      %v1183 = vpop.f32.mrb[0].mxu0
      %1184 = vmatprep.mubr.bf16.mxu0 0
      %1185 = vmatmul.mubr.bf16.gmra.mrb[0].mxu0 %v1082
      %v1186 = vpop.f32.mrb[0].mxu0
      %v1187 = vadd.f32 0.0, %v1186
      %v1188 = vpop.f32.mrb[0].mxu0
      %v1189 = vpop.f32.mrb[0].mxu0
      %v1190 = vadd.f32 0.0, %v1189
      %v1191 = vpop.f32.mrb[0].mxu0
      %1192 = vmatprep.mubr.bf16.mxu0 0
      %1193 = vmatmul.mubr.bf16.gmra.mrb[0].mxu0 %v1085
      %v1194 = vpop.f32.mrb[0].mxu0
      %v1195 = vadd.f32 0.0, %v1194
      %v1196 = vpop.f32.mrb[0].mxu0
      %v1197 = vpop.f32.mrb[0].mxu0
      %v1198 = vadd.f32 0.0, %v1197
      %v1199 = vpop.f32.mrb[0].mxu0
      %1200 = vmatprep.mubr.bf16.mxu0 0
      %1201 = vmatmul.mubr.bf16.gmra.mrb[0].mxu0 %v1088
      %v1202 = vpop.f32.mrb[0].mxu0
      %v1203 = vadd.f32 0.0, %v1202
      %v1204 = vpop.f32.mrb[0].mxu0
      %v1205 = vpop.f32.mrb[0].mxu0
      %v1206 = vadd.f32 0.0, %v1205
      %v1207 = vpop.f32.mrb[0].mxu0
      %1208 = vmatprep.mubr.bf16.mxu0 0
      %1209 = vmatmul.mubr.bf16.gmra.mrb[0].mxu0 %v1091
      %v1210 = vpop.f32.mrb[0].mxu0
      %v1211 = vadd.f32 0.0, %v1210
      %v1212 = vpop.f32.mrb[0].mxu0
      %v1213 = vpop.f32.mrb[0].mxu0
      %v1214 = vadd.f32 0.0, %v1213
      %v1215 = vpop.f32.mrb[0].mxu0
      %1216 = vmatprep.mubr.bf16.mxu0 0
      %1217 = vmatmul.mubr.bf16.gmra.mrb[0].mxu0 %v1094
      %v1218 = vpop.f32.mrb[0].mxu0
      %v1219 = vadd.f32 0.0, %v1218
      %v1220 = vpop.f32.mrb[0].mxu0
      %v1221 = vpop.f32.mrb[0].mxu0
      %v1222 = vadd.f32 0.0, %v1221
      %v1223 = vpop.f32.mrb[0].mxu0
      %1224 = vmatprep.mubr.bf16.mxu0 0
      %1225 = vmatmul.mubr.bf16.gmra.mrb[0].mxu0 %v1097
      %v1226 = vpop.f32.mrb[0].mxu0
      %v1227 = vadd.f32 0.0, %v1226
      %v1228 = vpop.f32.mrb[0].mxu0
      %v1229 = vpop.f32.mrb[0].mxu0
      %v1230 = vadd.f32 0.0, %v1229
      %v1231 = vpop.f32.mrb[0].mxu0
      %1232 = vmatprep.mubr.bf16.mxu0 0
      %1233 = vmatmul.mubr.bf16.gmra.mrb[0].mxu0 %v1100
      %v1234 = vpop.f32.mrb[0].mxu0
      %v1235 = vadd.f32 0.0, %v1234
      %v1236 = vpop.f32.mrb[0].mxu0
      %v1237 = vpop.f32.mrb[0].mxu0
      %v1238 = vadd.f32 0.0, %v1237
      %v1239 = vpop.f32.mrb[0].mxu0
      %1240 = vmatprep.mubr.bf16.mxu0 0
      %1241 = vmatmul.mubr.bf16.gmra.mrb[0].mxu0 %v1103
      %v1242 = vpop.f32.mrb[0].mxu0
      %v1243 = vadd.f32 0.0, %v1242
      %v1244 = vpop.f32.mrb[0].mxu0
      %v1245 = vpop.f32.mrb[0].mxu0
      %v1246 = vadd.f32 0.0, %v1245
      %v1247 = vpop.f32.mrb[0].mxu0
      %1248 = vmatprep.mubr.bf16.mxu0 0
      %1249 = vmatmul.mubr.bf16.gmra.mrb[0].mxu0 %v1106
      %v1250 = vpop.f32.mrb[0].mxu0
      %v1251 = vadd.f32 0.0, %v1250
      %v1252 = vpop.f32.mrb[0].mxu0
      %v1253 = vpop.f32.mrb[0].mxu0
      %v1254 = vadd.f32 0.0, %v1253
      %v1255 = vpop.f32.mrb[0].mxu0
      %1256 = vmatprep.mubr.bf16.mxu0 0
      %1257 = vmatmul.mubr.bf16.gmra.mrb[0].mxu0 %v1109
      %v1258 = vpop.f32.mrb[0].mxu0
      %v1259 = vadd.f32 0.0, %v1258
      %v1260 = vpop.f32.mrb[0].mxu0
      %v1261 = vpop.f32.mrb[0].mxu0
      %v1262 = vadd.f32 0.0, %v1261
      %v1263 = vpop.f32.mrb[0].mxu0
      %1264 = vmatprep.mubr.bf16.mxu0 0
      %1265 = vmatmul.mubr.bf16.gmra.mrb[0].mxu0 %v1112
      %v1266 = vpop.f32.mrb[0].mxu0
      %v1267 = vadd.f32 0.0, %v1266
      %v1268 = vpop.f32.mrb[0].mxu0
      %v1269 = vpop.f32.mrb[0].mxu0
      %v1270 = vadd.f32 0.0, %v1269
      %v1271 = vpop.f32.mrb[0].mxu0
      %1272 = vmatprep.mubr.bf16.mxu0 0
      %1273 = vmatmul.mubr.bf16.gmra.mrb[0].mxu0 %v1115
      %v1274 = vpop.f32.mrb[0].mxu0
      %v1275 = vadd.f32 0.0, %v1274
      %v1276 = vpop.f32.mrb[0].mxu0
      %v1277 = vpop.f32.mrb[0].mxu0
      %v1278 = vadd.f32 0.0, %v1277
      %v1279 = vpop.f32.mrb[0].mxu0
      %1280 = vdwg.mxu0
      %1313 = vrot.lane.b32.xlu0 %v819, 32
      %v1314 = vpop.permute.xlu0 %1313
      %1315 = vrot.lane.b32.xlu0 %v822, 32
      %v1316 = vpop.permute.xlu0 %1315
      %1317 = vrot.lane.b32.xlu0 %v827, 32
      %v1318 = vpop.permute.xlu0 %1317
      %1319 = vrot.lane.b32.xlu0 %v830, 32
      %v1320 = vpop.permute.xlu0 %1319
      %1321 = vrot.lane.b32.xlu0 %v835, 32
      %v1322 = vpop.permute.xlu0 %1321
      %1323 = vrot.lane.b32.xlu0 %v838, 32
      %v1324 = vpop.permute.xlu0 %1323
      %1325 = vrot.lane.b32.xlu0 %v843, 32
      %v1326 = vpop.permute.xlu0 %1325
      %1327 = vrot.lane.b32.xlu0 %v846, 32
      %v1328 = vpop.permute.xlu0 %1327
      %1329 = vrot.lane.b32.xlu0 %v851, 32
      %v1330 = vpop.permute.xlu0 %1329
      %1331 = vrot.lane.b32.xlu0 %v854, 32
      %v1332 = vpop.permute.xlu0 %1331
      %1333 = vrot.lane.b32.xlu0 %v859, 32
      %v1334 = vpop.permute.xlu0 %1333
      %1335 = vrot.lane.b32.xlu0 %v862, 32
      %v1336 = vpop.permute.xlu0 %1335
      %1337 = vrot.lane.b32.xlu0 %v867, 32
      %v1338 = vpop.permute.xlu0 %1337
      %1339 = vrot.lane.b32.xlu0 %v870, 32
      %v1340 = vpop.permute.xlu0 %1339
      %1341 = vrot.lane.b32.xlu0 %v875, 32
      %v1342 = vpop.permute.xlu0 %1341
      %1343 = vrot.lane.b32.xlu0 %v878, 32
      %v1344 = vpop.permute.xlu0 %1343
      %1345 = vrot.lane.b32.xlu0 %v883, 32
      %v1346 = vpop.permute.xlu0 %1345
      %1347 = vrot.lane.b32.xlu0 %v886, 32
      %v1348 = vpop.permute.xlu0 %1347
      %1349 = vrot.lane.b32.xlu0 %v891, 32
      %v1350 = vpop.permute.xlu0 %1349
      %1351 = vrot.lane.b32.xlu0 %v894, 32
      %v1352 = vpop.permute.xlu0 %1351
      %1353 = vrot.lane.b32.xlu0 %v899, 32
      %v1354 = vpop.permute.xlu0 %1353
      %1355 = vrot.lane.b32.xlu0 %v902, 32
      %v1356 = vpop.permute.xlu0 %1355
      %1357 = vrot.lane.b32.xlu0 %v907, 32
      %v1358 = vpop.permute.xlu0 %1357
      %1359 = vrot.lane.b32.xlu0 %v910, 32
      %v1360 = vpop.permute.xlu0 %1359
      %1361 = vrot.lane.b32.xlu0 %v915, 32
      %v1362 = vpop.permute.xlu0 %1361
      %1363 = vrot.lane.b32.xlu0 %v918, 32
      %v1364 = vpop.permute.xlu0 %1363
      %1365 = vrot.lane.b32.xlu0 %v923, 32
      %v1366 = vpop.permute.xlu0 %1365
      %1367 = vrot.lane.b32.xlu0 %v926, 32
      %v1368 = vpop.permute.xlu0 %1367
      %1369 = vrot.lane.b32.xlu0 %v931, 32
      %v1370 = vpop.permute.xlu0 %1369
      %1371 = vrot.lane.b32.xlu0 %v934, 32
      %v1372 = vpop.permute.xlu0 %1371
      %1373 = vrot.lane.b32.xlu0 %v939, 32
      %v1374 = vpop.permute.xlu0 %1373
      %1375 = vrot.lane.b32.xlu0 %v942, 32
      %v1376 = vpop.permute.xlu0 %1375
      %1441 = vrot.lane.b32.xlu0 %v1155, 64
      %v1442 = vpop.permute.xlu0 %1441
      %1443 = vrot.lane.b32.xlu0 %v1158, 64
      %v1444 = vpop.permute.xlu0 %1443
      %1445 = vrot.lane.b32.xlu0 %v1163, 64
      %v1446 = vpop.permute.xlu0 %1445
      %1447 = vrot.lane.b32.xlu0 %v1166, 64
      %v1448 = vpop.permute.xlu0 %1447
      %1449 = vrot.lane.b32.xlu0 %v1171, 64
      %v1450 = vpop.permute.xlu0 %1449
      %1451 = vrot.lane.b32.xlu0 %v1174, 64
      %v1452 = vpop.permute.xlu0 %1451
      %1453 = vrot.lane.b32.xlu0 %v1179, 64
      %v1454 = vpop.permute.xlu0 %1453
      %1455 = vrot.lane.b32.xlu0 %v1182, 64
      %v1456 = vpop.permute.xlu0 %1455
      %1457 = vrot.lane.b32.xlu0 %v1187, 64
      %v1458 = vpop.permute.xlu0 %1457
      %1459 = vrot.lane.b32.xlu0 %v1190, 64
      %v1460 = vpop.permute.xlu0 %1459
      %1461 = vrot.lane.b32.xlu0 %v1195, 64
      %v1462 = vpop.permute.xlu0 %1461
      %1463 = vrot.lane.b32.xlu0 %v1198, 64
      %v1464 = vpop.permute.xlu0 %1463
      %1465 = vrot.lane.b32.xlu0 %v1203, 64
      %v1466 = vpop.permute.xlu0 %1465
      %1467 = vrot.lane.b32.xlu0 %v1206, 64
      %v1468 = vpop.permute.xlu0 %1467
      %1469 = vrot.lane.b32.xlu0 %v1211, 64
      %v1470 = vpop.permute.xlu0 %1469
      %1471 = vrot.lane.b32.xlu0 %v1214, 64
      %v1472 = vpop.permute.xlu0 %1471
      %1473 = vrot.lane.b32.xlu0 %v1219, 64
      %v1474 = vpop.permute.xlu0 %1473
      %1475 = vrot.lane.b32.xlu0 %v1222, 64
      %v1476 = vpop.permute.xlu0 %1475
      %1477 = vrot.lane.b32.xlu0 %v1227, 64
      %v1478 = vpop.permute.xlu0 %1477
      %1479 = vrot.lane.b32.xlu0 %v1230, 64
      %v1480 = vpop.permute.xlu0 %1479
      %1481 = vrot.lane.b32.xlu0 %v1235, 64
      %v1482 = vpop.permute.xlu0 %1481
      %1483 = vrot.lane.b32.xlu0 %v1238, 64
      %v1484 = vpop.permute.xlu0 %1483
      %1485 = vrot.lane.b32.xlu0 %v1243, 64
      %v1486 = vpop.permute.xlu0 %1485
      %1487 = vrot.lane.b32.xlu0 %v1246, 64
      %v1488 = vpop.permute.xlu0 %1487
      %1489 = vrot.lane.b32.xlu0 %v1251, 64
      %v1490 = vpop.permute.xlu0 %1489
      %1491 = vrot.lane.b32.xlu0 %v1254, 64
      %v1492 = vpop.permute.xlu0 %1491
      %1493 = vrot.lane.b32.xlu0 %v1259, 64
      %v1494 = vpop.permute.xlu0 %1493
      %1495 = vrot.lane.b32.xlu0 %v1262, 64
      %v1496 = vpop.permute.xlu0 %1495
      %1497 = vrot.lane.b32.xlu0 %v1267, 64
      %v1498 = vpop.permute.xlu0 %1497
      %1499 = vrot.lane.b32.xlu0 %v1270, 64
      %v1500 = vpop.permute.xlu0 %1499
      %1501 = vrot.lane.b32.xlu0 %v1275, 64
      %v1502 = vpop.permute.xlu0 %1501
      %1503 = vrot.lane.b32.xlu0 %v1278, 64
      %v1504 = vpop.permute.xlu0 %1503
      %vm1537 = vcmask 261120
      %v1538 = vsel %vm1537, %v483, %v1314
      %v1539 = vsel %vm1537, %v486, %v1316
      %v1540 = vsel %vm1537, %v491, %v1318
      %v1541 = vsel %vm1537, %v494, %v1320
      %v1542 = vsel %vm1537, %v499, %v1322
      %v1543 = vsel %vm1537, %v502, %v1324
      %v1544 = vsel %vm1537, %v507, %v1326
      %v1545 = vsel %vm1537, %v510, %v1328
      %v1546 = vsel %vm1537, %v515, %v1330
      %v1547 = vsel %vm1537, %v518, %v1332
      %v1548 = vsel %vm1537, %v523, %v1334
      %v1549 = vsel %vm1537, %v526, %v1336
      %v1550 = vsel %vm1537, %v531, %v1338
      %v1551 = vsel %vm1537, %v534, %v1340
      %v1552 = vsel %vm1537, %v539, %v1342
      %v1553 = vsel %vm1537, %v542, %v1344
      %v1554 = vsel %vm1537, %v547, %v1346
      %v1555 = vsel %vm1537, %v550, %v1348
      %v1556 = vsel %vm1537, %v555, %v1350
      %v1557 = vsel %vm1537, %v558, %v1352
      %v1558 = vsel %vm1537, %v563, %v1354
      %v1559 = vsel %vm1537, %v566, %v1356
      %v1560 = vsel %vm1537, %v571, %v1358
      %v1561 = vsel %vm1537, %v574, %v1360
      %v1562 = vsel %vm1537, %v579, %v1362
      %v1563 = vsel %vm1537, %v582, %v1364
      %v1564 = vsel %vm1537, %v587, %v1366
      %v1565 = vsel %vm1537, %v590, %v1368
      %v1566 = vsel %vm1537, %v595, %v1370
      %v1567 = vsel %vm1537, %v598, %v1372
      %v1568 = vsel %vm1537, %v603, %v1374
      %v1569 = vsel %vm1537, %v606, %v1376
      %vm1570 = vcmask 523264
      %v1571 = vsel %vm1570, %v1538, %v1442
      %v1572 = vsel %vm1570, %v1539, %v1444
      %v1573 = vsel %vm1570, %v1540, %v1446
      %v1574 = vsel %vm1570, %v1541, %v1448
      %v1575 = vsel %vm1570, %v1542, %v1450
      %v1576 = vsel %vm1570, %v1543, %v1452
      %v1577 = vsel %vm1570, %v1544, %v1454
      %v1578 = vsel %vm1570, %v1545, %v1456
      %v1579 = vsel %vm1570, %v1546, %v1458
      %v1580 = vsel %vm1570, %v1547, %v1460
      %v1581 = vsel %vm1570, %v1548, %v1462
      %v1582 = vsel %vm1570, %v1549, %v1464
      %v1583 = vsel %vm1570, %v1550, %v1466
      %v1584 = vsel %vm1570, %v1551, %v1468
      %v1585 = vsel %vm1570, %v1552, %v1470
      %v1586 = vsel %vm1570, %v1553, %v1472
      %v1587 = vsel %vm1570, %v1554, %v1474
      %v1588 = vsel %vm1570, %v1555, %v1476
      %v1589 = vsel %vm1570, %v1556, %v1478
      %v1590 = vsel %vm1570, %v1557, %v1480
      %v1591 = vsel %vm1570, %v1558, %v1482
      %v1592 = vsel %vm1570, %v1559, %v1484
      %v1593 = vsel %vm1570, %v1560, %v1486
      %v1594 = vsel %vm1570, %v1561, %v1488
      %v1595 = vsel %vm1570, %v1562, %v1490
      %v1596 = vsel %vm1570, %v1563, %v1492
      %v1597 = vsel %vm1570, %v1564, %v1494
      %v1598 = vsel %vm1570, %v1565, %v1496
      %v1599 = vsel %vm1570, %v1566, %v1498
      %v1600 = vsel %vm1570, %v1567, %v1500
      %v1601 = vsel %vm1570, %v1568, %v1502
      %v1602 = vsel %vm1570, %v1569, %v1504
      %vm1603 = vcmask 785408
      %1604 = vst.msk [vmem:[%s233] sm:$0xff] %vm1603, %v1571
      %1605 = vst.msk [vmem:[%s233 + $0x8] sm:$0xff] %vm1603, %v1572
      %1606 = vst.msk [vmem:[%s233 + $0x10] sm:$0xff] %vm1603, %v1573
      %1607 = vst.msk [vmem:[%s233 + $0x18] sm:$0xff] %vm1603, %v1574
      %1608 = vst.msk [vmem:[%s233 + $0x20] sm:$0xff] %vm1603, %v1575
      %1609 = vst.msk [vmem:[%s233 + $0x28] sm:$0xff] %vm1603, %v1576
      %1610 = vst.msk [vmem:[%s233 + $0x30] sm:$0xff] %vm1603, %v1577
      %1611 = vst.msk [vmem:[%s233 + $0x38] sm:$0xff] %vm1603, %v1578
      %1612 = vst.msk [vmem:[%s233 + $0x40] sm:$0xff] %vm1603, %v1579
      %1613 = vst.msk [vmem:[%s233 + $0x48] sm:$0xff] %vm1603, %v1580
      %1614 = vst.msk [vmem:[%s233 + $0x50] sm:$0xff] %vm1603, %v1581
      %1615 = vst.msk [vmem:[%s233 + $0x58] sm:$0xff] %vm1603, %v1582
      %1616 = vst.msk [vmem:[%s233 + $0x60] sm:$0xff] %vm1603, %v1583
      %1617 = vst.msk [vmem:[%s233 + $0x68] sm:$0xff] %vm1603, %v1584
      %1618 = vst.msk [vmem:[%s233 + $0x70] sm:$0xff] %vm1603, %v1585
      %1619 = vst.msk [vmem:[%s233 + $0x78] sm:$0xff] %vm1603, %v1586
      %1620 = vst.msk [vmem:[%s233 + $0x80] sm:$0xff] %vm1603, %v1587
      %1621 = vst.msk [vmem:[%s233 + $0x88] sm:$0xff] %vm1603, %v1588
      %1622 = vst.msk [vmem:[%s233 + $0x90] sm:$0xff] %vm1603, %v1589
      %1623 = vst.msk [vmem:[%s233 + $0x98] sm:$0xff] %vm1603, %v1590
      %1624 = vst.msk [vmem:[%s233 + $0xa0] sm:$0xff] %vm1603, %v1591
      %1625 = vst.msk [vmem:[%s233 + $0xa8] sm:$0xff] %vm1603, %v1592
      %1626 = vst.msk [vmem:[%s233 + $0xb0] sm:$0xff] %vm1603, %v1593
      %1627 = vst.msk [vmem:[%s233 + $0xb8] sm:$0xff] %vm1603, %v1594
      %1628 = vst.msk [vmem:[%s233 + $0xc0] sm:$0xff] %vm1603, %v1595
      %1629 = vst.msk [vmem:[%s233 + $0xc8] sm:$0xff] %vm1603, %v1596
      %1630 = vst.msk [vmem:[%s233 + $0xd0] sm:$0xff] %vm1603, %v1597
      %1631 = vst.msk [vmem:[%s233 + $0xd8] sm:$0xff] %vm1603, %v1598
      %1632 = vst.msk [vmem:[%s233 + $0xe0] sm:$0xff] %vm1603, %v1599
      %1633 = vst.msk [vmem:[%s233 + $0xe8] sm:$0xff] %vm1603, %v1600
      %1634 = vst.msk [vmem:[%s233 + $0xf0] sm:$0xff] %vm1603, %v1601
      %1635 = vst.msk [vmem:[%s233 + $0xf8] sm:$0xff] %vm1603, %v1602
      %v1636 = vsel %vm1603, %v1571, 0.0
      %v1637 = vsel %vm1603, %v1572, 0.0
      %v1638 = vadd.f32 %v1636, %v1637
      %v1639 = vsel %vm1603, %v1573, 0.0
      %v1640 = vadd.f32 %v1638, %v1639
      %v1641 = vsel %vm1603, %v1574, 0.0
      %v1642 = vadd.f32 %v1640, %v1641
      %v1643 = vsel %vm1603, %v1575, 0.0
      %v1644 = vadd.f32 %v1642, %v1643
      %v1645 = vsel %vm1603, %v1576, 0.0
      %v1646 = vadd.f32 %v1644, %v1645
      %v1647 = vsel %vm1603, %v1577, 0.0
      %v1648 = vadd.f32 %v1646, %v1647
      %v1649 = vsel %vm1603, %v1578, 0.0
      %v1650 = vadd.f32 %v1648, %v1649
      %v1651 = vsel %vm1603, %v1579, 0.0
      %v1652 = vadd.f32 %v1650, %v1651
      %v1653 = vsel %vm1603, %v1580, 0.0
      %v1654 = vadd.f32 %v1652, %v1653
      %v1655 = vsel %vm1603, %v1581, 0.0
      %v1656 = vadd.f32 %v1654, %v1655
      %v1657 = vsel %vm1603, %v1582, 0.0
      %v1658 = vadd.f32 %v1656, %v1657
      %v1659 = vsel %vm1603, %v1583, 0.0
      %v1660 = vadd.f32 %v1658, %v1659
      %v1661 = vsel %vm1603, %v1584, 0.0
      %v1662 = vadd.f32 %v1660, %v1661
      %v1663 = vsel %vm1603, %v1585, 0.0
      %v1664 = vadd.f32 %v1662, %v1663
      %v1665 = vsel %vm1603, %v1586, 0.0
      %v1666 = vadd.f32 %v1664, %v1665
      %v1667 = vsel %vm1603, %v1587, 0.0
      %v1668 = vadd.f32 %v1666, %v1667
      %v1669 = vsel %vm1603, %v1588, 0.0
      %v1670 = vadd.f32 %v1668, %v1669
      %v1671 = vsel %vm1603, %v1589, 0.0
      %v1672 = vadd.f32 %v1670, %v1671
      %v1673 = vsel %vm1603, %v1590, 0.0
      %v1674 = vadd.f32 %v1672, %v1673
      %v1675 = vsel %vm1603, %v1591, 0.0
      %v1676 = vadd.f32 %v1674, %v1675
      %v1677 = vsel %vm1603, %v1592, 0.0
      %v1678 = vadd.f32 %v1676, %v1677
      %v1679 = vsel %vm1603, %v1593, 0.0
      %v1680 = vadd.f32 %v1678, %v1679
      %v1681 = vsel %vm1603, %v1594, 0.0
      %v1682 = vadd.f32 %v1680, %v1681
      %v1683 = vsel %vm1603, %v1595, 0.0
      %v1684 = vadd.f32 %v1682, %v1683
      %v1685 = vsel %vm1603, %v1596, 0.0
      %v1686 = vadd.f32 %v1684, %v1685
      %v1687 = vsel %vm1603, %v1597, 0.0
      %v1688 = vadd.f32 %v1686, %v1687
      %v1689 = vsel %vm1603, %v1598, 0.0
      %v1690 = vadd.f32 %v1688, %v1689
      %v1691 = vsel %vm1603, %v1599, 0.0
      %v1692 = vadd.f32 %v1690, %v1691
      %v1693 = vsel %vm1603, %v1600, 0.0
      %v1694 = vadd.f32 %v1692, %v1693
      %v1695 = vsel %vm1603, %v1601, 0.0
      %v1696 = vadd.f32 %v1694, %v1695
      %v1697 = vsel %vm1603, %v1602, 0.0
      %v1698 = vadd.f32 %v1696, %v1697
      %v1699 = vrot.slane %v1698, 4
      %v1700 = vadd.f32 %v1698, %v1699
      %v1701 = vrot.slane %v1700, 2
      %v1702 = vadd.f32 %v1700, %v1701
      %v1703 = vrot.slane %v1702, 1
      %v1704 = vadd.f32 %v1702, %v1703
      %v1705 = vmul.f32 %v1571, %v1571
      %v1706 = vmul.f32 %v1572, %v1572
      %v1707 = vmul.f32 %v1573, %v1573
      %v1708 = vmul.f32 %v1574, %v1574
      %v1709 = vmul.f32 %v1575, %v1575
      %v1710 = vmul.f32 %v1576, %v1576
      %v1711 = vmul.f32 %v1577, %v1577
      %v1712 = vmul.f32 %v1578, %v1578
      %v1713 = vmul.f32 %v1579, %v1579
      %v1714 = vmul.f32 %v1580, %v1580
      %v1715 = vmul.f32 %v1581, %v1581
      %v1716 = vmul.f32 %v1582, %v1582
      %v1717 = vmul.f32 %v1583, %v1583
      %v1718 = vmul.f32 %v1584, %v1584
      %v1719 = vmul.f32 %v1585, %v1585
      %v1720 = vmul.f32 %v1586, %v1586
      %v1721 = vmul.f32 %v1587, %v1587
      %v1722 = vmul.f32 %v1588, %v1588
      %v1723 = vmul.f32 %v1589, %v1589
      %v1724 = vmul.f32 %v1590, %v1590
      %v1725 = vmul.f32 %v1591, %v1591
      %v1726 = vmul.f32 %v1592, %v1592
      %v1727 = vmul.f32 %v1593, %v1593
      %v1728 = vmul.f32 %v1594, %v1594
      %v1729 = vmul.f32 %v1595, %v1595
      %v1730 = vmul.f32 %v1596, %v1596
      %v1731 = vmul.f32 %v1597, %v1597
      %v1732 = vmul.f32 %v1598, %v1598
      %v1733 = vmul.f32 %v1599, %v1599
      %v1734 = vmul.f32 %v1600, %v1600
      %v1735 = vmul.f32 %v1601, %v1601
      %v1736 = vmul.f32 %v1602, %v1602
      %v1737 = vsel %vm1603, %v1705, 0.0
      %v1738 = vsel %vm1603, %v1706, 0.0
      %v1739 = vadd.f32 %v1737, %v1738
      %v1740 = vsel %vm1603, %v1707, 0.0
      %v1741 = vadd.f32 %v1739, %v1740
      %v1742 = vsel %vm1603, %v1708, 0.0
      %v1743 = vadd.f32 %v1741, %v1742
      %v1744 = vsel %vm1603, %v1709, 0.0
      %v1745 = vadd.f32 %v1743, %v1744
      %v1746 = vsel %vm1603, %v1710, 0.0
      %v1747 = vadd.f32 %v1745, %v1746
      %v1748 = vsel %vm1603, %v1711, 0.0
      %v1749 = vadd.f32 %v1747, %v1748
      %v1750 = vsel %vm1603, %v1712, 0.0
      %v1751 = vadd.f32 %v1749, %v1750
      %v1752 = vsel %vm1603, %v1713, 0.0
      %v1753 = vadd.f32 %v1751, %v1752
      %v1754 = vsel %vm1603, %v1714, 0.0
      %v1755 = vadd.f32 %v1753, %v1754
      %v1756 = vsel %vm1603, %v1715, 0.0
      %v1757 = vadd.f32 %v1755, %v1756
      %v1758 = vsel %vm1603, %v1716, 0.0
      %v1759 = vadd.f32 %v1757, %v1758
      %v1760 = vsel %vm1603, %v1717, 0.0
      %v1761 = vadd.f32 %v1759, %v1760
      %v1762 = vsel %vm1603, %v1718, 0.0
      %v1763 = vadd.f32 %v1761, %v1762
      %v1764 = vsel %vm1603, %v1719, 0.0
      %v1765 = vadd.f32 %v1763, %v1764
      %v1766 = vsel %vm1603, %v1720, 0.0
      %v1767 = vadd.f32 %v1765, %v1766
      %v1768 = vsel %vm1603, %v1721, 0.0
      %v1769 = vadd.f32 %v1767, %v1768
      %v1770 = vsel %vm1603, %v1722, 0.0
      %v1771 = vadd.f32 %v1769, %v1770
      %v1772 = vsel %vm1603, %v1723, 0.0
      %v1773 = vadd.f32 %v1771, %v1772
      %v1774 = vsel %vm1603, %v1724, 0.0
      %v1775 = vadd.f32 %v1773, %v1774
      %v1776 = vsel %vm1603, %v1725, 0.0
      %v1777 = vadd.f32 %v1775, %v1776
      %v1778 = vsel %vm1603, %v1726, 0.0
      %v1779 = vadd.f32 %v1777, %v1778
      %v1780 = vsel %vm1603, %v1727, 0.0
      %v1781 = vadd.f32 %v1779, %v1780
      %v1782 = vsel %vm1603, %v1728, 0.0
      %v1783 = vadd.f32 %v1781, %v1782
      %v1784 = vsel %vm1603, %v1729, 0.0
      %v1785 = vadd.f32 %v1783, %v1784
      %v1786 = vsel %vm1603, %v1730, 0.0
      %v1787 = vadd.f32 %v1785, %v1786
      %v1788 = vsel %vm1603, %v1731, 0.0
      %v1789 = vadd.f32 %v1787, %v1788
      %v1790 = vsel %vm1603, %v1732, 0.0
      %v1791 = vadd.f32 %v1789, %v1790
      %v1792 = vsel %vm1603, %v1733, 0.0
      %v1793 = vadd.f32 %v1791, %v1792
      %v1794 = vsel %vm1603, %v1734, 0.0
      %v1795 = vadd.f32 %v1793, %v1794
      %v1796 = vsel %vm1603, %v1735, 0.0
      %v1797 = vadd.f32 %v1795, %v1796
      %v1798 = vsel %vm1603, %v1736, 0.0
      %v1799 = vadd.f32 %v1797, %v1798
      %v1800 = vrot.slane %v1799, 4
      %v1801 = vadd.f32 %v1799, %v1800
      %v1802 = vrot.slane %v1801, 2
      %v1803 = vadd.f32 %v1801, %v1802
      %v1804 = vrot.slane %v1803, 1
      %v1805 = vadd.f32 %v1803, %v1804
      %vm1806 = vcmask 1040384
      %v1807 = vsel %vm1806, %v1704, %v1805
      %vm1808 = vcmask 779264
      %1809 = vst.msk [vmem:[%s238] sm:$0x3] %vm1808, %v1807
      %s1810 = smul.u32 32, %s17
      %p1811 = scmp.lt.s32.totalorder %s1810, 63
      %s1812 = scalar_select %p1811, %s1810, 63
      %s1813 = smul.addr %s1812, 8
      %s1814 = scalar_lea.vmem %s4, %s1813
      %p1815 = scmp.lt.s32.totalorder %s17, 1
      %s1816 = scalar_select %p1815, %s17, 1
      %s1817 = smul.addr %s1816, 2
      %s1818 = scalar_lea.vmem %s5, %s1817
      // Predicated region
      $region37: #{_inception_a_forward.4} parent=35 // pred_check
        %p1819 = pneg %p124
      $region38: #{_inception_a_forward.4} parent=35 // pred_check_branch
        %1821 = sbr.rel (%p1819) target = $region40
      $region39: #{_inception_a_forward.4} parent=35 // pred_region
        %s1822 = smul.u32 32, %s17
      $region40: #{_inception_a_forward.4} parent=35 // pred_fallthru
        _
      // Predicated region
      $region41: #{_inception_a_forward.4} parent=35 // pred_check
        %p1823 = pneg %p150
      $region42: #{_inception_a_forward.4} parent=35 // pred_check_branch
        %1825 = sbr.rel (%p1823) target = $region44
      $region43: #{_inception_a_forward.4} parent=35 // pred_region
        _
      $region44: #{_inception_a_forward.4} parent=35 // pred_fallthru
        _
    $region36: #{_inception_a_forward.4} parent=5 // pred_fallthru
      _
    %p1826 = scmp.le.s32.totalorder 2, %s12
    // Predicated region
    $region45: #{_inception_a_forward.4} parent=5 // pred_check
      %p1827 = pneg %p1826
    $region46: #{_inception_a_forward.4} parent=5 // pred_check_branch
      %1829 = sbr.rel (%p1827) target = $region48
    $region47: #{_inception_a_forward.4} parent=5 // pred_region
      %s1830 = ssub.s32 %s12, 2
      // Predicated region
      $region49: #{_inception_a_forward.4} parent=47 // pred_check
        %p1831 = pneg %p130
      $region50: #{_inception_a_forward.4} parent=47 // pred_check_branch
        %1833 = sbr.rel (%p1831) target = $region52
      $region51: #{_inception_a_forward.4} parent=47 // pred_region
        %s1834 = smul.u32 32, %s18
        %p1835 = scmp.lt.s32.totalorder %s1834, 63
        %s1836 = scalar_select %p1835, %s1834, 63
        %s1837 = smul.addr %s1836, 8
        %s1838 = scalar_lea.vmem %s4, %s1837
      $region52: #{_inception_a_forward.4} parent=47 // pred_fallthru
        _
      // Predicated region
      $region53: #{_inception_a_forward.4} parent=47 // pred_check
        %p1839 = pneg %p156
      $region54: #{_inception_a_forward.4} parent=47 // pred_check_branch
        %1841 = sbr.rel (%p1839) target = $region56
      $region55: #{_inception_a_forward.4} parent=47 // pred_region
        %p1842 = scmp.lt.s32.totalorder %s18, 1
        %s1843 = scalar_select %p1842, %s18, 1
        %s1844 = smul.addr %s1843, 2
        %s1845 = scalar_lea.vmem %s5, %s1844
      $region56: #{_inception_a_forward.4} parent=47 // pred_fallthru
        _
    $region48: #{_inception_a_forward.4} parent=5 // pred_fallthru
      _
  $region6: #{_inception_a_forward.4} parent=0 // loop_footer
    %s16 = sadd.s32 1, %s12
  $region7: #{_inception_a_forward.4} parent=0 // loop_footer_branch
    %11 = sbr.rel target = $region3
  $region8: #{_inception_a_forward.4} parent=0 // loop_exit
    _

// kernel: _inception_a_forward.5
$region0: #{_inception_a_forward.5}
  #allocation0 [shape = 'u32[]', space=smem, size = 0x4, offset = 0x4, fixed_abs, tag = 'smem constant byte address 0x4 - core index']
  #allocation1 [shape = 'u32[144,128]{1,0:T(1,128)}', space=vmem, size = 0x12000, scoped, tag = 'internal scratch']
  #allocation2 [shape = 'f32[18,32,32]{2,1,0:T(8,128)}', space=vmem, size = 0x48000, scoped, tag = 'scratch operand']
  %s0 = inlined_call_operand.vmem [shape: f32[2,16,16,32], index: 0, kind: input, shape index: {}]
  %s1 = inlined_call_operand.vmem [shape: f32[1,32], index: 1, kind: input, shape index: {}]
  %s2 = inlined_call_operand.vmem [shape: f32[1,32], index: 2, kind: input, shape index: {}]
  %s3 = inlined_call_operand.vmem [shape: bf16[3,96,32], index: 3, kind: input, shape index: {}]
  %s4 = inlined_call_operand.vmem [shape: f32[2,256,32], index: 4, kind: output, shape index: {}]
  %s5 = sld [smem:[#allocation0]]
  $region49: #{_inception_a_forward.5} parent=0
    _
  %s7 = ssub.s32 1, %s5
  %s8 = scalar_select 0, %s7, %s5
  loop: start=0, step=1, limit=4
  $region2: #{_inception_a_forward.5} parent=0 // loop_pre_header
    _
  $region3: #{_inception_a_forward.5} parent=0 // loop_header
    %s10 = sphi 0, %s14
    %p11 = scmp.ge.s32.totalorder %s10, 4
    %s20 = sphi 0, %s22
    %s23 = sphi 0, %s20
    %s24 = sphi 0, %s23
    %s40 = sphi 0, %s24
    %s44 = sphi 0, %s44
    %s46 = sphi 0, %s44
    %s47 = sphi 0, %s46
    %s61 = sphi 0, %s47
    %s65 = sphi 0, %s65
    %s67 = sphi 0, %s65
    %s68 = sphi 0, %s67
    %s82 = sphi 0, %s68
    %s86 = sphi 0, %s86
    %s88 = sphi 0, %s86
    %s89 = sphi 0, %s88
    %s103 = sphi 0, %s89
    %s109 = sphi 0, %s111
    %s112 = sphi 0, %s109
    %s113 = sphi 0, %s112
    %s129 = sphi 0, %s113
  $region4: #{_inception_a_forward.5} parent=0 // loop_header_branch
    %13 = sbr.rel (%p11) target = $region8
  $region5: #{_inception_a_forward.5} parent=0 // loop_body
    %s15 = ssub.s32 %s10, 1
    %s16 = ssub.s32 %s10, 2
    %s17 = sadd.s32 %s10, 1
    %s18 = ssub.s32 %s10, %s17
    %p19 = scmp.eq.s32.totalorder %s18, 0
    %s21 = sadd.s32 %s20, 1
    %s22 = scalar_select %p19, %s20, %s21
    %p25 = pneg %p19
    %p26 = scmp.eq.s32.totalorder %s10, 1
    %p27 = por %p25, %p26
    %p28 = scmp.ne.s32.totalorder %s20, %s23
    %p29 = scmp.eq.s32.totalorder %s10, 0
    %p30 = por %p28, %p29
    %p31 = scmp.ne.s32.totalorder %s20, %s23
    %p32 = scmp.eq.s32.totalorder %s15, 1
    %p33 = por %p31, %p32
    %p34 = scmp.ne.s32.totalorder %s23, %s24
    %p35 = scmp.eq.s32.totalorder %s15, 0
    %p36 = por %p34, %p35
    %p37 = scmp.ne.s32.totalorder %s23, %s24
    %p38 = scmp.eq.s32.totalorder %s16, 1
    %p39 = por %p37, %p38
    %p41 = scmp.ne.s32.totalorder %s24, %s40
    %p42 = scmp.eq.s32.totalorder %s16, 0
    %p43 = por %p41, %p42
    %s45 = sadd.s32 %s44, 1
    %p48 = scmp.eq.s32.totalorder %s10, 1
    %p49 = scmp.ne.s32.totalorder %s44, %s46
    %p50 = scmp.eq.s32.totalorder %s10, 0
    %p51 = por %p49, %p50
    %p52 = scmp.ne.s32.totalorder %s44, %s46
    %p53 = scmp.eq.s32.totalorder %s15, 1
    %p54 = por %p52, %p53
    %p55 = scmp.ne.s32.totalorder %s46, %s47
    %p56 = scmp.eq.s32.totalorder %s15, 0
    %p57 = por %p55, %p56
    %p58 = scmp.ne.s32.totalorder %s46, %s47
    %p59 = scmp.eq.s32.totalorder %s16, 1
    %p60 = por %p58, %p59
    %p62 = scmp.ne.s32.totalorder %s47, %s61
    %p63 = scmp.eq.s32.totalorder %s16, 0
    %p64 = por %p62, %p63
    %s66 = sadd.s32 %s65, 1
    %p69 = scmp.eq.s32.totalorder %s10, 1
    %p70 = scmp.ne.s32.totalorder %s65, %s67
    %p71 = scmp.eq.s32.totalorder %s10, 0
    %p72 = por %p70, %p71
    %p73 = scmp.ne.s32.totalorder %s65, %s67
    %p74 = scmp.eq.s32.totalorder %s15, 1
    %p75 = por %p73, %p74
    %p76 = scmp.ne.s32.totalorder %s67, %s68
    %p77 = scmp.eq.s32.totalorder %s15, 0
    %p78 = por %p76, %p77
    %p79 = scmp.ne.s32.totalorder %s67, %s68
    %p80 = scmp.eq.s32.totalorder %s16, 1
    %p81 = por %p79, %p80
    %p83 = scmp.ne.s32.totalorder %s68, %s82
    %p84 = scmp.eq.s32.totalorder %s16, 0
    %p85 = por %p83, %p84
    %s87 = sadd.s32 %s86, 1
    %p90 = scmp.eq.s32.totalorder %s10, 1
    %p91 = scmp.ne.s32.totalorder %s86, %s88
    %p92 = scmp.eq.s32.totalorder %s10, 0
    %p93 = por %p91, %p92
    %p94 = scmp.ne.s32.totalorder %s86, %s88
    %p95 = scmp.eq.s32.totalorder %s15, 1
    %p96 = por %p94, %p95
    %p97 = scmp.ne.s32.totalorder %s88, %s89
    %p98 = scmp.eq.s32.totalorder %s15, 0
    %p99 = por %p97, %p98
    %p100 = scmp.ne.s32.totalorder %s88, %s89
    %p101 = scmp.eq.s32.totalorder %s16, 1
    %p102 = por %p100, %p101
    %p104 = scmp.ne.s32.totalorder %s89, %s103
    %p105 = scmp.eq.s32.totalorder %s16, 0
    %p106 = por %p104, %p105
    %s107 = ssub.s32 %s10, %s17
    %p108 = scmp.eq.s32.totalorder %s107, 0
    %s110 = sadd.s32 %s109, 1
    %s111 = scalar_select %p108, %s109, %s110
    %p114 = pneg %p108
    %p115 = scmp.eq.s32.totalorder %s10, 1
    %p116 = por %p114, %p115
    %p117 = scmp.ne.s32.totalorder %s109, %s112
    %p118 = scmp.eq.s32.totalorder %s10, 0
    %p119 = por %p117, %p118
    %p120 = scmp.ne.s32.totalorder %s109, %s112
    %p121 = scmp.eq.s32.totalorder %s15, 1
    %p122 = por %p120, %p121
    %p123 = scmp.ne.s32.totalorder %s112, %s113
    %p124 = scmp.eq.s32.totalorder %s15, 0
    %p125 = por %p123, %p124
    %p126 = scmp.ne.s32.totalorder %s112, %s113
    %p127 = scmp.eq.s32.totalorder %s16, 1
    %p128 = por %p126, %p127
    %p130 = scmp.ne.s32.totalorder %s113, %s129
    %p131 = scmp.eq.s32.totalorder %s16, 0
    %p132 = por %p130, %p131
    %p133 = scmp.le.s32.totalorder 1, %s10
    %p134 = scmp.lt.s32.totalorder %s10, 3
    %p135 = pnand %p133, %p134
    %p136 = pneg %p135
    // Predicated region
    $region9: #{_inception_a_forward.5} parent=5 // pred_check
      _
    $region10: #{_inception_a_forward.5} parent=5 // pred_check_branch
      %138 = sbr.rel (%p135) target = $region12
    $region11: #{_inception_a_forward.5} parent=5 // pred_region
      %s139 = ssub.s32 %s10, 1
      // Predicated region
      $region13: #{_inception_a_forward.5} parent=11 // pred_check
        %p140 = pneg %p57
      $region14: #{_inception_a_forward.5} parent=11 // pred_check_branch
        %142 = sbr.rel (%p140) target = $region16
      $region15: #{_inception_a_forward.5} parent=11 // pred_region
        _
      $region16: #{_inception_a_forward.5} parent=11 // pred_fallthru
        _
      // Predicated region
      $region17: #{_inception_a_forward.5} parent=11 // pred_check
        %p143 = pneg %p78
      $region18: #{_inception_a_forward.5} parent=11 // pred_check_branch
        %145 = sbr.rel (%p143) target = $region20
      $region19: #{_inception_a_forward.5} parent=11 // pred_region
        _
      $region20: #{_inception_a_forward.5} parent=11 // pred_fallthru
        _
      // Predicated region
      $region21: #{_inception_a_forward.5} parent=11 // pred_check
        %p146 = pneg %p99
      $region22: #{_inception_a_forward.5} parent=11 // pred_check_branch
        %148 = sbr.rel (%p146) target = $region24
      $region23: #{_inception_a_forward.5} parent=11 // pred_region
        _
      $region24: #{_inception_a_forward.5} parent=11 // pred_fallthru
        _
    $region12: #{_inception_a_forward.5} parent=5 // pred_fallthru
      _
    %p149 = scmp.lt.s32.totalorder %s10, 2
    // Predicated region
    $region25: #{_inception_a_forward.5} parent=5 // pred_check
      %p150 = pneg %p149
    $region26: #{_inception_a_forward.5} parent=5 // pred_check_branch
      %152 = sbr.rel (%p150) target = $region28
    $region27: #{_inception_a_forward.5} parent=5 // pred_region
      // Predicated region
      $region29: #{_inception_a_forward.5} parent=27 // pred_check
        %p153 = pneg %p30
      $region30: #{_inception_a_forward.5} parent=27 // pred_check_branch
        %155 = sbr.rel (%p153) target = $region32
      $region31: #{_inception_a_forward.5} parent=27 // pred_region
        %p156 = scmp.lt.s32.totalorder %s10, 1
        %s157 = scalar_select %p156, %s10, 1
        %s158 = smul.addr %s157, 32
        %s159 = smul.addr %s158, 8
        %s160 = scalar_lea.vmem %s0, %s159
      $region32: #{_inception_a_forward.5} parent=27 // pred_fallthru
        _
    $region28: #{_inception_a_forward.5} parent=5 // pred_fallthru
      _
    %p161 = scmp.le.s32.totalorder 1, %s10
    %p162 = scmp.lt.s32.totalorder %s10, 3
    %p163 = pnand %p161, %p162
    %p164 = pneg %p163
    // Predicated region
    $region33: #{_inception_a_forward.5} parent=5 // pred_check
      _
    $region34: #{_inception_a_forward.5} parent=5 // pred_check_branch
      %166 = sbr.rel (%p163) target = $region36
    $region35: #{_inception_a_forward.5} parent=5 // pred_region
      %s167 = ssub.s32 %s10, 1
      %p168 = scmp.lt.s32.totalorder %s15, 1
      %s169 = scalar_select %p168, %s15, 1
      %s170 = smul.addr %s169, 32
      %s171 = smul.addr %s170, 8
      %s172 = scalar_lea.vmem %s0, %s171
      %p173 = pneg %p36
      %p174 = pneg %p33
      %p175 = pneg %p57
      %p176 = pneg %p54
      %p177 = pneg %p78
      %p178 = pneg %p75
      %p179 = pneg %p99
      %p180 = pneg %p96
      %p181 = pneg %p125
      %p182 = pneg %p122
      %p183 = scmp.lt.s32.totalorder %s15, 1
      %s184 = scalar_select %p183, %s15, 1
      %s185 = smul.addr %s184, 32
      %s186 = smul.addr %s185, 8
      %s187 = scalar_lea.vmem %s4, %s186
      %p188 = scmp.lt.s32.totalorder %s15, 1
      %s189 = scalar_select %p188, %s15, 1
      %s190 = smul.addr %s189, 32
      %s191 = smul.addr %s190, 8
      %s192 = scalar_lea.vmem %s0, %s191
      %p193 = scmp.lt.s32.totalorder %s15, 1
      %s194 = scalar_select %p193, %s15, 1
      %s195 = smul.addr %s194, 32
      %s196 = smul.addr %s195, 8
      %s197 = scalar_lea.vmem %s4, %s196
      %vm199 = vcmask 261120
      %200 = vst.msk [vmem:[#allocation2] sm:$0xff] %vm199, 0.0
      %201 = vst.msk [vmem:[#allocation2 + $0x8] sm:$0xff] %vm199, 0.0
      %202 = vst.msk [vmem:[#allocation2 + $0x10] sm:$0xff] %vm199, 0.0
      %203 = vst.msk [vmem:[#allocation2 + $0x18] sm:$0xff] %vm199, 0.0
      %s204 = scalar_lea.vmem [#allocation2], 544
      %205 = vst.msk [vmem:[%s204] sm:$0xff] %vm199, 0.0
      %206 = vst.msk [vmem:[%s204 + $0x8] sm:$0xff] %vm199, 0.0
      %207 = vst.msk [vmem:[%s204 + $0x10] sm:$0xff] %vm199, 0.0
      %208 = vst.msk [vmem:[%s204 + $0x18] sm:$0xff] %vm199, 0.0
      %vm209 = vcmask 253952
      %210 = vst.msk [vmem:[#allocation2 + $0x7] sm:$0x1] %vm209, 0.0
      %211 = vst.msk [vmem:[#allocation2 + $0x27] sm:$0x1] %vm209, 0.0
      %212 = vst.msk [vmem:[#allocation2 + $0x47] sm:$0x1] %vm209, 0.0
      %213 = vst.msk [vmem:[#allocation2 + $0x67] sm:$0x1] %vm209, 0.0
      %214 = vst.msk [vmem:[#allocation2 + $0x87] sm:$0x1] %vm209, 0.0
      %215 = vst.msk [vmem:[#allocation2 + $0xa7] sm:$0x1] %vm209, 0.0
      %216 = vst.msk [vmem:[#allocation2 + $0xc7] sm:$0x1] %vm209, 0.0
      %217 = vst.msk [vmem:[#allocation2 + $0xe7] sm:$0x1] %vm209, 0.0
      %218 = vst.msk [vmem:[#allocation2 + $0x107] sm:$0x1] %vm209, 0.0
      %219 = vst.msk [vmem:[#allocation2 + $0x127] sm:$0x1] %vm209, 0.0
      %220 = vst.msk [vmem:[#allocation2 + $0x147] sm:$0x1] %vm209, 0.0
      %221 = vst.msk [vmem:[#allocation2 + $0x167] sm:$0x1] %vm209, 0.0
      %222 = vst.msk [vmem:[#allocation2 + $0x187] sm:$0x1] %vm209, 0.0
      %223 = vst.msk [vmem:[#allocation2 + $0x1a7] sm:$0x1] %vm209, 0.0
      %224 = vst.msk [vmem:[#allocation2 + $0x1c7] sm:$0x1] %vm209, 0.0
      %225 = vst.msk [vmem:[#allocation2 + $0x1e7] sm:$0x1] %vm209, 0.0
      %226 = vst.msk [vmem:[#allocation2 + $0x207] sm:$0x1] %vm209, 0.0
      %227 = vst.msk [vmem:[#allocation2 + $0x227] sm:$0x1] %vm209, 0.0
      %228 = vst.msk [vmem:[#allocation2 + $0x18] sm:$0x1] %vm209, 0.0
      %229 = vst.msk [vmem:[#allocation2 + $0x38] sm:$0x1] %vm209, 0.0
      %230 = vst.msk [vmem:[#allocation2 + $0x58] sm:$0x1] %vm209, 0.0
      %231 = vst.msk [vmem:[#allocation2 + $0x78] sm:$0x1] %vm209, 0.0
      %232 = vst.msk [vmem:[#allocation2 + $0x98] sm:$0x1] %vm209, 0.0
      %233 = vst.msk [vmem:[#allocation2 + $0xb8] sm:$0x1] %vm209, 0.0
      %234 = vst.msk [vmem:[#allocation2 + $0xd8] sm:$0x1] %vm209, 0.0
      %235 = vst.msk [vmem:[#allocation2 + $0xf8] sm:$0x1] %vm209, 0.0
      %236 = vst.msk [vmem:[#allocation2 + $0x118] sm:$0x1] %vm209, 0.0
      %237 = vst.msk [vmem:[#allocation2 + $0x138] sm:$0x1] %vm209, 0.0
      %238 = vst.msk [vmem:[#allocation2 + $0x158] sm:$0x1] %vm209, 0.0
      %239 = vst.msk [vmem:[#allocation2 + $0x178] sm:$0x1] %vm209, 0.0
      %240 = vst.msk [vmem:[#allocation2 + $0x198] sm:$0x1] %vm209, 0.0
      %241 = vst.msk [vmem:[#allocation2 + $0x1b8] sm:$0x1] %vm209, 0.0
      %242 = vst.msk [vmem:[#allocation2 + $0x1d8] sm:$0x1] %vm209, 0.0
      %243 = vst.msk [vmem:[#allocation2 + $0x1f8] sm:$0x1] %vm209, 0.0
      %244 = vst.msk [vmem:[#allocation2 + $0x218] sm:$0x1] %vm209, 0.0
      %245 = vst.msk [vmem:[#allocation2 + $0x238] sm:$0x1] %vm209, 0.0
      %v246 = vld [vmem:[%s192] sm:$0xff]
      %v247 = vld [vmem:[%s192 + $0x8] sm:$0xff]
      %v248 = vld [vmem:[%s192 + $0x10] sm:$0xff]
      %v249 = vld [vmem:[%s192 + $0x18] sm:$0xff]
      %v250 = vld [vmem:[%s192 + $0x20] sm:$0xff]
      %v251 = vld [vmem:[%s192 + $0x28] sm:$0xff]
      %v252 = vld [vmem:[%s192 + $0x30] sm:$0xff]
      %v253 = vld [vmem:[%s192 + $0x38] sm:$0xff]
      %v254 = vld [vmem:[%s192 + $0x40] sm:$0xff]
      %v255 = vld [vmem:[%s192 + $0x48] sm:$0xff]
      %v256 = vld [vmem:[%s192 + $0x50] sm:$0xff]
      %v257 = vld [vmem:[%s192 + $0x58] sm:$0xff]
      %v258 = vld [vmem:[%s192 + $0x60] sm:$0xff]
      %v259 = vld [vmem:[%s192 + $0x68] sm:$0xff]
      %v260 = vld [vmem:[%s192 + $0x70] sm:$0xff]
      %v261 = vld [vmem:[%s192 + $0x78] sm:$0xff]
      %v262 = vld [vmem:[%s192 + $0x80] sm:$0xff]
      %v263 = vld [vmem:[%s192 + $0x88] sm:$0xff]
      %v264 = vld [vmem:[%s192 + $0x90] sm:$0xff]
      %v265 = vld [vmem:[%s192 + $0x98] sm:$0xff]
      %v266 = vld [vmem:[%s192 + $0xa0] sm:$0xff]
      %v267 = vld [vmem:[%s192 + $0xa8] sm:$0xff]
      %v268 = vld [vmem:[%s192 + $0xb0] sm:$0xff]
      %v269 = vld [vmem:[%s192 + $0xb8] sm:$0xff]
      %v270 = vld [vmem:[%s192 + $0xc0] sm:$0xff]
      %v271 = vld [vmem:[%s192 + $0xc8] sm:$0xff]
      %v272 = vld [vmem:[%s192 + $0xd0] sm:$0xff]
      %v273 = vld [vmem:[%s192 + $0xd8] sm:$0xff]
      %v274 = vld [vmem:[%s192 + $0xe0] sm:$0xff]
      %v275 = vld [vmem:[%s192 + $0xe8] sm:$0xff]
      %v276 = vld [vmem:[%s192 + $0xf0] sm:$0xff]
      %v277 = vld [vmem:[%s192 + $0xf8] sm:$0xff]
      %v278 = vld [vmem:[%s1] sm:$0x1]
      %v279 = vld [vmem:[%s2] sm:$0x1]
      %v281 = vlaneseq
      %v282 = vshrl.u32 %v281, 7
      %v283 = vsub.s32 0, %v282
      %v284 = vrot.slane %v278, %v283
      %v286 = vmul.f32 %v246, %v284
      %v287 = vmul.f32 %v247, %v284
      %v288 = vmul.f32 %v248, %v284
      %v289 = vmul.f32 %v249, %v284
      %v290 = vmul.f32 %v250, %v284
      %v291 = vmul.f32 %v251, %v284
      %v292 = vmul.f32 %v252, %v284
      %v293 = vmul.f32 %v253, %v284
      %v294 = vmul.f32 %v254, %v284
      %v295 = vmul.f32 %v255, %v284
      %v296 = vmul.f32 %v256, %v284
      %v297 = vmul.f32 %v257, %v284
      %v298 = vmul.f32 %v258, %v284
      %v299 = vmul.f32 %v259, %v284
      %v300 = vmul.f32 %v260, %v284
      %v301 = vmul.f32 %v261, %v284
      %v302 = vmul.f32 %v262, %v284
      %v303 = vmul.f32 %v263, %v284
      %v304 = vmul.f32 %v264, %v284
      %v305 = vmul.f32 %v265, %v284
      %v306 = vmul.f32 %v266, %v284
      %v307 = vmul.f32 %v267, %v284
      %v308 = vmul.f32 %v268, %v284
      %v309 = vmul.f32 %v269, %v284
      %v310 = vmul.f32 %v270, %v284
      %v311 = vmul.f32 %v271, %v284
      %v312 = vmul.f32 %v272, %v284
      %v313 = vmul.f32 %v273, %v284
      %v314 = vmul.f32 %v274, %v284
      %v315 = vmul.f32 %v275, %v284
      %v316 = vmul.f32 %v276, %v284
      %v317 = vmul.f32 %v277, %v284
      %v319 = vlaneseq
      %v320 = vshrl.u32 %v319, 7
      %v321 = vsub.s32 0, %v320
      %v322 = vrot.slane %v279, %v321
      %v324 = vadd.f32 %v286, %v322
      %v325 = vadd.f32 %v287, %v322
      %v326 = vadd.f32 %v288, %v322
      %v327 = vadd.f32 %v289, %v322
      %v328 = vadd.f32 %v290, %v322
      %v329 = vadd.f32 %v291, %v322
      %v330 = vadd.f32 %v292, %v322
      %v331 = vadd.f32 %v293, %v322
      %v332 = vadd.f32 %v294, %v322
      %v333 = vadd.f32 %v295, %v322
      %v334 = vadd.f32 %v296, %v322
      %v335 = vadd.f32 %v297, %v322
      %v336 = vadd.f32 %v298, %v322
      %v337 = vadd.f32 %v299, %v322
      %v338 = vadd.f32 %v300, %v322
      %v339 = vadd.f32 %v301, %v322
      %v340 = vadd.f32 %v302, %v322
      %v341 = vadd.f32 %v303, %v322
      %v342 = vadd.f32 %v304, %v322
      %v343 = vadd.f32 %v305, %v322
      %v344 = vadd.f32 %v306, %v322
      %v345 = vadd.f32 %v307, %v322
      %v346 = vadd.f32 %v308, %v322
      %v347 = vadd.f32 %v309, %v322
      %v348 = vadd.f32 %v310, %v322
      %v349 = vadd.f32 %v311, %v322
      %v350 = vadd.f32 %v312, %v322
      %v351 = vadd.f32 %v313, %v322
      %v352 = vadd.f32 %v314, %v322
      %v353 = vadd.f32 %v315, %v322
      %v354 = vadd.f32 %v316, %v322
      %v355 = vadd.f32 %v317, %v322
      %v356 = vmax.f32 %v324, 0.0
      %v357 = vmax.f32 %v325, 0.0
      %v358 = vmax.f32 %v326, 0.0
      %v359 = vmax.f32 %v327, 0.0
      %v360 = vmax.f32 %v328, 0.0
      %v361 = vmax.f32 %v329, 0.0
      %v362 = vmax.f32 %v330, 0.0
      %v363 = vmax.f32 %v331, 0.0
      %v364 = vmax.f32 %v332, 0.0
      %v365 = vmax.f32 %v333, 0.0
      %v366 = vmax.f32 %v334, 0.0
      %v367 = vmax.f32 %v335, 0.0
      %v368 = vmax.f32 %v336, 0.0
      %v369 = vmax.f32 %v337, 0.0
      %v370 = vmax.f32 %v338, 0.0
      %v371 = vmax.f32 %v339, 0.0
      %v372 = vmax.f32 %v340, 0.0
      %v373 = vmax.f32 %v341, 0.0
      %v374 = vmax.f32 %v342, 0.0
      %v375 = vmax.f32 %v343, 0.0
      %v376 = vmax.f32 %v344, 0.0
      %v377 = vmax.f32 %v345, 0.0
      %v378 = vmax.f32 %v346, 0.0
      %v379 = vmax.f32 %v347, 0.0
      %v380 = vmax.f32 %v348, 0.0
      %v381 = vmax.f32 %v349, 0.0
      %v382 = vmax.f32 %v350, 0.0
      %v383 = vmax.f32 %v351, 0.0
      %v384 = vmax.f32 %v352, 0.0
      %v385 = vmax.f32 %v353, 0.0
      %v386 = vmax.f32 %v354, 0.0
      %v387 = vmax.f32 %v355, 0.0
      %s388 = scalar_lea.vmem [#allocation2], 32
      %389 = vst.msk [vmem:[%s388 + $0x8] sm:$0xff] %vm199, %v356
      %390 = vst.msk [vmem:[%s388 + $0x10] sm:$0xff] %vm199, %v357
      %391 = vst.msk [vmem:[%s388 + $0x28] sm:$0xff] %vm199, %v358
      %392 = vst.msk [vmem:[%s388 + $0x30] sm:$0xff] %vm199, %v359
      %393 = vst.msk [vmem:[%s388 + $0x48] sm:$0xff] %vm199, %v360
      %394 = vst.msk [vmem:[%s388 + $0x50] sm:$0xff] %vm199, %v361
      %395 = vst.msk [vmem:[%s388 + $0x68] sm:$0xff] %vm199, %v362
      %396 = vst.msk [vmem:[%s388 + $0x70] sm:$0xff] %vm199, %v363
      %397 = vst.msk [vmem:[%s388 + $0x88] sm:$0xff] %vm199, %v364
      %398 = vst.msk [vmem:[%s388 + $0x90] sm:$0xff] %vm199, %v365
      %399 = vst.msk [vmem:[%s388 + $0xa8] sm:$0xff] %vm199, %v366
      %400 = vst.msk [vmem:[%s388 + $0xb0] sm:$0xff] %vm199, %v367
      %401 = vst.msk [vmem:[%s388 + $0xc8] sm:$0xff] %vm199, %v368
      %402 = vst.msk [vmem:[%s388 + $0xd0] sm:$0xff] %vm199, %v369
      %403 = vst.msk [vmem:[%s388 + $0xe8] sm:$0xff] %vm199, %v370
      %404 = vst.msk [vmem:[%s388 + $0xf0] sm:$0xff] %vm199, %v371
      %405 = vst.msk [vmem:[%s388 + $0x108] sm:$0xff] %vm199, %v372
      %406 = vst.msk [vmem:[%s388 + $0x110] sm:$0xff] %vm199, %v373
      %407 = vst.msk [vmem:[%s388 + $0x128] sm:$0xff] %vm199, %v374
      %408 = vst.msk [vmem:[%s388 + $0x130] sm:$0xff] %vm199, %v375
      %409 = vst.msk [vmem:[%s388 + $0x148] sm:$0xff] %vm199, %v376
      %410 = vst.msk [vmem:[%s388 + $0x150] sm:$0xff] %vm199, %v377
      %411 = vst.msk [vmem:[%s388 + $0x168] sm:$0xff] %vm199, %v378
      %412 = vst.msk [vmem:[%s388 + $0x170] sm:$0xff] %vm199, %v379
      %413 = vst.msk [vmem:[%s388 + $0x188] sm:$0xff] %vm199, %v380
      %414 = vst.msk [vmem:[%s388 + $0x190] sm:$0xff] %vm199, %v381
      %415 = vst.msk [vmem:[%s388 + $0x1a8] sm:$0xff] %vm199, %v382
      %416 = vst.msk [vmem:[%s388 + $0x1b0] sm:$0xff] %vm199, %v383
      %417 = vst.msk [vmem:[%s388 + $0x1c8] sm:$0xff] %vm199, %v384
      %418 = vst.msk [vmem:[%s388 + $0x1d0] sm:$0xff] %vm199, %v385
      %419 = vst.msk [vmem:[%s388 + $0x1e8] sm:$0xff] %vm199, %v386
      %420 = vst.msk [vmem:[%s388 + $0x1f0] sm:$0xff] %vm199, %v387
      %v421 = vld [vmem:[#allocation2 + $0x7] sm:$0xff]
      %v422 = vld [vmem:[#allocation2 + $0xf] sm:$0xff]
      %v423 = vld [vmem:[#allocation2 + $0x27] sm:$0xff]
      %v424 = vld [vmem:[#allocation2 + $0x2f] sm:$0xff]
      %v425 = vld [vmem:[#allocation2 + $0x47] sm:$0xff]
      %v426 = vld [vmem:[#allocation2 + $0x4f] sm:$0xff]
      %v427 = vld [vmem:[#allocation2 + $0x67] sm:$0xff]
      %v428 = vld [vmem:[#allocation2 + $0x6f] sm:$0xff]
      %v429 = vld [vmem:[#allocation2 + $0x87] sm:$0xff]
      %v430 = vld [vmem:[#allocation2 + $0x8f] sm:$0xff]
      %v431 = vld [vmem:[#allocation2 + $0xa7] sm:$0xff]
      %v432 = vld [vmem:[#allocation2 + $0xaf] sm:$0xff]
      %v433 = vld [vmem:[#allocation2 + $0xc7] sm:$0xff]
      %v434 = vld [vmem:[#allocation2 + $0xcf] sm:$0xff]
      %v435 = vld [vmem:[#allocation2 + $0xe7] sm:$0xff]
      %v436 = vld [vmem:[#allocation2 + $0xef] sm:$0xff]
      %v437 = vld [vmem:[#allocation2 + $0x107] sm:$0xff]
      %v438 = vld [vmem:[#allocation2 + $0x10f] sm:$0xff]
      %v439 = vld [vmem:[#allocation2 + $0x127] sm:$0xff]
      %v440 = vld [vmem:[#allocation2 + $0x12f] sm:$0xff]
      %v441 = vld [vmem:[#allocation2 + $0x147] sm:$0xff]
      %v442 = vld [vmem:[#allocation2 + $0x14f] sm:$0xff]
      %v443 = vld [vmem:[#allocation2 + $0x167] sm:$0xff]
      %v444 = vld [vmem:[#allocation2 + $0x16f] sm:$0xff]
      %v445 = vld [vmem:[#allocation2 + $0x187] sm:$0xff]
      %v446 = vld [vmem:[#allocation2 + $0x18f] sm:$0xff]
      %v447 = vld [vmem:[#allocation2 + $0x1a7] sm:$0xff]
      %v448 = vld [vmem:[#allocation2 + $0x1af] sm:$0xff]
      %v449 = vld [vmem:[#allocation2 + $0x1c7] sm:$0xff]
      %v450 = vld [vmem:[#allocation2 + $0x1cf] sm:$0xff]
      %v451 = vld [vmem:[#allocation2 + $0x1e7] sm:$0xff]
      %v452 = vld [vmem:[#allocation2 + $0x1ef] sm:$0xff]
      %v453 = vld [vmem:[#allocation2 + $0x8] sm:$0xff]
      %v454 = vld [vmem:[#allocation2 + $0x10] sm:$0xff]
      %v455 = vld [vmem:[#allocation2 + $0x28] sm:$0xff]
      %v456 = vld [vmem:[#allocation2 + $0x30] sm:$0xff]
      %v457 = vld [vmem:[#allocation2 + $0x48] sm:$0xff]
      %v458 = vld [vmem:[#allocation2 + $0x50] sm:$0xff]
      %v459 = vld [vmem:[#allocation2 + $0x68] sm:$0xff]
      %v460 = vld [vmem:[#allocation2 + $0x70] sm:$0xff]
      %v461 = vld [vmem:[#allocation2 + $0x88] sm:$0xff]
      %v462 = vld [vmem:[#allocation2 + $0x90] sm:$0xff]
      %v463 = vld [vmem:[#allocation2 + $0xa8] sm:$0xff]
      %v464 = vld [vmem:[#allocation2 + $0xb0] sm:$0xff]
      %v465 = vld [vmem:[#allocation2 + $0xc8] sm:$0xff]
      %v466 = vld [vmem:[#allocation2 + $0xd0] sm:$0xff]
      %v467 = vld [vmem:[#allocation2 + $0xe8] sm:$0xff]
      %v468 = vld [vmem:[#allocation2 + $0xf0] sm:$0xff]
      %v469 = vld [vmem:[#allocation2 + $0x108] sm:$0xff]
      %v470 = vld [vmem:[#allocation2 + $0x110] sm:$0xff]
      %v471 = vld [vmem:[#allocation2 + $0x128] sm:$0xff]
      %v472 = vld [vmem:[#allocation2 + $0x130] sm:$0xff]
      %v473 = vld [vmem:[#allocation2 + $0x148] sm:$0xff]
      %v474 = vld [vmem:[#allocation2 + $0x150] sm:$0xff]
      %v475 = vld [vmem:[#allocation2 + $0x168] sm:$0xff]
      %v476 = vld [vmem:[#allocation2 + $0x170] sm:$0xff]
      %v477 = vld [vmem:[#allocation2 + $0x188] sm:$0xff]
      %v478 = vld [vmem:[#allocation2 + $0x190] sm:$0xff]
      %v479 = vld [vmem:[#allocation2 + $0x1a8] sm:$0xff]
      %v480 = vld [vmem:[#allocation2 + $0x1b0] sm:$0xff]
      %v481 = vld [vmem:[#allocation2 + $0x1c8] sm:$0xff]
      %v482 = vld [vmem:[#allocation2 + $0x1d0] sm:$0xff]
      %v483 = vld [vmem:[#allocation2 + $0x1e8] sm:$0xff]
      %v484 = vld [vmem:[#allocation2 + $0x1f0] sm:$0xff]
      %v485 = vld [vmem:[#allocation2 + $0x9] sm:$0xff]
      %v486 = vld [vmem:[#allocation2 + $0x11] sm:$0xff]
      %v487 = vld [vmem:[#allocation2 + $0x29] sm:$0xff]
      %v488 = vld [vmem:[#allocation2 + $0x31] sm:$0xff]
      %v489 = vld [vmem:[#allocation2 + $0x49] sm:$0xff]
      %v490 = vld [vmem:[#allocation2 + $0x51] sm:$0xff]
      %v491 = vld [vmem:[#allocation2 + $0x69] sm:$0xff]
      %v492 = vld [vmem:[#allocation2 + $0x71] sm:$0xff]
      %v493 = vld [vmem:[#allocation2 + $0x89] sm:$0xff]
      %v494 = vld [vmem:[#allocation2 + $0x91] sm:$0xff]
      %v495 = vld [vmem:[#allocation2 + $0xa9] sm:$0xff]
      %v496 = vld [vmem:[#allocation2 + $0xb1] sm:$0xff]
      %v497 = vld [vmem:[#allocation2 + $0xc9] sm:$0xff]
      %v498 = vld [vmem:[#allocation2 + $0xd1] sm:$0xff]
      %v499 = vld [vmem:[#allocation2 + $0xe9] sm:$0xff]
      %v500 = vld [vmem:[#allocation2 + $0xf1] sm:$0xff]
      %v501 = vld [vmem:[#allocation2 + $0x109] sm:$0xff]
      %v502 = vld [vmem:[#allocation2 + $0x111] sm:$0xff]
      %v503 = vld [vmem:[#allocation2 + $0x129] sm:$0xff]
      %v504 = vld [vmem:[#allocation2 + $0x131] sm:$0xff]
      %v505 = vld [vmem:[#allocation2 + $0x149] sm:$0xff]
      %v506 = vld [vmem:[#allocation2 + $0x151] sm:$0xff]
      %v507 = vld [vmem:[#allocation2 + $0x169] sm:$0xff]
      %v508 = vld [vmem:[#allocation2 + $0x171] sm:$0xff]
      %v509 = vld [vmem:[#allocation2 + $0x189] sm:$0xff]
      %v510 = vld [vmem:[#allocation2 + $0x191] sm:$0xff]
      %v511 = vld [vmem:[#allocation2 + $0x1a9] sm:$0xff]
      %v512 = vld [vmem:[#allocation2 + $0x1b1] sm:$0xff]
      %v513 = vld [vmem:[#allocation2 + $0x1c9] sm:$0xff]
      %v514 = vld [vmem:[#allocation2 + $0x1d1] sm:$0xff]
      %v515 = vld [vmem:[#allocation2 + $0x1e9] sm:$0xff]
      %v516 = vld [vmem:[#allocation2 + $0x1f1] sm:$0xff]
      %549 = vrot.lane.b32.xlu0 %v453, 32
      %v550 = vpop.permute.xlu0 %549
      %551 = vrot.lane.b32.xlu0 %v454, 32
      %v552 = vpop.permute.xlu0 %551
      %553 = vrot.lane.b32.xlu0 %v455, 32
      %v554 = vpop.permute.xlu0 %553
      %555 = vrot.lane.b32.xlu0 %v456, 32
      %v556 = vpop.permute.xlu0 %555
      %557 = vrot.lane.b32.xlu0 %v457, 32
      %v558 = vpop.permute.xlu0 %557
      %559 = vrot.lane.b32.xlu0 %v458, 32
      %v560 = vpop.permute.xlu0 %559
      %561 = vrot.lane.b32.xlu0 %v459, 32
      %v562 = vpop.permute.xlu0 %561
      %563 = vrot.lane.b32.xlu0 %v460, 32
      %v564 = vpop.permute.xlu0 %563
      %565 = vrot.lane.b32.xlu0 %v461, 32
      %v566 = vpop.permute.xlu0 %565
      %567 = vrot.lane.b32.xlu0 %v462, 32
      %v568 = vpop.permute.xlu0 %567
      %569 = vrot.lane.b32.xlu0 %v463, 32
      %v570 = vpop.permute.xlu0 %569
      %571 = vrot.lane.b32.xlu0 %v464, 32
      %v572 = vpop.permute.xlu0 %571
      %573 = vrot.lane.b32.xlu0 %v465, 32
      %v574 = vpop.permute.xlu0 %573
      %575 = vrot.lane.b32.xlu0 %v466, 32
      %v576 = vpop.permute.xlu0 %575
      %577 = vrot.lane.b32.xlu0 %v467, 32
      %v578 = vpop.permute.xlu0 %577
      %579 = vrot.lane.b32.xlu0 %v468, 32
      %v580 = vpop.permute.xlu0 %579
      %581 = vrot.lane.b32.xlu0 %v469, 32
      %v582 = vpop.permute.xlu0 %581
      %583 = vrot.lane.b32.xlu0 %v470, 32
      %v584 = vpop.permute.xlu0 %583
      %585 = vrot.lane.b32.xlu0 %v471, 32
      %v586 = vpop.permute.xlu0 %585
      %587 = vrot.lane.b32.xlu0 %v472, 32
      %v588 = vpop.permute.xlu0 %587
      %589 = vrot.lane.b32.xlu0 %v473, 32
      %v590 = vpop.permute.xlu0 %589
      %591 = vrot.lane.b32.xlu0 %v474, 32
      %v592 = vpop.permute.xlu0 %591
      %593 = vrot.lane.b32.xlu0 %v475, 32
      %v594 = vpop.permute.xlu0 %593
      %595 = vrot.lane.b32.xlu0 %v476, 32
      %v596 = vpop.permute.xlu0 %595
      %597 = vrot.lane.b32.xlu0 %v477, 32
      %v598 = vpop.permute.xlu0 %597
      %599 = vrot.lane.b32.xlu0 %v478, 32
      %v600 = vpop.permute.xlu0 %599
      %601 = vrot.lane.b32.xlu0 %v479, 32
      %v602 = vpop.permute.xlu0 %601
      %603 = vrot.lane.b32.xlu0 %v480, 32
      %v604 = vpop.permute.xlu0 %603
      %605 = vrot.lane.b32.xlu0 %v481, 32
      %v606 = vpop.permute.xlu0 %605
      %607 = vrot.lane.b32.xlu0 %v482, 32
      %v608 = vpop.permute.xlu0 %607
      %609 = vrot.lane.b32.xlu0 %v483, 32
      %v610 = vpop.permute.xlu0 %609
      %611 = vrot.lane.b32.xlu0 %v484, 32
      %v612 = vpop.permute.xlu0 %611
      %677 = vrot.lane.b32.xlu0 %v485, 64
      %v678 = vpop.permute.xlu0 %677
      %679 = vrot.lane.b32.xlu0 %v486, 64
      %v680 = vpop.permute.xlu0 %679
      %681 = vrot.lane.b32.xlu0 %v487, 64
      %v682 = vpop.permute.xlu0 %681
      %683 = vrot.lane.b32.xlu0 %v488, 64
      %v684 = vpop.permute.xlu0 %683
      %685 = vrot.lane.b32.xlu0 %v489, 64
      %v686 = vpop.permute.xlu0 %685
      %687 = vrot.lane.b32.xlu0 %v490, 64
      %v688 = vpop.permute.xlu0 %687
      %689 = vrot.lane.b32.xlu0 %v491, 64
      %v690 = vpop.permute.xlu0 %689
      %691 = vrot.lane.b32.xlu0 %v492, 64
      %v692 = vpop.permute.xlu0 %691
      %693 = vrot.lane.b32.xlu0 %v493, 64
      %v694 = vpop.permute.xlu0 %693
      %695 = vrot.lane.b32.xlu0 %v494, 64
      %v696 = vpop.permute.xlu0 %695
      %697 = vrot.lane.b32.xlu0 %v495, 64
      %v698 = vpop.permute.xlu0 %697
      %699 = vrot.lane.b32.xlu0 %v496, 64
      %v700 = vpop.permute.xlu0 %699
      %701 = vrot.lane.b32.xlu0 %v497, 64
      %v702 = vpop.permute.xlu0 %701
      %703 = vrot.lane.b32.xlu0 %v498, 64
      %v704 = vpop.permute.xlu0 %703
      %705 = vrot.lane.b32.xlu0 %v499, 64
      %v706 = vpop.permute.xlu0 %705
      %707 = vrot.lane.b32.xlu0 %v500, 64
      %v708 = vpop.permute.xlu0 %707
      %709 = vrot.lane.b32.xlu0 %v501, 64
      %v710 = vpop.permute.xlu0 %709
      %711 = vrot.lane.b32.xlu0 %v502, 64
      %v712 = vpop.permute.xlu0 %711
      %713 = vrot.lane.b32.xlu0 %v503, 64
      %v714 = vpop.permute.xlu0 %713
      %715 = vrot.lane.b32.xlu0 %v504, 64
      %v716 = vpop.permute.xlu0 %715
      %717 = vrot.lane.b32.xlu0 %v505, 64
      %v718 = vpop.permute.xlu0 %717
      %719 = vrot.lane.b32.xlu0 %v506, 64
      %v720 = vpop.permute.xlu0 %719
      %721 = vrot.lane.b32.xlu0 %v507, 64
      %v722 = vpop.permute.xlu0 %721
      %723 = vrot.lane.b32.xlu0 %v508, 64
      %v724 = vpop.permute.xlu0 %723
      %725 = vrot.lane.b32.xlu0 %v509, 64
      %v726 = vpop.permute.xlu0 %725
      %727 = vrot.lane.b32.xlu0 %v510, 64
      %v728 = vpop.permute.xlu0 %727
      %729 = vrot.lane.b32.xlu0 %v511, 64
      %v730 = vpop.permute.xlu0 %729
      %731 = vrot.lane.b32.xlu0 %v512, 64
      %v732 = vpop.permute.xlu0 %731
      %733 = vrot.lane.b32.xlu0 %v513, 64
      %v734 = vpop.permute.xlu0 %733
      %735 = vrot.lane.b32.xlu0 %v514, 64
      %v736 = vpop.permute.xlu0 %735
      %737 = vrot.lane.b32.xlu0 %v515, 64
      %v738 = vpop.permute.xlu0 %737
      %739 = vrot.lane.b32.xlu0 %v516, 64
      %v740 = vpop.permute.xlu0 %739
      %v773 = vsel %vm199, %v421, %v550
      %v774 = vsel %vm199, %v422, %v552
      %v775 = vsel %vm199, %v423, %v554
      %v776 = vsel %vm199, %v424, %v556
      %v777 = vsel %vm199, %v425, %v558
      %v778 = vsel %vm199, %v426, %v560
      %v779 = vsel %vm199, %v427, %v562
      %v780 = vsel %vm199, %v428, %v564
      %v781 = vsel %vm199, %v429, %v566
      %v782 = vsel %vm199, %v430, %v568
      %v783 = vsel %vm199, %v431, %v570
      %v784 = vsel %vm199, %v432, %v572
      %v785 = vsel %vm199, %v433, %v574
      %v786 = vsel %vm199, %v434, %v576
      %v787 = vsel %vm199, %v435, %v578
      %v788 = vsel %vm199, %v436, %v580
      %v789 = vsel %vm199, %v437, %v582
      %v790 = vsel %vm199, %v438, %v584
      %v791 = vsel %vm199, %v439, %v586
      %v792 = vsel %vm199, %v440, %v588
      %v793 = vsel %vm199, %v441, %v590
      %v794 = vsel %vm199, %v442, %v592
      %v795 = vsel %vm199, %v443, %v594
      %v796 = vsel %vm199, %v444, %v596
      %v797 = vsel %vm199, %v445, %v598
      %v798 = vsel %vm199, %v446, %v600
      %v799 = vsel %vm199, %v447, %v602
      %v800 = vsel %vm199, %v448, %v604
      %v801 = vsel %vm199, %v449, %v606
      %v802 = vsel %vm199, %v450, %v608
      %v803 = vsel %vm199, %v451, %v610
      %v804 = vsel %vm199, %v452, %v612
      %vm805 = vcmask 523264
      %v806 = vsel %vm805, %v773, %v678
      %v807 = vsel %vm805, %v774, %v680
      %v808 = vsel %vm805, %v775, %v682
      %v809 = vsel %vm805, %v776, %v684
      %v810 = vsel %vm805, %v777, %v686
      %v811 = vsel %vm805, %v778, %v688
      %v812 = vsel %vm805, %v779, %v690
      %v813 = vsel %vm805, %v780, %v692
      %v814 = vsel %vm805, %v781, %v694
      %v815 = vsel %vm805, %v782, %v696
      %v816 = vsel %vm805, %v783, %v698
      %v817 = vsel %vm805, %v784, %v700
      %v818 = vsel %vm805, %v785, %v702
      %v819 = vsel %vm805, %v786, %v704
      %v820 = vsel %vm805, %v787, %v706
      %v821 = vsel %vm805, %v788, %v708
      %v822 = vsel %vm805, %v789, %v710
      %v823 = vsel %vm805, %v790, %v712
      %v824 = vsel %vm805, %v791, %v714
      %v825 = vsel %vm805, %v792, %v716
      %v826 = vsel %vm805, %v793, %v718
      %v827 = vsel %vm805, %v794, %v720
      %v828 = vsel %vm805, %v795, %v722
      %v829 = vsel %vm805, %v796, %v724
      %v830 = vsel %vm805, %v797, %v726
      %v831 = vsel %vm805, %v798, %v728
      %v832 = vsel %vm805, %v799, %v730
      %v833 = vsel %vm805, %v800, %v732
      %v834 = vsel %vm805, %v801, %v734
      %v835 = vsel %vm805, %v802, %v736
      %v836 = vsel %vm805, %v803, %v738
      %v837 = vsel %vm805, %v804, %v740
      %v838 = vpack.c.bf16 %v807, %v806
      %v839 = vpack.c.bf16 %v809, %v808
      %v840 = vpack.c.bf16 %v811, %v810
      %v841 = vpack.c.bf16 %v813, %v812
      %v842 = vpack.c.bf16 %v815, %v814
      %v843 = vpack.c.bf16 %v817, %v816
      %v844 = vpack.c.bf16 %v819, %v818
      %v845 = vpack.c.bf16 %v821, %v820
      %v846 = vpack.c.bf16 %v823, %v822
      %v847 = vpack.c.bf16 %v825, %v824
      %v848 = vpack.c.bf16 %v827, %v826
      %v849 = vpack.c.bf16 %v829, %v828
      %v850 = vpack.c.bf16 %v831, %v830
      %v851 = vpack.c.bf16 %v833, %v832
      %v852 = vpack.c.bf16 %v835, %v834
      %v853 = vpack.c.bf16 %v837, %v836
      %v854 = vld [vmem:[%s3] sm:$0xf]
      %v855 = vld [vmem:[%s3 + $0x4] sm:$0xf]
      %v856 = vld [vmem:[%s3 + $0x8] sm:$0xf]
      %v857 = vld [vmem:[%s3 + $0xc] sm:$0xf]
      %v858 = vld [vmem:[%s3 + $0x10] sm:$0xf]
      %v859 = vld [vmem:[%s3 + $0x14] sm:$0xf]
      %v860 = vld [vmem:[%s3 + $0x18] sm:$0xf]
      %v861 = vld [vmem:[%s3 + $0x1c] sm:$0xf]
      %v862 = vld [vmem:[%s3 + $0x20] sm:$0xf]
      %v863 = vld [vmem:[%s3 + $0x24] sm:$0xf]
      %v864 = vld [vmem:[%s3 + $0x28] sm:$0xf]
      %v865 = vld [vmem:[%s3 + $0x2c] sm:$0xf]
      %v866 = vld [vmem:[%s388 + $0x7] sm:$0xff]
      %v867 = vld [vmem:[%s388 + $0xf] sm:$0xff]
      %v868 = vld [vmem:[%s388 + $0x27] sm:$0xff]
      %v869 = vld [vmem:[%s388 + $0x2f] sm:$0xff]
      %v870 = vld [vmem:[%s388 + $0x47] sm:$0xff]
      %v871 = vld [vmem:[%s388 + $0x4f] sm:$0xff]
      %v872 = vld [vmem:[%s388 + $0x67] sm:$0xff]
      %v873 = vld [vmem:[%s388 + $0x6f] sm:$0xff]
      %v874 = vld [vmem:[%s388 + $0x87] sm:$0xff]
      %v875 = vld [vmem:[%s388 + $0x8f] sm:$0xff]
      %v876 = vld [vmem:[%s388 + $0xa7] sm:$0xff]
      %v877 = vld [vmem:[%s388 + $0xaf] sm:$0xff]
      %v878 = vld [vmem:[%s388 + $0xc7] sm:$0xff]
      %v879 = vld [vmem:[%s388 + $0xcf] sm:$0xff]
      %v880 = vld [vmem:[%s388 + $0xe7] sm:$0xff]
      %v881 = vld [vmem:[%s388 + $0xef] sm:$0xff]
      %v882 = vld [vmem:[%s388 + $0x107] sm:$0xff]
      %v883 = vld [vmem:[%s388 + $0x10f] sm:$0xff]
      %v884 = vld [vmem:[%s388 + $0x127] sm:$0xff]
      %v885 = vld [vmem:[%s388 + $0x12f] sm:$0xff]
      %v886 = vld [vmem:[%s388 + $0x147] sm:$0xff]
      %v887 = vld [vmem:[%s388 + $0x14f] sm:$0xff]
      %v888 = vld [vmem:[%s388 + $0x167] sm:$0xff]
      %v889 = vld [vmem:[%s388 + $0x16f] sm:$0xff]
      %v890 = vld [vmem:[%s388 + $0x187] sm:$0xff]
      %v891 = vld [vmem:[%s388 + $0x18f] sm:$0xff]
      %v892 = vld [vmem:[%s388 + $0x1a7] sm:$0xff]
      %v893 = vld [vmem:[%s388 + $0x1af] sm:$0xff]
      %v894 = vld [vmem:[%s388 + $0x1c7] sm:$0xff]
      %v895 = vld [vmem:[%s388 + $0x1cf] sm:$0xff]
      %v896 = vld [vmem:[%s388 + $0x1e7] sm:$0xff]
      %v897 = vld [vmem:[%s388 + $0x1ef] sm:$0xff]
      %v898 = vld [vmem:[%s388 + $0x8] sm:$0xff]
      %v899 = vld [vmem:[%s388 + $0x10] sm:$0xff]
      %v900 = vld [vmem:[%s388 + $0x28] sm:$0xff]
      %v901 = vld [vmem:[%s388 + $0x30] sm:$0xff]
      %v902 = vld [vmem:[%s388 + $0x48] sm:$0xff]
      %v903 = vld [vmem:[%s388 + $0x50] sm:$0xff]
      %v904 = vld [vmem:[%s388 + $0x68] sm:$0xff]
      %v905 = vld [vmem:[%s388 + $0x70] sm:$0xff]
      %v906 = vld [vmem:[%s388 + $0x88] sm:$0xff]
      %v907 = vld [vmem:[%s388 + $0x90] sm:$0xff]
      %v908 = vld [vmem:[%s388 + $0xa8] sm:$0xff]
      %v909 = vld [vmem:[%s388 + $0xb0] sm:$0xff]
      %v910 = vld [vmem:[%s388 + $0xc8] sm:$0xff]
      %v911 = vld [vmem:[%s388 + $0xd0] sm:$0xff]
      %v912 = vld [vmem:[%s388 + $0xe8] sm:$0xff]
      %v913 = vld [vmem:[%s388 + $0xf0] sm:$0xff]
      %v914 = vld [vmem:[%s388 + $0x108] sm:$0xff]
      %v915 = vld [vmem:[%s388 + $0x110] sm:$0xff]
      %v916 = vld [vmem:[%s388 + $0x128] sm:$0xff]
      %v917 = vld [vmem:[%s388 + $0x130] sm:$0xff]
      %v918 = vld [vmem:[%s388 + $0x148] sm:$0xff]
      %v919 = vld [vmem:[%s388 + $0x150] sm:$0xff]
      %v920 = vld [vmem:[%s388 + $0x168] sm:$0xff]
      %v921 = vld [vmem:[%s388 + $0x170] sm:$0xff]
      %v922 = vld [vmem:[%s388 + $0x188] sm:$0xff]
      %v923 = vld [vmem:[%s388 + $0x190] sm:$0xff]
      %v924 = vld [vmem:[%s388 + $0x1a8] sm:$0xff]
      %v925 = vld [vmem:[%s388 + $0x1b0] sm:$0xff]
      %v926 = vld [vmem:[%s388 + $0x1c8] sm:$0xff]
      %v927 = vld [vmem:[%s388 + $0x1d0] sm:$0xff]
      %v928 = vld [vmem:[%s388 + $0x1e8] sm:$0xff]
      %v929 = vld [vmem:[%s388 + $0x1f0] sm:$0xff]
      %v930 = vld [vmem:[%s388 + $0x9] sm:$0xff]
      %v931 = vld [vmem:[%s388 + $0x11] sm:$0xff]
      %v932 = vld [vmem:[%s388 + $0x29] sm:$0xff]
      %v933 = vld [vmem:[%s388 + $0x31] sm:$0xff]
      %v934 = vld [vmem:[%s388 + $0x49] sm:$0xff]
      %v935 = vld [vmem:[%s388 + $0x51] sm:$0xff]
      %v936 = vld [vmem:[%s388 + $0x69] sm:$0xff]
      %v937 = vld [vmem:[%s388 + $0x71] sm:$0xff]
      %v938 = vld [vmem:[%s388 + $0x89] sm:$0xff]
      %v939 = vld [vmem:[%s388 + $0x91] sm:$0xff]
      %v940 = vld [vmem:[%s388 + $0xa9] sm:$0xff]
      %v941 = vld [vmem:[%s388 + $0xb1] sm:$0xff]
      %v942 = vld [vmem:[%s388 + $0xc9] sm:$0xff]
      %v943 = vld [vmem:[%s388 + $0xd1] sm:$0xff]
      %v944 = vld [vmem:[%s388 + $0xe9] sm:$0xff]
      %v945 = vld [vmem:[%s388 + $0xf1] sm:$0xff]
      %v946 = vld [vmem:[%s388 + $0x109] sm:$0xff]
      %v947 = vld [vmem:[%s388 + $0x111] sm:$0xff]
      %v948 = vld [vmem:[%s388 + $0x129] sm:$0xff]
      %v949 = vld [vmem:[%s388 + $0x131] sm:$0xff]
      %v950 = vld [vmem:[%s388 + $0x149] sm:$0xff]
      %v951 = vld [vmem:[%s388 + $0x151] sm:$0xff]
      %v952 = vld [vmem:[%s388 + $0x169] sm:$0xff]
      %v953 = vld [vmem:[%s388 + $0x171] sm:$0xff]
      %v954 = vld [vmem:[%s388 + $0x189] sm:$0xff]
      %v955 = vld [vmem:[%s388 + $0x191] sm:$0xff]
      %v956 = vld [vmem:[%s388 + $0x1a9] sm:$0xff]
      %v957 = vld [vmem:[%s388 + $0x1b1] sm:$0xff]
      %v958 = vld [vmem:[%s388 + $0x1c9] sm:$0xff]
      %v959 = vld [vmem:[%s388 + $0x1d1] sm:$0xff]
      %v960 = vld [vmem:[%s388 + $0x1e9] sm:$0xff]
      %v961 = vld [vmem:[%s388 + $0x1f1] sm:$0xff]
      %994 = vrot.lane.b32.xlu0 %v898, 32
      %v995 = vpop.permute.xlu0 %994
      %996 = vrot.lane.b32.xlu0 %v899, 32
      %v997 = vpop.permute.xlu0 %996
      %998 = vrot.lane.b32.xlu0 %v900, 32
      %v999 = vpop.permute.xlu0 %998
      %1000 = vrot.lane.b32.xlu0 %v901, 32
      %v1001 = vpop.permute.xlu0 %1000
      %1002 = vrot.lane.b32.xlu0 %v902, 32
      %v1003 = vpop.permute.xlu0 %1002
      %1004 = vrot.lane.b32.xlu0 %v903, 32
      %v1005 = vpop.permute.xlu0 %1004
      %1006 = vrot.lane.b32.xlu0 %v904, 32
      %v1007 = vpop.permute.xlu0 %1006
      %1008 = vrot.lane.b32.xlu0 %v905, 32
      %v1009 = vpop.permute.xlu0 %1008
      %1010 = vrot.lane.b32.xlu0 %v906, 32
      %v1011 = vpop.permute.xlu0 %1010
      %1012 = vrot.lane.b32.xlu0 %v907, 32
      %v1013 = vpop.permute.xlu0 %1012
      %1014 = vrot.lane.b32.xlu0 %v908, 32
      %v1015 = vpop.permute.xlu0 %1014
      %1016 = vrot.lane.b32.xlu0 %v909, 32
      %v1017 = vpop.permute.xlu0 %1016
      %1018 = vrot.lane.b32.xlu0 %v910, 32
      %v1019 = vpop.permute.xlu0 %1018
      %1020 = vrot.lane.b32.xlu0 %v911, 32
      %v1021 = vpop.permute.xlu0 %1020
      %1022 = vrot.lane.b32.xlu0 %v912, 32
      %v1023 = vpop.permute.xlu0 %1022
      %1024 = vrot.lane.b32.xlu0 %v913, 32
      %v1025 = vpop.permute.xlu0 %1024
      %1026 = vrot.lane.b32.xlu0 %v914, 32
      %v1027 = vpop.permute.xlu0 %1026
      %1028 = vrot.lane.b32.xlu0 %v915, 32
      %v1029 = vpop.permute.xlu0 %1028
      %1030 = vrot.lane.b32.xlu0 %v916, 32
      %v1031 = vpop.permute.xlu0 %1030
      %1032 = vrot.lane.b32.xlu0 %v917, 32
      %v1033 = vpop.permute.xlu0 %1032
      %1034 = vrot.lane.b32.xlu0 %v918, 32
      %v1035 = vpop.permute.xlu0 %1034
      %1036 = vrot.lane.b32.xlu0 %v919, 32
      %v1037 = vpop.permute.xlu0 %1036
      %1038 = vrot.lane.b32.xlu0 %v920, 32
      %v1039 = vpop.permute.xlu0 %1038
      %1040 = vrot.lane.b32.xlu0 %v921, 32
      %v1041 = vpop.permute.xlu0 %1040
      %1042 = vrot.lane.b32.xlu0 %v922, 32
      %v1043 = vpop.permute.xlu0 %1042
      %1044 = vrot.lane.b32.xlu0 %v923, 32
      %v1045 = vpop.permute.xlu0 %1044
      %1046 = vrot.lane.b32.xlu0 %v924, 32
      %v1047 = vpop.permute.xlu0 %1046
      %1048 = vrot.lane.b32.xlu0 %v925, 32
      %v1049 = vpop.permute.xlu0 %1048
      %1050 = vrot.lane.b32.xlu0 %v926, 32
      %v1051 = vpop.permute.xlu0 %1050
      %1052 = vrot.lane.b32.xlu0 %v927, 32
      %v1053 = vpop.permute.xlu0 %1052
      %1054 = vrot.lane.b32.xlu0 %v928, 32
      %v1055 = vpop.permute.xlu0 %1054
      %1056 = vrot.lane.b32.xlu0 %v929, 32
      %v1057 = vpop.permute.xlu0 %1056
      %1122 = vrot.lane.b32.xlu0 %v930, 64
      %v1123 = vpop.permute.xlu0 %1122
      %1124 = vrot.lane.b32.xlu0 %v931, 64
      %v1125 = vpop.permute.xlu0 %1124
      %1126 = vrot.lane.b32.xlu0 %v932, 64
      %v1127 = vpop.permute.xlu0 %1126
      %1128 = vrot.lane.b32.xlu0 %v933, 64
      %v1129 = vpop.permute.xlu0 %1128
      %1130 = vrot.lane.b32.xlu0 %v934, 64
      %v1131 = vpop.permute.xlu0 %1130
      %1132 = vrot.lane.b32.xlu0 %v935, 64
      %v1133 = vpop.permute.xlu0 %1132
      %1134 = vrot.lane.b32.xlu0 %v936, 64
      %v1135 = vpop.permute.xlu0 %1134
      %1136 = vrot.lane.b32.xlu0 %v937, 64
      %v1137 = vpop.permute.xlu0 %1136
      %1138 = vrot.lane.b32.xlu0 %v938, 64
      %v1139 = vpop.permute.xlu0 %1138
      %1140 = vrot.lane.b32.xlu0 %v939, 64
      %v1141 = vpop.permute.xlu0 %1140
      %1142 = vrot.lane.b32.xlu0 %v940, 64
      %v1143 = vpop.permute.xlu0 %1142
      %1144 = vrot.lane.b32.xlu0 %v941, 64
      %v1145 = vpop.permute.xlu0 %1144
      %1146 = vrot.lane.b32.xlu0 %v942, 64
      %v1147 = vpop.permute.xlu0 %1146
      %1148 = vrot.lane.b32.xlu0 %v943, 64
      %v1149 = vpop.permute.xlu0 %1148
      %1150 = vrot.lane.b32.xlu0 %v944, 64
      %v1151 = vpop.permute.xlu0 %1150
      %1152 = vrot.lane.b32.xlu0 %v945, 64
      %v1153 = vpop.permute.xlu0 %1152
      %1154 = vrot.lane.b32.xlu0 %v946, 64
      %v1155 = vpop.permute.xlu0 %1154
      %1156 = vrot.lane.b32.xlu0 %v947, 64
      %v1157 = vpop.permute.xlu0 %1156
      %1158 = vrot.lane.b32.xlu0 %v948, 64
      %v1159 = vpop.permute.xlu0 %1158
      %1160 = vrot.lane.b32.xlu0 %v949, 64
      %v1161 = vpop.permute.xlu0 %1160
      %1162 = vrot.lane.b32.xlu0 %v950, 64
      %v1163 = vpop.permute.xlu0 %1162
      %1164 = vrot.lane.b32.xlu0 %v951, 64
      %v1165 = vpop.permute.xlu0 %1164
      %1166 = vrot.lane.b32.xlu0 %v952, 64
      %v1167 = vpop.permute.xlu0 %1166
      %1168 = vrot.lane.b32.xlu0 %v953, 64
      %v1169 = vpop.permute.xlu0 %1168
      %1170 = vrot.lane.b32.xlu0 %v954, 64
      %v1171 = vpop.permute.xlu0 %1170
      %1172 = vrot.lane.b32.xlu0 %v955, 64
      %v1173 = vpop.permute.xlu0 %1172
      %1174 = vrot.lane.b32.xlu0 %v956, 64
      %v1175 = vpop.permute.xlu0 %1174
      %1176 = vrot.lane.b32.xlu0 %v957, 64
      %v1177 = vpop.permute.xlu0 %1176
      %1178 = vrot.lane.b32.xlu0 %v958, 64
      %v1179 = vpop.permute.xlu0 %1178
      %1180 = vrot.lane.b32.xlu0 %v959, 64
      %v1181 = vpop.permute.xlu0 %1180
      %1182 = vrot.lane.b32.xlu0 %v960, 64
      %v1183 = vpop.permute.xlu0 %1182
      %1184 = vrot.lane.b32.xlu0 %v961, 64
      %v1185 = vpop.permute.xlu0 %1184
      %v1218 = vsel %vm199, %v866, %v995
      %v1219 = vsel %vm199, %v867, %v997
      %v1220 = vsel %vm199, %v868, %v999
      %v1221 = vsel %vm199, %v869, %v1001
      %v1222 = vsel %vm199, %v870, %v1003
      %v1223 = vsel %vm199, %v871, %v1005
      %v1224 = vsel %vm199, %v872, %v1007
      %v1225 = vsel %vm199, %v873, %v1009
      %v1226 = vsel %vm199, %v874, %v1011
      %v1227 = vsel %vm199, %v875, %v1013
      %v1228 = vsel %vm199, %v876, %v1015
      %v1229 = vsel %vm199, %v877, %v1017
      %v1230 = vsel %vm199, %v878, %v1019
      %v1231 = vsel %vm199, %v879, %v1021
      %v1232 = vsel %vm199, %v880, %v1023
      %v1233 = vsel %vm199, %v881, %v1025
      %v1234 = vsel %vm199, %v882, %v1027
      %v1235 = vsel %vm199, %v883, %v1029
      %v1236 = vsel %vm199, %v884, %v1031
      %v1237 = vsel %vm199, %v885, %v1033
      %v1238 = vsel %vm199, %v886, %v1035
      %v1239 = vsel %vm199, %v887, %v1037
      %v1240 = vsel %vm199, %v888, %v1039
      %v1241 = vsel %vm199, %v889, %v1041
      %v1242 = vsel %vm199, %v890, %v1043
      %v1243 = vsel %vm199, %v891, %v1045
      %v1244 = vsel %vm199, %v892, %v1047
      %v1245 = vsel %vm199, %v893, %v1049
      %v1246 = vsel %vm199, %v894, %v1051
      %v1247 = vsel %vm199, %v895, %v1053
      %v1248 = vsel %vm199, %v896, %v1055
      %v1249 = vsel %vm199, %v897, %v1057
      %v1250 = vsel %vm805, %v1218, %v1123
      %v1251 = vsel %vm805, %v1219, %v1125
      %v1252 = vsel %vm805, %v1220, %v1127
      %v1253 = vsel %vm805, %v1221, %v1129
      %v1254 = vsel %vm805, %v1222, %v1131
      %v1255 = vsel %vm805, %v1223, %v1133
      %v1256 = vsel %vm805, %v1224, %v1135
      %v1257 = vsel %vm805, %v1225, %v1137
      %v1258 = vsel %vm805, %v1226, %v1139
      %v1259 = vsel %vm805, %v1227, %v1141
      %v1260 = vsel %vm805, %v1228, %v1143
      %v1261 = vsel %vm805, %v1229, %v1145
      %v1262 = vsel %vm805, %v1230, %v1147
      %v1263 = vsel %vm805, %v1231, %v1149
      %v1264 = vsel %vm805, %v1232, %v1151
      %v1265 = vsel %vm805, %v1233, %v1153
      %v1266 = vsel %vm805, %v1234, %v1155
      %v1267 = vsel %vm805, %v1235, %v1157
      %v1268 = vsel %vm805, %v1236, %v1159
      %v1269 = vsel %vm805, %v1237, %v1161
      %v1270 = vsel %vm805, %v1238, %v1163
      %v1271 = vsel %vm805, %v1239, %v1165
      %v1272 = vsel %vm805, %v1240, %v1167
      %v1273 = vsel %vm805, %v1241, %v1169
      %v1274 = vsel %vm805, %v1242, %v1171
      %v1275 = vsel %vm805, %v1243, %v1173
      %v1276 = vsel %vm805, %v1244, %v1175
      %v1277 = vsel %vm805, %v1245, %v1177
      %v1278 = vsel %vm805, %v1246, %v1179
      %v1279 = vsel %vm805, %v1247, %v1181
      %v1280 = vsel %vm805, %v1248, %v1183
      %v1281 = vsel %vm805, %v1249, %v1185
      %v1282 = vpack.c.bf16 %v1251, %v1250
      %v1283 = vpack.c.bf16 %v1253, %v1252
      %v1284 = vpack.c.bf16 %v1255, %v1254
      %v1285 = vpack.c.bf16 %v1257, %v1256
      %v1286 = vpack.c.bf16 %v1259, %v1258
      %v1287 = vpack.c.bf16 %v1261, %v1260
      %v1288 = vpack.c.bf16 %v1263, %v1262
      %v1289 = vpack.c.bf16 %v1265, %v1264
      %v1290 = vpack.c.bf16 %v1267, %v1266
      %v1291 = vpack.c.bf16 %v1269, %v1268
      %v1292 = vpack.c.bf16 %v1271, %v1270
      %v1293 = vpack.c.bf16 %v1273, %v1272
      %v1294 = vpack.c.bf16 %v1275, %v1274
      %v1295 = vpack.c.bf16 %v1277, %v1276
      %v1296 = vpack.c.bf16 %v1279, %v1278
      %v1297 = vpack.c.bf16 %v1281, %v1280
      %s1298 = scalar_lea.vmem %s3, 48
      %v1299 = vld [vmem:[%s1298] sm:$0xf]
      %v1300 = vld [vmem:[%s1298 + $0x4] sm:$0xf]
      %v1301 = vld [vmem:[%s1298 + $0x8] sm:$0xf]
      %v1302 = vld [vmem:[%s1298 + $0xc] sm:$0xf]
      %v1303 = vld [vmem:[%s1298 + $0x10] sm:$0xf]
      %v1304 = vld [vmem:[%s1298 + $0x14] sm:$0xf]
      %v1305 = vld [vmem:[%s1298 + $0x18] sm:$0xf]
      %v1306 = vld [vmem:[%s1298 + $0x1c] sm:$0xf]
      %v1307 = vld [vmem:[%s1298 + $0x20] sm:$0xf]
      %v1308 = vld [vmem:[%s1298 + $0x24] sm:$0xf]
      %v1309 = vld [vmem:[%s1298 + $0x28] sm:$0xf]
      %v1310 = vld [vmem:[%s1298 + $0x2c] sm:$0xf]
      %v1323 = vunpack.c.l.b16 %v1299
      %v1324 = vunpack.c.l.b16 %v1300
      %v1325 = vunpack.c.l.b16 %v1301
      %v1326 = vunpack.c.l.b16 %v1302
      %v1327 = vunpack.c.l.b16 %v1303
      %v1328 = vunpack.c.l.b16 %v1304
      %v1329 = vunpack.c.l.b16 %v1305
      %v1330 = vunpack.c.l.b16 %v1306
      %v1331 = vunpack.c.l.b16 %v1307
      %v1332 = vunpack.c.l.b16 %v1308
      %v1333 = vunpack.c.l.b16 %v1309
      %v1334 = vunpack.c.l.b16 %v1310
      %v1335 = vpack.c.b16 %v1324, %v1323
      %v1336 = vpack.c.b16 %v1326, %v1325
      %v1337 = vpack.c.b16 %v1328, %v1327
      %v1338 = vpack.c.b16 %v1330, %v1329
      %v1339 = vpack.c.b16 %v1332, %v1331
      %v1340 = vpack.c.b16 %v1334, %v1333
      %vm1347 = vcmask 785408
      %v1349 = vsel %vm1347, %v1282, 0
      %v1352 = vsel %vm1347, %v1283, 0
      %v1355 = vsel %vm1347, %v1284, 0
      %v1358 = vsel %vm1347, %v1285, 0
      %v1361 = vsel %vm1347, %v1286, 0
      %v1364 = vsel %vm1347, %v1287, 0
      %v1367 = vsel %vm1347, %v1288, 0
      %v1370 = vsel %vm1347, %v1289, 0
      %v1373 = vsel %vm1347, %v1290, 0
      %v1376 = vsel %vm1347, %v1291, 0
      %v1379 = vsel %vm1347, %v1292, 0
      %v1382 = vsel %vm1347, %v1293, 0
      %v1385 = vsel %vm1347, %v1294, 0
      %v1388 = vsel %vm1347, %v1295, 0
      %v1391 = vsel %vm1347, %v1296, 0
      %v1394 = vsel %vm1347, %v1297, 0
      %1396 = vmatprep.subr.bf16.mxu0 0
      %1397 = vmatpush1.bf16.msra.mxu0 %v1335
      %1398 = vmatprep.subr.bf16.mxu0 0
      %1399 = vmatpush1.bf16.msra.mxu0 %v1336
      %1400 = vmatprep.subr.bf16.mxu0 0
      %1401 = vmatpush1.bf16.msra.mxu0 %v1337
      %1402 = vmatprep.subr.bf16.mxu0 0
      %1403 = vmatpush1.bf16.msra.mxu0 %v1338
      %1404 = vmatprep.subr.bf16.mxu0 0
      %1405 = vmatpush1.bf16.msra.mxu0 %v1339
      %1406 = vmatprep.subr.bf16.mxu0 0
      %1407 = vmatpush1.bf16.msra.mxu0 %v1340
      %1408 = vmatprep.subr.bf16.mxu0 0
      %1409 = vmatpush1.bf16.msra.mxu0 0
      %1410 = vmatprep.subr.bf16.mxu0 0
      %1411 = vmatpush1.bf16.msra.mxu0 0
      %1412 = vmatprep.subr.bf16.mxu0 0
      %1413 = vmatpush1.bf16.msra.mxu0 0
      %1414 = vmatprep.subr.bf16.mxu0 0
      %1415 = vmatpush1.bf16.msra.mxu0 0
      %1416 = vmatprep.subr.bf16.mxu0 0
      %1417 = vmatpush1.bf16.msra.mxu0 0
      %1418 = vmatprep.subr.bf16.mxu0 0
      %1419 = vmatpush1.bf16.msra.mxu0 0
      %1420 = vmatprep.subr.bf16.mxu0 0
      %1421 = vmatpush1.bf16.msra.mxu0 0
      %1422 = vmatprep.subr.bf16.mxu0 0
      %1423 = vmatpush1.bf16.msra.mxu0 0
      %1424 = vmatprep.subr.bf16.mxu0 0
      %1425 = vmatpush1.bf16.msra.mxu0 0
      %1426 = vmatprep.subr.bf16.mxu0 0
      %1427 = vmatpush1.bf16.msra.mxu0 0
      %1428 = vmatprep.mubr.bf16.mxu0 0
      %1429 = vmatmul.mubr.bf16.gmra.mrb[0].mxu0 %v1349
      %v1430 = vpop.f32.mrb[0].mxu0
      %v1431 = vadd.f32 0.0, %v1430
      %v1432 = vpop.f32.mrb[0].mxu0
      %v1433 = vpop.f32.mrb[0].mxu0
      %v1434 = vadd.f32 0.0, %v1433
      %v1435 = vpop.f32.mrb[0].mxu0
      %1436 = vmatprep.mubr.bf16.mxu0 0
      %1437 = vmatmul.mubr.bf16.gmra.mrb[0].mxu0 %v1352
      %v1438 = vpop.f32.mrb[0].mxu0
      %v1439 = vadd.f32 0.0, %v1438
      %v1440 = vpop.f32.mrb[0].mxu0
      %v1441 = vpop.f32.mrb[0].mxu0
      %v1442 = vadd.f32 0.0, %v1441
      %v1443 = vpop.f32.mrb[0].mxu0
      %1444 = vmatprep.mubr.bf16.mxu0 0
      %1445 = vmatmul.mubr.bf16.gmra.mrb[0].mxu0 %v1355
      %v1446 = vpop.f32.mrb[0].mxu0
      %v1447 = vadd.f32 0.0, %v1446
      %v1448 = vpop.f32.mrb[0].mxu0
      %v1449 = vpop.f32.mrb[0].mxu0
      %v1450 = vadd.f32 0.0, %v1449
      %v1451 = vpop.f32.mrb[0].mxu0
      %1452 = vmatprep.mubr.bf16.mxu0 0
      %1453 = vmatmul.mubr.bf16.gmra.mrb[0].mxu0 %v1358
      %v1454 = vpop.f32.mrb[0].mxu0
      %v1455 = vadd.f32 0.0, %v1454
      %v1456 = vpop.f32.mrb[0].mxu0
      %v1457 = vpop.f32.mrb[0].mxu0
      %v1458 = vadd.f32 0.0, %v1457
      %v1459 = vpop.f32.mrb[0].mxu0
      %1460 = vmatprep.mubr.bf16.mxu0 0
      %1461 = vmatmul.mubr.bf16.gmra.mrb[0].mxu0 %v1361
      %v1462 = vpop.f32.mrb[0].mxu0
      %v1463 = vadd.f32 0.0, %v1462
      %v1464 = vpop.f32.mrb[0].mxu0
      %v1465 = vpop.f32.mrb[0].mxu0
      %v1466 = vadd.f32 0.0, %v1465
      %v1467 = vpop.f32.mrb[0].mxu0
      %1468 = vmatprep.mubr.bf16.mxu0 0
      %1469 = vmatmul.mubr.bf16.gmra.mrb[0].mxu0 %v1364
      %v1470 = vpop.f32.mrb[0].mxu0
      %v1471 = vadd.f32 0.0, %v1470
      %v1472 = vpop.f32.mrb[0].mxu0
      %v1473 = vpop.f32.mrb[0].mxu0
      %v1474 = vadd.f32 0.0, %v1473
      %v1475 = vpop.f32.mrb[0].mxu0
      %1476 = vmatprep.mubr.bf16.mxu0 0
      %1477 = vmatmul.mubr.bf16.gmra.mrb[0].mxu0 %v1367
      %v1478 = vpop.f32.mrb[0].mxu0
      %v1479 = vadd.f32 0.0, %v1478
      %v1480 = vpop.f32.mrb[0].mxu0
      %v1481 = vpop.f32.mrb[0].mxu0
      %v1482 = vadd.f32 0.0, %v1481
      %v1483 = vpop.f32.mrb[0].mxu0
      %1484 = vmatprep.mubr.bf16.mxu0 0
      %1485 = vmatmul.mubr.bf16.gmra.mrb[0].mxu0 %v1370
      %v1486 = vpop.f32.mrb[0].mxu0
      %v1487 = vadd.f32 0.0, %v1486
      %v1488 = vpop.f32.mrb[0].mxu0
      %v1489 = vpop.f32.mrb[0].mxu0
      %v1490 = vadd.f32 0.0, %v1489
      %v1491 = vpop.f32.mrb[0].mxu0
      %1492 = vmatprep.mubr.bf16.mxu0 0
      %1493 = vmatmul.mubr.bf16.gmra.mrb[0].mxu0 %v1373
      %v1494 = vpop.f32.mrb[0].mxu0
      %v1495 = vadd.f32 0.0, %v1494
      %v1496 = vpop.f32.mrb[0].mxu0
      %v1497 = vpop.f32.mrb[0].mxu0
      %v1498 = vadd.f32 0.0, %v1497
      %v1499 = vpop.f32.mrb[0].mxu0
      %1500 = vmatprep.mubr.bf16.mxu0 0
      %1501 = vmatmul.mubr.bf16.gmra.mrb[0].mxu0 %v1376
      %v1502 = vpop.f32.mrb[0].mxu0
      %v1503 = vadd.f32 0.0, %v1502
      %v1504 = vpop.f32.mrb[0].mxu0
      %v1505 = vpop.f32.mrb[0].mxu0
      %v1506 = vadd.f32 0.0, %v1505
      %v1507 = vpop.f32.mrb[0].mxu0
      %1508 = vmatprep.mubr.bf16.mxu0 0
      %1509 = vmatmul.mubr.bf16.gmra.mrb[0].mxu0 %v1379
      %v1510 = vpop.f32.mrb[0].mxu0
      %v1511 = vadd.f32 0.0, %v1510
      %v1512 = vpop.f32.mrb[0].mxu0
      %v1513 = vpop.f32.mrb[0].mxu0
      %v1514 = vadd.f32 0.0, %v1513
      %v1515 = vpop.f32.mrb[0].mxu0
      %1516 = vmatprep.mubr.bf16.mxu0 0
      %1517 = vmatmul.mubr.bf16.gmra.mrb[0].mxu0 %v1382
      %v1518 = vpop.f32.mrb[0].mxu0
      %v1519 = vadd.f32 0.0, %v1518
      %v1520 = vpop.f32.mrb[0].mxu0
      %v1521 = vpop.f32.mrb[0].mxu0
      %v1522 = vadd.f32 0.0, %v1521
      %v1523 = vpop.f32.mrb[0].mxu0
      %1524 = vmatprep.mubr.bf16.mxu0 0
      %1525 = vmatmul.mubr.bf16.gmra.mrb[0].mxu0 %v1385
      %v1526 = vpop.f32.mrb[0].mxu0
      %v1527 = vadd.f32 0.0, %v1526
      %v1528 = vpop.f32.mrb[0].mxu0
      %v1529 = vpop.f32.mrb[0].mxu0
      %v1530 = vadd.f32 0.0, %v1529
      %v1531 = vpop.f32.mrb[0].mxu0
      %1532 = vmatprep.mubr.bf16.mxu0 0
      %1533 = vmatmul.mubr.bf16.gmra.mrb[0].mxu0 %v1388
      %v1534 = vpop.f32.mrb[0].mxu0
      %v1535 = vadd.f32 0.0, %v1534
      %v1536 = vpop.f32.mrb[0].mxu0
      %v1537 = vpop.f32.mrb[0].mxu0
      %v1538 = vadd.f32 0.0, %v1537
      %v1539 = vpop.f32.mrb[0].mxu0
      %1540 = vmatprep.mubr.bf16.mxu0 0
      %1541 = vmatmul.mubr.bf16.gmra.mrb[0].mxu0 %v1391
      %v1542 = vpop.f32.mrb[0].mxu0
      %v1543 = vadd.f32 0.0, %v1542
      %v1544 = vpop.f32.mrb[0].mxu0
      %v1545 = vpop.f32.mrb[0].mxu0
      %v1546 = vadd.f32 0.0, %v1545
      %v1547 = vpop.f32.mrb[0].mxu0
      %1548 = vmatprep.mubr.bf16.mxu0 0
      %1549 = vmatmul.mubr.bf16.gmra.mrb[0].mxu0 %v1394
      %v1550 = vpop.f32.mrb[0].mxu0
      %v1551 = vadd.f32 0.0, %v1550
      %v1552 = vpop.f32.mrb[0].mxu0
      %v1553 = vpop.f32.mrb[0].mxu0
      %v1554 = vadd.f32 0.0, %v1553
      %v1555 = vpop.f32.mrb[0].mxu0
      %1556 = vdwg.mxu0
      %v1569 = vunpack.c.l.b16 %v854
      %v1570 = vunpack.c.l.b16 %v855
      %v1571 = vunpack.c.l.b16 %v856
      %v1572 = vunpack.c.l.b16 %v857
      %v1573 = vunpack.c.l.b16 %v858
      %v1574 = vunpack.c.l.b16 %v859
      %v1575 = vunpack.c.l.b16 %v860
      %v1576 = vunpack.c.l.b16 %v861
      %v1577 = vunpack.c.l.b16 %v862
      %v1578 = vunpack.c.l.b16 %v863
      %v1579 = vunpack.c.l.b16 %v864
      %v1580 = vunpack.c.l.b16 %v865
      %v1581 = vpack.c.b16 %v1570, %v1569
      %v1582 = vpack.c.b16 %v1572, %v1571
      %v1583 = vpack.c.b16 %v1574, %v1573
      %v1584 = vpack.c.b16 %v1576, %v1575
      %v1585 = vpack.c.b16 %v1578, %v1577
      %v1586 = vpack.c.b16 %v1580, %v1579
      %v1594 = vsel %vm1347, %v838, 0
      %v1597 = vsel %vm1347, %v839, 0
      %v1600 = vsel %vm1347, %v840, 0
      %v1603 = vsel %vm1347, %v841, 0
      %v1606 = vsel %vm1347, %v842, 0
      %v1609 = vsel %vm1347, %v843, 0
      %v1612 = vsel %vm1347, %v844, 0
      %v1615 = vsel %vm1347, %v845, 0
      %v1618 = vsel %vm1347, %v846, 0
      %v1621 = vsel %vm1347, %v847, 0
      %v1624 = vsel %vm1347, %v848, 0
      %v1627 = vsel %vm1347, %v849, 0
      %v1630 = vsel %vm1347, %v850, 0
      %v1633 = vsel %vm1347, %v851, 0
      %v1636 = vsel %vm1347, %v852, 0
      %v1639 = vsel %vm1347, %v853, 0
      %1641 = vmatprep.subr.bf16.mxu0 0
      %1642 = vmatpush1.bf16.msra.mxu0 %v1581
      %1643 = vmatprep.subr.bf16.mxu0 0
      %1644 = vmatpush1.bf16.msra.mxu0 %v1582
      %1645 = vmatprep.subr.bf16.mxu0 0
      %1646 = vmatpush1.bf16.msra.mxu0 %v1583
      %1647 = vmatprep.subr.bf16.mxu0 0
      %1648 = vmatpush1.bf16.msra.mxu0 %v1584
      %1649 = vmatprep.subr.bf16.mxu0 0
      %1650 = vmatpush1.bf16.msra.mxu0 %v1585
      %1651 = vmatprep.subr.bf16.mxu0 0
      %1652 = vmatpush1.bf16.msra.mxu0 %v1586
      %1653 = vmatprep.subr.bf16.mxu0 0
      %1654 = vmatpush1.bf16.msra.mxu0 0
      %1655 = vmatprep.subr.bf16.mxu0 0
      %1656 = vmatpush1.bf16.msra.mxu0 0
      %1657 = vmatprep.subr.bf16.mxu0 0
      %1658 = vmatpush1.bf16.msra.mxu0 0
      %1659 = vmatprep.subr.bf16.mxu0 0
      %1660 = vmatpush1.bf16.msra.mxu0 0
      %1661 = vmatprep.subr.bf16.mxu0 0
      %1662 = vmatpush1.bf16.msra.mxu0 0
      %1663 = vmatprep.subr.bf16.mxu0 0
      %1664 = vmatpush1.bf16.msra.mxu0 0
      %1665 = vmatprep.subr.bf16.mxu0 0
      %1666 = vmatpush1.bf16.msra.mxu0 0
      %1667 = vmatprep.subr.bf16.mxu0 0
      %1668 = vmatpush1.bf16.msra.mxu0 0
      %1669 = vmatprep.subr.bf16.mxu0 0
      %1670 = vmatpush1.bf16.msra.mxu0 0
      %1671 = vmatprep.subr.bf16.mxu0 0
      %1672 = vmatpush1.bf16.msra.mxu0 0
      %1673 = vmatprep.mubr.bf16.mxu0 0
      %1674 = vmatmul.mubr.bf16.gmra.mrb[0].mxu0 %v1594
      %v1675 = vpop.f32.mrb[0].mxu0
      %v1676 = vadd.f32 %v1431, %v1675
      %v1677 = vpop.f32.mrb[0].mxu0
      %v1678 = vpop.f32.mrb[0].mxu0
      %v1679 = vadd.f32 %v1434, %v1678
      %v1680 = vpop.f32.mrb[0].mxu0
      %1681 = vmatprep.mubr.bf16.mxu0 0
      %1682 = vmatmul.mubr.bf16.gmra.mrb[0].mxu0 %v1597
      %v1683 = vpop.f32.mrb[0].mxu0
      %v1684 = vadd.f32 %v1439, %v1683
      %v1685 = vpop.f32.mrb[0].mxu0
      %v1686 = vpop.f32.mrb[0].mxu0
      %v1687 = vadd.f32 %v1442, %v1686
      %v1688 = vpop.f32.mrb[0].mxu0
      %1689 = vmatprep.mubr.bf16.mxu0 0
      %1690 = vmatmul.mubr.bf16.gmra.mrb[0].mxu0 %v1600
      %v1691 = vpop.f32.mrb[0].mxu0
      %v1692 = vadd.f32 %v1447, %v1691
      %v1693 = vpop.f32.mrb[0].mxu0
      %v1694 = vpop.f32.mrb[0].mxu0
      %v1695 = vadd.f32 %v1450, %v1694
      %v1696 = vpop.f32.mrb[0].mxu0
      %1697 = vmatprep.mubr.bf16.mxu0 0
      %1698 = vmatmul.mubr.bf16.gmra.mrb[0].mxu0 %v1603
      %v1699 = vpop.f32.mrb[0].mxu0
      %v1700 = vadd.f32 %v1455, %v1699
      %v1701 = vpop.f32.mrb[0].mxu0
      %v1702 = vpop.f32.mrb[0].mxu0
      %v1703 = vadd.f32 %v1458, %v1702
      %v1704 = vpop.f32.mrb[0].mxu0
      %1705 = vmatprep.mubr.bf16.mxu0 0
      %1706 = vmatmul.mubr.bf16.gmra.mrb[0].mxu0 %v1606
      %v1707 = vpop.f32.mrb[0].mxu0
      %v1708 = vadd.f32 %v1463, %v1707
      %v1709 = vpop.f32.mrb[0].mxu0
      %v1710 = vpop.f32.mrb[0].mxu0
      %v1711 = vadd.f32 %v1466, %v1710
      %v1712 = vpop.f32.mrb[0].mxu0
      %1713 = vmatprep.mubr.bf16.mxu0 0
      %1714 = vmatmul.mubr.bf16.gmra.mrb[0].mxu0 %v1609
      %v1715 = vpop.f32.mrb[0].mxu0
      %v1716 = vadd.f32 %v1471, %v1715
      %v1717 = vpop.f32.mrb[0].mxu0
      %v1718 = vpop.f32.mrb[0].mxu0
      %v1719 = vadd.f32 %v1474, %v1718
      %v1720 = vpop.f32.mrb[0].mxu0
      %1721 = vmatprep.mubr.bf16.mxu0 0
      %1722 = vmatmul.mubr.bf16.gmra.mrb[0].mxu0 %v1612
      %v1723 = vpop.f32.mrb[0].mxu0
      %v1724 = vadd.f32 %v1479, %v1723
      %v1725 = vpop.f32.mrb[0].mxu0
      %v1726 = vpop.f32.mrb[0].mxu0
      %v1727 = vadd.f32 %v1482, %v1726
      %v1728 = vpop.f32.mrb[0].mxu0
      %1729 = vmatprep.mubr.bf16.mxu0 0
      %1730 = vmatmul.mubr.bf16.gmra.mrb[0].mxu0 %v1615
      %v1731 = vpop.f32.mrb[0].mxu0
      %v1732 = vadd.f32 %v1487, %v1731
      %v1733 = vpop.f32.mrb[0].mxu0
      %v1734 = vpop.f32.mrb[0].mxu0
      %v1735 = vadd.f32 %v1490, %v1734
      %v1736 = vpop.f32.mrb[0].mxu0
      %1737 = vmatprep.mubr.bf16.mxu0 0
      %1738 = vmatmul.mubr.bf16.gmra.mrb[0].mxu0 %v1618
      %v1739 = vpop.f32.mrb[0].mxu0
      %v1740 = vadd.f32 %v1495, %v1739
      %v1741 = vpop.f32.mrb[0].mxu0
      %v1742 = vpop.f32.mrb[0].mxu0
      %v1743 = vadd.f32 %v1498, %v1742
      %v1744 = vpop.f32.mrb[0].mxu0
      %1745 = vmatprep.mubr.bf16.mxu0 0
      %1746 = vmatmul.mubr.bf16.gmra.mrb[0].mxu0 %v1621
      %v1747 = vpop.f32.mrb[0].mxu0
      %v1748 = vadd.f32 %v1503, %v1747
      %v1749 = vpop.f32.mrb[0].mxu0
      %v1750 = vpop.f32.mrb[0].mxu0
      %v1751 = vadd.f32 %v1506, %v1750
      %v1752 = vpop.f32.mrb[0].mxu0
      %1753 = vmatprep.mubr.bf16.mxu0 0
      %1754 = vmatmul.mubr.bf16.gmra.mrb[0].mxu0 %v1624
      %v1755 = vpop.f32.mrb[0].mxu0
      %v1756 = vadd.f32 %v1511, %v1755
      %v1757 = vpop.f32.mrb[0].mxu0
      %v1758 = vpop.f32.mrb[0].mxu0
      %v1759 = vadd.f32 %v1514, %v1758
      %v1760 = vpop.f32.mrb[0].mxu0
      %1761 = vmatprep.mubr.bf16.mxu0 0
      %1762 = vmatmul.mubr.bf16.gmra.mrb[0].mxu0 %v1627
      %v1763 = vpop.f32.mrb[0].mxu0
      %v1764 = vadd.f32 %v1519, %v1763
      %v1765 = vpop.f32.mrb[0].mxu0
      %v1766 = vpop.f32.mrb[0].mxu0
      %v1767 = vadd.f32 %v1522, %v1766
      %v1768 = vpop.f32.mrb[0].mxu0
      %1769 = vmatprep.mubr.bf16.mxu0 0
      %1770 = vmatmul.mubr.bf16.gmra.mrb[0].mxu0 %v1630
      %v1771 = vpop.f32.mrb[0].mxu0
      %v1772 = vadd.f32 %v1527, %v1771
      %v1773 = vpop.f32.mrb[0].mxu0
      %v1774 = vpop.f32.mrb[0].mxu0
      %v1775 = vadd.f32 %v1530, %v1774
      %v1776 = vpop.f32.mrb[0].mxu0
      %1777 = vmatprep.mubr.bf16.mxu0 0
      %1778 = vmatmul.mubr.bf16.gmra.mrb[0].mxu0 %v1633
      %v1779 = vpop.f32.mrb[0].mxu0
      %v1780 = vadd.f32 %v1535, %v1779
      %v1781 = vpop.f32.mrb[0].mxu0
      %v1782 = vpop.f32.mrb[0].mxu0
      %v1783 = vadd.f32 %v1538, %v1782
      %v1784 = vpop.f32.mrb[0].mxu0
      %1785 = vmatprep.mubr.bf16.mxu0 0
      %1786 = vmatmul.mubr.bf16.gmra.mrb[0].mxu0 %v1636
      %v1787 = vpop.f32.mrb[0].mxu0
      %v1788 = vadd.f32 %v1543, %v1787
      %v1789 = vpop.f32.mrb[0].mxu0
      %v1790 = vpop.f32.mrb[0].mxu0
      %v1791 = vadd.f32 %v1546, %v1790
      %v1792 = vpop.f32.mrb[0].mxu0
      %1793 = vmatprep.mubr.bf16.mxu0 0
      %1794 = vmatmul.mubr.bf16.gmra.mrb[0].mxu0 %v1639
      %v1795 = vpop.f32.mrb[0].mxu0
      %v1796 = vadd.f32 %v1551, %v1795
      %v1797 = vpop.f32.mrb[0].mxu0
      %v1798 = vpop.f32.mrb[0].mxu0
      %v1799 = vadd.f32 %v1554, %v1798
      %v1800 = vpop.f32.mrb[0].mxu0
      %1801 = vdwg.mxu0
      %s1802 = scalar_lea.vmem [#allocation2], 64
      %v1803 = vld [vmem:[%s1802 + $0x7] sm:$0xff]
      %v1804 = vld [vmem:[%s1802 + $0xf] sm:$0xff]
      %v1805 = vld [vmem:[%s1802 + $0x27] sm:$0xff]
      %v1806 = vld [vmem:[%s1802 + $0x2f] sm:$0xff]
      %v1807 = vld [vmem:[%s1802 + $0x47] sm:$0xff]
      %v1808 = vld [vmem:[%s1802 + $0x4f] sm:$0xff]
      %v1809 = vld [vmem:[%s1802 + $0x67] sm:$0xff]
      %v1810 = vld [vmem:[%s1802 + $0x6f] sm:$0xff]
      %v1811 = vld [vmem:[%s1802 + $0x87] sm:$0xff]
      %v1812 = vld [vmem:[%s1802 + $0x8f] sm:$0xff]
      %v1813 = vld [vmem:[%s1802 + $0xa7] sm:$0xff]
      %v1814 = vld [vmem:[%s1802 + $0xaf] sm:$0xff]
      %v1815 = vld [vmem:[%s1802 + $0xc7] sm:$0xff]
      %v1816 = vld [vmem:[%s1802 + $0xcf] sm:$0xff]
      %v1817 = vld [vmem:[%s1802 + $0xe7] sm:$0xff]
      %v1818 = vld [vmem:[%s1802 + $0xef] sm:$0xff]
      %v1819 = vld [vmem:[%s1802 + $0x107] sm:$0xff]
      %v1820 = vld [vmem:[%s1802 + $0x10f] sm:$0xff]
      %v1821 = vld [vmem:[%s1802 + $0x127] sm:$0xff]
      %v1822 = vld [vmem:[%s1802 + $0x12f] sm:$0xff]
      %v1823 = vld [vmem:[%s1802 + $0x147] sm:$0xff]
      %v1824 = vld [vmem:[%s1802 + $0x14f] sm:$0xff]
      %v1825 = vld [vmem:[%s1802 + $0x167] sm:$0xff]
      %v1826 = vld [vmem:[%s1802 + $0x16f] sm:$0xff]
      %v1827 = vld [vmem:[%s1802 + $0x187] sm:$0xff]
      %v1828 = vld [vmem:[%s1802 + $0x18f] sm:$0xff]
      %v1829 = vld [vmem:[%s1802 + $0x1a7] sm:$0xff]
      %v1830 = vld [vmem:[%s1802 + $0x1af] sm:$0xff]
      %v1831 = vld [vmem:[%s1802 + $0x1c7] sm:$0xff]
      %v1832 = vld [vmem:[%s1802 + $0x1cf] sm:$0xff]
      %v1833 = vld [vmem:[%s1802 + $0x1e7] sm:$0xff]
      %v1834 = vld [vmem:[%s1802 + $0x1ef] sm:$0xff]
      %v1835 = vld [vmem:[%s1802 + $0x8] sm:$0xff]
      %v1836 = vld [vmem:[%s1802 + $0x10] sm:$0xff]
      %v1837 = vld [vmem:[%s1802 + $0x28] sm:$0xff]
      %v1838 = vld [vmem:[%s1802 + $0x30] sm:$0xff]
      %v1839 = vld [vmem:[%s1802 + $0x48] sm:$0xff]
      %v1840 = vld [vmem:[%s1802 + $0x50] sm:$0xff]
      %v1841 = vld [vmem:[%s1802 + $0x68] sm:$0xff]
      %v1842 = vld [vmem:[%s1802 + $0x70] sm:$0xff]
      %v1843 = vld [vmem:[%s1802 + $0x88] sm:$0xff]
      %v1844 = vld [vmem:[%s1802 + $0x90] sm:$0xff]
      %v1845 = vld [vmem:[%s1802 + $0xa8] sm:$0xff]
      %v1846 = vld [vmem:[%s1802 + $0xb0] sm:$0xff]
      %v1847 = vld [vmem:[%s1802 + $0xc8] sm:$0xff]
      %v1848 = vld [vmem:[%s1802 + $0xd0] sm:$0xff]
      %v1849 = vld [vmem:[%s1802 + $0xe8] sm:$0xff]
      %v1850 = vld [vmem:[%s1802 + $0xf0] sm:$0xff]
      %v1851 = vld [vmem:[%s1802 + $0x108] sm:$0xff]
      %v1852 = vld [vmem:[%s1802 + $0x110] sm:$0xff]
      %v1853 = vld [vmem:[%s1802 + $0x128] sm:$0xff]
      %v1854 = vld [vmem:[%s1802 + $0x130] sm:$0xff]
      %v1855 = vld [vmem:[%s1802 + $0x148] sm:$0xff]
      %v1856 = vld [vmem:[%s1802 + $0x150] sm:$0xff]
      %v1857 = vld [vmem:[%s1802 + $0x168] sm:$0xff]
      %v1858 = vld [vmem:[%s1802 + $0x170] sm:$0xff]
      %v1859 = vld [vmem:[%s1802 + $0x188] sm:$0xff]
      %v1860 = vld [vmem:[%s1802 + $0x190] sm:$0xff]
      %v1861 = vld [vmem:[%s1802 + $0x1a8] sm:$0xff]
      %v1862 = vld [vmem:[%s1802 + $0x1b0] sm:$0xff]
      %v1863 = vld [vmem:[%s1802 + $0x1c8] sm:$0xff]
      %v1864 = vld [vmem:[%s1802 + $0x1d0] sm:$0xff]
      %v1865 = vld [vmem:[%s1802 + $0x1e8] sm:$0xff]
      %v1866 = vld [vmem:[%s1802 + $0x1f0] sm:$0xff]
      %v1867 = vld [vmem:[%s1802 + $0x9] sm:$0xff]
      %v1868 = vld [vmem:[%s1802 + $0x11] sm:$0xff]
      %v1869 = vld [vmem:[%s1802 + $0x29] sm:$0xff]
      %v1870 = vld [vmem:[%s1802 + $0x31] sm:$0xff]
      %v1871 = vld [vmem:[%s1802 + $0x49] sm:$0xff]
      %v1872 = vld [vmem:[%s1802 + $0x51] sm:$0xff]
      %v1873 = vld [vmem:[%s1802 + $0x69] sm:$0xff]
      %v1874 = vld [vmem:[%s1802 + $0x71] sm:$0xff]
      %v1875 = vld [vmem:[%s1802 + $0x89] sm:$0xff]
      %v1876 = vld [vmem:[%s1802 + $0x91] sm:$0xff]
      %v1877 = vld [vmem:[%s1802 + $0xa9] sm:$0xff]
      %v1878 = vld [vmem:[%s1802 + $0xb1] sm:$0xff]
      %v1879 = vld [vmem:[%s1802 + $0xc9] sm:$0xff]
      %v1880 = vld [vmem:[%s1802 + $0xd1] sm:$0xff]
      %v1881 = vld [vmem:[%s1802 + $0xe9] sm:$0xff]
      %v1882 = vld [vmem:[%s1802 + $0xf1] sm:$0xff]
      %v1883 = vld [vmem:[%s1802 + $0x109] sm:$0xff]
      %v1884 = vld [vmem:[%s1802 + $0x111] sm:$0xff]
      %v1885 = vld [vmem:[%s1802 + $0x129] sm:$0xff]
      %v1886 = vld [vmem:[%s1802 + $0x131] sm:$0xff]
      %v1887 = vld [vmem:[%s1802 + $0x149] sm:$0xff]
      %v1888 = vld [vmem:[%s1802 + $0x151] sm:$0xff]
      %v1889 = vld [vmem:[%s1802 + $0x169] sm:$0xff]
      %v1890 = vld [vmem:[%s1802 + $0x171] sm:$0xff]
      %v1891 = vld [vmem:[%s1802 + $0x189] sm:$0xff]
      %v1892 = vld [vmem:[%s1802 + $0x191] sm:$0xff]
      %v1893 = vld [vmem:[%s1802 + $0x1a9] sm:$0xff]
      %v1894 = vld [vmem:[%s1802 + $0x1b1] sm:$0xff]
      %v1895 = vld [vmem:[%s1802 + $0x1c9] sm:$0xff]
      %v1896 = vld [vmem:[%s1802 + $0x1d1] sm:$0xff]
      %v1897 = vld [vmem:[%s1802 + $0x1e9] sm:$0xff]
      %v1898 = vld [vmem:[%s1802 + $0x1f1] sm:$0xff]
      %1931 = vrot.lane.b32.xlu0 %v1835, 32
      %v1932 = vpop.permute.xlu0 %1931
      %1933 = vrot.lane.b32.xlu0 %v1836, 32
      %v1934 = vpop.permute.xlu0 %1933
      %1935 = vrot.lane.b32.xlu0 %v1837, 32
      %v1936 = vpop.permute.xlu0 %1935
      %1937 = vrot.lane.b32.xlu0 %v1838, 32
      %v1938 = vpop.permute.xlu0 %1937
      %1939 = vrot.lane.b32.xlu0 %v1839, 32
      %v1940 = vpop.permute.xlu0 %1939
      %1941 = vrot.lane.b32.xlu0 %v1840, 32
      %v1942 = vpop.permute.xlu0 %1941
      %1943 = vrot.lane.b32.xlu0 %v1841, 32
      %v1944 = vpop.permute.xlu0 %1943
      %1945 = vrot.lane.b32.xlu0 %v1842, 32
      %v1946 = vpop.permute.xlu0 %1945
      %1947 = vrot.lane.b32.xlu0 %v1843, 32
      %v1948 = vpop.permute.xlu0 %1947
      %1949 = vrot.lane.b32.xlu0 %v1844, 32
      %v1950 = vpop.permute.xlu0 %1949
      %1951 = vrot.lane.b32.xlu0 %v1845, 32
      %v1952 = vpop.permute.xlu0 %1951
      %1953 = vrot.lane.b32.xlu0 %v1846, 32
      %v1954 = vpop.permute.xlu0 %1953
      %1955 = vrot.lane.b32.xlu0 %v1847, 32
      %v1956 = vpop.permute.xlu0 %1955
      %1957 = vrot.lane.b32.xlu0 %v1848, 32
      %v1958 = vpop.permute.xlu0 %1957
      %1959 = vrot.lane.b32.xlu0 %v1849, 32
      %v1960 = vpop.permute.xlu0 %1959
      %1961 = vrot.lane.b32.xlu0 %v1850, 32
      %v1962 = vpop.permute.xlu0 %1961
      %1963 = vrot.lane.b32.xlu0 %v1851, 32
      %v1964 = vpop.permute.xlu0 %1963
      %1965 = vrot.lane.b32.xlu0 %v1852, 32
      %v1966 = vpop.permute.xlu0 %1965
      %1967 = vrot.lane.b32.xlu0 %v1853, 32
      %v1968 = vpop.permute.xlu0 %1967
      %1969 = vrot.lane.b32.xlu0 %v1854, 32
      %v1970 = vpop.permute.xlu0 %1969
      %1971 = vrot.lane.b32.xlu0 %v1855, 32
      %v1972 = vpop.permute.xlu0 %1971
      %1973 = vrot.lane.b32.xlu0 %v1856, 32
      %v1974 = vpop.permute.xlu0 %1973
      %1975 = vrot.lane.b32.xlu0 %v1857, 32
      %v1976 = vpop.permute.xlu0 %1975
      %1977 = vrot.lane.b32.xlu0 %v1858, 32
      %v1978 = vpop.permute.xlu0 %1977
      %1979 = vrot.lane.b32.xlu0 %v1859, 32
      %v1980 = vpop.permute.xlu0 %1979
      %1981 = vrot.lane.b32.xlu0 %v1860, 32
      %v1982 = vpop.permute.xlu0 %1981
      %1983 = vrot.lane.b32.xlu0 %v1861, 32
      %v1984 = vpop.permute.xlu0 %1983
      %1985 = vrot.lane.b32.xlu0 %v1862, 32
      %v1986 = vpop.permute.xlu0 %1985
      %1987 = vrot.lane.b32.xlu0 %v1863, 32
      %v1988 = vpop.permute.xlu0 %1987
      %1989 = vrot.lane.b32.xlu0 %v1864, 32
      %v1990 = vpop.permute.xlu0 %1989
      %1991 = vrot.lane.b32.xlu0 %v1865, 32
      %v1992 = vpop.permute.xlu0 %1991
      %1993 = vrot.lane.b32.xlu0 %v1866, 32
      %v1994 = vpop.permute.xlu0 %1993
      %2059 = vrot.lane.b32.xlu0 %v1867, 64
      %v2060 = vpop.permute.xlu0 %2059
      %2061 = vrot.lane.b32.xlu0 %v1868, 64
      %v2062 = vpop.permute.xlu0 %2061
      %2063 = vrot.lane.b32.xlu0 %v1869, 64
      %v2064 = vpop.permute.xlu0 %2063
      %2065 = vrot.lane.b32.xlu0 %v1870, 64
      %v2066 = vpop.permute.xlu0 %2065
      %2067 = vrot.lane.b32.xlu0 %v1871, 64
      %v2068 = vpop.permute.xlu0 %2067
      %2069 = vrot.lane.b32.xlu0 %v1872, 64
      %v2070 = vpop.permute.xlu0 %2069
      %2071 = vrot.lane.b32.xlu0 %v1873, 64
      %v2072 = vpop.permute.xlu0 %2071
      %2073 = vrot.lane.b32.xlu0 %v1874, 64
      %v2074 = vpop.permute.xlu0 %2073
      %2075 = vrot.lane.b32.xlu0 %v1875, 64
      %v2076 = vpop.permute.xlu0 %2075
      %2077 = vrot.lane.b32.xlu0 %v1876, 64
      %v2078 = vpop.permute.xlu0 %2077
      %2079 = vrot.lane.b32.xlu0 %v1877, 64
      %v2080 = vpop.permute.xlu0 %2079
      %2081 = vrot.lane.b32.xlu0 %v1878, 64
      %v2082 = vpop.permute.xlu0 %2081
      %2083 = vrot.lane.b32.xlu0 %v1879, 64
      %v2084 = vpop.permute.xlu0 %2083
      %2085 = vrot.lane.b32.xlu0 %v1880, 64
      %v2086 = vpop.permute.xlu0 %2085
      %2087 = vrot.lane.b32.xlu0 %v1881, 64
      %v2088 = vpop.permute.xlu0 %2087
      %2089 = vrot.lane.b32.xlu0 %v1882, 64
      %v2090 = vpop.permute.xlu0 %2089
      %2091 = vrot.lane.b32.xlu0 %v1883, 64
      %v2092 = vpop.permute.xlu0 %2091
      %2093 = vrot.lane.b32.xlu0 %v1884, 64
      %v2094 = vpop.permute.xlu0 %2093
      %2095 = vrot.lane.b32.xlu0 %v1885, 64
      %v2096 = vpop.permute.xlu0 %2095
      %2097 = vrot.lane.b32.xlu0 %v1886, 64
      %v2098 = vpop.permute.xlu0 %2097
      %2099 = vrot.lane.b32.xlu0 %v1887, 64
      %v2100 = vpop.permute.xlu0 %2099
      %2101 = vrot.lane.b32.xlu0 %v1888, 64
      %v2102 = vpop.permute.xlu0 %2101
      %2103 = vrot.lane.b32.xlu0 %v1889, 64
      %v2104 = vpop.permute.xlu0 %2103
      %2105 = vrot.lane.b32.xlu0 %v1890, 64
      %v2106 = vpop.permute.xlu0 %2105
      %2107 = vrot.lane.b32.xlu0 %v1891, 64
      %v2108 = vpop.permute.xlu0 %2107
      %2109 = vrot.lane.b32.xlu0 %v1892, 64
      %v2110 = vpop.permute.xlu0 %2109
      %2111 = vrot.lane.b32.xlu0 %v1893, 64
      %v2112 = vpop.permute.xlu0 %2111
      %2113 = vrot.lane.b32.xlu0 %v1894, 64
      %v2114 = vpop.permute.xlu0 %2113
      %2115 = vrot.lane.b32.xlu0 %v1895, 64
      %v2116 = vpop.permute.xlu0 %2115
      %2117 = vrot.lane.b32.xlu0 %v1896, 64
      %v2118 = vpop.permute.xlu0 %2117
      %2119 = vrot.lane.b32.xlu0 %v1897, 64
      %v2120 = vpop.permute.xlu0 %2119
      %2121 = vrot.lane.b32.xlu0 %v1898, 64
      %v2122 = vpop.permute.xlu0 %2121
      %v2155 = vsel %vm199, %v1803, %v1932
      %v2156 = vsel %vm199, %v1804, %v1934
      %v2157 = vsel %vm199, %v1805, %v1936
      %v2158 = vsel %vm199, %v1806, %v1938
      %v2159 = vsel %vm199, %v1807, %v1940
      %v2160 = vsel %vm199, %v1808, %v1942
      %v2161 = vsel %vm199, %v1809, %v1944
      %v2162 = vsel %vm199, %v1810, %v1946
      %v2163 = vsel %vm199, %v1811, %v1948
      %v2164 = vsel %vm199, %v1812, %v1950
      %v2165 = vsel %vm199, %v1813, %v1952
      %v2166 = vsel %vm199, %v1814, %v1954
      %v2167 = vsel %vm199, %v1815, %v1956
      %v2168 = vsel %vm199, %v1816, %v1958
      %v2169 = vsel %vm199, %v1817, %v1960
      %v2170 = vsel %vm199, %v1818, %v1962
      %v2171 = vsel %vm199, %v1819, %v1964
      %v2172 = vsel %vm199, %v1820, %v1966
      %v2173 = vsel %vm199, %v1821, %v1968
      %v2174 = vsel %vm199, %v1822, %v1970
      %v2175 = vsel %vm199, %v1823, %v1972
      %v2176 = vsel %vm199, %v1824, %v1974
      %v2177 = vsel %vm199, %v1825, %v1976
      %v2178 = vsel %vm199, %v1826, %v1978
      %v2179 = vsel %vm199, %v1827, %v1980
      %v2180 = vsel %vm199, %v1828, %v1982
      %v2181 = vsel %vm199, %v1829, %v1984
      %v2182 = vsel %vm199, %v1830, %v1986
      %v2183 = vsel %vm199, %v1831, %v1988
      %v2184 = vsel %vm199, %v1832, %v1990
      %v2185 = vsel %vm199, %v1833, %v1992
      %v2186 = vsel %vm199, %v1834, %v1994
      %v2187 = vsel %vm805, %v2155, %v2060
      %v2188 = vsel %vm805, %v2156, %v2062
      %v2189 = vsel %vm805, %v2157, %v2064
      %v2190 = vsel %vm805, %v2158, %v2066
      %v2191 = vsel %vm805, %v2159, %v2068
      %v2192 = vsel %vm805, %v2160, %v2070
      %v2193 = vsel %vm805, %v2161, %v2072
      %v2194 = vsel %vm805, %v2162, %v2074
      %v2195 = vsel %vm805, %v2163, %v2076
      %v2196 = vsel %vm805, %v2164, %v2078
      %v2197 = vsel %vm805, %v2165, %v2080
      %v2198 = vsel %vm805, %v2166, %v2082
      %v2199 = vsel %vm805, %v2167, %v2084
      %v2200 = vsel %vm805, %v2168, %v2086
      %v2201 = vsel %vm805, %v2169, %v2088
      %v2202 = vsel %vm805, %v2170, %v2090
      %v2203 = vsel %vm805, %v2171, %v2092
      %v2204 = vsel %vm805, %v2172, %v2094
      %v2205 = vsel %vm805, %v2173, %v2096
      %v2206 = vsel %vm805, %v2174, %v2098
      %v2207 = vsel %vm805, %v2175, %v2100
      %v2208 = vsel %vm805, %v2176, %v2102
      %v2209 = vsel %vm805, %v2177, %v2104
      %v2210 = vsel %vm805, %v2178, %v2106
      %v2211 = vsel %vm805, %v2179, %v2108
      %v2212 = vsel %vm805, %v2180, %v2110
      %v2213 = vsel %vm805, %v2181, %v2112
      %v2214 = vsel %vm805, %v2182, %v2114
      %v2215 = vsel %vm805, %v2183, %v2116
      %v2216 = vsel %vm805, %v2184, %v2118
      %v2217 = vsel %vm805, %v2185, %v2120
      %v2218 = vsel %vm805, %v2186, %v2122
      %v2219 = vpack.c.bf16 %v2188, %v2187
      %v2220 = vpack.c.bf16 %v2190, %v2189
      %v2221 = vpack.c.bf16 %v2192, %v2191
      %v2222 = vpack.c.bf16 %v2194, %v2193
      %v2223 = vpack.c.bf16 %v2196, %v2195
      %v2224 = vpack.c.bf16 %v2198, %v2197
      %v2225 = vpack.c.bf16 %v2200, %v2199
      %v2226 = vpack.c.bf16 %v2202, %v2201
      %v2227 = vpack.c.bf16 %v2204, %v2203
      %v2228 = vpack.c.bf16 %v2206, %v2205
      %v2229 = vpack.c.bf16 %v2208, %v2207
      %v2230 = vpack.c.bf16 %v2210, %v2209
      %v2231 = vpack.c.bf16 %v2212, %v2211
      %v2232 = vpack.c.bf16 %v2214, %v2213
      %v2233 = vpack.c.bf16 %v2216, %v2215
      %v2234 = vpack.c.bf16 %v2218, %v2217
      %s2235 = scalar_lea.vmem %s3, 96
      %v2236 = vld [vmem:[%s2235] sm:$0xf]
      %v2237 = vld [vmem:[%s2235 + $0x4] sm:$0xf]
      %v2238 = vld [vmem:[%s2235 + $0x8] sm:$0xf]
      %v2239 = vld [vmem:[%s2235 + $0xc] sm:$0xf]
      %v2240 = vld [vmem:[%s2235 + $0x10] sm:$0xf]
      %v2241 = vld [vmem:[%s2235 + $0x14] sm:$0xf]
      %v2242 = vld [vmem:[%s2235 + $0x18] sm:$0xf]
      %v2243 = vld [vmem:[%s2235 + $0x1c] sm:$0xf]
      %v2244 = vld [vmem:[%s2235 + $0x20] sm:$0xf]
      %v2245 = vld [vmem:[%s2235 + $0x24] sm:$0xf]
      %v2246 = vld [vmem:[%s2235 + $0x28] sm:$0xf]
      %v2247 = vld [vmem:[%s2235 + $0x2c] sm:$0xf]
      %v2260 = vunpack.c.l.b16 %v2236
      %v2261 = vunpack.c.l.b16 %v2237
      %v2262 = vunpack.c.l.b16 %v2238
      %v2263 = vunpack.c.l.b16 %v2239
      %v2264 = vunpack.c.l.b16 %v2240
      %v2265 = vunpack.c.l.b16 %v2241
      %v2266 = vunpack.c.l.b16 %v2242
      %v2267 = vunpack.c.l.b16 %v2243
      %v2268 = vunpack.c.l.b16 %v2244
      %v2269 = vunpack.c.l.b16 %v2245
      %v2270 = vunpack.c.l.b16 %v2246
      %v2271 = vunpack.c.l.b16 %v2247
      %v2272 = vpack.c.b16 %v2261, %v2260
      %v2273 = vpack.c.b16 %v2263, %v2262
      %v2274 = vpack.c.b16 %v2265, %v2264
      %v2275 = vpack.c.b16 %v2267, %v2266
      %v2276 = vpack.c.b16 %v2269, %v2268
      %v2277 = vpack.c.b16 %v2271, %v2270
      %v2285 = vsel %vm1347, %v2219, 0
      %v2288 = vsel %vm1347, %v2220, 0
      %v2291 = vsel %vm1347, %v2221, 0
      %v2294 = vsel %vm1347, %v2222, 0
      %v2297 = vsel %vm1347, %v2223, 0
      %v2300 = vsel %vm1347, %v2224, 0
      %v2303 = vsel %vm1347, %v2225, 0
      %v2306 = vsel %vm1347, %v2226, 0
      %v2309 = vsel %vm1347, %v2227, 0
      %v2312 = vsel %vm1347, %v2228, 0
      %v2315 = vsel %vm1347, %v2229, 0
      %v2318 = vsel %vm1347, %v2230, 0
      %v2321 = vsel %vm1347, %v2231, 0
      %v2324 = vsel %vm1347, %v2232, 0
      %v2327 = vsel %vm1347, %v2233, 0
      %v2330 = vsel %vm1347, %v2234, 0
      %2332 = vmatprep.subr.bf16.mxu0 0
      %2333 = vmatpush1.bf16.msra.mxu0 %v2272
      %2334 = vmatprep.subr.bf16.mxu0 0
      %2335 = vmatpush1.bf16.msra.mxu0 %v2273
      %2336 = vmatprep.subr.bf16.mxu0 0
      %2337 = vmatpush1.bf16.msra.mxu0 %v2274
      %2338 = vmatprep.subr.bf16.mxu0 0
      %2339 = vmatpush1.bf16.msra.mxu0 %v2275
      %2340 = vmatprep.subr.bf16.mxu0 0
      %2341 = vmatpush1.bf16.msra.mxu0 %v2276
      %2342 = vmatprep.subr.bf16.mxu0 0
      %2343 = vmatpush1.bf16.msra.mxu0 %v2277
      %2344 = vmatprep.subr.bf16.mxu0 0
      %2345 = vmatpush1.bf16.msra.mxu0 0
      %2346 = vmatprep.subr.bf16.mxu0 0
      %2347 = vmatpush1.bf16.msra.mxu0 0
      %2348 = vmatprep.subr.bf16.mxu0 0
      %2349 = vmatpush1.bf16.msra.mxu0 0
      %2350 = vmatprep.subr.bf16.mxu0 0
      %2351 = vmatpush1.bf16.msra.mxu0 0
      %2352 = vmatprep.subr.bf16.mxu0 0
      %2353 = vmatpush1.bf16.msra.mxu0 0
      %2354 = vmatprep.subr.bf16.mxu0 0
      %2355 = vmatpush1.bf16.msra.mxu0 0
      %2356 = vmatprep.subr.bf16.mxu0 0
      %2357 = vmatpush1.bf16.msra.mxu0 0
      %2358 = vmatprep.subr.bf16.mxu0 0
      %2359 = vmatpush1.bf16.msra.mxu0 0
      %2360 = vmatprep.subr.bf16.mxu0 0
      %2361 = vmatpush1.bf16.msra.mxu0 0
      %2362 = vmatprep.subr.bf16.mxu0 0
      %2363 = vmatpush1.bf16.msra.mxu0 0
      %2364 = vmatprep.mubr.bf16.mxu0 0
      %2365 = vmatmul.mubr.bf16.gmra.mrb[0].mxu0 %v2285
      %v2366 = vpop.f32.mrb[0].mxu0
      %v2367 = vadd.f32 0.0, %v2366
      %v2368 = vpop.f32.mrb[0].mxu0
      %v2369 = vpop.f32.mrb[0].mxu0
      %v2370 = vadd.f32 0.0, %v2369
      %v2371 = vpop.f32.mrb[0].mxu0
      %2372 = vmatprep.mubr.bf16.mxu0 0
      %2373 = vmatmul.mubr.bf16.gmra.mrb[0].mxu0 %v2288
      %v2374 = vpop.f32.mrb[0].mxu0
      %v2375 = vadd.f32 0.0, %v2374
      %v2376 = vpop.f32.mrb[0].mxu0
      %v2377 = vpop.f32.mrb[0].mxu0
      %v2378 = vadd.f32 0.0, %v2377
      %v2379 = vpop.f32.mrb[0].mxu0
      %2380 = vmatprep.mubr.bf16.mxu0 0
      %2381 = vmatmul.mubr.bf16.gmra.mrb[0].mxu0 %v2291
      %v2382 = vpop.f32.mrb[0].mxu0
      %v2383 = vadd.f32 0.0, %v2382
      %v2384 = vpop.f32.mrb[0].mxu0
      %v2385 = vpop.f32.mrb[0].mxu0
      %v2386 = vadd.f32 0.0, %v2385
      %v2387 = vpop.f32.mrb[0].mxu0
      %2388 = vmatprep.mubr.bf16.mxu0 0
      %2389 = vmatmul.mubr.bf16.gmra.mrb[0].mxu0 %v2294
      %v2390 = vpop.f32.mrb[0].mxu0
      %v2391 = vadd.f32 0.0, %v2390
      %v2392 = vpop.f32.mrb[0].mxu0
      %v2393 = vpop.f32.mrb[0].mxu0
      %v2394 = vadd.f32 0.0, %v2393
      %v2395 = vpop.f32.mrb[0].mxu0
      %2396 = vmatprep.mubr.bf16.mxu0 0
      %2397 = vmatmul.mubr.bf16.gmra.mrb[0].mxu0 %v2297
      %v2398 = vpop.f32.mrb[0].mxu0
      %v2399 = vadd.f32 0.0, %v2398
      %v2400 = vpop.f32.mrb[0].mxu0
      %v2401 = vpop.f32.mrb[0].mxu0
      %v2402 = vadd.f32 0.0, %v2401
      %v2403 = vpop.f32.mrb[0].mxu0
      %2404 = vmatprep.mubr.bf16.mxu0 0
      %2405 = vmatmul.mubr.bf16.gmra.mrb[0].mxu0 %v2300
      %v2406 = vpop.f32.mrb[0].mxu0
      %v2407 = vadd.f32 0.0, %v2406
      %v2408 = vpop.f32.mrb[0].mxu0
      %v2409 = vpop.f32.mrb[0].mxu0
      %v2410 = vadd.f32 0.0, %v2409
      %v2411 = vpop.f32.mrb[0].mxu0
      %2412 = vmatprep.mubr.bf16.mxu0 0
      %2413 = vmatmul.mubr.bf16.gmra.mrb[0].mxu0 %v2303
      %v2414 = vpop.f32.mrb[0].mxu0
      %v2415 = vadd.f32 0.0, %v2414
      %v2416 = vpop.f32.mrb[0].mxu0
      %v2417 = vpop.f32.mrb[0].mxu0
      %v2418 = vadd.f32 0.0, %v2417
      %v2419 = vpop.f32.mrb[0].mxu0
      %2420 = vmatprep.mubr.bf16.mxu0 0
      %2421 = vmatmul.mubr.bf16.gmra.mrb[0].mxu0 %v2306
      %v2422 = vpop.f32.mrb[0].mxu0
      %v2423 = vadd.f32 0.0, %v2422
      %v2424 = vpop.f32.mrb[0].mxu0
      %v2425 = vpop.f32.mrb[0].mxu0
      %v2426 = vadd.f32 0.0, %v2425
      %v2427 = vpop.f32.mrb[0].mxu0
      %2428 = vmatprep.mubr.bf16.mxu0 0
      %2429 = vmatmul.mubr.bf16.gmra.mrb[0].mxu0 %v2309
      %v2430 = vpop.f32.mrb[0].mxu0
      %v2431 = vadd.f32 0.0, %v2430
      %v2432 = vpop.f32.mrb[0].mxu0
      %v2433 = vpop.f32.mrb[0].mxu0
      %v2434 = vadd.f32 0.0, %v2433
      %v2435 = vpop.f32.mrb[0].mxu0
      %2436 = vmatprep.mubr.bf16.mxu0 0
      %2437 = vmatmul.mubr.bf16.gmra.mrb[0].mxu0 %v2312
      %v2438 = vpop.f32.mrb[0].mxu0
      %v2439 = vadd.f32 0.0, %v2438
      %v2440 = vpop.f32.mrb[0].mxu0
      %v2441 = vpop.f32.mrb[0].mxu0
      %v2442 = vadd.f32 0.0, %v2441
      %v2443 = vpop.f32.mrb[0].mxu0
      %2444 = vmatprep.mubr.bf16.mxu0 0
      %2445 = vmatmul.mubr.bf16.gmra.mrb[0].mxu0 %v2315
      %v2446 = vpop.f32.mrb[0].mxu0
      %v2447 = vadd.f32 0.0, %v2446
      %v2448 = vpop.f32.mrb[0].mxu0
      %v2449 = vpop.f32.mrb[0].mxu0
      %v2450 = vadd.f32 0.0, %v2449
      %v2451 = vpop.f32.mrb[0].mxu0
      %2452 = vmatprep.mubr.bf16.mxu0 0
      %2453 = vmatmul.mubr.bf16.gmra.mrb[0].mxu0 %v2318
      %v2454 = vpop.f32.mrb[0].mxu0
      %v2455 = vadd.f32 0.0, %v2454
      %v2456 = vpop.f32.mrb[0].mxu0
      %v2457 = vpop.f32.mrb[0].mxu0
      %v2458 = vadd.f32 0.0, %v2457
      %v2459 = vpop.f32.mrb[0].mxu0
      %2460 = vmatprep.mubr.bf16.mxu0 0
      %2461 = vmatmul.mubr.bf16.gmra.mrb[0].mxu0 %v2321
      %v2462 = vpop.f32.mrb[0].mxu0
      %v2463 = vadd.f32 0.0, %v2462
      %v2464 = vpop.f32.mrb[0].mxu0
      %v2465 = vpop.f32.mrb[0].mxu0
      %v2466 = vadd.f32 0.0, %v2465
      %v2467 = vpop.f32.mrb[0].mxu0
      %2468 = vmatprep.mubr.bf16.mxu0 0
      %2469 = vmatmul.mubr.bf16.gmra.mrb[0].mxu0 %v2324
      %v2470 = vpop.f32.mrb[0].mxu0
      %v2471 = vadd.f32 0.0, %v2470
      %v2472 = vpop.f32.mrb[0].mxu0
      %v2473 = vpop.f32.mrb[0].mxu0
      %v2474 = vadd.f32 0.0, %v2473
      %v2475 = vpop.f32.mrb[0].mxu0
      %2476 = vmatprep.mubr.bf16.mxu0 0
      %2477 = vmatmul.mubr.bf16.gmra.mrb[0].mxu0 %v2327
      %v2478 = vpop.f32.mrb[0].mxu0
      %v2479 = vadd.f32 0.0, %v2478
      %v2480 = vpop.f32.mrb[0].mxu0
      %v2481 = vpop.f32.mrb[0].mxu0
      %v2482 = vadd.f32 0.0, %v2481
      %v2483 = vpop.f32.mrb[0].mxu0
      %2484 = vmatprep.mubr.bf16.mxu0 0
      %2485 = vmatmul.mubr.bf16.gmra.mrb[0].mxu0 %v2330
      %v2486 = vpop.f32.mrb[0].mxu0
      %v2487 = vadd.f32 0.0, %v2486
      %v2488 = vpop.f32.mrb[0].mxu0
      %v2489 = vpop.f32.mrb[0].mxu0
      %v2490 = vadd.f32 0.0, %v2489
      %v2491 = vpop.f32.mrb[0].mxu0
      %2492 = vdwg.mxu0
      %v2493 = vadd.f32 %v1676, %v2367
      %v2494 = vadd.f32 %v1679, %v2370
      %v2495 = vadd.f32 %v1684, %v2375
      %v2496 = vadd.f32 %v1687, %v2378
      %v2497 = vadd.f32 %v1692, %v2383
      %v2498 = vadd.f32 %v1695, %v2386
      %v2499 = vadd.f32 %v1700, %v2391
      %v2500 = vadd.f32 %v1703, %v2394
      %v2501 = vadd.f32 %v1708, %v2399
      %v2502 = vadd.f32 %v1711, %v2402
      %v2503 = vadd.f32 %v1716, %v2407
      %v2504 = vadd.f32 %v1719, %v2410
      %v2505 = vadd.f32 %v1724, %v2415
      %v2506 = vadd.f32 %v1727, %v2418
      %v2507 = vadd.f32 %v1732, %v2423
      %v2508 = vadd.f32 %v1735, %v2426
      %v2509 = vadd.f32 %v1740, %v2431
      %v2510 = vadd.f32 %v1743, %v2434
      %v2511 = vadd.f32 %v1748, %v2439
      %v2512 = vadd.f32 %v1751, %v2442
      %v2513 = vadd.f32 %v1756, %v2447
      %v2514 = vadd.f32 %v1759, %v2450
      %v2515 = vadd.f32 %v1764, %v2455
      %v2516 = vadd.f32 %v1767, %v2458
      %v2517 = vadd.f32 %v1772, %v2463
      %v2518 = vadd.f32 %v1775, %v2466
      %v2519 = vadd.f32 %v1780, %v2471
      %v2520 = vadd.f32 %v1783, %v2474
      %v2521 = vadd.f32 %v1788, %v2479
      %v2522 = vadd.f32 %v1791, %v2482
      %v2523 = vadd.f32 %v1796, %v2487
      %v2524 = vadd.f32 %v1799, %v2490
      %2525 = vst.msk [vmem:[%s197] sm:$0xff] %vm199, %v2493
      %2526 = vst.msk [vmem:[%s197 + $0x8] sm:$0xff] %vm199, %v2494
      %2527 = vst.msk [vmem:[%s197 + $0x10] sm:$0xff] %vm199, %v2495
      %2528 = vst.msk [vmem:[%s197 + $0x18] sm:$0xff] %vm199, %v2496
      %2529 = vst.msk [vmem:[%s197 + $0x20] sm:$0xff] %vm199, %v2497
      %2530 = vst.msk [vmem:[%s197 + $0x28] sm:$0xff] %vm199, %v2498
      %2531 = vst.msk [vmem:[%s197 + $0x30] sm:$0xff] %vm199, %v2499
      %2532 = vst.msk [vmem:[%s197 + $0x38] sm:$0xff] %vm199, %v2500
      %2533 = vst.msk [vmem:[%s197 + $0x40] sm:$0xff] %vm199, %v2501
      %2534 = vst.msk [vmem:[%s197 + $0x48] sm:$0xff] %vm199, %v2502
      %2535 = vst.msk [vmem:[%s197 + $0x50] sm:$0xff] %vm199, %v2503
      %2536 = vst.msk [vmem:[%s197 + $0x58] sm:$0xff] %vm199, %v2504
      %2537 = vst.msk [vmem:[%s197 + $0x60] sm:$0xff] %vm199, %v2505
      %2538 = vst.msk [vmem:[%s197 + $0x68] sm:$0xff] %vm199, %v2506
      %2539 = vst.msk [vmem:[%s197 + $0x70] sm:$0xff] %vm199, %v2507
      %2540 = vst.msk [vmem:[%s197 + $0x78] sm:$0xff] %vm199, %v2508
      %2541 = vst.msk [vmem:[%s197 + $0x80] sm:$0xff] %vm199, %v2509
      %2542 = vst.msk [vmem:[%s197 + $0x88] sm:$0xff] %vm199, %v2510
      %2543 = vst.msk [vmem:[%s197 + $0x90] sm:$0xff] %vm199, %v2511
      %2544 = vst.msk [vmem:[%s197 + $0x98] sm:$0xff] %vm199, %v2512
      %2545 = vst.msk [vmem:[%s197 + $0xa0] sm:$0xff] %vm199, %v2513
      %2546 = vst.msk [vmem:[%s197 + $0xa8] sm:$0xff] %vm199, %v2514
      %2547 = vst.msk [vmem:[%s197 + $0xb0] sm:$0xff] %vm199, %v2515
      %2548 = vst.msk [vmem:[%s197 + $0xb8] sm:$0xff] %vm199, %v2516
      %2549 = vst.msk [vmem:[%s197 + $0xc0] sm:$0xff] %vm199, %v2517
      %2550 = vst.msk [vmem:[%s197 + $0xc8] sm:$0xff] %vm199, %v2518
      %2551 = vst.msk [vmem:[%s197 + $0xd0] sm:$0xff] %vm199, %v2519
      %2552 = vst.msk [vmem:[%s197 + $0xd8] sm:$0xff] %vm199, %v2520
      %2553 = vst.msk [vmem:[%s197 + $0xe0] sm:$0xff] %vm199, %v2521
      %2554 = vst.msk [vmem:[%s197 + $0xe8] sm:$0xff] %vm199, %v2522
      %2555 = vst.msk [vmem:[%s197 + $0xf0] sm:$0xff] %vm199, %v2523
      %2556 = vst.msk [vmem:[%s197 + $0xf8] sm:$0xff] %vm199, %v2524
      %p2557 = scmp.lt.s32.totalorder %s15, 1
      %s2558 = scalar_select %p2557, %s15, 1
      %s2559 = smul.addr %s2558, 32
      %s2560 = smul.addr %s2559, 8
      %s2561 = scalar_lea.vmem %s4, %s2560
      // Predicated region
      $region37: #{_inception_a_forward.5} parent=35 // pred_check
        %p2562 = pneg %p122
      $region38: #{_inception_a_forward.5} parent=35 // pred_check_branch
        %2564 = sbr.rel (%p2562) target = $region40
      $region39: #{_inception_a_forward.5} parent=35 // pred_region
        _
      $region40: #{_inception_a_forward.5} parent=35 // pred_fallthru
        _
    $region36: #{_inception_a_forward.5} parent=5 // pred_fallthru
      _
    %p2565 = scmp.le.s32.totalorder 2, %s10
    // Predicated region
    $region41: #{_inception_a_forward.5} parent=5 // pred_check
      %p2566 = pneg %p2565
    $region42: #{_inception_a_forward.5} parent=5 // pred_check_branch
      %2568 = sbr.rel (%p2566) target = $region44
    $region43: #{_inception_a_forward.5} parent=5 // pred_region
      %s2569 = ssub.s32 %s10, 2
      // Predicated region
      $region45: #{_inception_a_forward.5} parent=43 // pred_check
        %p2570 = pneg %p128
      $region46: #{_inception_a_forward.5} parent=43 // pred_check_branch
        %2572 = sbr.rel (%p2570) target = $region48
      $region47: #{_inception_a_forward.5} parent=43 // pred_region
        %p2573 = scmp.lt.s32.totalorder %s16, 1
        %s2574 = scalar_select %p2573, %s16, 1
        %s2575 = smul.addr %s2574, 32
        %s2576 = smul.addr %s2575, 8
        %s2577 = scalar_lea.vmem %s4, %s2576
      $region48: #{_inception_a_forward.5} parent=43 // pred_fallthru
        _
    $region44: #{_inception_a_forward.5} parent=5 // pred_fallthru
      _
  $region6: #{_inception_a_forward.5} parent=0 // loop_footer
    %s14 = sadd.s32 1, %s10
  $region7: #{_inception_a_forward.5} parent=0 // loop_footer_branch
    %9 = sbr.rel target = $region3
  $region8: #{_inception_a_forward.5} parent=0 // loop_exit
    _

// kernel: _inception_a_forward.6
$region0: #{_inception_a_forward.6}
  #allocation0 [shape = 'u32[]', space=smem, size = 0x4, offset = 0x4, fixed_abs, tag = 'smem constant byte address 0x4 - core index']
  #allocation1 [shape = 'u32[144,128]{1,0:T(1,128)}', space=vmem, size = 0x12000, scoped, tag = 'internal scratch']
  #allocation2 [shape = 'f32[18,32,32]{2,1,0:T(8,128)}', space=vmem, size = 0x48000, scoped, tag = 'scratch operand']
  %s0 = inlined_call_operand.vmem [shape: f32[2,16,16,32], index: 0, kind: input, shape index: {}]
  %s1 = inlined_call_operand.vmem [shape: f32[1,32], index: 1, kind: input, shape index: {}]
  %s2 = inlined_call_operand.vmem [shape: f32[1,32], index: 2, kind: input, shape index: {}]
  %s3 = inlined_call_operand.vmem [shape: bf16[3,96,48], index: 3, kind: input, shape index: {}]
  %s4 = inlined_call_operand.vmem [shape: f32[2,256,48], index: 4, kind: output, shape index: {0}]
  %s5 = inlined_call_operand.vmem [shape: f32[2,2,48], index: 5, kind: output, shape index: {1}]
  %6 = xla_tuple %s4, %s5
  %s7 = sld [smem:[#allocation0]]
  $region57: #{_inception_a_forward.6} parent=0
    _
  %s9 = ssub.s32 1, %s7
  %s10 = scalar_select 0, %s9, %s7
  loop: start=0, step=1, limit=4
  $region2: #{_inception_a_forward.6} parent=0 // loop_pre_header
    _
  $region3: #{_inception_a_forward.6} parent=0 // loop_header
    %s12 = sphi 0, %s16
    %p13 = scmp.ge.s32.totalorder %s12, 4
    %s22 = sphi 0, %s24
    %s25 = sphi 0, %s22
    %s26 = sphi 0, %s25
    %s42 = sphi 0, %s26
    %s46 = sphi 0, %s46
    %s48 = sphi 0, %s46
    %s49 = sphi 0, %s48
    %s63 = sphi 0, %s49
    %s67 = sphi 0, %s67
    %s69 = sphi 0, %s67
    %s70 = sphi 0, %s69
    %s84 = sphi 0, %s70
    %s88 = sphi 0, %s88
    %s90 = sphi 0, %s88
    %s91 = sphi 0, %s90
    %s105 = sphi 0, %s91
    %s111 = sphi 0, %s113
    %s114 = sphi 0, %s111
    %s115 = sphi 0, %s114
    %s131 = sphi 0, %s115
    %s137 = sphi 0, %s139
    %s140 = sphi 0, %s137
    %s141 = sphi 0, %s140
    %s157 = sphi 0, %s141
  $region4: #{_inception_a_forward.6} parent=0 // loop_header_branch
    %15 = sbr.rel (%p13) target = $region8
  $region5: #{_inception_a_forward.6} parent=0 // loop_body
    %s17 = ssub.s32 %s12, 1
    %s18 = ssub.s32 %s12, 2
    %s19 = sadd.s32 %s12, 1
    %s20 = ssub.s32 %s12, %s19
    %p21 = scmp.eq.s32.totalorder %s20, 0
    %s23 = sadd.s32 %s22, 1
    %s24 = scalar_select %p21, %s22, %s23
    %p27 = pneg %p21
    %p28 = scmp.eq.s32.totalorder %s12, 1
    %p29 = por %p27, %p28
    %p30 = scmp.ne.s32.totalorder %s22, %s25
    %p31 = scmp.eq.s32.totalorder %s12, 0
    %p32 = por %p30, %p31
    %p33 = scmp.ne.s32.totalorder %s22, %s25
    %p34 = scmp.eq.s32.totalorder %s17, 1
    %p35 = por %p33, %p34
    %p36 = scmp.ne.s32.totalorder %s25, %s26
    %p37 = scmp.eq.s32.totalorder %s17, 0
    %p38 = por %p36, %p37
    %p39 = scmp.ne.s32.totalorder %s25, %s26
    %p40 = scmp.eq.s32.totalorder %s18, 1
    %p41 = por %p39, %p40
    %p43 = scmp.ne.s32.totalorder %s26, %s42
    %p44 = scmp.eq.s32.totalorder %s18, 0
    %p45 = por %p43, %p44
    %s47 = sadd.s32 %s46, 1
    %p50 = scmp.eq.s32.totalorder %s12, 1
    %p51 = scmp.ne.s32.totalorder %s46, %s48
    %p52 = scmp.eq.s32.totalorder %s12, 0
    %p53 = por %p51, %p52
    %p54 = scmp.ne.s32.totalorder %s46, %s48
    %p55 = scmp.eq.s32.totalorder %s17, 1
    %p56 = por %p54, %p55
    %p57 = scmp.ne.s32.totalorder %s48, %s49
    %p58 = scmp.eq.s32.totalorder %s17, 0
    %p59 = por %p57, %p58
    %p60 = scmp.ne.s32.totalorder %s48, %s49
    %p61 = scmp.eq.s32.totalorder %s18, 1
    %p62 = por %p60, %p61
    %p64 = scmp.ne.s32.totalorder %s49, %s63
    %p65 = scmp.eq.s32.totalorder %s18, 0
    %p66 = por %p64, %p65
    %s68 = sadd.s32 %s67, 1
    %p71 = scmp.eq.s32.totalorder %s12, 1
    %p72 = scmp.ne.s32.totalorder %s67, %s69
    %p73 = scmp.eq.s32.totalorder %s12, 0
    %p74 = por %p72, %p73
    %p75 = scmp.ne.s32.totalorder %s67, %s69
    %p76 = scmp.eq.s32.totalorder %s17, 1
    %p77 = por %p75, %p76
    %p78 = scmp.ne.s32.totalorder %s69, %s70
    %p79 = scmp.eq.s32.totalorder %s17, 0
    %p80 = por %p78, %p79
    %p81 = scmp.ne.s32.totalorder %s69, %s70
    %p82 = scmp.eq.s32.totalorder %s18, 1
    %p83 = por %p81, %p82
    %p85 = scmp.ne.s32.totalorder %s70, %s84
    %p86 = scmp.eq.s32.totalorder %s18, 0
    %p87 = por %p85, %p86
    %s89 = sadd.s32 %s88, 1
    %p92 = scmp.eq.s32.totalorder %s12, 1
    %p93 = scmp.ne.s32.totalorder %s88, %s90
    %p94 = scmp.eq.s32.totalorder %s12, 0
    %p95 = por %p93, %p94
    %p96 = scmp.ne.s32.totalorder %s88, %s90
    %p97 = scmp.eq.s32.totalorder %s17, 1
    %p98 = por %p96, %p97
    %p99 = scmp.ne.s32.totalorder %s90, %s91
    %p100 = scmp.eq.s32.totalorder %s17, 0
    %p101 = por %p99, %p100
    %p102 = scmp.ne.s32.totalorder %s90, %s91
    %p103 = scmp.eq.s32.totalorder %s18, 1
    %p104 = por %p102, %p103
    %p106 = scmp.ne.s32.totalorder %s91, %s105
    %p107 = scmp.eq.s32.totalorder %s18, 0
    %p108 = por %p106, %p107
    %s109 = ssub.s32 %s12, %s19
    %p110 = scmp.eq.s32.totalorder %s109, 0
    %s112 = sadd.s32 %s111, 1
    %s113 = scalar_select %p110, %s111, %s112
    %p116 = pneg %p110
    %p117 = scmp.eq.s32.totalorder %s12, 1
    %p118 = por %p116, %p117
    %p119 = scmp.ne.s32.totalorder %s111, %s114
    %p120 = scmp.eq.s32.totalorder %s12, 0
    %p121 = por %p119, %p120
    %p122 = scmp.ne.s32.totalorder %s111, %s114
    %p123 = scmp.eq.s32.totalorder %s17, 1
    %p124 = por %p122, %p123
    %p125 = scmp.ne.s32.totalorder %s114, %s115
    %p126 = scmp.eq.s32.totalorder %s17, 0
    %p127 = por %p125, %p126
    %p128 = scmp.ne.s32.totalorder %s114, %s115
    %p129 = scmp.eq.s32.totalorder %s18, 1
    %p130 = por %p128, %p129
    %p132 = scmp.ne.s32.totalorder %s115, %s131
    %p133 = scmp.eq.s32.totalorder %s18, 0
    %p134 = por %p132, %p133
    %s135 = ssub.s32 %s12, %s19
    %p136 = scmp.eq.s32.totalorder %s135, 0
    %s138 = sadd.s32 %s137, 1
    %s139 = scalar_select %p136, %s137, %s138
    %p142 = pneg %p136
    %p143 = scmp.eq.s32.totalorder %s12, 1
    %p144 = por %p142, %p143
    %p145 = scmp.ne.s32.totalorder %s137, %s140
    %p146 = scmp.eq.s32.totalorder %s12, 0
    %p147 = por %p145, %p146
    %p148 = scmp.ne.s32.totalorder %s137, %s140
    %p149 = scmp.eq.s32.totalorder %s17, 1
    %p150 = por %p148, %p149
    %p151 = scmp.ne.s32.totalorder %s140, %s141
    %p152 = scmp.eq.s32.totalorder %s17, 0
    %p153 = por %p151, %p152
    %p154 = scmp.ne.s32.totalorder %s140, %s141
    %p155 = scmp.eq.s32.totalorder %s18, 1
    %p156 = por %p154, %p155
    %p158 = scmp.ne.s32.totalorder %s141, %s157
    %p159 = scmp.eq.s32.totalorder %s18, 0
    %p160 = por %p158, %p159
    %p161 = scmp.le.s32.totalorder 1, %s12
    %p162 = scmp.lt.s32.totalorder %s12, 3
    %p163 = pnand %p161, %p162
    %p164 = pneg %p163
    // Predicated region
    $region9: #{_inception_a_forward.6} parent=5 // pred_check
      _
    $region10: #{_inception_a_forward.6} parent=5 // pred_check_branch
      %166 = sbr.rel (%p163) target = $region12
    $region11: #{_inception_a_forward.6} parent=5 // pred_region
      %s167 = ssub.s32 %s12, 1
      // Predicated region
      $region13: #{_inception_a_forward.6} parent=11 // pred_check
        %p168 = pneg %p59
      $region14: #{_inception_a_forward.6} parent=11 // pred_check_branch
        %170 = sbr.rel (%p168) target = $region16
      $region15: #{_inception_a_forward.6} parent=11 // pred_region
        _
      $region16: #{_inception_a_forward.6} parent=11 // pred_fallthru
        _
      // Predicated region
      $region17: #{_inception_a_forward.6} parent=11 // pred_check
        %p171 = pneg %p80
      $region18: #{_inception_a_forward.6} parent=11 // pred_check_branch
        %173 = sbr.rel (%p171) target = $region20
      $region19: #{_inception_a_forward.6} parent=11 // pred_region
        _
      $region20: #{_inception_a_forward.6} parent=11 // pred_fallthru
        _
      // Predicated region
      $region21: #{_inception_a_forward.6} parent=11 // pred_check
        %p174 = pneg %p101
      $region22: #{_inception_a_forward.6} parent=11 // pred_check_branch
        %176 = sbr.rel (%p174) target = $region24
      $region23: #{_inception_a_forward.6} parent=11 // pred_region
        _
      $region24: #{_inception_a_forward.6} parent=11 // pred_fallthru
        _
    $region12: #{_inception_a_forward.6} parent=5 // pred_fallthru
      _
    %p177 = scmp.lt.s32.totalorder %s12, 2
    // Predicated region
    $region25: #{_inception_a_forward.6} parent=5 // pred_check
      %p178 = pneg %p177
    $region26: #{_inception_a_forward.6} parent=5 // pred_check_branch
      %180 = sbr.rel (%p178) target = $region28
    $region27: #{_inception_a_forward.6} parent=5 // pred_region
      // Predicated region
      $region29: #{_inception_a_forward.6} parent=27 // pred_check
        %p181 = pneg %p32
      $region30: #{_inception_a_forward.6} parent=27 // pred_check_branch
        %183 = sbr.rel (%p181) target = $region32
      $region31: #{_inception_a_forward.6} parent=27 // pred_region
        %p184 = scmp.lt.s32.totalorder %s12, 1
        %s185 = scalar_select %p184, %s12, 1
        %s186 = smul.addr %s185, 32
        %s187 = smul.addr %s186, 8
        %s188 = scalar_lea.vmem %s0, %s187
      $region32: #{_inception_a_forward.6} parent=27 // pred_fallthru
        _
    $region28: #{_inception_a_forward.6} parent=5 // pred_fallthru
      _
    %p189 = scmp.le.s32.totalorder 1, %s12
    %p190 = scmp.lt.s32.totalorder %s12, 3
    %p191 = pnand %p189, %p190
    %p192 = pneg %p191
    // Predicated region
    $region33: #{_inception_a_forward.6} parent=5 // pred_check
      _
    $region34: #{_inception_a_forward.6} parent=5 // pred_check_branch
      %194 = sbr.rel (%p191) target = $region36
    $region35: #{_inception_a_forward.6} parent=5 // pred_region
      %s195 = ssub.s32 %s12, 1
      %p196 = scmp.lt.s32.totalorder %s17, 1
      %s197 = scalar_select %p196, %s17, 1
      %s198 = smul.addr %s197, 32
      %s199 = smul.addr %s198, 8
      %s200 = scalar_lea.vmem %s0, %s199
      %p201 = pneg %p38
      %p202 = pneg %p35
      %p203 = pneg %p59
      %p204 = pneg %p56
      %p205 = pneg %p80
      %p206 = pneg %p77
      %p207 = pneg %p101
      %p208 = pneg %p98
      %p209 = pneg %p127
      %p210 = pneg %p124
      %p211 = scmp.lt.s32.totalorder %s17, 1
      %s212 = scalar_select %p211, %s17, 1
      %s213 = smul.addr %s212, 32
      %s214 = smul.addr %s213, 8
      %s215 = scalar_lea.vmem %s4, %s214
      %p216 = pneg %p153
      %p217 = pneg %p150
      %p218 = scmp.lt.s32.totalorder %s17, 1
      %s219 = scalar_select %p218, %s17, 1
      %s220 = smul.addr %s219, 2
      %s221 = scalar_lea.vmem %s5, %s220
      %p222 = scmp.lt.s32.totalorder %s17, 1
      %s223 = scalar_select %p222, %s17, 1
      %s224 = smul.addr %s223, 32
      %s225 = smul.addr %s224, 8
      %s226 = scalar_lea.vmem %s0, %s225
      %p227 = scmp.lt.s32.totalorder %s17, 1
      %s228 = scalar_select %p227, %s17, 1
      %s229 = smul.addr %s228, 32
      %s230 = smul.addr %s229, 8
      %s231 = scalar_lea.vmem %s4, %s230
      %p232 = scmp.lt.s32.totalorder %s17, 1
      %s233 = scalar_select %p232, %s17, 1
      %s234 = smul.addr %s233, 2
      %s235 = scalar_lea.vmem %s5, %s234
      %vm237 = vcmask 261120
      %238 = vst.msk [vmem:[#allocation2] sm:$0xff] %vm237, 0.0
      %239 = vst.msk [vmem:[#allocation2 + $0x8] sm:$0xff] %vm237, 0.0
      %240 = vst.msk [vmem:[#allocation2 + $0x10] sm:$0xff] %vm237, 0.0
      %241 = vst.msk [vmem:[#allocation2 + $0x18] sm:$0xff] %vm237, 0.0
      %s242 = scalar_lea.vmem [#allocation2], 544
      %243 = vst.msk [vmem:[%s242] sm:$0xff] %vm237, 0.0
      %244 = vst.msk [vmem:[%s242 + $0x8] sm:$0xff] %vm237, 0.0
      %245 = vst.msk [vmem:[%s242 + $0x10] sm:$0xff] %vm237, 0.0
      %246 = vst.msk [vmem:[%s242 + $0x18] sm:$0xff] %vm237, 0.0
      %vm247 = vcmask 253952
      %248 = vst.msk [vmem:[#allocation2 + $0x7] sm:$0x1] %vm247, 0.0
      %249 = vst.msk [vmem:[#allocation2 + $0x27] sm:$0x1] %vm247, 0.0
      %250 = vst.msk [vmem:[#allocation2 + $0x47] sm:$0x1] %vm247, 0.0
      %251 = vst.msk [vmem:[#allocation2 + $0x67] sm:$0x1] %vm247, 0.0
      %252 = vst.msk [vmem:[#allocation2 + $0x87] sm:$0x1] %vm247, 0.0
      %253 = vst.msk [vmem:[#allocation2 + $0xa7] sm:$0x1] %vm247, 0.0
      %254 = vst.msk [vmem:[#allocation2 + $0xc7] sm:$0x1] %vm247, 0.0
      %255 = vst.msk [vmem:[#allocation2 + $0xe7] sm:$0x1] %vm247, 0.0
      %256 = vst.msk [vmem:[#allocation2 + $0x107] sm:$0x1] %vm247, 0.0
      %257 = vst.msk [vmem:[#allocation2 + $0x127] sm:$0x1] %vm247, 0.0
      %258 = vst.msk [vmem:[#allocation2 + $0x147] sm:$0x1] %vm247, 0.0
      %259 = vst.msk [vmem:[#allocation2 + $0x167] sm:$0x1] %vm247, 0.0
      %260 = vst.msk [vmem:[#allocation2 + $0x187] sm:$0x1] %vm247, 0.0
      %261 = vst.msk [vmem:[#allocation2 + $0x1a7] sm:$0x1] %vm247, 0.0
      %262 = vst.msk [vmem:[#allocation2 + $0x1c7] sm:$0x1] %vm247, 0.0
      %263 = vst.msk [vmem:[#allocation2 + $0x1e7] sm:$0x1] %vm247, 0.0
      %264 = vst.msk [vmem:[#allocation2 + $0x207] sm:$0x1] %vm247, 0.0
      %265 = vst.msk [vmem:[#allocation2 + $0x227] sm:$0x1] %vm247, 0.0
      %266 = vst.msk [vmem:[#allocation2 + $0x18] sm:$0x1] %vm247, 0.0
      %267 = vst.msk [vmem:[#allocation2 + $0x38] sm:$0x1] %vm247, 0.0
      %268 = vst.msk [vmem:[#allocation2 + $0x58] sm:$0x1] %vm247, 0.0
      %269 = vst.msk [vmem:[#allocation2 + $0x78] sm:$0x1] %vm247, 0.0
      %270 = vst.msk [vmem:[#allocation2 + $0x98] sm:$0x1] %vm247, 0.0
      %271 = vst.msk [vmem:[#allocation2 + $0xb8] sm:$0x1] %vm247, 0.0
      %272 = vst.msk [vmem:[#allocation2 + $0xd8] sm:$0x1] %vm247, 0.0
      %273 = vst.msk [vmem:[#allocation2 + $0xf8] sm:$0x1] %vm247, 0.0
      %274 = vst.msk [vmem:[#allocation2 + $0x118] sm:$0x1] %vm247, 0.0
      %275 = vst.msk [vmem:[#allocation2 + $0x138] sm:$0x1] %vm247, 0.0
      %276 = vst.msk [vmem:[#allocation2 + $0x158] sm:$0x1] %vm247, 0.0
      %277 = vst.msk [vmem:[#allocation2 + $0x178] sm:$0x1] %vm247, 0.0
      %278 = vst.msk [vmem:[#allocation2 + $0x198] sm:$0x1] %vm247, 0.0
      %279 = vst.msk [vmem:[#allocation2 + $0x1b8] sm:$0x1] %vm247, 0.0
      %280 = vst.msk [vmem:[#allocation2 + $0x1d8] sm:$0x1] %vm247, 0.0
      %281 = vst.msk [vmem:[#allocation2 + $0x1f8] sm:$0x1] %vm247, 0.0
      %282 = vst.msk [vmem:[#allocation2 + $0x218] sm:$0x1] %vm247, 0.0
      %283 = vst.msk [vmem:[#allocation2 + $0x238] sm:$0x1] %vm247, 0.0
      %v284 = vld [vmem:[%s226] sm:$0xff]
      %v285 = vld [vmem:[%s226 + $0x8] sm:$0xff]
      %v286 = vld [vmem:[%s226 + $0x10] sm:$0xff]
      %v287 = vld [vmem:[%s226 + $0x18] sm:$0xff]
      %v288 = vld [vmem:[%s226 + $0x20] sm:$0xff]
      %v289 = vld [vmem:[%s226 + $0x28] sm:$0xff]
      %v290 = vld [vmem:[%s226 + $0x30] sm:$0xff]
      %v291 = vld [vmem:[%s226 + $0x38] sm:$0xff]
      %v292 = vld [vmem:[%s226 + $0x40] sm:$0xff]
      %v293 = vld [vmem:[%s226 + $0x48] sm:$0xff]
      %v294 = vld [vmem:[%s226 + $0x50] sm:$0xff]
      %v295 = vld [vmem:[%s226 + $0x58] sm:$0xff]
      %v296 = vld [vmem:[%s226 + $0x60] sm:$0xff]
      %v297 = vld [vmem:[%s226 + $0x68] sm:$0xff]
      %v298 = vld [vmem:[%s226 + $0x70] sm:$0xff]
      %v299 = vld [vmem:[%s226 + $0x78] sm:$0xff]
      %v300 = vld [vmem:[%s226 + $0x80] sm:$0xff]
      %v301 = vld [vmem:[%s226 + $0x88] sm:$0xff]
      %v302 = vld [vmem:[%s226 + $0x90] sm:$0xff]
      %v303 = vld [vmem:[%s226 + $0x98] sm:$0xff]
      %v304 = vld [vmem:[%s226 + $0xa0] sm:$0xff]
      %v305 = vld [vmem:[%s226 + $0xa8] sm:$0xff]
      %v306 = vld [vmem:[%s226 + $0xb0] sm:$0xff]
      %v307 = vld [vmem:[%s226 + $0xb8] sm:$0xff]
      %v308 = vld [vmem:[%s226 + $0xc0] sm:$0xff]
      %v309 = vld [vmem:[%s226 + $0xc8] sm:$0xff]
      %v310 = vld [vmem:[%s226 + $0xd0] sm:$0xff]
      %v311 = vld [vmem:[%s226 + $0xd8] sm:$0xff]
      %v312 = vld [vmem:[%s226 + $0xe0] sm:$0xff]
      %v313 = vld [vmem:[%s226 + $0xe8] sm:$0xff]
      %v314 = vld [vmem:[%s226 + $0xf0] sm:$0xff]
      %v315 = vld [vmem:[%s226 + $0xf8] sm:$0xff]
      %v316 = vld [vmem:[%s1] sm:$0x1]
      %v317 = vld [vmem:[%s2] sm:$0x1]
      %v319 = vlaneseq
      %v320 = vshrl.u32 %v319, 7
      %v321 = vsub.s32 0, %v320
      %v322 = vrot.slane %v316, %v321
      %v324 = vmul.f32 %v284, %v322
      %v325 = vmul.f32 %v285, %v322
      %v326 = vmul.f32 %v286, %v322
      %v327 = vmul.f32 %v287, %v322
      %v328 = vmul.f32 %v288, %v322
      %v329 = vmul.f32 %v289, %v322
      %v330 = vmul.f32 %v290, %v322
      %v331 = vmul.f32 %v291, %v322
      %v332 = vmul.f32 %v292, %v322
      %v333 = vmul.f32 %v293, %v322
      %v334 = vmul.f32 %v294, %v322
      %v335 = vmul.f32 %v295, %v322
      %v336 = vmul.f32 %v296, %v322
      %v337 = vmul.f32 %v297, %v322
      %v338 = vmul.f32 %v298, %v322
      %v339 = vmul.f32 %v299, %v322
      %v340 = vmul.f32 %v300, %v322
      %v341 = vmul.f32 %v301, %v322
      %v342 = vmul.f32 %v302, %v322
      %v343 = vmul.f32 %v303, %v322
      %v344 = vmul.f32 %v304, %v322
      %v345 = vmul.f32 %v305, %v322
      %v346 = vmul.f32 %v306, %v322
      %v347 = vmul.f32 %v307, %v322
      %v348 = vmul.f32 %v308, %v322
      %v349 = vmul.f32 %v309, %v322
      %v350 = vmul.f32 %v310, %v322
      %v351 = vmul.f32 %v311, %v322
      %v352 = vmul.f32 %v312, %v322
      %v353 = vmul.f32 %v313, %v322
      %v354 = vmul.f32 %v314, %v322
      %v355 = vmul.f32 %v315, %v322
      %v357 = vlaneseq
      %v358 = vshrl.u32 %v357, 7
      %v359 = vsub.s32 0, %v358
      %v360 = vrot.slane %v317, %v359
      %v362 = vadd.f32 %v324, %v360
      %v363 = vadd.f32 %v325, %v360
      %v364 = vadd.f32 %v326, %v360
      %v365 = vadd.f32 %v327, %v360
      %v366 = vadd.f32 %v328, %v360
      %v367 = vadd.f32 %v329, %v360
      %v368 = vadd.f32 %v330, %v360
      %v369 = vadd.f32 %v331, %v360
      %v370 = vadd.f32 %v332, %v360
      %v371 = vadd.f32 %v333, %v360
      %v372 = vadd.f32 %v334, %v360
      %v373 = vadd.f32 %v335, %v360
      %v374 = vadd.f32 %v336, %v360
      %v375 = vadd.f32 %v337, %v360
      %v376 = vadd.f32 %v338, %v360
      %v377 = vadd.f32 %v339, %v360
      %v378 = vadd.f32 %v340, %v360
      %v379 = vadd.f32 %v341, %v360
      %v380 = vadd.f32 %v342, %v360
      %v381 = vadd.f32 %v343, %v360
      %v382 = vadd.f32 %v344, %v360
      %v383 = vadd.f32 %v345, %v360
      %v384 = vadd.f32 %v346, %v360
      %v385 = vadd.f32 %v347, %v360
      %v386 = vadd.f32 %v348, %v360
      %v387 = vadd.f32 %v349, %v360
      %v388 = vadd.f32 %v350, %v360
      %v389 = vadd.f32 %v351, %v360
      %v390 = vadd.f32 %v352, %v360
      %v391 = vadd.f32 %v353, %v360
      %v392 = vadd.f32 %v354, %v360
      %v393 = vadd.f32 %v355, %v360
      %v394 = vmax.f32 %v362, 0.0
      %v395 = vmax.f32 %v363, 0.0
      %v396 = vmax.f32 %v364, 0.0
      %v397 = vmax.f32 %v365, 0.0
      %v398 = vmax.f32 %v366, 0.0
      %v399 = vmax.f32 %v367, 0.0
      %v400 = vmax.f32 %v368, 0.0
      %v401 = vmax.f32 %v369, 0.0
      %v402 = vmax.f32 %v370, 0.0
      %v403 = vmax.f32 %v371, 0.0
      %v404 = vmax.f32 %v372, 0.0
      %v405 = vmax.f32 %v373, 0.0
      %v406 = vmax.f32 %v374, 0.0
      %v407 = vmax.f32 %v375, 0.0
      %v408 = vmax.f32 %v376, 0.0
      %v409 = vmax.f32 %v377, 0.0
      %v410 = vmax.f32 %v378, 0.0
      %v411 = vmax.f32 %v379, 0.0
      %v412 = vmax.f32 %v380, 0.0
      %v413 = vmax.f32 %v381, 0.0
      %v414 = vmax.f32 %v382, 0.0
      %v415 = vmax.f32 %v383, 0.0
      %v416 = vmax.f32 %v384, 0.0
      %v417 = vmax.f32 %v385, 0.0
      %v418 = vmax.f32 %v386, 0.0
      %v419 = vmax.f32 %v387, 0.0
      %v420 = vmax.f32 %v388, 0.0
      %v421 = vmax.f32 %v389, 0.0
      %v422 = vmax.f32 %v390, 0.0
      %v423 = vmax.f32 %v391, 0.0
      %v424 = vmax.f32 %v392, 0.0
      %v425 = vmax.f32 %v393, 0.0
      %s426 = scalar_lea.vmem [#allocation2], 32
      %427 = vst.msk [vmem:[%s426 + $0x8] sm:$0xff] %vm237, %v394
      %428 = vst.msk [vmem:[%s426 + $0x10] sm:$0xff] %vm237, %v395
      %429 = vst.msk [vmem:[%s426 + $0x28] sm:$0xff] %vm237, %v396
      %430 = vst.msk [vmem:[%s426 + $0x30] sm:$0xff] %vm237, %v397
      %431 = vst.msk [vmem:[%s426 + $0x48] sm:$0xff] %vm237, %v398
      %432 = vst.msk [vmem:[%s426 + $0x50] sm:$0xff] %vm237, %v399
      %433 = vst.msk [vmem:[%s426 + $0x68] sm:$0xff] %vm237, %v400
      %434 = vst.msk [vmem:[%s426 + $0x70] sm:$0xff] %vm237, %v401
      %435 = vst.msk [vmem:[%s426 + $0x88] sm:$0xff] %vm237, %v402
      %436 = vst.msk [vmem:[%s426 + $0x90] sm:$0xff] %vm237, %v403
      %437 = vst.msk [vmem:[%s426 + $0xa8] sm:$0xff] %vm237, %v404
      %438 = vst.msk [vmem:[%s426 + $0xb0] sm:$0xff] %vm237, %v405
      %439 = vst.msk [vmem:[%s426 + $0xc8] sm:$0xff] %vm237, %v406
      %440 = vst.msk [vmem:[%s426 + $0xd0] sm:$0xff] %vm237, %v407
      %441 = vst.msk [vmem:[%s426 + $0xe8] sm:$0xff] %vm237, %v408
      %442 = vst.msk [vmem:[%s426 + $0xf0] sm:$0xff] %vm237, %v409
      %443 = vst.msk [vmem:[%s426 + $0x108] sm:$0xff] %vm237, %v410
      %444 = vst.msk [vmem:[%s426 + $0x110] sm:$0xff] %vm237, %v411
      %445 = vst.msk [vmem:[%s426 + $0x128] sm:$0xff] %vm237, %v412
      %446 = vst.msk [vmem:[%s426 + $0x130] sm:$0xff] %vm237, %v413
      %447 = vst.msk [vmem:[%s426 + $0x148] sm:$0xff] %vm237, %v414
      %448 = vst.msk [vmem:[%s426 + $0x150] sm:$0xff] %vm237, %v415
      %449 = vst.msk [vmem:[%s426 + $0x168] sm:$0xff] %vm237, %v416
      %450 = vst.msk [vmem:[%s426 + $0x170] sm:$0xff] %vm237, %v417
      %451 = vst.msk [vmem:[%s426 + $0x188] sm:$0xff] %vm237, %v418
      %452 = vst.msk [vmem:[%s426 + $0x190] sm:$0xff] %vm237, %v419
      %453 = vst.msk [vmem:[%s426 + $0x1a8] sm:$0xff] %vm237, %v420
      %454 = vst.msk [vmem:[%s426 + $0x1b0] sm:$0xff] %vm237, %v421
      %455 = vst.msk [vmem:[%s426 + $0x1c8] sm:$0xff] %vm237, %v422
      %456 = vst.msk [vmem:[%s426 + $0x1d0] sm:$0xff] %vm237, %v423
      %457 = vst.msk [vmem:[%s426 + $0x1e8] sm:$0xff] %vm237, %v424
      %458 = vst.msk [vmem:[%s426 + $0x1f0] sm:$0xff] %vm237, %v425
      %v459 = vld [vmem:[#allocation2 + $0x7] sm:$0xff]
      %v460 = vld [vmem:[#allocation2 + $0xf] sm:$0xff]
      %v461 = vld [vmem:[#allocation2 + $0x27] sm:$0xff]
      %v462 = vld [vmem:[#allocation2 + $0x2f] sm:$0xff]
      %v463 = vld [vmem:[#allocation2 + $0x47] sm:$0xff]
      %v464 = vld [vmem:[#allocation2 + $0x4f] sm:$0xff]
      %v465 = vld [vmem:[#allocation2 + $0x67] sm:$0xff]
      %v466 = vld [vmem:[#allocation2 + $0x6f] sm:$0xff]
      %v467 = vld [vmem:[#allocation2 + $0x87] sm:$0xff]
      %v468 = vld [vmem:[#allocation2 + $0x8f] sm:$0xff]
      %v469 = vld [vmem:[#allocation2 + $0xa7] sm:$0xff]
      %v470 = vld [vmem:[#allocation2 + $0xaf] sm:$0xff]
      %v471 = vld [vmem:[#allocation2 + $0xc7] sm:$0xff]
      %v472 = vld [vmem:[#allocation2 + $0xcf] sm:$0xff]
      %v473 = vld [vmem:[#allocation2 + $0xe7] sm:$0xff]
      %v474 = vld [vmem:[#allocation2 + $0xef] sm:$0xff]
      %v475 = vld [vmem:[#allocation2 + $0x107] sm:$0xff]
      %v476 = vld [vmem:[#allocation2 + $0x10f] sm:$0xff]
      %v477 = vld [vmem:[#allocation2 + $0x127] sm:$0xff]
      %v478 = vld [vmem:[#allocation2 + $0x12f] sm:$0xff]
      %v479 = vld [vmem:[#allocation2 + $0x147] sm:$0xff]
      %v480 = vld [vmem:[#allocation2 + $0x14f] sm:$0xff]
      %v481 = vld [vmem:[#allocation2 + $0x167] sm:$0xff]
      %v482 = vld [vmem:[#allocation2 + $0x16f] sm:$0xff]
      %v483 = vld [vmem:[#allocation2 + $0x187] sm:$0xff]
      %v484 = vld [vmem:[#allocation2 + $0x18f] sm:$0xff]
      %v485 = vld [vmem:[#allocation2 + $0x1a7] sm:$0xff]
      %v486 = vld [vmem:[#allocation2 + $0x1af] sm:$0xff]
      %v487 = vld [vmem:[#allocation2 + $0x1c7] sm:$0xff]
      %v488 = vld [vmem:[#allocation2 + $0x1cf] sm:$0xff]
      %v489 = vld [vmem:[#allocation2 + $0x1e7] sm:$0xff]
      %v490 = vld [vmem:[#allocation2 + $0x1ef] sm:$0xff]
      %v491 = vld [vmem:[#allocation2 + $0x8] sm:$0xff]
      %v492 = vld [vmem:[#allocation2 + $0x10] sm:$0xff]
      %v493 = vld [vmem:[#allocation2 + $0x28] sm:$0xff]
      %v494 = vld [vmem:[#allocation2 + $0x30] sm:$0xff]
      %v495 = vld [vmem:[#allocation2 + $0x48] sm:$0xff]
      %v496 = vld [vmem:[#allocation2 + $0x50] sm:$0xff]
      %v497 = vld [vmem:[#allocation2 + $0x68] sm:$0xff]
      %v498 = vld [vmem:[#allocation2 + $0x70] sm:$0xff]
      %v499 = vld [vmem:[#allocation2 + $0x88] sm:$0xff]
      %v500 = vld [vmem:[#allocation2 + $0x90] sm:$0xff]
      %v501 = vld [vmem:[#allocation2 + $0xa8] sm:$0xff]
      %v502 = vld [vmem:[#allocation2 + $0xb0] sm:$0xff]
      %v503 = vld [vmem:[#allocation2 + $0xc8] sm:$0xff]
      %v504 = vld [vmem:[#allocation2 + $0xd0] sm:$0xff]
      %v505 = vld [vmem:[#allocation2 + $0xe8] sm:$0xff]
      %v506 = vld [vmem:[#allocation2 + $0xf0] sm:$0xff]
      %v507 = vld [vmem:[#allocation2 + $0x108] sm:$0xff]
      %v508 = vld [vmem:[#allocation2 + $0x110] sm:$0xff]
      %v509 = vld [vmem:[#allocation2 + $0x128] sm:$0xff]
      %v510 = vld [vmem:[#allocation2 + $0x130] sm:$0xff]
      %v511 = vld [vmem:[#allocation2 + $0x148] sm:$0xff]
      %v512 = vld [vmem:[#allocation2 + $0x150] sm:$0xff]
      %v513 = vld [vmem:[#allocation2 + $0x168] sm:$0xff]
      %v514 = vld [vmem:[#allocation2 + $0x170] sm:$0xff]
      %v515 = vld [vmem:[#allocation2 + $0x188] sm:$0xff]
      %v516 = vld [vmem:[#allocation2 + $0x190] sm:$0xff]
      %v517 = vld [vmem:[#allocation2 + $0x1a8] sm:$0xff]
      %v518 = vld [vmem:[#allocation2 + $0x1b0] sm:$0xff]
      %v519 = vld [vmem:[#allocation2 + $0x1c8] sm:$0xff]
      %v520 = vld [vmem:[#allocation2 + $0x1d0] sm:$0xff]
      %v521 = vld [vmem:[#allocation2 + $0x1e8] sm:$0xff]
      %v522 = vld [vmem:[#allocation2 + $0x1f0] sm:$0xff]
      %v523 = vld [vmem:[#allocation2 + $0x9] sm:$0xff]
      %v524 = vld [vmem:[#allocation2 + $0x11] sm:$0xff]
      %v525 = vld [vmem:[#allocation2 + $0x29] sm:$0xff]
      %v526 = vld [vmem:[#allocation2 + $0x31] sm:$0xff]
      %v527 = vld [vmem:[#allocation2 + $0x49] sm:$0xff]
      %v528 = vld [vmem:[#allocation2 + $0x51] sm:$0xff]
      %v529 = vld [vmem:[#allocation2 + $0x69] sm:$0xff]
      %v530 = vld [vmem:[#allocation2 + $0x71] sm:$0xff]
      %v531 = vld [vmem:[#allocation2 + $0x89] sm:$0xff]
      %v532 = vld [vmem:[#allocation2 + $0x91] sm:$0xff]
      %v533 = vld [vmem:[#allocation2 + $0xa9] sm:$0xff]
      %v534 = vld [vmem:[#allocation2 + $0xb1] sm:$0xff]
      %v535 = vld [vmem:[#allocation2 + $0xc9] sm:$0xff]
      %v536 = vld [vmem:[#allocation2 + $0xd1] sm:$0xff]
      %v537 = vld [vmem:[#allocation2 + $0xe9] sm:$0xff]
      %v538 = vld [vmem:[#allocation2 + $0xf1] sm:$0xff]
      %v539 = vld [vmem:[#allocation2 + $0x109] sm:$0xff]
      %v540 = vld [vmem:[#allocation2 + $0x111] sm:$0xff]
      %v541 = vld [vmem:[#allocation2 + $0x129] sm:$0xff]
      %v542 = vld [vmem:[#allocation2 + $0x131] sm:$0xff]
      %v543 = vld [vmem:[#allocation2 + $0x149] sm:$0xff]
      %v544 = vld [vmem:[#allocation2 + $0x151] sm:$0xff]
      %v545 = vld [vmem:[#allocation2 + $0x169] sm:$0xff]
      %v546 = vld [vmem:[#allocation2 + $0x171] sm:$0xff]
      %v547 = vld [vmem:[#allocation2 + $0x189] sm:$0xff]
      %v548 = vld [vmem:[#allocation2 + $0x191] sm:$0xff]
      %v549 = vld [vmem:[#allocation2 + $0x1a9] sm:$0xff]
      %v550 = vld [vmem:[#allocation2 + $0x1b1] sm:$0xff]
      %v551 = vld [vmem:[#allocation2 + $0x1c9] sm:$0xff]
      %v552 = vld [vmem:[#allocation2 + $0x1d1] sm:$0xff]
      %v553 = vld [vmem:[#allocation2 + $0x1e9] sm:$0xff]
      %v554 = vld [vmem:[#allocation2 + $0x1f1] sm:$0xff]
      %587 = vrot.lane.b32.xlu0 %v491, 32
      %v588 = vpop.permute.xlu0 %587
      %589 = vrot.lane.b32.xlu0 %v492, 32
      %v590 = vpop.permute.xlu0 %589
      %591 = vrot.lane.b32.xlu0 %v493, 32
      %v592 = vpop.permute.xlu0 %591
      %593 = vrot.lane.b32.xlu0 %v494, 32
      %v594 = vpop.permute.xlu0 %593
      %595 = vrot.lane.b32.xlu0 %v495, 32
      %v596 = vpop.permute.xlu0 %595
      %597 = vrot.lane.b32.xlu0 %v496, 32
      %v598 = vpop.permute.xlu0 %597
      %599 = vrot.lane.b32.xlu0 %v497, 32
      %v600 = vpop.permute.xlu0 %599
      %601 = vrot.lane.b32.xlu0 %v498, 32
      %v602 = vpop.permute.xlu0 %601
      %603 = vrot.lane.b32.xlu0 %v499, 32
      %v604 = vpop.permute.xlu0 %603
      %605 = vrot.lane.b32.xlu0 %v500, 32
      %v606 = vpop.permute.xlu0 %605
      %607 = vrot.lane.b32.xlu0 %v501, 32
      %v608 = vpop.permute.xlu0 %607
      %609 = vrot.lane.b32.xlu0 %v502, 32
      %v610 = vpop.permute.xlu0 %609
      %611 = vrot.lane.b32.xlu0 %v503, 32
      %v612 = vpop.permute.xlu0 %611
      %613 = vrot.lane.b32.xlu0 %v504, 32
      %v614 = vpop.permute.xlu0 %613
      %615 = vrot.lane.b32.xlu0 %v505, 32
      %v616 = vpop.permute.xlu0 %615
      %617 = vrot.lane.b32.xlu0 %v506, 32
      %v618 = vpop.permute.xlu0 %617
      %619 = vrot.lane.b32.xlu0 %v507, 32
      %v620 = vpop.permute.xlu0 %619
      %621 = vrot.lane.b32.xlu0 %v508, 32
      %v622 = vpop.permute.xlu0 %621
      %623 = vrot.lane.b32.xlu0 %v509, 32
      %v624 = vpop.permute.xlu0 %623
      %625 = vrot.lane.b32.xlu0 %v510, 32
      %v626 = vpop.permute.xlu0 %625
      %627 = vrot.lane.b32.xlu0 %v511, 32
      %v628 = vpop.permute.xlu0 %627
      %629 = vrot.lane.b32.xlu0 %v512, 32
      %v630 = vpop.permute.xlu0 %629
      %631 = vrot.lane.b32.xlu0 %v513, 32
      %v632 = vpop.permute.xlu0 %631
      %633 = vrot.lane.b32.xlu0 %v514, 32
      %v634 = vpop.permute.xlu0 %633
      %635 = vrot.lane.b32.xlu0 %v515, 32
      %v636 = vpop.permute.xlu0 %635
      %637 = vrot.lane.b32.xlu0 %v516, 32
      %v638 = vpop.permute.xlu0 %637
      %639 = vrot.lane.b32.xlu0 %v517, 32
      %v640 = vpop.permute.xlu0 %639
      %641 = vrot.lane.b32.xlu0 %v518, 32
      %v642 = vpop.permute.xlu0 %641
      %643 = vrot.lane.b32.xlu0 %v519, 32
      %v644 = vpop.permute.xlu0 %643
      %645 = vrot.lane.b32.xlu0 %v520, 32
      %v646 = vpop.permute.xlu0 %645
      %647 = vrot.lane.b32.xlu0 %v521, 32
      %v648 = vpop.permute.xlu0 %647
      %649 = vrot.lane.b32.xlu0 %v522, 32
      %v650 = vpop.permute.xlu0 %649
      %715 = vrot.lane.b32.xlu0 %v523, 64
      %v716 = vpop.permute.xlu0 %715
      %717 = vrot.lane.b32.xlu0 %v524, 64
      %v718 = vpop.permute.xlu0 %717
      %719 = vrot.lane.b32.xlu0 %v525, 64
      %v720 = vpop.permute.xlu0 %719
      %721 = vrot.lane.b32.xlu0 %v526, 64
      %v722 = vpop.permute.xlu0 %721
      %723 = vrot.lane.b32.xlu0 %v527, 64
      %v724 = vpop.permute.xlu0 %723
      %725 = vrot.lane.b32.xlu0 %v528, 64
      %v726 = vpop.permute.xlu0 %725
      %727 = vrot.lane.b32.xlu0 %v529, 64
      %v728 = vpop.permute.xlu0 %727
      %729 = vrot.lane.b32.xlu0 %v530, 64
      %v730 = vpop.permute.xlu0 %729
      %731 = vrot.lane.b32.xlu0 %v531, 64
      %v732 = vpop.permute.xlu0 %731
      %733 = vrot.lane.b32.xlu0 %v532, 64
      %v734 = vpop.permute.xlu0 %733
      %735 = vrot.lane.b32.xlu0 %v533, 64
      %v736 = vpop.permute.xlu0 %735
      %737 = vrot.lane.b32.xlu0 %v534, 64
      %v738 = vpop.permute.xlu0 %737
      %739 = vrot.lane.b32.xlu0 %v535, 64
      %v740 = vpop.permute.xlu0 %739
      %741 = vrot.lane.b32.xlu0 %v536, 64
      %v742 = vpop.permute.xlu0 %741
      %743 = vrot.lane.b32.xlu0 %v537, 64
      %v744 = vpop.permute.xlu0 %743
      %745 = vrot.lane.b32.xlu0 %v538, 64
      %v746 = vpop.permute.xlu0 %745
      %747 = vrot.lane.b32.xlu0 %v539, 64
      %v748 = vpop.permute.xlu0 %747
      %749 = vrot.lane.b32.xlu0 %v540, 64
      %v750 = vpop.permute.xlu0 %749
      %751 = vrot.lane.b32.xlu0 %v541, 64
      %v752 = vpop.permute.xlu0 %751
      %753 = vrot.lane.b32.xlu0 %v542, 64
      %v754 = vpop.permute.xlu0 %753
      %755 = vrot.lane.b32.xlu0 %v543, 64
      %v756 = vpop.permute.xlu0 %755
      %757 = vrot.lane.b32.xlu0 %v544, 64
      %v758 = vpop.permute.xlu0 %757
      %759 = vrot.lane.b32.xlu0 %v545, 64
      %v760 = vpop.permute.xlu0 %759
      %761 = vrot.lane.b32.xlu0 %v546, 64
      %v762 = vpop.permute.xlu0 %761
      %763 = vrot.lane.b32.xlu0 %v547, 64
      %v764 = vpop.permute.xlu0 %763
      %765 = vrot.lane.b32.xlu0 %v548, 64
      %v766 = vpop.permute.xlu0 %765
      %767 = vrot.lane.b32.xlu0 %v549, 64
      %v768 = vpop.permute.xlu0 %767
      %769 = vrot.lane.b32.xlu0 %v550, 64
      %v770 = vpop.permute.xlu0 %769
      %771 = vrot.lane.b32.xlu0 %v551, 64
      %v772 = vpop.permute.xlu0 %771
      %773 = vrot.lane.b32.xlu0 %v552, 64
      %v774 = vpop.permute.xlu0 %773
      %775 = vrot.lane.b32.xlu0 %v553, 64
      %v776 = vpop.permute.xlu0 %775
      %777 = vrot.lane.b32.xlu0 %v554, 64
      %v778 = vpop.permute.xlu0 %777
      %v811 = vsel %vm237, %v459, %v588
      %v812 = vsel %vm237, %v460, %v590
      %v813 = vsel %vm237, %v461, %v592
      %v814 = vsel %vm237, %v462, %v594
      %v815 = vsel %vm237, %v463, %v596
      %v816 = vsel %vm237, %v464, %v598
      %v817 = vsel %vm237, %v465, %v600
      %v818 = vsel %vm237, %v466, %v602
      %v819 = vsel %vm237, %v467, %v604
      %v820 = vsel %vm237, %v468, %v606
      %v821 = vsel %vm237, %v469, %v608
      %v822 = vsel %vm237, %v470, %v610
      %v823 = vsel %vm237, %v471, %v612
      %v824 = vsel %vm237, %v472, %v614
      %v825 = vsel %vm237, %v473, %v616
      %v826 = vsel %vm237, %v474, %v618
      %v827 = vsel %vm237, %v475, %v620
      %v828 = vsel %vm237, %v476, %v622
      %v829 = vsel %vm237, %v477, %v624
      %v830 = vsel %vm237, %v478, %v626
      %v831 = vsel %vm237, %v479, %v628
      %v832 = vsel %vm237, %v480, %v630
      %v833 = vsel %vm237, %v481, %v632
      %v834 = vsel %vm237, %v482, %v634
      %v835 = vsel %vm237, %v483, %v636
      %v836 = vsel %vm237, %v484, %v638
      %v837 = vsel %vm237, %v485, %v640
      %v838 = vsel %vm237, %v486, %v642
      %v839 = vsel %vm237, %v487, %v644
      %v840 = vsel %vm237, %v488, %v646
      %v841 = vsel %vm237, %v489, %v648
      %v842 = vsel %vm237, %v490, %v650
      %vm843 = vcmask 523264
      %v844 = vsel %vm843, %v811, %v716
      %v845 = vsel %vm843, %v812, %v718
      %v846 = vsel %vm843, %v813, %v720
      %v847 = vsel %vm843, %v814, %v722
      %v848 = vsel %vm843, %v815, %v724
      %v849 = vsel %vm843, %v816, %v726
      %v850 = vsel %vm843, %v817, %v728
      %v851 = vsel %vm843, %v818, %v730
      %v852 = vsel %vm843, %v819, %v732
      %v853 = vsel %vm843, %v820, %v734
      %v854 = vsel %vm843, %v821, %v736
      %v855 = vsel %vm843, %v822, %v738
      %v856 = vsel %vm843, %v823, %v740
      %v857 = vsel %vm843, %v824, %v742
      %v858 = vsel %vm843, %v825, %v744
      %v859 = vsel %vm843, %v826, %v746
      %v860 = vsel %vm843, %v827, %v748
      %v861 = vsel %vm843, %v828, %v750
      %v862 = vsel %vm843, %v829, %v752
      %v863 = vsel %vm843, %v830, %v754
      %v864 = vsel %vm843, %v831, %v756
      %v865 = vsel %vm843, %v832, %v758
      %v866 = vsel %vm843, %v833, %v760
      %v867 = vsel %vm843, %v834, %v762
      %v868 = vsel %vm843, %v835, %v764
      %v869 = vsel %vm843, %v836, %v766
      %v870 = vsel %vm843, %v837, %v768
      %v871 = vsel %vm843, %v838, %v770
      %v872 = vsel %vm843, %v839, %v772
      %v873 = vsel %vm843, %v840, %v774
      %v874 = vsel %vm843, %v841, %v776
      %v875 = vsel %vm843, %v842, %v778
      %v876 = vpack.c.bf16 %v845, %v844
      %v877 = vpack.c.bf16 %v847, %v846
      %v878 = vpack.c.bf16 %v849, %v848
      %v879 = vpack.c.bf16 %v851, %v850
      %v880 = vpack.c.bf16 %v853, %v852
      %v881 = vpack.c.bf16 %v855, %v854
      %v882 = vpack.c.bf16 %v857, %v856
      %v883 = vpack.c.bf16 %v859, %v858
      %v884 = vpack.c.bf16 %v861, %v860
      %v885 = vpack.c.bf16 %v863, %v862
      %v886 = vpack.c.bf16 %v865, %v864
      %v887 = vpack.c.bf16 %v867, %v866
      %v888 = vpack.c.bf16 %v869, %v868
      %v889 = vpack.c.bf16 %v871, %v870
      %v890 = vpack.c.bf16 %v873, %v872
      %v891 = vpack.c.bf16 %v875, %v874
      %v892 = vld [vmem:[%s3] sm:$0xf]
      %v893 = vld [vmem:[%s3 + $0x4] sm:$0xf]
      %v894 = vld [vmem:[%s3 + $0x8] sm:$0xf]
      %v895 = vld [vmem:[%s3 + $0xc] sm:$0xf]
      %v896 = vld [vmem:[%s3 + $0x10] sm:$0xf]
      %v897 = vld [vmem:[%s3 + $0x14] sm:$0xf]
      %v898 = vld [vmem:[%s3 + $0x18] sm:$0xf]
      %v899 = vld [vmem:[%s3 + $0x1c] sm:$0xf]
      %v900 = vld [vmem:[%s3 + $0x20] sm:$0xf]
      %v901 = vld [vmem:[%s3 + $0x24] sm:$0xf]
      %v902 = vld [vmem:[%s3 + $0x28] sm:$0xf]
      %v903 = vld [vmem:[%s3 + $0x2c] sm:$0xf]
      %v904 = vld [vmem:[%s426 + $0x7] sm:$0xff]
      %v905 = vld [vmem:[%s426 + $0xf] sm:$0xff]
      %v906 = vld [vmem:[%s426 + $0x27] sm:$0xff]
      %v907 = vld [vmem:[%s426 + $0x2f] sm:$0xff]
      %v908 = vld [vmem:[%s426 + $0x47] sm:$0xff]
      %v909 = vld [vmem:[%s426 + $0x4f] sm:$0xff]
      %v910 = vld [vmem:[%s426 + $0x67] sm:$0xff]
      %v911 = vld [vmem:[%s426 + $0x6f] sm:$0xff]
      %v912 = vld [vmem:[%s426 + $0x87] sm:$0xff]
      %v913 = vld [vmem:[%s426 + $0x8f] sm:$0xff]
      %v914 = vld [vmem:[%s426 + $0xa7] sm:$0xff]
      %v915 = vld [vmem:[%s426 + $0xaf] sm:$0xff]
      %v916 = vld [vmem:[%s426 + $0xc7] sm:$0xff]
      %v917 = vld [vmem:[%s426 + $0xcf] sm:$0xff]
      %v918 = vld [vmem:[%s426 + $0xe7] sm:$0xff]
      %v919 = vld [vmem:[%s426 + $0xef] sm:$0xff]
      %v920 = vld [vmem:[%s426 + $0x107] sm:$0xff]
      %v921 = vld [vmem:[%s426 + $0x10f] sm:$0xff]
      %v922 = vld [vmem:[%s426 + $0x127] sm:$0xff]
      %v923 = vld [vmem:[%s426 + $0x12f] sm:$0xff]
      %v924 = vld [vmem:[%s426 + $0x147] sm:$0xff]
      %v925 = vld [vmem:[%s426 + $0x14f] sm:$0xff]
      %v926 = vld [vmem:[%s426 + $0x167] sm:$0xff]
      %v927 = vld [vmem:[%s426 + $0x16f] sm:$0xff]
      %v928 = vld [vmem:[%s426 + $0x187] sm:$0xff]
      %v929 = vld [vmem:[%s426 + $0x18f] sm:$0xff]
      %v930 = vld [vmem:[%s426 + $0x1a7] sm:$0xff]
      %v931 = vld [vmem:[%s426 + $0x1af] sm:$0xff]
      %v932 = vld [vmem:[%s426 + $0x1c7] sm:$0xff]
      %v933 = vld [vmem:[%s426 + $0x1cf] sm:$0xff]
      %v934 = vld [vmem:[%s426 + $0x1e7] sm:$0xff]
      %v935 = vld [vmem:[%s426 + $0x1ef] sm:$0xff]
      %v936 = vld [vmem:[%s426 + $0x8] sm:$0xff]
      %v937 = vld [vmem:[%s426 + $0x10] sm:$0xff]
      %v938 = vld [vmem:[%s426 + $0x28] sm:$0xff]
      %v939 = vld [vmem:[%s426 + $0x30] sm:$0xff]
      %v940 = vld [vmem:[%s426 + $0x48] sm:$0xff]
      %v941 = vld [vmem:[%s426 + $0x50] sm:$0xff]
      %v942 = vld [vmem:[%s426 + $0x68] sm:$0xff]
      %v943 = vld [vmem:[%s426 + $0x70] sm:$0xff]
      %v944 = vld [vmem:[%s426 + $0x88] sm:$0xff]
      %v945 = vld [vmem:[%s426 + $0x90] sm:$0xff]
      %v946 = vld [vmem:[%s426 + $0xa8] sm:$0xff]
      %v947 = vld [vmem:[%s426 + $0xb0] sm:$0xff]
      %v948 = vld [vmem:[%s426 + $0xc8] sm:$0xff]
      %v949 = vld [vmem:[%s426 + $0xd0] sm:$0xff]
      %v950 = vld [vmem:[%s426 + $0xe8] sm:$0xff]
      %v951 = vld [vmem:[%s426 + $0xf0] sm:$0xff]
      %v952 = vld [vmem:[%s426 + $0x108] sm:$0xff]
      %v953 = vld [vmem:[%s426 + $0x110] sm:$0xff]
      %v954 = vld [vmem:[%s426 + $0x128] sm:$0xff]
      %v955 = vld [vmem:[%s426 + $0x130] sm:$0xff]
      %v956 = vld [vmem:[%s426 + $0x148] sm:$0xff]
      %v957 = vld [vmem:[%s426 + $0x150] sm:$0xff]
      %v958 = vld [vmem:[%s426 + $0x168] sm:$0xff]
      %v959 = vld [vmem:[%s426 + $0x170] sm:$0xff]
      %v960 = vld [vmem:[%s426 + $0x188] sm:$0xff]
      %v961 = vld [vmem:[%s426 + $0x190] sm:$0xff]
      %v962 = vld [vmem:[%s426 + $0x1a8] sm:$0xff]
      %v963 = vld [vmem:[%s426 + $0x1b0] sm:$0xff]
      %v964 = vld [vmem:[%s426 + $0x1c8] sm:$0xff]
      %v965 = vld [vmem:[%s426 + $0x1d0] sm:$0xff]
      %v966 = vld [vmem:[%s426 + $0x1e8] sm:$0xff]
      %v967 = vld [vmem:[%s426 + $0x1f0] sm:$0xff]
      %v968 = vld [vmem:[%s426 + $0x9] sm:$0xff]
      %v969 = vld [vmem:[%s426 + $0x11] sm:$0xff]
      %v970 = vld [vmem:[%s426 + $0x29] sm:$0xff]
      %v971 = vld [vmem:[%s426 + $0x31] sm:$0xff]
      %v972 = vld [vmem:[%s426 + $0x49] sm:$0xff]
      %v973 = vld [vmem:[%s426 + $0x51] sm:$0xff]
      %v974 = vld [vmem:[%s426 + $0x69] sm:$0xff]
      %v975 = vld [vmem:[%s426 + $0x71] sm:$0xff]
      %v976 = vld [vmem:[%s426 + $0x89] sm:$0xff]
      %v977 = vld [vmem:[%s426 + $0x91] sm:$0xff]
      %v978 = vld [vmem:[%s426 + $0xa9] sm:$0xff]
      %v979 = vld [vmem:[%s426 + $0xb1] sm:$0xff]
      %v980 = vld [vmem:[%s426 + $0xc9] sm:$0xff]
      %v981 = vld [vmem:[%s426 + $0xd1] sm:$0xff]
      %v982 = vld [vmem:[%s426 + $0xe9] sm:$0xff]
      %v983 = vld [vmem:[%s426 + $0xf1] sm:$0xff]
      %v984 = vld [vmem:[%s426 + $0x109] sm:$0xff]
      %v985 = vld [vmem:[%s426 + $0x111] sm:$0xff]
      %v986 = vld [vmem:[%s426 + $0x129] sm:$0xff]
      %v987 = vld [vmem:[%s426 + $0x131] sm:$0xff]
      %v988 = vld [vmem:[%s426 + $0x149] sm:$0xff]
      %v989 = vld [vmem:[%s426 + $0x151] sm:$0xff]
      %v990 = vld [vmem:[%s426 + $0x169] sm:$0xff]
      %v991 = vld [vmem:[%s426 + $0x171] sm:$0xff]
      %v992 = vld [vmem:[%s426 + $0x189] sm:$0xff]
      %v993 = vld [vmem:[%s426 + $0x191] sm:$0xff]
      %v994 = vld [vmem:[%s426 + $0x1a9] sm:$0xff]
      %v995 = vld [vmem:[%s426 + $0x1b1] sm:$0xff]
      %v996 = vld [vmem:[%s426 + $0x1c9] sm:$0xff]
      %v997 = vld [vmem:[%s426 + $0x1d1] sm:$0xff]
      %v998 = vld [vmem:[%s426 + $0x1e9] sm:$0xff]
      %v999 = vld [vmem:[%s426 + $0x1f1] sm:$0xff]
      %1032 = vrot.lane.b32.xlu0 %v936, 32
      %v1033 = vpop.permute.xlu0 %1032
      %1034 = vrot.lane.b32.xlu0 %v937, 32
      %v1035 = vpop.permute.xlu0 %1034
      %1036 = vrot.lane.b32.xlu0 %v938, 32
      %v1037 = vpop.permute.xlu0 %1036
      %1038 = vrot.lane.b32.xlu0 %v939, 32
      %v1039 = vpop.permute.xlu0 %1038
      %1040 = vrot.lane.b32.xlu0 %v940, 32
      %v1041 = vpop.permute.xlu0 %1040
      %1042 = vrot.lane.b32.xlu0 %v941, 32
      %v1043 = vpop.permute.xlu0 %1042
      %1044 = vrot.lane.b32.xlu0 %v942, 32
      %v1045 = vpop.permute.xlu0 %1044
      %1046 = vrot.lane.b32.xlu0 %v943, 32
      %v1047 = vpop.permute.xlu0 %1046
      %1048 = vrot.lane.b32.xlu0 %v944, 32
      %v1049 = vpop.permute.xlu0 %1048
      %1050 = vrot.lane.b32.xlu0 %v945, 32
      %v1051 = vpop.permute.xlu0 %1050
      %1052 = vrot.lane.b32.xlu0 %v946, 32
      %v1053 = vpop.permute.xlu0 %1052
      %1054 = vrot.lane.b32.xlu0 %v947, 32
      %v1055 = vpop.permute.xlu0 %1054
      %1056 = vrot.lane.b32.xlu0 %v948, 32
      %v1057 = vpop.permute.xlu0 %1056
      %1058 = vrot.lane.b32.xlu0 %v949, 32
      %v1059 = vpop.permute.xlu0 %1058
      %1060 = vrot.lane.b32.xlu0 %v950, 32
      %v1061 = vpop.permute.xlu0 %1060
      %1062 = vrot.lane.b32.xlu0 %v951, 32
      %v1063 = vpop.permute.xlu0 %1062
      %1064 = vrot.lane.b32.xlu0 %v952, 32
      %v1065 = vpop.permute.xlu0 %1064
      %1066 = vrot.lane.b32.xlu0 %v953, 32
      %v1067 = vpop.permute.xlu0 %1066
      %1068 = vrot.lane.b32.xlu0 %v954, 32
      %v1069 = vpop.permute.xlu0 %1068
      %1070 = vrot.lane.b32.xlu0 %v955, 32
      %v1071 = vpop.permute.xlu0 %1070
      %1072 = vrot.lane.b32.xlu0 %v956, 32
      %v1073 = vpop.permute.xlu0 %1072
      %1074 = vrot.lane.b32.xlu0 %v957, 32
      %v1075 = vpop.permute.xlu0 %1074
      %1076 = vrot.lane.b32.xlu0 %v958, 32
      %v1077 = vpop.permute.xlu0 %1076
      %1078 = vrot.lane.b32.xlu0 %v959, 32
      %v1079 = vpop.permute.xlu0 %1078
      %1080 = vrot.lane.b32.xlu0 %v960, 32
      %v1081 = vpop.permute.xlu0 %1080
      %1082 = vrot.lane.b32.xlu0 %v961, 32
      %v1083 = vpop.permute.xlu0 %1082
      %1084 = vrot.lane.b32.xlu0 %v962, 32
      %v1085 = vpop.permute.xlu0 %1084
      %1086 = vrot.lane.b32.xlu0 %v963, 32
      %v1087 = vpop.permute.xlu0 %1086
      %1088 = vrot.lane.b32.xlu0 %v964, 32
      %v1089 = vpop.permute.xlu0 %1088
      %1090 = vrot.lane.b32.xlu0 %v965, 32
      %v1091 = vpop.permute.xlu0 %1090
      %1092 = vrot.lane.b32.xlu0 %v966, 32
      %v1093 = vpop.permute.xlu0 %1092
      %1094 = vrot.lane.b32.xlu0 %v967, 32
      %v1095 = vpop.permute.xlu0 %1094
      %1160 = vrot.lane.b32.xlu0 %v968, 64
      %v1161 = vpop.permute.xlu0 %1160
      %1162 = vrot.lane.b32.xlu0 %v969, 64
      %v1163 = vpop.permute.xlu0 %1162
      %1164 = vrot.lane.b32.xlu0 %v970, 64
      %v1165 = vpop.permute.xlu0 %1164
      %1166 = vrot.lane.b32.xlu0 %v971, 64
      %v1167 = vpop.permute.xlu0 %1166
      %1168 = vrot.lane.b32.xlu0 %v972, 64
      %v1169 = vpop.permute.xlu0 %1168
      %1170 = vrot.lane.b32.xlu0 %v973, 64
      %v1171 = vpop.permute.xlu0 %1170
      %1172 = vrot.lane.b32.xlu0 %v974, 64
      %v1173 = vpop.permute.xlu0 %1172
      %1174 = vrot.lane.b32.xlu0 %v975, 64
      %v1175 = vpop.permute.xlu0 %1174
      %1176 = vrot.lane.b32.xlu0 %v976, 64
      %v1177 = vpop.permute.xlu0 %1176
      %1178 = vrot.lane.b32.xlu0 %v977, 64
      %v1179 = vpop.permute.xlu0 %1178
      %1180 = vrot.lane.b32.xlu0 %v978, 64
      %v1181 = vpop.permute.xlu0 %1180
      %1182 = vrot.lane.b32.xlu0 %v979, 64
      %v1183 = vpop.permute.xlu0 %1182
      %1184 = vrot.lane.b32.xlu0 %v980, 64
      %v1185 = vpop.permute.xlu0 %1184
      %1186 = vrot.lane.b32.xlu0 %v981, 64
      %v1187 = vpop.permute.xlu0 %1186
      %1188 = vrot.lane.b32.xlu0 %v982, 64
      %v1189 = vpop.permute.xlu0 %1188
      %1190 = vrot.lane.b32.xlu0 %v983, 64
      %v1191 = vpop.permute.xlu0 %1190
      %1192 = vrot.lane.b32.xlu0 %v984, 64
      %v1193 = vpop.permute.xlu0 %1192
      %1194 = vrot.lane.b32.xlu0 %v985, 64
      %v1195 = vpop.permute.xlu0 %1194
      %1196 = vrot.lane.b32.xlu0 %v986, 64
      %v1197 = vpop.permute.xlu0 %1196
      %1198 = vrot.lane.b32.xlu0 %v987, 64
      %v1199 = vpop.permute.xlu0 %1198
      %1200 = vrot.lane.b32.xlu0 %v988, 64
      %v1201 = vpop.permute.xlu0 %1200
      %1202 = vrot.lane.b32.xlu0 %v989, 64
      %v1203 = vpop.permute.xlu0 %1202
      %1204 = vrot.lane.b32.xlu0 %v990, 64
      %v1205 = vpop.permute.xlu0 %1204
      %1206 = vrot.lane.b32.xlu0 %v991, 64
      %v1207 = vpop.permute.xlu0 %1206
      %1208 = vrot.lane.b32.xlu0 %v992, 64
      %v1209 = vpop.permute.xlu0 %1208
      %1210 = vrot.lane.b32.xlu0 %v993, 64
      %v1211 = vpop.permute.xlu0 %1210
      %1212 = vrot.lane.b32.xlu0 %v994, 64
      %v1213 = vpop.permute.xlu0 %1212
      %1214 = vrot.lane.b32.xlu0 %v995, 64
      %v1215 = vpop.permute.xlu0 %1214
      %1216 = vrot.lane.b32.xlu0 %v996, 64
      %v1217 = vpop.permute.xlu0 %1216
      %1218 = vrot.lane.b32.xlu0 %v997, 64
      %v1219 = vpop.permute.xlu0 %1218
      %1220 = vrot.lane.b32.xlu0 %v998, 64
      %v1221 = vpop.permute.xlu0 %1220
      %1222 = vrot.lane.b32.xlu0 %v999, 64
      %v1223 = vpop.permute.xlu0 %1222
      %v1256 = vsel %vm237, %v904, %v1033
      %v1257 = vsel %vm237, %v905, %v1035
      %v1258 = vsel %vm237, %v906, %v1037
      %v1259 = vsel %vm237, %v907, %v1039
      %v1260 = vsel %vm237, %v908, %v1041
      %v1261 = vsel %vm237, %v909, %v1043
      %v1262 = vsel %vm237, %v910, %v1045
      %v1263 = vsel %vm237, %v911, %v1047
      %v1264 = vsel %vm237, %v912, %v1049
      %v1265 = vsel %vm237, %v913, %v1051
      %v1266 = vsel %vm237, %v914, %v1053
      %v1267 = vsel %vm237, %v915, %v1055
      %v1268 = vsel %vm237, %v916, %v1057
      %v1269 = vsel %vm237, %v917, %v1059
      %v1270 = vsel %vm237, %v918, %v1061
      %v1271 = vsel %vm237, %v919, %v1063
      %v1272 = vsel %vm237, %v920, %v1065
      %v1273 = vsel %vm237, %v921, %v1067
      %v1274 = vsel %vm237, %v922, %v1069
      %v1275 = vsel %vm237, %v923, %v1071
      %v1276 = vsel %vm237, %v924, %v1073
      %v1277 = vsel %vm237, %v925, %v1075
      %v1278 = vsel %vm237, %v926, %v1077
      %v1279 = vsel %vm237, %v927, %v1079
      %v1280 = vsel %vm237, %v928, %v1081
      %v1281 = vsel %vm237, %v929, %v1083
      %v1282 = vsel %vm237, %v930, %v1085
      %v1283 = vsel %vm237, %v931, %v1087
      %v1284 = vsel %vm237, %v932, %v1089
      %v1285 = vsel %vm237, %v933, %v1091
      %v1286 = vsel %vm237, %v934, %v1093
      %v1287 = vsel %vm237, %v935, %v1095
      %v1288 = vsel %vm843, %v1256, %v1161
      %v1289 = vsel %vm843, %v1257, %v1163
      %v1290 = vsel %vm843, %v1258, %v1165
      %v1291 = vsel %vm843, %v1259, %v1167
      %v1292 = vsel %vm843, %v1260, %v1169
      %v1293 = vsel %vm843, %v1261, %v1171
      %v1294 = vsel %vm843, %v1262, %v1173
      %v1295 = vsel %vm843, %v1263, %v1175
      %v1296 = vsel %vm843, %v1264, %v1177
      %v1297 = vsel %vm843, %v1265, %v1179
      %v1298 = vsel %vm843, %v1266, %v1181
      %v1299 = vsel %vm843, %v1267, %v1183
      %v1300 = vsel %vm843, %v1268, %v1185
      %v1301 = vsel %vm843, %v1269, %v1187
      %v1302 = vsel %vm843, %v1270, %v1189
      %v1303 = vsel %vm843, %v1271, %v1191
      %v1304 = vsel %vm843, %v1272, %v1193
      %v1305 = vsel %vm843, %v1273, %v1195
      %v1306 = vsel %vm843, %v1274, %v1197
      %v1307 = vsel %vm843, %v1275, %v1199
      %v1308 = vsel %vm843, %v1276, %v1201
      %v1309 = vsel %vm843, %v1277, %v1203
      %v1310 = vsel %vm843, %v1278, %v1205
      %v1311 = vsel %vm843, %v1279, %v1207
      %v1312 = vsel %vm843, %v1280, %v1209
      %v1313 = vsel %vm843, %v1281, %v1211
      %v1314 = vsel %vm843, %v1282, %v1213
      %v1315 = vsel %vm843, %v1283, %v1215
      %v1316 = vsel %vm843, %v1284, %v1217
      %v1317 = vsel %vm843, %v1285, %v1219
      %v1318 = vsel %vm843, %v1286, %v1221
      %v1319 = vsel %vm843, %v1287, %v1223
      %v1320 = vpack.c.bf16 %v1289, %v1288
      %v1321 = vpack.c.bf16 %v1291, %v1290
      %v1322 = vpack.c.bf16 %v1293, %v1292
      %v1323 = vpack.c.bf16 %v1295, %v1294
      %v1324 = vpack.c.bf16 %v1297, %v1296
      %v1325 = vpack.c.bf16 %v1299, %v1298
      %v1326 = vpack.c.bf16 %v1301, %v1300
      %v1327 = vpack.c.bf16 %v1303, %v1302
      %v1328 = vpack.c.bf16 %v1305, %v1304
      %v1329 = vpack.c.bf16 %v1307, %v1306
      %v1330 = vpack.c.bf16 %v1309, %v1308
      %v1331 = vpack.c.bf16 %v1311, %v1310
      %v1332 = vpack.c.bf16 %v1313, %v1312
      %v1333 = vpack.c.bf16 %v1315, %v1314
      %v1334 = vpack.c.bf16 %v1317, %v1316
      %v1335 = vpack.c.bf16 %v1319, %v1318
      %s1336 = scalar_lea.vmem %s3, 48
      %v1337 = vld [vmem:[%s1336] sm:$0xf]
      %v1338 = vld [vmem:[%s1336 + $0x4] sm:$0xf]
      %v1339 = vld [vmem:[%s1336 + $0x8] sm:$0xf]
      %v1340 = vld [vmem:[%s1336 + $0xc] sm:$0xf]
      %v1341 = vld [vmem:[%s1336 + $0x10] sm:$0xf]
      %v1342 = vld [vmem:[%s1336 + $0x14] sm:$0xf]
      %v1343 = vld [vmem:[%s1336 + $0x18] sm:$0xf]
      %v1344 = vld [vmem:[%s1336 + $0x1c] sm:$0xf]
      %v1345 = vld [vmem:[%s1336 + $0x20] sm:$0xf]
      %v1346 = vld [vmem:[%s1336 + $0x24] sm:$0xf]
      %v1347 = vld [vmem:[%s1336 + $0x28] sm:$0xf]
      %v1348 = vld [vmem:[%s1336 + $0x2c] sm:$0xf]
      %v1361 = vunpack.c.l.b16 %v1337
      %v1362 = vunpack.c.l.b16 %v1338
      %v1363 = vunpack.c.l.b16 %v1339
      %v1364 = vunpack.c.l.b16 %v1340
      %v1365 = vunpack.c.l.b16 %v1341
      %v1366 = vunpack.c.l.b16 %v1342
      %v1367 = vunpack.c.l.b16 %v1343
      %v1368 = vunpack.c.l.b16 %v1344
      %v1369 = vunpack.c.l.b16 %v1345
      %v1370 = vunpack.c.l.b16 %v1346
      %v1371 = vunpack.c.l.b16 %v1347
      %v1372 = vunpack.c.l.b16 %v1348
      %v1373 = vpack.c.b16 %v1362, %v1361
      %v1374 = vpack.c.b16 %v1364, %v1363
      %v1375 = vpack.c.b16 %v1366, %v1365
      %v1376 = vpack.c.b16 %v1368, %v1367
      %v1377 = vpack.c.b16 %v1370, %v1369
      %v1378 = vpack.c.b16 %v1372, %v1371
      %vm1385 = vcmask 785408
      %v1387 = vsel %vm1385, %v1320, 0
      %v1390 = vsel %vm1385, %v1321, 0
      %v1393 = vsel %vm1385, %v1322, 0
      %v1396 = vsel %vm1385, %v1323, 0
      %v1399 = vsel %vm1385, %v1324, 0
      %v1402 = vsel %vm1385, %v1325, 0
      %v1405 = vsel %vm1385, %v1326, 0
      %v1408 = vsel %vm1385, %v1327, 0
      %v1411 = vsel %vm1385, %v1328, 0
      %v1414 = vsel %vm1385, %v1329, 0
      %v1417 = vsel %vm1385, %v1330, 0
      %v1420 = vsel %vm1385, %v1331, 0
      %v1423 = vsel %vm1385, %v1332, 0
      %v1426 = vsel %vm1385, %v1333, 0
      %v1429 = vsel %vm1385, %v1334, 0
      %v1432 = vsel %vm1385, %v1335, 0
      %1434 = vmatprep.subr.bf16.mxu0 0
      %1435 = vmatpush1.bf16.msra.mxu0 %v1373
      %1436 = vmatprep.subr.bf16.mxu0 0
      %1437 = vmatpush1.bf16.msra.mxu0 %v1374
      %1438 = vmatprep.subr.bf16.mxu0 0
      %1439 = vmatpush1.bf16.msra.mxu0 %v1375
      %1440 = vmatprep.subr.bf16.mxu0 0
      %1441 = vmatpush1.bf16.msra.mxu0 %v1376
      %1442 = vmatprep.subr.bf16.mxu0 0
      %1443 = vmatpush1.bf16.msra.mxu0 %v1377
      %1444 = vmatprep.subr.bf16.mxu0 0
      %1445 = vmatpush1.bf16.msra.mxu0 %v1378
      %1446 = vmatprep.subr.bf16.mxu0 0
      %1447 = vmatpush1.bf16.msra.mxu0 0
      %1448 = vmatprep.subr.bf16.mxu0 0
      %1449 = vmatpush1.bf16.msra.mxu0 0
      %1450 = vmatprep.subr.bf16.mxu0 0
      %1451 = vmatpush1.bf16.msra.mxu0 0
      %1452 = vmatprep.subr.bf16.mxu0 0
      %1453 = vmatpush1.bf16.msra.mxu0 0
      %1454 = vmatprep.subr.bf16.mxu0 0
      %1455 = vmatpush1.bf16.msra.mxu0 0
      %1456 = vmatprep.subr.bf16.mxu0 0
      %1457 = vmatpush1.bf16.msra.mxu0 0
      %1458 = vmatprep.subr.bf16.mxu0 0
      %1459 = vmatpush1.bf16.msra.mxu0 0
      %1460 = vmatprep.subr.bf16.mxu0 0
      %1461 = vmatpush1.bf16.msra.mxu0 0
      %1462 = vmatprep.subr.bf16.mxu0 0
      %1463 = vmatpush1.bf16.msra.mxu0 0
      %1464 = vmatprep.subr.bf16.mxu0 0
      %1465 = vmatpush1.bf16.msra.mxu0 0
      %1466 = vmatprep.mubr.bf16.mxu0 0
      %1467 = vmatmul.mubr.bf16.gmra.mrb[0].mxu0 %v1387
      %v1468 = vpop.f32.mrb[0].mxu0
      %v1469 = vadd.f32 0.0, %v1468
      %v1470 = vpop.f32.mrb[0].mxu0
      %v1471 = vpop.f32.mrb[0].mxu0
      %v1472 = vadd.f32 0.0, %v1471
      %v1473 = vpop.f32.mrb[0].mxu0
      %1474 = vmatprep.mubr.bf16.mxu0 0
      %1475 = vmatmul.mubr.bf16.gmra.mrb[0].mxu0 %v1390
      %v1476 = vpop.f32.mrb[0].mxu0
      %v1477 = vadd.f32 0.0, %v1476
      %v1478 = vpop.f32.mrb[0].mxu0
      %v1479 = vpop.f32.mrb[0].mxu0
      %v1480 = vadd.f32 0.0, %v1479
      %v1481 = vpop.f32.mrb[0].mxu0
      %1482 = vmatprep.mubr.bf16.mxu0 0
      %1483 = vmatmul.mubr.bf16.gmra.mrb[0].mxu0 %v1393
      %v1484 = vpop.f32.mrb[0].mxu0
      %v1485 = vadd.f32 0.0, %v1484
      %v1486 = vpop.f32.mrb[0].mxu0
      %v1487 = vpop.f32.mrb[0].mxu0
      %v1488 = vadd.f32 0.0, %v1487
      %v1489 = vpop.f32.mrb[0].mxu0
      %1490 = vmatprep.mubr.bf16.mxu0 0
      %1491 = vmatmul.mubr.bf16.gmra.mrb[0].mxu0 %v1396
      %v1492 = vpop.f32.mrb[0].mxu0
      %v1493 = vadd.f32 0.0, %v1492
      %v1494 = vpop.f32.mrb[0].mxu0
      %v1495 = vpop.f32.mrb[0].mxu0
      %v1496 = vadd.f32 0.0, %v1495
      %v1497 = vpop.f32.mrb[0].mxu0
      %1498 = vmatprep.mubr.bf16.mxu0 0
      %1499 = vmatmul.mubr.bf16.gmra.mrb[0].mxu0 %v1399
      %v1500 = vpop.f32.mrb[0].mxu0
      %v1501 = vadd.f32 0.0, %v1500
      %v1502 = vpop.f32.mrb[0].mxu0
      %v1503 = vpop.f32.mrb[0].mxu0
      %v1504 = vadd.f32 0.0, %v1503
      %v1505 = vpop.f32.mrb[0].mxu0
      %1506 = vmatprep.mubr.bf16.mxu0 0
      %1507 = vmatmul.mubr.bf16.gmra.mrb[0].mxu0 %v1402
      %v1508 = vpop.f32.mrb[0].mxu0
      %v1509 = vadd.f32 0.0, %v1508
      %v1510 = vpop.f32.mrb[0].mxu0
      %v1511 = vpop.f32.mrb[0].mxu0
      %v1512 = vadd.f32 0.0, %v1511
      %v1513 = vpop.f32.mrb[0].mxu0
      %1514 = vmatprep.mubr.bf16.mxu0 0
      %1515 = vmatmul.mubr.bf16.gmra.mrb[0].mxu0 %v1405
      %v1516 = vpop.f32.mrb[0].mxu0
      %v1517 = vadd.f32 0.0, %v1516
      %v1518 = vpop.f32.mrb[0].mxu0
      %v1519 = vpop.f32.mrb[0].mxu0
      %v1520 = vadd.f32 0.0, %v1519
      %v1521 = vpop.f32.mrb[0].mxu0
      %1522 = vmatprep.mubr.bf16.mxu0 0
      %1523 = vmatmul.mubr.bf16.gmra.mrb[0].mxu0 %v1408
      %v1524 = vpop.f32.mrb[0].mxu0
      %v1525 = vadd.f32 0.0, %v1524
      %v1526 = vpop.f32.mrb[0].mxu0
      %v1527 = vpop.f32.mrb[0].mxu0
      %v1528 = vadd.f32 0.0, %v1527
      %v1529 = vpop.f32.mrb[0].mxu0
      %1530 = vmatprep.mubr.bf16.mxu0 0
      %1531 = vmatmul.mubr.bf16.gmra.mrb[0].mxu0 %v1411
      %v1532 = vpop.f32.mrb[0].mxu0
      %v1533 = vadd.f32 0.0, %v1532
      %v1534 = vpop.f32.mrb[0].mxu0
      %v1535 = vpop.f32.mrb[0].mxu0
      %v1536 = vadd.f32 0.0, %v1535
      %v1537 = vpop.f32.mrb[0].mxu0
      %1538 = vmatprep.mubr.bf16.mxu0 0
      %1539 = vmatmul.mubr.bf16.gmra.mrb[0].mxu0 %v1414
      %v1540 = vpop.f32.mrb[0].mxu0
      %v1541 = vadd.f32 0.0, %v1540
      %v1542 = vpop.f32.mrb[0].mxu0
      %v1543 = vpop.f32.mrb[0].mxu0
      %v1544 = vadd.f32 0.0, %v1543
      %v1545 = vpop.f32.mrb[0].mxu0
      %1546 = vmatprep.mubr.bf16.mxu0 0
      %1547 = vmatmul.mubr.bf16.gmra.mrb[0].mxu0 %v1417
      %v1548 = vpop.f32.mrb[0].mxu0
      %v1549 = vadd.f32 0.0, %v1548
      %v1550 = vpop.f32.mrb[0].mxu0
      %v1551 = vpop.f32.mrb[0].mxu0
      %v1552 = vadd.f32 0.0, %v1551
      %v1553 = vpop.f32.mrb[0].mxu0
      %1554 = vmatprep.mubr.bf16.mxu0 0
      %1555 = vmatmul.mubr.bf16.gmra.mrb[0].mxu0 %v1420
      %v1556 = vpop.f32.mrb[0].mxu0
      %v1557 = vadd.f32 0.0, %v1556
      %v1558 = vpop.f32.mrb[0].mxu0
      %v1559 = vpop.f32.mrb[0].mxu0
      %v1560 = vadd.f32 0.0, %v1559
      %v1561 = vpop.f32.mrb[0].mxu0
      %1562 = vmatprep.mubr.bf16.mxu0 0
      %1563 = vmatmul.mubr.bf16.gmra.mrb[0].mxu0 %v1423
      %v1564 = vpop.f32.mrb[0].mxu0
      %v1565 = vadd.f32 0.0, %v1564
      %v1566 = vpop.f32.mrb[0].mxu0
      %v1567 = vpop.f32.mrb[0].mxu0
      %v1568 = vadd.f32 0.0, %v1567
      %v1569 = vpop.f32.mrb[0].mxu0
      %1570 = vmatprep.mubr.bf16.mxu0 0
      %1571 = vmatmul.mubr.bf16.gmra.mrb[0].mxu0 %v1426
      %v1572 = vpop.f32.mrb[0].mxu0
      %v1573 = vadd.f32 0.0, %v1572
      %v1574 = vpop.f32.mrb[0].mxu0
      %v1575 = vpop.f32.mrb[0].mxu0
      %v1576 = vadd.f32 0.0, %v1575
      %v1577 = vpop.f32.mrb[0].mxu0
      %1578 = vmatprep.mubr.bf16.mxu0 0
      %1579 = vmatmul.mubr.bf16.gmra.mrb[0].mxu0 %v1429
      %v1580 = vpop.f32.mrb[0].mxu0
      %v1581 = vadd.f32 0.0, %v1580
      %v1582 = vpop.f32.mrb[0].mxu0
      %v1583 = vpop.f32.mrb[0].mxu0
      %v1584 = vadd.f32 0.0, %v1583
      %v1585 = vpop.f32.mrb[0].mxu0
      %1586 = vmatprep.mubr.bf16.mxu0 0
      %1587 = vmatmul.mubr.bf16.gmra.mrb[0].mxu0 %v1432
      %v1588 = vpop.f32.mrb[0].mxu0
      %v1589 = vadd.f32 0.0, %v1588
      %v1590 = vpop.f32.mrb[0].mxu0
      %v1591 = vpop.f32.mrb[0].mxu0
      %v1592 = vadd.f32 0.0, %v1591
      %v1593 = vpop.f32.mrb[0].mxu0
      %1594 = vdwg.mxu0
      %v1607 = vunpack.c.l.b16 %v892
      %v1608 = vunpack.c.l.b16 %v893
      %v1609 = vunpack.c.l.b16 %v894
      %v1610 = vunpack.c.l.b16 %v895
      %v1611 = vunpack.c.l.b16 %v896
      %v1612 = vunpack.c.l.b16 %v897
      %v1613 = vunpack.c.l.b16 %v898
      %v1614 = vunpack.c.l.b16 %v899
      %v1615 = vunpack.c.l.b16 %v900
      %v1616 = vunpack.c.l.b16 %v901
      %v1617 = vunpack.c.l.b16 %v902
      %v1618 = vunpack.c.l.b16 %v903
      %v1619 = vpack.c.b16 %v1608, %v1607
      %v1620 = vpack.c.b16 %v1610, %v1609
      %v1621 = vpack.c.b16 %v1612, %v1611
      %v1622 = vpack.c.b16 %v1614, %v1613
      %v1623 = vpack.c.b16 %v1616, %v1615
      %v1624 = vpack.c.b16 %v1618, %v1617
      %v1632 = vsel %vm1385, %v876, 0
      %v1635 = vsel %vm1385, %v877, 0
      %v1638 = vsel %vm1385, %v878, 0
      %v1641 = vsel %vm1385, %v879, 0
      %v1644 = vsel %vm1385, %v880, 0
      %v1647 = vsel %vm1385, %v881, 0
      %v1650 = vsel %vm1385, %v882, 0
      %v1653 = vsel %vm1385, %v883, 0
      %v1656 = vsel %vm1385, %v884, 0
      %v1659 = vsel %vm1385, %v885, 0
      %v1662 = vsel %vm1385, %v886, 0
      %v1665 = vsel %vm1385, %v887, 0
      %v1668 = vsel %vm1385, %v888, 0
      %v1671 = vsel %vm1385, %v889, 0
      %v1674 = vsel %vm1385, %v890, 0
      %v1677 = vsel %vm1385, %v891, 0
      %1679 = vmatprep.subr.bf16.mxu0 0
      %1680 = vmatpush1.bf16.msra.mxu0 %v1619
      %1681 = vmatprep.subr.bf16.mxu0 0
      %1682 = vmatpush1.bf16.msra.mxu0 %v1620
      %1683 = vmatprep.subr.bf16.mxu0 0
      %1684 = vmatpush1.bf16.msra.mxu0 %v1621
      %1685 = vmatprep.subr.bf16.mxu0 0
      %1686 = vmatpush1.bf16.msra.mxu0 %v1622
      %1687 = vmatprep.subr.bf16.mxu0 0
      %1688 = vmatpush1.bf16.msra.mxu0 %v1623
      %1689 = vmatprep.subr.bf16.mxu0 0
      %1690 = vmatpush1.bf16.msra.mxu0 %v1624
      %1691 = vmatprep.subr.bf16.mxu0 0
      %1692 = vmatpush1.bf16.msra.mxu0 0
      %1693 = vmatprep.subr.bf16.mxu0 0
      %1694 = vmatpush1.bf16.msra.mxu0 0
      %1695 = vmatprep.subr.bf16.mxu0 0
      %1696 = vmatpush1.bf16.msra.mxu0 0
      %1697 = vmatprep.subr.bf16.mxu0 0
      %1698 = vmatpush1.bf16.msra.mxu0 0
      %1699 = vmatprep.subr.bf16.mxu0 0
      %1700 = vmatpush1.bf16.msra.mxu0 0
      %1701 = vmatprep.subr.bf16.mxu0 0
      %1702 = vmatpush1.bf16.msra.mxu0 0
      %1703 = vmatprep.subr.bf16.mxu0 0
      %1704 = vmatpush1.bf16.msra.mxu0 0
      %1705 = vmatprep.subr.bf16.mxu0 0
      %1706 = vmatpush1.bf16.msra.mxu0 0
      %1707 = vmatprep.subr.bf16.mxu0 0
      %1708 = vmatpush1.bf16.msra.mxu0 0
      %1709 = vmatprep.subr.bf16.mxu0 0
      %1710 = vmatpush1.bf16.msra.mxu0 0
      %1711 = vmatprep.mubr.bf16.mxu0 0
      %1712 = vmatmul.mubr.bf16.gmra.mrb[0].mxu0 %v1632
      %v1713 = vpop.f32.mrb[0].mxu0
      %v1714 = vadd.f32 %v1469, %v1713
      %v1715 = vpop.f32.mrb[0].mxu0
      %v1716 = vpop.f32.mrb[0].mxu0
      %v1717 = vadd.f32 %v1472, %v1716
      %v1718 = vpop.f32.mrb[0].mxu0
      %1719 = vmatprep.mubr.bf16.mxu0 0
      %1720 = vmatmul.mubr.bf16.gmra.mrb[0].mxu0 %v1635
      %v1721 = vpop.f32.mrb[0].mxu0
      %v1722 = vadd.f32 %v1477, %v1721
      %v1723 = vpop.f32.mrb[0].mxu0
      %v1724 = vpop.f32.mrb[0].mxu0
      %v1725 = vadd.f32 %v1480, %v1724
      %v1726 = vpop.f32.mrb[0].mxu0
      %1727 = vmatprep.mubr.bf16.mxu0 0
      %1728 = vmatmul.mubr.bf16.gmra.mrb[0].mxu0 %v1638
      %v1729 = vpop.f32.mrb[0].mxu0
      %v1730 = vadd.f32 %v1485, %v1729
      %v1731 = vpop.f32.mrb[0].mxu0
      %v1732 = vpop.f32.mrb[0].mxu0
      %v1733 = vadd.f32 %v1488, %v1732
      %v1734 = vpop.f32.mrb[0].mxu0
      %1735 = vmatprep.mubr.bf16.mxu0 0
      %1736 = vmatmul.mubr.bf16.gmra.mrb[0].mxu0 %v1641
      %v1737 = vpop.f32.mrb[0].mxu0
      %v1738 = vadd.f32 %v1493, %v1737
      %v1739 = vpop.f32.mrb[0].mxu0
      %v1740 = vpop.f32.mrb[0].mxu0
      %v1741 = vadd.f32 %v1496, %v1740
      %v1742 = vpop.f32.mrb[0].mxu0
      %1743 = vmatprep.mubr.bf16.mxu0 0
      %1744 = vmatmul.mubr.bf16.gmra.mrb[0].mxu0 %v1644
      %v1745 = vpop.f32.mrb[0].mxu0
      %v1746 = vadd.f32 %v1501, %v1745
      %v1747 = vpop.f32.mrb[0].mxu0
      %v1748 = vpop.f32.mrb[0].mxu0
      %v1749 = vadd.f32 %v1504, %v1748
      %v1750 = vpop.f32.mrb[0].mxu0
      %1751 = vmatprep.mubr.bf16.mxu0 0
      %1752 = vmatmul.mubr.bf16.gmra.mrb[0].mxu0 %v1647
      %v1753 = vpop.f32.mrb[0].mxu0
      %v1754 = vadd.f32 %v1509, %v1753
      %v1755 = vpop.f32.mrb[0].mxu0
      %v1756 = vpop.f32.mrb[0].mxu0
      %v1757 = vadd.f32 %v1512, %v1756
      %v1758 = vpop.f32.mrb[0].mxu0
      %1759 = vmatprep.mubr.bf16.mxu0 0
      %1760 = vmatmul.mubr.bf16.gmra.mrb[0].mxu0 %v1650
      %v1761 = vpop.f32.mrb[0].mxu0
      %v1762 = vadd.f32 %v1517, %v1761
      %v1763 = vpop.f32.mrb[0].mxu0
      %v1764 = vpop.f32.mrb[0].mxu0
      %v1765 = vadd.f32 %v1520, %v1764
      %v1766 = vpop.f32.mrb[0].mxu0
      %1767 = vmatprep.mubr.bf16.mxu0 0
      %1768 = vmatmul.mubr.bf16.gmra.mrb[0].mxu0 %v1653
      %v1769 = vpop.f32.mrb[0].mxu0
      %v1770 = vadd.f32 %v1525, %v1769
      %v1771 = vpop.f32.mrb[0].mxu0
      %v1772 = vpop.f32.mrb[0].mxu0
      %v1773 = vadd.f32 %v1528, %v1772
      %v1774 = vpop.f32.mrb[0].mxu0
      %1775 = vmatprep.mubr.bf16.mxu0 0
      %1776 = vmatmul.mubr.bf16.gmra.mrb[0].mxu0 %v1656
      %v1777 = vpop.f32.mrb[0].mxu0
      %v1778 = vadd.f32 %v1533, %v1777
      %v1779 = vpop.f32.mrb[0].mxu0
      %v1780 = vpop.f32.mrb[0].mxu0
      %v1781 = vadd.f32 %v1536, %v1780
      %v1782 = vpop.f32.mrb[0].mxu0
      %1783 = vmatprep.mubr.bf16.mxu0 0
      %1784 = vmatmul.mubr.bf16.gmra.mrb[0].mxu0 %v1659
      %v1785 = vpop.f32.mrb[0].mxu0
      %v1786 = vadd.f32 %v1541, %v1785
      %v1787 = vpop.f32.mrb[0].mxu0
      %v1788 = vpop.f32.mrb[0].mxu0
      %v1789 = vadd.f32 %v1544, %v1788
      %v1790 = vpop.f32.mrb[0].mxu0
      %1791 = vmatprep.mubr.bf16.mxu0 0
      %1792 = vmatmul.mubr.bf16.gmra.mrb[0].mxu0 %v1662
      %v1793 = vpop.f32.mrb[0].mxu0
      %v1794 = vadd.f32 %v1549, %v1793
      %v1795 = vpop.f32.mrb[0].mxu0
      %v1796 = vpop.f32.mrb[0].mxu0
      %v1797 = vadd.f32 %v1552, %v1796
      %v1798 = vpop.f32.mrb[0].mxu0
      %1799 = vmatprep.mubr.bf16.mxu0 0
      %1800 = vmatmul.mubr.bf16.gmra.mrb[0].mxu0 %v1665
      %v1801 = vpop.f32.mrb[0].mxu0
      %v1802 = vadd.f32 %v1557, %v1801
      %v1803 = vpop.f32.mrb[0].mxu0
      %v1804 = vpop.f32.mrb[0].mxu0
      %v1805 = vadd.f32 %v1560, %v1804
      %v1806 = vpop.f32.mrb[0].mxu0
      %1807 = vmatprep.mubr.bf16.mxu0 0
      %1808 = vmatmul.mubr.bf16.gmra.mrb[0].mxu0 %v1668
      %v1809 = vpop.f32.mrb[0].mxu0
      %v1810 = vadd.f32 %v1565, %v1809
      %v1811 = vpop.f32.mrb[0].mxu0
      %v1812 = vpop.f32.mrb[0].mxu0
      %v1813 = vadd.f32 %v1568, %v1812
      %v1814 = vpop.f32.mrb[0].mxu0
      %1815 = vmatprep.mubr.bf16.mxu0 0
      %1816 = vmatmul.mubr.bf16.gmra.mrb[0].mxu0 %v1671
      %v1817 = vpop.f32.mrb[0].mxu0
      %v1818 = vadd.f32 %v1573, %v1817
      %v1819 = vpop.f32.mrb[0].mxu0
      %v1820 = vpop.f32.mrb[0].mxu0
      %v1821 = vadd.f32 %v1576, %v1820
      %v1822 = vpop.f32.mrb[0].mxu0
      %1823 = vmatprep.mubr.bf16.mxu0 0
      %1824 = vmatmul.mubr.bf16.gmra.mrb[0].mxu0 %v1674
      %v1825 = vpop.f32.mrb[0].mxu0
      %v1826 = vadd.f32 %v1581, %v1825
      %v1827 = vpop.f32.mrb[0].mxu0
      %v1828 = vpop.f32.mrb[0].mxu0
      %v1829 = vadd.f32 %v1584, %v1828
      %v1830 = vpop.f32.mrb[0].mxu0
      %1831 = vmatprep.mubr.bf16.mxu0 0
      %1832 = vmatmul.mubr.bf16.gmra.mrb[0].mxu0 %v1677
      %v1833 = vpop.f32.mrb[0].mxu0
      %v1834 = vadd.f32 %v1589, %v1833
      %v1835 = vpop.f32.mrb[0].mxu0
      %v1836 = vpop.f32.mrb[0].mxu0
      %v1837 = vadd.f32 %v1592, %v1836
      %v1838 = vpop.f32.mrb[0].mxu0
      %1839 = vdwg.mxu0
      %s1840 = scalar_lea.vmem [#allocation2], 64
      %v1841 = vld [vmem:[%s1840 + $0x7] sm:$0xff]
      %v1842 = vld [vmem:[%s1840 + $0xf] sm:$0xff]
      %v1843 = vld [vmem:[%s1840 + $0x27] sm:$0xff]
      %v1844 = vld [vmem:[%s1840 + $0x2f] sm:$0xff]
      %v1845 = vld [vmem:[%s1840 + $0x47] sm:$0xff]
      %v1846 = vld [vmem:[%s1840 + $0x4f] sm:$0xff]
      %v1847 = vld [vmem:[%s1840 + $0x67] sm:$0xff]
      %v1848 = vld [vmem:[%s1840 + $0x6f] sm:$0xff]
      %v1849 = vld [vmem:[%s1840 + $0x87] sm:$0xff]
      %v1850 = vld [vmem:[%s1840 + $0x8f] sm:$0xff]
      %v1851 = vld [vmem:[%s1840 + $0xa7] sm:$0xff]
      %v1852 = vld [vmem:[%s1840 + $0xaf] sm:$0xff]
      %v1853 = vld [vmem:[%s1840 + $0xc7] sm:$0xff]
      %v1854 = vld [vmem:[%s1840 + $0xcf] sm:$0xff]
      %v1855 = vld [vmem:[%s1840 + $0xe7] sm:$0xff]
      %v1856 = vld [vmem:[%s1840 + $0xef] sm:$0xff]
      %v1857 = vld [vmem:[%s1840 + $0x107] sm:$0xff]
      %v1858 = vld [vmem:[%s1840 + $0x10f] sm:$0xff]
      %v1859 = vld [vmem:[%s1840 + $0x127] sm:$0xff]
      %v1860 = vld [vmem:[%s1840 + $0x12f] sm:$0xff]
      %v1861 = vld [vmem:[%s1840 + $0x147] sm:$0xff]
      %v1862 = vld [vmem:[%s1840 + $0x14f] sm:$0xff]
      %v1863 = vld [vmem:[%s1840 + $0x167] sm:$0xff]
      %v1864 = vld [vmem:[%s1840 + $0x16f] sm:$0xff]
      %v1865 = vld [vmem:[%s1840 + $0x187] sm:$0xff]
      %v1866 = vld [vmem:[%s1840 + $0x18f] sm:$0xff]
      %v1867 = vld [vmem:[%s1840 + $0x1a7] sm:$0xff]
      %v1868 = vld [vmem:[%s1840 + $0x1af] sm:$0xff]
      %v1869 = vld [vmem:[%s1840 + $0x1c7] sm:$0xff]
      %v1870 = vld [vmem:[%s1840 + $0x1cf] sm:$0xff]
      %v1871 = vld [vmem:[%s1840 + $0x1e7] sm:$0xff]
      %v1872 = vld [vmem:[%s1840 + $0x1ef] sm:$0xff]
      %v1873 = vld [vmem:[%s1840 + $0x8] sm:$0xff]
      %v1874 = vld [vmem:[%s1840 + $0x10] sm:$0xff]
      %v1875 = vld [vmem:[%s1840 + $0x28] sm:$0xff]
      %v1876 = vld [vmem:[%s1840 + $0x30] sm:$0xff]
      %v1877 = vld [vmem:[%s1840 + $0x48] sm:$0xff]
      %v1878 = vld [vmem:[%s1840 + $0x50] sm:$0xff]
      %v1879 = vld [vmem:[%s1840 + $0x68] sm:$0xff]
      %v1880 = vld [vmem:[%s1840 + $0x70] sm:$0xff]
      %v1881 = vld [vmem:[%s1840 + $0x88] sm:$0xff]
      %v1882 = vld [vmem:[%s1840 + $0x90] sm:$0xff]
      %v1883 = vld [vmem:[%s1840 + $0xa8] sm:$0xff]
      %v1884 = vld [vmem:[%s1840 + $0xb0] sm:$0xff]
      %v1885 = vld [vmem:[%s1840 + $0xc8] sm:$0xff]
      %v1886 = vld [vmem:[%s1840 + $0xd0] sm:$0xff]
      %v1887 = vld [vmem:[%s1840 + $0xe8] sm:$0xff]
      %v1888 = vld [vmem:[%s1840 + $0xf0] sm:$0xff]
      %v1889 = vld [vmem:[%s1840 + $0x108] sm:$0xff]
      %v1890 = vld [vmem:[%s1840 + $0x110] sm:$0xff]
      %v1891 = vld [vmem:[%s1840 + $0x128] sm:$0xff]
      %v1892 = vld [vmem:[%s1840 + $0x130] sm:$0xff]
      %v1893 = vld [vmem:[%s1840 + $0x148] sm:$0xff]
      %v1894 = vld [vmem:[%s1840 + $0x150] sm:$0xff]
      %v1895 = vld [vmem:[%s1840 + $0x168] sm:$0xff]
      %v1896 = vld [vmem:[%s1840 + $0x170] sm:$0xff]
      %v1897 = vld [vmem:[%s1840 + $0x188] sm:$0xff]
      %v1898 = vld [vmem:[%s1840 + $0x190] sm:$0xff]
      %v1899 = vld [vmem:[%s1840 + $0x1a8] sm:$0xff]
      %v1900 = vld [vmem:[%s1840 + $0x1b0] sm:$0xff]
      %v1901 = vld [vmem:[%s1840 + $0x1c8] sm:$0xff]
      %v1902 = vld [vmem:[%s1840 + $0x1d0] sm:$0xff]
      %v1903 = vld [vmem:[%s1840 + $0x1e8] sm:$0xff]
      %v1904 = vld [vmem:[%s1840 + $0x1f0] sm:$0xff]
      %v1905 = vld [vmem:[%s1840 + $0x9] sm:$0xff]
      %v1906 = vld [vmem:[%s1840 + $0x11] sm:$0xff]
      %v1907 = vld [vmem:[%s1840 + $0x29] sm:$0xff]
      %v1908 = vld [vmem:[%s1840 + $0x31] sm:$0xff]
      %v1909 = vld [vmem:[%s1840 + $0x49] sm:$0xff]
      %v1910 = vld [vmem:[%s1840 + $0x51] sm:$0xff]
      %v1911 = vld [vmem:[%s1840 + $0x69] sm:$0xff]
      %v1912 = vld [vmem:[%s1840 + $0x71] sm:$0xff]
      %v1913 = vld [vmem:[%s1840 + $0x89] sm:$0xff]
      %v1914 = vld [vmem:[%s1840 + $0x91] sm:$0xff]
      %v1915 = vld [vmem:[%s1840 + $0xa9] sm:$0xff]
      %v1916 = vld [vmem:[%s1840 + $0xb1] sm:$0xff]
      %v1917 = vld [vmem:[%s1840 + $0xc9] sm:$0xff]
      %v1918 = vld [vmem:[%s1840 + $0xd1] sm:$0xff]
      %v1919 = vld [vmem:[%s1840 + $0xe9] sm:$0xff]
      %v1920 = vld [vmem:[%s1840 + $0xf1] sm:$0xff]
      %v1921 = vld [vmem:[%s1840 + $0x109] sm:$0xff]
      %v1922 = vld [vmem:[%s1840 + $0x111] sm:$0xff]
      %v1923 = vld [vmem:[%s1840 + $0x129] sm:$0xff]
      %v1924 = vld [vmem:[%s1840 + $0x131] sm:$0xff]
      %v1925 = vld [vmem:[%s1840 + $0x149] sm:$0xff]
      %v1926 = vld [vmem:[%s1840 + $0x151] sm:$0xff]
      %v1927 = vld [vmem:[%s1840 + $0x169] sm:$0xff]
      %v1928 = vld [vmem:[%s1840 + $0x171] sm:$0xff]
      %v1929 = vld [vmem:[%s1840 + $0x189] sm:$0xff]
      %v1930 = vld [vmem:[%s1840 + $0x191] sm:$0xff]
      %v1931 = vld [vmem:[%s1840 + $0x1a9] sm:$0xff]
      %v1932 = vld [vmem:[%s1840 + $0x1b1] sm:$0xff]
      %v1933 = vld [vmem:[%s1840 + $0x1c9] sm:$0xff]
      %v1934 = vld [vmem:[%s1840 + $0x1d1] sm:$0xff]
      %v1935 = vld [vmem:[%s1840 + $0x1e9] sm:$0xff]
      %v1936 = vld [vmem:[%s1840 + $0x1f1] sm:$0xff]
      %1969 = vrot.lane.b32.xlu0 %v1873, 32
      %v1970 = vpop.permute.xlu0 %1969
      %1971 = vrot.lane.b32.xlu0 %v1874, 32
      %v1972 = vpop.permute.xlu0 %1971
      %1973 = vrot.lane.b32.xlu0 %v1875, 32
      %v1974 = vpop.permute.xlu0 %1973
      %1975 = vrot.lane.b32.xlu0 %v1876, 32
      %v1976 = vpop.permute.xlu0 %1975
      %1977 = vrot.lane.b32.xlu0 %v1877, 32
      %v1978 = vpop.permute.xlu0 %1977
      %1979 = vrot.lane.b32.xlu0 %v1878, 32
      %v1980 = vpop.permute.xlu0 %1979
      %1981 = vrot.lane.b32.xlu0 %v1879, 32
      %v1982 = vpop.permute.xlu0 %1981
      %1983 = vrot.lane.b32.xlu0 %v1880, 32
      %v1984 = vpop.permute.xlu0 %1983
      %1985 = vrot.lane.b32.xlu0 %v1881, 32
      %v1986 = vpop.permute.xlu0 %1985
      %1987 = vrot.lane.b32.xlu0 %v1882, 32
      %v1988 = vpop.permute.xlu0 %1987
      %1989 = vrot.lane.b32.xlu0 %v1883, 32
      %v1990 = vpop.permute.xlu0 %1989
      %1991 = vrot.lane.b32.xlu0 %v1884, 32
      %v1992 = vpop.permute.xlu0 %1991
      %1993 = vrot.lane.b32.xlu0 %v1885, 32
      %v1994 = vpop.permute.xlu0 %1993
      %1995 = vrot.lane.b32.xlu0 %v1886, 32
      %v1996 = vpop.permute.xlu0 %1995
      %1997 = vrot.lane.b32.xlu0 %v1887, 32
      %v1998 = vpop.permute.xlu0 %1997
      %1999 = vrot.lane.b32.xlu0 %v1888, 32
      %v2000 = vpop.permute.xlu0 %1999
      %2001 = vrot.lane.b32.xlu0 %v1889, 32
      %v2002 = vpop.permute.xlu0 %2001
      %2003 = vrot.lane.b32.xlu0 %v1890, 32
      %v2004 = vpop.permute.xlu0 %2003
      %2005 = vrot.lane.b32.xlu0 %v1891, 32
      %v2006 = vpop.permute.xlu0 %2005
      %2007 = vrot.lane.b32.xlu0 %v1892, 32
      %v2008 = vpop.permute.xlu0 %2007
      %2009 = vrot.lane.b32.xlu0 %v1893, 32
      %v2010 = vpop.permute.xlu0 %2009
      %2011 = vrot.lane.b32.xlu0 %v1894, 32
      %v2012 = vpop.permute.xlu0 %2011
      %2013 = vrot.lane.b32.xlu0 %v1895, 32
      %v2014 = vpop.permute.xlu0 %2013
      %2015 = vrot.lane.b32.xlu0 %v1896, 32
      %v2016 = vpop.permute.xlu0 %2015
      %2017 = vrot.lane.b32.xlu0 %v1897, 32
      %v2018 = vpop.permute.xlu0 %2017
      %2019 = vrot.lane.b32.xlu0 %v1898, 32
      %v2020 = vpop.permute.xlu0 %2019
      %2021 = vrot.lane.b32.xlu0 %v1899, 32
      %v2022 = vpop.permute.xlu0 %2021
      %2023 = vrot.lane.b32.xlu0 %v1900, 32
      %v2024 = vpop.permute.xlu0 %2023
      %2025 = vrot.lane.b32.xlu0 %v1901, 32
      %v2026 = vpop.permute.xlu0 %2025
      %2027 = vrot.lane.b32.xlu0 %v1902, 32
      %v2028 = vpop.permute.xlu0 %2027
      %2029 = vrot.lane.b32.xlu0 %v1903, 32
      %v2030 = vpop.permute.xlu0 %2029
      %2031 = vrot.lane.b32.xlu0 %v1904, 32
      %v2032 = vpop.permute.xlu0 %2031
      %2097 = vrot.lane.b32.xlu0 %v1905, 64
      %v2098 = vpop.permute.xlu0 %2097
      %2099 = vrot.lane.b32.xlu0 %v1906, 64
      %v2100 = vpop.permute.xlu0 %2099
      %2101 = vrot.lane.b32.xlu0 %v1907, 64
      %v2102 = vpop.permute.xlu0 %2101
      %2103 = vrot.lane.b32.xlu0 %v1908, 64
      %v2104 = vpop.permute.xlu0 %2103
      %2105 = vrot.lane.b32.xlu0 %v1909, 64
      %v2106 = vpop.permute.xlu0 %2105
      %2107 = vrot.lane.b32.xlu0 %v1910, 64
      %v2108 = vpop.permute.xlu0 %2107
      %2109 = vrot.lane.b32.xlu0 %v1911, 64
      %v2110 = vpop.permute.xlu0 %2109
      %2111 = vrot.lane.b32.xlu0 %v1912, 64
      %v2112 = vpop.permute.xlu0 %2111
      %2113 = vrot.lane.b32.xlu0 %v1913, 64
      %v2114 = vpop.permute.xlu0 %2113
      %2115 = vrot.lane.b32.xlu0 %v1914, 64
      %v2116 = vpop.permute.xlu0 %2115
      %2117 = vrot.lane.b32.xlu0 %v1915, 64
      %v2118 = vpop.permute.xlu0 %2117
      %2119 = vrot.lane.b32.xlu0 %v1916, 64
      %v2120 = vpop.permute.xlu0 %2119
      %2121 = vrot.lane.b32.xlu0 %v1917, 64
      %v2122 = vpop.permute.xlu0 %2121
      %2123 = vrot.lane.b32.xlu0 %v1918, 64
      %v2124 = vpop.permute.xlu0 %2123
      %2125 = vrot.lane.b32.xlu0 %v1919, 64
      %v2126 = vpop.permute.xlu0 %2125
      %2127 = vrot.lane.b32.xlu0 %v1920, 64
      %v2128 = vpop.permute.xlu0 %2127
      %2129 = vrot.lane.b32.xlu0 %v1921, 64
      %v2130 = vpop.permute.xlu0 %2129
      %2131 = vrot.lane.b32.xlu0 %v1922, 64
      %v2132 = vpop.permute.xlu0 %2131
      %2133 = vrot.lane.b32.xlu0 %v1923, 64
      %v2134 = vpop.permute.xlu0 %2133
      %2135 = vrot.lane.b32.xlu0 %v1924, 64
      %v2136 = vpop.permute.xlu0 %2135
      %2137 = vrot.lane.b32.xlu0 %v1925, 64
      %v2138 = vpop.permute.xlu0 %2137
      %2139 = vrot.lane.b32.xlu0 %v1926, 64
      %v2140 = vpop.permute.xlu0 %2139
      %2141 = vrot.lane.b32.xlu0 %v1927, 64
      %v2142 = vpop.permute.xlu0 %2141
      %2143 = vrot.lane.b32.xlu0 %v1928, 64
      %v2144 = vpop.permute.xlu0 %2143
      %2145 = vrot.lane.b32.xlu0 %v1929, 64
      %v2146 = vpop.permute.xlu0 %2145
      %2147 = vrot.lane.b32.xlu0 %v1930, 64
      %v2148 = vpop.permute.xlu0 %2147
      %2149 = vrot.lane.b32.xlu0 %v1931, 64
      %v2150 = vpop.permute.xlu0 %2149
      %2151 = vrot.lane.b32.xlu0 %v1932, 64
      %v2152 = vpop.permute.xlu0 %2151
      %2153 = vrot.lane.b32.xlu0 %v1933, 64
      %v2154 = vpop.permute.xlu0 %2153
      %2155 = vrot.lane.b32.xlu0 %v1934, 64
      %v2156 = vpop.permute.xlu0 %2155
      %2157 = vrot.lane.b32.xlu0 %v1935, 64
      %v2158 = vpop.permute.xlu0 %2157
      %2159 = vrot.lane.b32.xlu0 %v1936, 64
      %v2160 = vpop.permute.xlu0 %2159
      %v2193 = vsel %vm237, %v1841, %v1970
      %v2194 = vsel %vm237, %v1842, %v1972
      %v2195 = vsel %vm237, %v1843, %v1974
      %v2196 = vsel %vm237, %v1844, %v1976
      %v2197 = vsel %vm237, %v1845, %v1978
      %v2198 = vsel %vm237, %v1846, %v1980
      %v2199 = vsel %vm237, %v1847, %v1982
      %v2200 = vsel %vm237, %v1848, %v1984
      %v2201 = vsel %vm237, %v1849, %v1986
      %v2202 = vsel %vm237, %v1850, %v1988
      %v2203 = vsel %vm237, %v1851, %v1990
      %v2204 = vsel %vm237, %v1852, %v1992
      %v2205 = vsel %vm237, %v1853, %v1994
      %v2206 = vsel %vm237, %v1854, %v1996
      %v2207 = vsel %vm237, %v1855, %v1998
      %v2208 = vsel %vm237, %v1856, %v2000
      %v2209 = vsel %vm237, %v1857, %v2002
      %v2210 = vsel %vm237, %v1858, %v2004
      %v2211 = vsel %vm237, %v1859, %v2006
      %v2212 = vsel %vm237, %v1860, %v2008
      %v2213 = vsel %vm237, %v1861, %v2010
      %v2214 = vsel %vm237, %v1862, %v2012
      %v2215 = vsel %vm237, %v1863, %v2014
      %v2216 = vsel %vm237, %v1864, %v2016
      %v2217 = vsel %vm237, %v1865, %v2018
      %v2218 = vsel %vm237, %v1866, %v2020
      %v2219 = vsel %vm237, %v1867, %v2022
      %v2220 = vsel %vm237, %v1868, %v2024
      %v2221 = vsel %vm237, %v1869, %v2026
      %v2222 = vsel %vm237, %v1870, %v2028
      %v2223 = vsel %vm237, %v1871, %v2030
      %v2224 = vsel %vm237, %v1872, %v2032
      %v2225 = vsel %vm843, %v2193, %v2098
      %v2226 = vsel %vm843, %v2194, %v2100
      %v2227 = vsel %vm843, %v2195, %v2102
      %v2228 = vsel %vm843, %v2196, %v2104
      %v2229 = vsel %vm843, %v2197, %v2106
      %v2230 = vsel %vm843, %v2198, %v2108
      %v2231 = vsel %vm843, %v2199, %v2110
      %v2232 = vsel %vm843, %v2200, %v2112
      %v2233 = vsel %vm843, %v2201, %v2114
      %v2234 = vsel %vm843, %v2202, %v2116
      %v2235 = vsel %vm843, %v2203, %v2118
      %v2236 = vsel %vm843, %v2204, %v2120
      %v2237 = vsel %vm843, %v2205, %v2122
      %v2238 = vsel %vm843, %v2206, %v2124
      %v2239 = vsel %vm843, %v2207, %v2126
      %v2240 = vsel %vm843, %v2208, %v2128
      %v2241 = vsel %vm843, %v2209, %v2130
      %v2242 = vsel %vm843, %v2210, %v2132
      %v2243 = vsel %vm843, %v2211, %v2134
      %v2244 = vsel %vm843, %v2212, %v2136
      %v2245 = vsel %vm843, %v2213, %v2138
      %v2246 = vsel %vm843, %v2214, %v2140
      %v2247 = vsel %vm843, %v2215, %v2142
      %v2248 = vsel %vm843, %v2216, %v2144
      %v2249 = vsel %vm843, %v2217, %v2146
      %v2250 = vsel %vm843, %v2218, %v2148
      %v2251 = vsel %vm843, %v2219, %v2150
      %v2252 = vsel %vm843, %v2220, %v2152
      %v2253 = vsel %vm843, %v2221, %v2154
      %v2254 = vsel %vm843, %v2222, %v2156
      %v2255 = vsel %vm843, %v2223, %v2158
      %v2256 = vsel %vm843, %v2224, %v2160
      %v2257 = vpack.c.bf16 %v2226, %v2225
      %v2258 = vpack.c.bf16 %v2228, %v2227
      %v2259 = vpack.c.bf16 %v2230, %v2229
      %v2260 = vpack.c.bf16 %v2232, %v2231
      %v2261 = vpack.c.bf16 %v2234, %v2233
      %v2262 = vpack.c.bf16 %v2236, %v2235
      %v2263 = vpack.c.bf16 %v2238, %v2237
      %v2264 = vpack.c.bf16 %v2240, %v2239
      %v2265 = vpack.c.bf16 %v2242, %v2241
      %v2266 = vpack.c.bf16 %v2244, %v2243
      %v2267 = vpack.c.bf16 %v2246, %v2245
      %v2268 = vpack.c.bf16 %v2248, %v2247
      %v2269 = vpack.c.bf16 %v2250, %v2249
      %v2270 = vpack.c.bf16 %v2252, %v2251
      %v2271 = vpack.c.bf16 %v2254, %v2253
      %v2272 = vpack.c.bf16 %v2256, %v2255
      %s2273 = scalar_lea.vmem %s3, 96
      %v2274 = vld [vmem:[%s2273] sm:$0xf]
      %v2275 = vld [vmem:[%s2273 + $0x4] sm:$0xf]
      %v2276 = vld [vmem:[%s2273 + $0x8] sm:$0xf]
      %v2277 = vld [vmem:[%s2273 + $0xc] sm:$0xf]
      %v2278 = vld [vmem:[%s2273 + $0x10] sm:$0xf]
      %v2279 = vld [vmem:[%s2273 + $0x14] sm:$0xf]
      %v2280 = vld [vmem:[%s2273 + $0x18] sm:$0xf]
      %v2281 = vld [vmem:[%s2273 + $0x1c] sm:$0xf]
      %v2282 = vld [vmem:[%s2273 + $0x20] sm:$0xf]
      %v2283 = vld [vmem:[%s2273 + $0x24] sm:$0xf]
      %v2284 = vld [vmem:[%s2273 + $0x28] sm:$0xf]
      %v2285 = vld [vmem:[%s2273 + $0x2c] sm:$0xf]
      %v2298 = vunpack.c.l.b16 %v2274
      %v2299 = vunpack.c.l.b16 %v2275
      %v2300 = vunpack.c.l.b16 %v2276
      %v2301 = vunpack.c.l.b16 %v2277
      %v2302 = vunpack.c.l.b16 %v2278
      %v2303 = vunpack.c.l.b16 %v2279
      %v2304 = vunpack.c.l.b16 %v2280
      %v2305 = vunpack.c.l.b16 %v2281
      %v2306 = vunpack.c.l.b16 %v2282
      %v2307 = vunpack.c.l.b16 %v2283
      %v2308 = vunpack.c.l.b16 %v2284
      %v2309 = vunpack.c.l.b16 %v2285
      %v2310 = vpack.c.b16 %v2299, %v2298
      %v2311 = vpack.c.b16 %v2301, %v2300
      %v2312 = vpack.c.b16 %v2303, %v2302
      %v2313 = vpack.c.b16 %v2305, %v2304
      %v2314 = vpack.c.b16 %v2307, %v2306
      %v2315 = vpack.c.b16 %v2309, %v2308
      %v2323 = vsel %vm1385, %v2257, 0
      %v2326 = vsel %vm1385, %v2258, 0
      %v2329 = vsel %vm1385, %v2259, 0
      %v2332 = vsel %vm1385, %v2260, 0
      %v2335 = vsel %vm1385, %v2261, 0
      %v2338 = vsel %vm1385, %v2262, 0
      %v2341 = vsel %vm1385, %v2263, 0
      %v2344 = vsel %vm1385, %v2264, 0
      %v2347 = vsel %vm1385, %v2265, 0
      %v2350 = vsel %vm1385, %v2266, 0
      %v2353 = vsel %vm1385, %v2267, 0
      %v2356 = vsel %vm1385, %v2268, 0
      %v2359 = vsel %vm1385, %v2269, 0
      %v2362 = vsel %vm1385, %v2270, 0
      %v2365 = vsel %vm1385, %v2271, 0
      %v2368 = vsel %vm1385, %v2272, 0
      %2370 = vmatprep.subr.bf16.mxu0 0
      %2371 = vmatpush1.bf16.msra.mxu0 %v2310
      %2372 = vmatprep.subr.bf16.mxu0 0
      %2373 = vmatpush1.bf16.msra.mxu0 %v2311
      %2374 = vmatprep.subr.bf16.mxu0 0
      %2375 = vmatpush1.bf16.msra.mxu0 %v2312
      %2376 = vmatprep.subr.bf16.mxu0 0
      %2377 = vmatpush1.bf16.msra.mxu0 %v2313
      %2378 = vmatprep.subr.bf16.mxu0 0
      %2379 = vmatpush1.bf16.msra.mxu0 %v2314
      %2380 = vmatprep.subr.bf16.mxu0 0
      %2381 = vmatpush1.bf16.msra.mxu0 %v2315
      %2382 = vmatprep.subr.bf16.mxu0 0
      %2383 = vmatpush1.bf16.msra.mxu0 0
      %2384 = vmatprep.subr.bf16.mxu0 0
      %2385 = vmatpush1.bf16.msra.mxu0 0
      %2386 = vmatprep.subr.bf16.mxu0 0
      %2387 = vmatpush1.bf16.msra.mxu0 0
      %2388 = vmatprep.subr.bf16.mxu0 0
      %2389 = vmatpush1.bf16.msra.mxu0 0
      %2390 = vmatprep.subr.bf16.mxu0 0
      %2391 = vmatpush1.bf16.msra.mxu0 0
      %2392 = vmatprep.subr.bf16.mxu0 0
      %2393 = vmatpush1.bf16.msra.mxu0 0
      %2394 = vmatprep.subr.bf16.mxu0 0
      %2395 = vmatpush1.bf16.msra.mxu0 0
      %2396 = vmatprep.subr.bf16.mxu0 0
      %2397 = vmatpush1.bf16.msra.mxu0 0
      %2398 = vmatprep.subr.bf16.mxu0 0
      %2399 = vmatpush1.bf16.msra.mxu0 0
      %2400 = vmatprep.subr.bf16.mxu0 0
      %2401 = vmatpush1.bf16.msra.mxu0 0
      %2402 = vmatprep.mubr.bf16.mxu0 0
      %2403 = vmatmul.mubr.bf16.gmra.mrb[0].mxu0 %v2323
      %v2404 = vpop.f32.mrb[0].mxu0
      %v2405 = vadd.f32 0.0, %v2404
      %v2406 = vpop.f32.mrb[0].mxu0
      %v2407 = vpop.f32.mrb[0].mxu0
      %v2408 = vadd.f32 0.0, %v2407
      %v2409 = vpop.f32.mrb[0].mxu0
      %2410 = vmatprep.mubr.bf16.mxu0 0
      %2411 = vmatmul.mubr.bf16.gmra.mrb[0].mxu0 %v2326
      %v2412 = vpop.f32.mrb[0].mxu0
      %v2413 = vadd.f32 0.0, %v2412
      %v2414 = vpop.f32.mrb[0].mxu0
      %v2415 = vpop.f32.mrb[0].mxu0
      %v2416 = vadd.f32 0.0, %v2415
      %v2417 = vpop.f32.mrb[0].mxu0
      %2418 = vmatprep.mubr.bf16.mxu0 0
      %2419 = vmatmul.mubr.bf16.gmra.mrb[0].mxu0 %v2329
      %v2420 = vpop.f32.mrb[0].mxu0
      %v2421 = vadd.f32 0.0, %v2420
      %v2422 = vpop.f32.mrb[0].mxu0
      %v2423 = vpop.f32.mrb[0].mxu0
      %v2424 = vadd.f32 0.0, %v2423
      %v2425 = vpop.f32.mrb[0].mxu0
      %2426 = vmatprep.mubr.bf16.mxu0 0
      %2427 = vmatmul.mubr.bf16.gmra.mrb[0].mxu0 %v2332
      %v2428 = vpop.f32.mrb[0].mxu0
      %v2429 = vadd.f32 0.0, %v2428
      %v2430 = vpop.f32.mrb[0].mxu0
      %v2431 = vpop.f32.mrb[0].mxu0
      %v2432 = vadd.f32 0.0, %v2431
      %v2433 = vpop.f32.mrb[0].mxu0
      %2434 = vmatprep.mubr.bf16.mxu0 0
      %2435 = vmatmul.mubr.bf16.gmra.mrb[0].mxu0 %v2335
      %v2436 = vpop.f32.mrb[0].mxu0
      %v2437 = vadd.f32 0.0, %v2436
      %v2438 = vpop.f32.mrb[0].mxu0
      %v2439 = vpop.f32.mrb[0].mxu0
      %v2440 = vadd.f32 0.0, %v2439
      %v2441 = vpop.f32.mrb[0].mxu0
      %2442 = vmatprep.mubr.bf16.mxu0 0
      %2443 = vmatmul.mubr.bf16.gmra.mrb[0].mxu0 %v2338
      %v2444 = vpop.f32.mrb[0].mxu0
      %v2445 = vadd.f32 0.0, %v2444
      %v2446 = vpop.f32.mrb[0].mxu0
      %v2447 = vpop.f32.mrb[0].mxu0
      %v2448 = vadd.f32 0.0, %v2447
      %v2449 = vpop.f32.mrb[0].mxu0
      %2450 = vmatprep.mubr.bf16.mxu0 0
      %2451 = vmatmul.mubr.bf16.gmra.mrb[0].mxu0 %v2341
      %v2452 = vpop.f32.mrb[0].mxu0
      %v2453 = vadd.f32 0.0, %v2452
      %v2454 = vpop.f32.mrb[0].mxu0
      %v2455 = vpop.f32.mrb[0].mxu0
      %v2456 = vadd.f32 0.0, %v2455
      %v2457 = vpop.f32.mrb[0].mxu0
      %2458 = vmatprep.mubr.bf16.mxu0 0
      %2459 = vmatmul.mubr.bf16.gmra.mrb[0].mxu0 %v2344
      %v2460 = vpop.f32.mrb[0].mxu0
      %v2461 = vadd.f32 0.0, %v2460
      %v2462 = vpop.f32.mrb[0].mxu0
      %v2463 = vpop.f32.mrb[0].mxu0
      %v2464 = vadd.f32 0.0, %v2463
      %v2465 = vpop.f32.mrb[0].mxu0
      %2466 = vmatprep.mubr.bf16.mxu0 0
      %2467 = vmatmul.mubr.bf16.gmra.mrb[0].mxu0 %v2347
      %v2468 = vpop.f32.mrb[0].mxu0
      %v2469 = vadd.f32 0.0, %v2468
      %v2470 = vpop.f32.mrb[0].mxu0
      %v2471 = vpop.f32.mrb[0].mxu0
      %v2472 = vadd.f32 0.0, %v2471
      %v2473 = vpop.f32.mrb[0].mxu0
      %2474 = vmatprep.mubr.bf16.mxu0 0
      %2475 = vmatmul.mubr.bf16.gmra.mrb[0].mxu0 %v2350
      %v2476 = vpop.f32.mrb[0].mxu0
      %v2477 = vadd.f32 0.0, %v2476
      %v2478 = vpop.f32.mrb[0].mxu0
      %v2479 = vpop.f32.mrb[0].mxu0
      %v2480 = vadd.f32 0.0, %v2479
      %v2481 = vpop.f32.mrb[0].mxu0
      %2482 = vmatprep.mubr.bf16.mxu0 0
      %2483 = vmatmul.mubr.bf16.gmra.mrb[0].mxu0 %v2353
      %v2484 = vpop.f32.mrb[0].mxu0
      %v2485 = vadd.f32 0.0, %v2484
      %v2486 = vpop.f32.mrb[0].mxu0
      %v2487 = vpop.f32.mrb[0].mxu0
      %v2488 = vadd.f32 0.0, %v2487
      %v2489 = vpop.f32.mrb[0].mxu0
      %2490 = vmatprep.mubr.bf16.mxu0 0
      %2491 = vmatmul.mubr.bf16.gmra.mrb[0].mxu0 %v2356
      %v2492 = vpop.f32.mrb[0].mxu0
      %v2493 = vadd.f32 0.0, %v2492
      %v2494 = vpop.f32.mrb[0].mxu0
      %v2495 = vpop.f32.mrb[0].mxu0
      %v2496 = vadd.f32 0.0, %v2495
      %v2497 = vpop.f32.mrb[0].mxu0
      %2498 = vmatprep.mubr.bf16.mxu0 0
      %2499 = vmatmul.mubr.bf16.gmra.mrb[0].mxu0 %v2359
      %v2500 = vpop.f32.mrb[0].mxu0
      %v2501 = vadd.f32 0.0, %v2500
      %v2502 = vpop.f32.mrb[0].mxu0
      %v2503 = vpop.f32.mrb[0].mxu0
      %v2504 = vadd.f32 0.0, %v2503
      %v2505 = vpop.f32.mrb[0].mxu0
      %2506 = vmatprep.mubr.bf16.mxu0 0
      %2507 = vmatmul.mubr.bf16.gmra.mrb[0].mxu0 %v2362
      %v2508 = vpop.f32.mrb[0].mxu0
      %v2509 = vadd.f32 0.0, %v2508
      %v2510 = vpop.f32.mrb[0].mxu0
      %v2511 = vpop.f32.mrb[0].mxu0
      %v2512 = vadd.f32 0.0, %v2511
      %v2513 = vpop.f32.mrb[0].mxu0
      %2514 = vmatprep.mubr.bf16.mxu0 0
      %2515 = vmatmul.mubr.bf16.gmra.mrb[0].mxu0 %v2365
      %v2516 = vpop.f32.mrb[0].mxu0
      %v2517 = vadd.f32 0.0, %v2516
      %v2518 = vpop.f32.mrb[0].mxu0
      %v2519 = vpop.f32.mrb[0].mxu0
      %v2520 = vadd.f32 0.0, %v2519
      %v2521 = vpop.f32.mrb[0].mxu0
      %2522 = vmatprep.mubr.bf16.mxu0 0
      %2523 = vmatmul.mubr.bf16.gmra.mrb[0].mxu0 %v2368
      %v2524 = vpop.f32.mrb[0].mxu0
      %v2525 = vadd.f32 0.0, %v2524
      %v2526 = vpop.f32.mrb[0].mxu0
      %v2527 = vpop.f32.mrb[0].mxu0
      %v2528 = vadd.f32 0.0, %v2527
      %v2529 = vpop.f32.mrb[0].mxu0
      %2530 = vdwg.mxu0
      %v2531 = vadd.f32 %v1714, %v2405
      %v2532 = vadd.f32 %v1717, %v2408
      %v2533 = vadd.f32 %v1722, %v2413
      %v2534 = vadd.f32 %v1725, %v2416
      %v2535 = vadd.f32 %v1730, %v2421
      %v2536 = vadd.f32 %v1733, %v2424
      %v2537 = vadd.f32 %v1738, %v2429
      %v2538 = vadd.f32 %v1741, %v2432
      %v2539 = vadd.f32 %v1746, %v2437
      %v2540 = vadd.f32 %v1749, %v2440
      %v2541 = vadd.f32 %v1754, %v2445
      %v2542 = vadd.f32 %v1757, %v2448
      %v2543 = vadd.f32 %v1762, %v2453
      %v2544 = vadd.f32 %v1765, %v2456
      %v2545 = vadd.f32 %v1770, %v2461
      %v2546 = vadd.f32 %v1773, %v2464
      %v2547 = vadd.f32 %v1778, %v2469
      %v2548 = vadd.f32 %v1781, %v2472
      %v2549 = vadd.f32 %v1786, %v2477
      %v2550 = vadd.f32 %v1789, %v2480
      %v2551 = vadd.f32 %v1794, %v2485
      %v2552 = vadd.f32 %v1797, %v2488
      %v2553 = vadd.f32 %v1802, %v2493
      %v2554 = vadd.f32 %v1805, %v2496
      %v2555 = vadd.f32 %v1810, %v2501
      %v2556 = vadd.f32 %v1813, %v2504
      %v2557 = vadd.f32 %v1818, %v2509
      %v2558 = vadd.f32 %v1821, %v2512
      %v2559 = vadd.f32 %v1826, %v2517
      %v2560 = vadd.f32 %v1829, %v2520
      %v2561 = vadd.f32 %v1834, %v2525
      %v2562 = vadd.f32 %v1837, %v2528
      %vm2563 = vcmask 392192
      %2564 = vst.msk [vmem:[%s231] sm:$0xff] %vm2563, %v2531
      %2565 = vst.msk [vmem:[%s231 + $0x8] sm:$0xff] %vm2563, %v2532
      %2566 = vst.msk [vmem:[%s231 + $0x10] sm:$0xff] %vm2563, %v2533
      %2567 = vst.msk [vmem:[%s231 + $0x18] sm:$0xff] %vm2563, %v2534
      %2568 = vst.msk [vmem:[%s231 + $0x20] sm:$0xff] %vm2563, %v2535
      %2569 = vst.msk [vmem:[%s231 + $0x28] sm:$0xff] %vm2563, %v2536
      %2570 = vst.msk [vmem:[%s231 + $0x30] sm:$0xff] %vm2563, %v2537
      %2571 = vst.msk [vmem:[%s231 + $0x38] sm:$0xff] %vm2563, %v2538
      %2572 = vst.msk [vmem:[%s231 + $0x40] sm:$0xff] %vm2563, %v2539
      %2573 = vst.msk [vmem:[%s231 + $0x48] sm:$0xff] %vm2563, %v2540
      %2574 = vst.msk [vmem:[%s231 + $0x50] sm:$0xff] %vm2563, %v2541
      %2575 = vst.msk [vmem:[%s231 + $0x58] sm:$0xff] %vm2563, %v2542
      %2576 = vst.msk [vmem:[%s231 + $0x60] sm:$0xff] %vm2563, %v2543
      %2577 = vst.msk [vmem:[%s231 + $0x68] sm:$0xff] %vm2563, %v2544
      %2578 = vst.msk [vmem:[%s231 + $0x70] sm:$0xff] %vm2563, %v2545
      %2579 = vst.msk [vmem:[%s231 + $0x78] sm:$0xff] %vm2563, %v2546
      %2580 = vst.msk [vmem:[%s231 + $0x80] sm:$0xff] %vm2563, %v2547
      %2581 = vst.msk [vmem:[%s231 + $0x88] sm:$0xff] %vm2563, %v2548
      %2582 = vst.msk [vmem:[%s231 + $0x90] sm:$0xff] %vm2563, %v2549
      %2583 = vst.msk [vmem:[%s231 + $0x98] sm:$0xff] %vm2563, %v2550
      %2584 = vst.msk [vmem:[%s231 + $0xa0] sm:$0xff] %vm2563, %v2551
      %2585 = vst.msk [vmem:[%s231 + $0xa8] sm:$0xff] %vm2563, %v2552
      %2586 = vst.msk [vmem:[%s231 + $0xb0] sm:$0xff] %vm2563, %v2553
      %2587 = vst.msk [vmem:[%s231 + $0xb8] sm:$0xff] %vm2563, %v2554
      %2588 = vst.msk [vmem:[%s231 + $0xc0] sm:$0xff] %vm2563, %v2555
      %2589 = vst.msk [vmem:[%s231 + $0xc8] sm:$0xff] %vm2563, %v2556
      %2590 = vst.msk [vmem:[%s231 + $0xd0] sm:$0xff] %vm2563, %v2557
      %2591 = vst.msk [vmem:[%s231 + $0xd8] sm:$0xff] %vm2563, %v2558
      %2592 = vst.msk [vmem:[%s231 + $0xe0] sm:$0xff] %vm2563, %v2559
      %2593 = vst.msk [vmem:[%s231 + $0xe8] sm:$0xff] %vm2563, %v2560
      %2594 = vst.msk [vmem:[%s231 + $0xf0] sm:$0xff] %vm2563, %v2561
      %2595 = vst.msk [vmem:[%s231 + $0xf8] sm:$0xff] %vm2563, %v2562
      %v2596 = vsel %vm2563, %v2531, 0.0
      %v2597 = vsel %vm2563, %v2532, 0.0
      %v2598 = vadd.f32 %v2596, %v2597
      %v2599 = vsel %vm2563, %v2533, 0.0
      %v2600 = vadd.f32 %v2598, %v2599
      %v2601 = vsel %vm2563, %v2534, 0.0
      %v2602 = vadd.f32 %v2600, %v2601
      %v2603 = vsel %vm2563, %v2535, 0.0
      %v2604 = vadd.f32 %v2602, %v2603
      %v2605 = vsel %vm2563, %v2536, 0.0
      %v2606 = vadd.f32 %v2604, %v2605
      %v2607 = vsel %vm2563, %v2537, 0.0
      %v2608 = vadd.f32 %v2606, %v2607
      %v2609 = vsel %vm2563, %v2538, 0.0
      %v2610 = vadd.f32 %v2608, %v2609
      %v2611 = vsel %vm2563, %v2539, 0.0
      %v2612 = vadd.f32 %v2610, %v2611
      %v2613 = vsel %vm2563, %v2540, 0.0
      %v2614 = vadd.f32 %v2612, %v2613
      %v2615 = vsel %vm2563, %v2541, 0.0
      %v2616 = vadd.f32 %v2614, %v2615
      %v2617 = vsel %vm2563, %v2542, 0.0
      %v2618 = vadd.f32 %v2616, %v2617
      %v2619 = vsel %vm2563, %v2543, 0.0
      %v2620 = vadd.f32 %v2618, %v2619
      %v2621 = vsel %vm2563, %v2544, 0.0
      %v2622 = vadd.f32 %v2620, %v2621
      %v2623 = vsel %vm2563, %v2545, 0.0
      %v2624 = vadd.f32 %v2622, %v2623
      %v2625 = vsel %vm2563, %v2546, 0.0
      %v2626 = vadd.f32 %v2624, %v2625
      %v2627 = vsel %vm2563, %v2547, 0.0
      %v2628 = vadd.f32 %v2626, %v2627
      %v2629 = vsel %vm2563, %v2548, 0.0
      %v2630 = vadd.f32 %v2628, %v2629
      %v2631 = vsel %vm2563, %v2549, 0.0
      %v2632 = vadd.f32 %v2630, %v2631
      %v2633 = vsel %vm2563, %v2550, 0.0
      %v2634 = vadd.f32 %v2632, %v2633
      %v2635 = vsel %vm2563, %v2551, 0.0
      %v2636 = vadd.f32 %v2634, %v2635
      %v2637 = vsel %vm2563, %v2552, 0.0
      %v2638 = vadd.f32 %v2636, %v2637
      %v2639 = vsel %vm2563, %v2553, 0.0
      %v2640 = vadd.f32 %v2638, %v2639
      %v2641 = vsel %vm2563, %v2554, 0.0
      %v2642 = vadd.f32 %v2640, %v2641
      %v2643 = vsel %vm2563, %v2555, 0.0
      %v2644 = vadd.f32 %v2642, %v2643
      %v2645 = vsel %vm2563, %v2556, 0.0
      %v2646 = vadd.f32 %v2644, %v2645
      %v2647 = vsel %vm2563, %v2557, 0.0
      %v2648 = vadd.f32 %v2646, %v2647
      %v2649 = vsel %vm2563, %v2558, 0.0
      %v2650 = vadd.f32 %v2648, %v2649
      %v2651 = vsel %vm2563, %v2559, 0.0
      %v2652 = vadd.f32 %v2650, %v2651
      %v2653 = vsel %vm2563, %v2560, 0.0
      %v2654 = vadd.f32 %v2652, %v2653
      %v2655 = vsel %vm2563, %v2561, 0.0
      %v2656 = vadd.f32 %v2654, %v2655
      %v2657 = vsel %vm2563, %v2562, 0.0
      %v2658 = vadd.f32 %v2656, %v2657
      %v2659 = vrot.slane %v2658, 4
      %v2660 = vadd.f32 %v2658, %v2659
      %v2661 = vrot.slane %v2660, 2
      %v2662 = vadd.f32 %v2660, %v2661
      %v2663 = vrot.slane %v2662, 1
      %v2664 = vadd.f32 %v2662, %v2663
      %v2665 = vmul.f32 %v2531, %v2531
      %v2666 = vmul.f32 %v2532, %v2532
      %v2667 = vmul.f32 %v2533, %v2533
      %v2668 = vmul.f32 %v2534, %v2534
      %v2669 = vmul.f32 %v2535, %v2535
      %v2670 = vmul.f32 %v2536, %v2536
      %v2671 = vmul.f32 %v2537, %v2537
      %v2672 = vmul.f32 %v2538, %v2538
      %v2673 = vmul.f32 %v2539, %v2539
      %v2674 = vmul.f32 %v2540, %v2540
      %v2675 = vmul.f32 %v2541, %v2541
      %v2676 = vmul.f32 %v2542, %v2542
      %v2677 = vmul.f32 %v2543, %v2543
      %v2678 = vmul.f32 %v2544, %v2544
      %v2679 = vmul.f32 %v2545, %v2545
      %v2680 = vmul.f32 %v2546, %v2546
      %v2681 = vmul.f32 %v2547, %v2547
      %v2682 = vmul.f32 %v2548, %v2548
      %v2683 = vmul.f32 %v2549, %v2549
      %v2684 = vmul.f32 %v2550, %v2550
      %v2685 = vmul.f32 %v2551, %v2551
      %v2686 = vmul.f32 %v2552, %v2552
      %v2687 = vmul.f32 %v2553, %v2553
      %v2688 = vmul.f32 %v2554, %v2554
      %v2689 = vmul.f32 %v2555, %v2555
      %v2690 = vmul.f32 %v2556, %v2556
      %v2691 = vmul.f32 %v2557, %v2557
      %v2692 = vmul.f32 %v2558, %v2558
      %v2693 = vmul.f32 %v2559, %v2559
      %v2694 = vmul.f32 %v2560, %v2560
      %v2695 = vmul.f32 %v2561, %v2561
      %v2696 = vmul.f32 %v2562, %v2562
      %v2697 = vsel %vm2563, %v2665, 0.0
      %v2698 = vsel %vm2563, %v2666, 0.0
      %v2699 = vadd.f32 %v2697, %v2698
      %v2700 = vsel %vm2563, %v2667, 0.0
      %v2701 = vadd.f32 %v2699, %v2700
      %v2702 = vsel %vm2563, %v2668, 0.0
      %v2703 = vadd.f32 %v2701, %v2702
      %v2704 = vsel %vm2563, %v2669, 0.0
      %v2705 = vadd.f32 %v2703, %v2704
      %v2706 = vsel %vm2563, %v2670, 0.0
      %v2707 = vadd.f32 %v2705, %v2706
      %v2708 = vsel %vm2563, %v2671, 0.0
      %v2709 = vadd.f32 %v2707, %v2708
      %v2710 = vsel %vm2563, %v2672, 0.0
      %v2711 = vadd.f32 %v2709, %v2710
      %v2712 = vsel %vm2563, %v2673, 0.0
      %v2713 = vadd.f32 %v2711, %v2712
      %v2714 = vsel %vm2563, %v2674, 0.0
      %v2715 = vadd.f32 %v2713, %v2714
      %v2716 = vsel %vm2563, %v2675, 0.0
      %v2717 = vadd.f32 %v2715, %v2716
      %v2718 = vsel %vm2563, %v2676, 0.0
      %v2719 = vadd.f32 %v2717, %v2718
      %v2720 = vsel %vm2563, %v2677, 0.0
      %v2721 = vadd.f32 %v2719, %v2720
      %v2722 = vsel %vm2563, %v2678, 0.0
      %v2723 = vadd.f32 %v2721, %v2722
      %v2724 = vsel %vm2563, %v2679, 0.0
      %v2725 = vadd.f32 %v2723, %v2724
      %v2726 = vsel %vm2563, %v2680, 0.0
      %v2727 = vadd.f32 %v2725, %v2726
      %v2728 = vsel %vm2563, %v2681, 0.0
      %v2729 = vadd.f32 %v2727, %v2728
      %v2730 = vsel %vm2563, %v2682, 0.0
      %v2731 = vadd.f32 %v2729, %v2730
      %v2732 = vsel %vm2563, %v2683, 0.0
      %v2733 = vadd.f32 %v2731, %v2732
      %v2734 = vsel %vm2563, %v2684, 0.0
      %v2735 = vadd.f32 %v2733, %v2734
      %v2736 = vsel %vm2563, %v2685, 0.0
      %v2737 = vadd.f32 %v2735, %v2736
      %v2738 = vsel %vm2563, %v2686, 0.0
      %v2739 = vadd.f32 %v2737, %v2738
      %v2740 = vsel %vm2563, %v2687, 0.0
      %v2741 = vadd.f32 %v2739, %v2740
      %v2742 = vsel %vm2563, %v2688, 0.0
      %v2743 = vadd.f32 %v2741, %v2742
      %v2744 = vsel %vm2563, %v2689, 0.0
      %v2745 = vadd.f32 %v2743, %v2744
      %v2746 = vsel %vm2563, %v2690, 0.0
      %v2747 = vadd.f32 %v2745, %v2746
      %v2748 = vsel %vm2563, %v2691, 0.0
      %v2749 = vadd.f32 %v2747, %v2748
      %v2750 = vsel %vm2563, %v2692, 0.0
      %v2751 = vadd.f32 %v2749, %v2750
      %v2752 = vsel %vm2563, %v2693, 0.0
      %v2753 = vadd.f32 %v2751, %v2752
      %v2754 = vsel %vm2563, %v2694, 0.0
      %v2755 = vadd.f32 %v2753, %v2754
      %v2756 = vsel %vm2563, %v2695, 0.0
      %v2757 = vadd.f32 %v2755, %v2756
      %v2758 = vsel %vm2563, %v2696, 0.0
      %v2759 = vadd.f32 %v2757, %v2758
      %v2760 = vrot.slane %v2759, 4
      %v2761 = vadd.f32 %v2759, %v2760
      %v2762 = vrot.slane %v2761, 2
      %v2763 = vadd.f32 %v2761, %v2762
      %v2764 = vrot.slane %v2763, 1
      %v2765 = vadd.f32 %v2763, %v2764
      %vm2766 = vcmask 1040384
      %v2767 = vsel %vm2766, %v2664, %v2765
      %vm2768 = vcmask 386048
      %2769 = vst.msk [vmem:[%s235] sm:$0x3] %vm2768, %v2767
      %p2770 = scmp.lt.s32.totalorder %s17, 1
      %s2771 = scalar_select %p2770, %s17, 1
      %s2772 = smul.addr %s2771, 32
      %s2773 = smul.addr %s2772, 8
      %s2774 = scalar_lea.vmem %s4, %s2773
      %p2775 = scmp.lt.s32.totalorder %s17, 1
      %s2776 = scalar_select %p2775, %s17, 1
      %s2777 = smul.addr %s2776, 2
      %s2778 = scalar_lea.vmem %s5, %s2777
      // Predicated region
      $region37: #{_inception_a_forward.6} parent=35 // pred_check
        %p2779 = pneg %p124
      $region38: #{_inception_a_forward.6} parent=35 // pred_check_branch
        %2781 = sbr.rel (%p2779) target = $region40
      $region39: #{_inception_a_forward.6} parent=35 // pred_region
        _
      $region40: #{_inception_a_forward.6} parent=35 // pred_fallthru
        _
      // Predicated region
      $region41: #{_inception_a_forward.6} parent=35 // pred_check
        %p2782 = pneg %p150
      $region42: #{_inception_a_forward.6} parent=35 // pred_check_branch
        %2784 = sbr.rel (%p2782) target = $region44
      $region43: #{_inception_a_forward.6} parent=35 // pred_region
        _
      $region44: #{_inception_a_forward.6} parent=35 // pred_fallthru
        _
    $region36: #{_inception_a_forward.6} parent=5 // pred_fallthru
      _
    %p2785 = scmp.le.s32.totalorder 2, %s12
    // Predicated region
    $region45: #{_inception_a_forward.6} parent=5 // pred_check
      %p2786 = pneg %p2785
    $region46: #{_inception_a_forward.6} parent=5 // pred_check_branch
      %2788 = sbr.rel (%p2786) target = $region48
    $region47: #{_inception_a_forward.6} parent=5 // pred_region
      %s2789 = ssub.s32 %s12, 2
      // Predicated region
      $region49: #{_inception_a_forward.6} parent=47 // pred_check
        %p2790 = pneg %p130
      $region50: #{_inception_a_forward.6} parent=47 // pred_check_branch
        %2792 = sbr.rel (%p2790) target = $region52
      $region51: #{_inception_a_forward.6} parent=47 // pred_region
        %p2793 = scmp.lt.s32.totalorder %s18, 1
        %s2794 = scalar_select %p2793, %s18, 1
        %s2795 = smul.addr %s2794, 32
        %s2796 = smul.addr %s2795, 8
        %s2797 = scalar_lea.vmem %s4, %s2796
      $region52: #{_inception_a_forward.6} parent=47 // pred_fallthru
        _
      // Predicated region
      $region53: #{_inception_a_forward.6} parent=47 // pred_check
        %p2798 = pneg %p156
      $region54: #{_inception_a_forward.6} parent=47 // pred_check_branch
        %2800 = sbr.rel (%p2798) target = $region56
      $region55: #{_inception_a_forward.6} parent=47 // pred_region
        %p2801 = scmp.lt.s32.totalorder %s18, 1
        %s2802 = scalar_select %p2801, %s18, 1
        %s2803 = smul.addr %s2802, 2
        %s2804 = scalar_lea.vmem %s5, %s2803
      $region56: #{_inception_a_forward.6} parent=47 // pred_fallthru
        _
    $region48: #{_inception_a_forward.6} parent=5 // pred_fallthru
      _
  $region6: #{_inception_a_forward.6} parent=0 // loop_footer
    %s16 = sadd.s32 1, %s12
  $region7: #{_inception_a_forward.6} parent=0 // loop_footer_branch
    %11 = sbr.rel target = $region3
  $region8: #{_inception_a_forward.6} parent=0 // loop_exit
    _

// kernel: _inception_a_forward.7
$region0: #{_inception_a_forward.7}
  #allocation0 [shape = 'u32[]', space=smem, size = 0x4, offset = 0x4, fixed_abs, tag = 'smem constant byte address 0x4 - core index']
  #allocation1 [shape = 'u32[144,128]{1,0:T(1,128)}', space=vmem, size = 0x12000, scoped, tag = 'internal scratch']
  #allocation2 [shape = 'f32[18,32,48]{2,1,0:T(8,128)}', space=vmem, size = 0x48000, scoped, tag = 'scratch operand']
  %s0 = inlined_call_operand.vmem [shape: f32[2,16,16,48], index: 0, kind: input, shape index: {}]
  %s1 = inlined_call_operand.vmem [shape: f32[1,48], index: 1, kind: input, shape index: {}]
  %s2 = inlined_call_operand.vmem [shape: f32[1,48], index: 2, kind: input, shape index: {}]
  %s3 = inlined_call_operand.vmem [shape: bf16[3,144,64], index: 3, kind: input, shape index: {}]
  %s4 = inlined_call_operand.vmem [shape: f32[2,256,64], index: 4, kind: output, shape index: {}]
  %s5 = sld [smem:[#allocation0]]
  $region49: #{_inception_a_forward.7} parent=0
    _
  %s7 = ssub.s32 1, %s5
  %s8 = scalar_select 0, %s7, %s5
  loop: start=0, step=1, limit=4
  $region2: #{_inception_a_forward.7} parent=0 // loop_pre_header
    _
  $region3: #{_inception_a_forward.7} parent=0 // loop_header
    %s10 = sphi 0, %s14
    %p11 = scmp.ge.s32.totalorder %s10, 4
    %s20 = sphi 0, %s22
    %s23 = sphi 0, %s20
    %s24 = sphi 0, %s23
    %s40 = sphi 0, %s24
    %s44 = sphi 0, %s44
    %s46 = sphi 0, %s44
    %s47 = sphi 0, %s46
    %s61 = sphi 0, %s47
    %s65 = sphi 0, %s65
    %s67 = sphi 0, %s65
    %s68 = sphi 0, %s67
    %s82 = sphi 0, %s68
    %s86 = sphi 0, %s86
    %s88 = sphi 0, %s86
    %s89 = sphi 0, %s88
    %s103 = sphi 0, %s89
    %s109 = sphi 0, %s111
    %s112 = sphi 0, %s109
    %s113 = sphi 0, %s112
    %s129 = sphi 0, %s113
  $region4: #{_inception_a_forward.7} parent=0 // loop_header_branch
    %13 = sbr.rel (%p11) target = $region8
  $region5: #{_inception_a_forward.7} parent=0 // loop_body
    %s15 = ssub.s32 %s10, 1
    %s16 = ssub.s32 %s10, 2
    %s17 = sadd.s32 %s10, 1
    %s18 = ssub.s32 %s10, %s17
    %p19 = scmp.eq.s32.totalorder %s18, 0
    %s21 = sadd.s32 %s20, 1
    %s22 = scalar_select %p19, %s20, %s21
    %p25 = pneg %p19
    %p26 = scmp.eq.s32.totalorder %s10, 1
    %p27 = por %p25, %p26
    %p28 = scmp.ne.s32.totalorder %s20, %s23
    %p29 = scmp.eq.s32.totalorder %s10, 0
    %p30 = por %p28, %p29
    %p31 = scmp.ne.s32.totalorder %s20, %s23
    %p32 = scmp.eq.s32.totalorder %s15, 1
    %p33 = por %p31, %p32
    %p34 = scmp.ne.s32.totalorder %s23, %s24
    %p35 = scmp.eq.s32.totalorder %s15, 0
    %p36 = por %p34, %p35
    %p37 = scmp.ne.s32.totalorder %s23, %s24
    %p38 = scmp.eq.s32.totalorder %s16, 1
    %p39 = por %p37, %p38
    %p41 = scmp.ne.s32.totalorder %s24, %s40
    %p42 = scmp.eq.s32.totalorder %s16, 0
    %p43 = por %p41, %p42
    %s45 = sadd.s32 %s44, 1
    %p48 = scmp.eq.s32.totalorder %s10, 1
    %p49 = scmp.ne.s32.totalorder %s44, %s46
    %p50 = scmp.eq.s32.totalorder %s10, 0
    %p51 = por %p49, %p50
    %p52 = scmp.ne.s32.totalorder %s44, %s46
    %p53 = scmp.eq.s32.totalorder %s15, 1
    %p54 = por %p52, %p53
    %p55 = scmp.ne.s32.totalorder %s46, %s47
    %p56 = scmp.eq.s32.totalorder %s15, 0
    %p57 = por %p55, %p56
    %p58 = scmp.ne.s32.totalorder %s46, %s47
    %p59 = scmp.eq.s32.totalorder %s16, 1
    %p60 = por %p58, %p59
    %p62 = scmp.ne.s32.totalorder %s47, %s61
    %p63 = scmp.eq.s32.totalorder %s16, 0
    %p64 = por %p62, %p63
    %s66 = sadd.s32 %s65, 1
    %p69 = scmp.eq.s32.totalorder %s10, 1
    %p70 = scmp.ne.s32.totalorder %s65, %s67
    %p71 = scmp.eq.s32.totalorder %s10, 0
    %p72 = por %p70, %p71
    %p73 = scmp.ne.s32.totalorder %s65, %s67
    %p74 = scmp.eq.s32.totalorder %s15, 1
    %p75 = por %p73, %p74
    %p76 = scmp.ne.s32.totalorder %s67, %s68
    %p77 = scmp.eq.s32.totalorder %s15, 0
    %p78 = por %p76, %p77
    %p79 = scmp.ne.s32.totalorder %s67, %s68
    %p80 = scmp.eq.s32.totalorder %s16, 1
    %p81 = por %p79, %p80
    %p83 = scmp.ne.s32.totalorder %s68, %s82
    %p84 = scmp.eq.s32.totalorder %s16, 0
    %p85 = por %p83, %p84
    %s87 = sadd.s32 %s86, 1
    %p90 = scmp.eq.s32.totalorder %s10, 1
    %p91 = scmp.ne.s32.totalorder %s86, %s88
    %p92 = scmp.eq.s32.totalorder %s10, 0
    %p93 = por %p91, %p92
    %p94 = scmp.ne.s32.totalorder %s86, %s88
    %p95 = scmp.eq.s32.totalorder %s15, 1
    %p96 = por %p94, %p95
    %p97 = scmp.ne.s32.totalorder %s88, %s89
    %p98 = scmp.eq.s32.totalorder %s15, 0
    %p99 = por %p97, %p98
    %p100 = scmp.ne.s32.totalorder %s88, %s89
    %p101 = scmp.eq.s32.totalorder %s16, 1
    %p102 = por %p100, %p101
    %p104 = scmp.ne.s32.totalorder %s89, %s103
    %p105 = scmp.eq.s32.totalorder %s16, 0
    %p106 = por %p104, %p105
    %s107 = ssub.s32 %s10, %s17
    %p108 = scmp.eq.s32.totalorder %s107, 0
    %s110 = sadd.s32 %s109, 1
    %s111 = scalar_select %p108, %s109, %s110
    %p114 = pneg %p108
    %p115 = scmp.eq.s32.totalorder %s10, 1
    %p116 = por %p114, %p115
    %p117 = scmp.ne.s32.totalorder %s109, %s112
    %p118 = scmp.eq.s32.totalorder %s10, 0
    %p119 = por %p117, %p118
    %p120 = scmp.ne.s32.totalorder %s109, %s112
    %p121 = scmp.eq.s32.totalorder %s15, 1
    %p122 = por %p120, %p121
    %p123 = scmp.ne.s32.totalorder %s112, %s113
    %p124 = scmp.eq.s32.totalorder %s15, 0
    %p125 = por %p123, %p124
    %p126 = scmp.ne.s32.totalorder %s112, %s113
    %p127 = scmp.eq.s32.totalorder %s16, 1
    %p128 = por %p126, %p127
    %p130 = scmp.ne.s32.totalorder %s113, %s129
    %p131 = scmp.eq.s32.totalorder %s16, 0
    %p132 = por %p130, %p131
    %p133 = scmp.le.s32.totalorder 1, %s10
    %p134 = scmp.lt.s32.totalorder %s10, 3
    %p135 = pnand %p133, %p134
    %p136 = pneg %p135
    // Predicated region
    $region9: #{_inception_a_forward.7} parent=5 // pred_check
      _
    $region10: #{_inception_a_forward.7} parent=5 // pred_check_branch
      %138 = sbr.rel (%p135) target = $region12
    $region11: #{_inception_a_forward.7} parent=5 // pred_region
      %s139 = ssub.s32 %s10, 1
      // Predicated region
      $region13: #{_inception_a_forward.7} parent=11 // pred_check
        %p140 = pneg %p57
      $region14: #{_inception_a_forward.7} parent=11 // pred_check_branch
        %142 = sbr.rel (%p140) target = $region16
      $region15: #{_inception_a_forward.7} parent=11 // pred_region
        _
      $region16: #{_inception_a_forward.7} parent=11 // pred_fallthru
        _
      // Predicated region
      $region17: #{_inception_a_forward.7} parent=11 // pred_check
        %p143 = pneg %p78
      $region18: #{_inception_a_forward.7} parent=11 // pred_check_branch
        %145 = sbr.rel (%p143) target = $region20
      $region19: #{_inception_a_forward.7} parent=11 // pred_region
        _
      $region20: #{_inception_a_forward.7} parent=11 // pred_fallthru
        _
      // Predicated region
      $region21: #{_inception_a_forward.7} parent=11 // pred_check
        %p146 = pneg %p99
      $region22: #{_inception_a_forward.7} parent=11 // pred_check_branch
        %148 = sbr.rel (%p146) target = $region24
      $region23: #{_inception_a_forward.7} parent=11 // pred_region
        _
      $region24: #{_inception_a_forward.7} parent=11 // pred_fallthru
        _
    $region12: #{_inception_a_forward.7} parent=5 // pred_fallthru
      _
    %p149 = scmp.lt.s32.totalorder %s10, 2
    // Predicated region
    $region25: #{_inception_a_forward.7} parent=5 // pred_check
      %p150 = pneg %p149
    $region26: #{_inception_a_forward.7} parent=5 // pred_check_branch
      %152 = sbr.rel (%p150) target = $region28
    $region27: #{_inception_a_forward.7} parent=5 // pred_region
      // Predicated region
      $region29: #{_inception_a_forward.7} parent=27 // pred_check
        %p153 = pneg %p30
      $region30: #{_inception_a_forward.7} parent=27 // pred_check_branch
        %155 = sbr.rel (%p153) target = $region32
      $region31: #{_inception_a_forward.7} parent=27 // pred_region
        %p156 = scmp.lt.s32.totalorder %s10, 1
        %s157 = scalar_select %p156, %s10, 1
        %s158 = smul.addr %s157, 32
        %s159 = smul.addr %s158, 8
        %s160 = scalar_lea.vmem %s0, %s159
      $region32: #{_inception_a_forward.7} parent=27 // pred_fallthru
        _
    $region28: #{_inception_a_forward.7} parent=5 // pred_fallthru
      _
    %p161 = scmp.le.s32.totalorder 1, %s10
    %p162 = scmp.lt.s32.totalorder %s10, 3
    %p163 = pnand %p161, %p162
    %p164 = pneg %p163
    // Predicated region
    $region33: #{_inception_a_forward.7} parent=5 // pred_check
      _
    $region34: #{_inception_a_forward.7} parent=5 // pred_check_branch
      %166 = sbr.rel (%p163) target = $region36
    $region35: #{_inception_a_forward.7} parent=5 // pred_region
      %s167 = ssub.s32 %s10, 1
      %p168 = scmp.lt.s32.totalorder %s15, 1
      %s169 = scalar_select %p168, %s15, 1
      %s170 = smul.addr %s169, 32
      %s171 = smul.addr %s170, 8
      %s172 = scalar_lea.vmem %s0, %s171
      %p173 = pneg %p36
      %p174 = pneg %p33
      %p175 = pneg %p57
      %p176 = pneg %p54
      %p177 = pneg %p78
      %p178 = pneg %p75
      %p179 = pneg %p99
      %p180 = pneg %p96
      %p181 = pneg %p125
      %p182 = pneg %p122
      %p183 = scmp.lt.s32.totalorder %s15, 1
      %s184 = scalar_select %p183, %s15, 1
      %s185 = smul.addr %s184, 32
      %s186 = smul.addr %s185, 8
      %s187 = scalar_lea.vmem %s4, %s186
      %p188 = scmp.lt.s32.totalorder %s15, 1
      %s189 = scalar_select %p188, %s15, 1
      %s190 = smul.addr %s189, 32
      %s191 = smul.addr %s190, 8
      %s192 = scalar_lea.vmem %s0, %s191
      %p193 = scmp.lt.s32.totalorder %s15, 1
      %s194 = scalar_select %p193, %s15, 1
      %s195 = smul.addr %s194, 32
      %s196 = smul.addr %s195, 8
      %s197 = scalar_lea.vmem %s4, %s196
      %vm199 = vcmask 392192
      %200 = vst.msk [vmem:[#allocation2] sm:$0xff] %vm199, 0.0
      %201 = vst.msk [vmem:[#allocation2 + $0x8] sm:$0xff] %vm199, 0.0
      %202 = vst.msk [vmem:[#allocation2 + $0x10] sm:$0xff] %vm199, 0.0
      %203 = vst.msk [vmem:[#allocation2 + $0x18] sm:$0xff] %vm199, 0.0
      %s204 = scalar_lea.vmem [#allocation2], 544
      %205 = vst.msk [vmem:[%s204] sm:$0xff] %vm199, 0.0
      %206 = vst.msk [vmem:[%s204 + $0x8] sm:$0xff] %vm199, 0.0
      %207 = vst.msk [vmem:[%s204 + $0x10] sm:$0xff] %vm199, 0.0
      %208 = vst.msk [vmem:[%s204 + $0x18] sm:$0xff] %vm199, 0.0
      %vm209 = vcmask 385024
      %210 = vst.msk [vmem:[#allocation2 + $0x7] sm:$0x1] %vm209, 0.0
      %211 = vst.msk [vmem:[#allocation2 + $0x27] sm:$0x1] %vm209, 0.0
      %212 = vst.msk [vmem:[#allocation2 + $0x47] sm:$0x1] %vm209, 0.0
      %213 = vst.msk [vmem:[#allocation2 + $0x67] sm:$0x1] %vm209, 0.0
      %214 = vst.msk [vmem:[#allocation2 + $0x87] sm:$0x1] %vm209, 0.0
      %215 = vst.msk [vmem:[#allocation2 + $0xa7] sm:$0x1] %vm209, 0.0
      %216 = vst.msk [vmem:[#allocation2 + $0xc7] sm:$0x1] %vm209, 0.0
      %217 = vst.msk [vmem:[#allocation2 + $0xe7] sm:$0x1] %vm209, 0.0
      %218 = vst.msk [vmem:[#allocation2 + $0x107] sm:$0x1] %vm209, 0.0
      %219 = vst.msk [vmem:[#allocation2 + $0x127] sm:$0x1] %vm209, 0.0
      %220 = vst.msk [vmem:[#allocation2 + $0x147] sm:$0x1] %vm209, 0.0
      %221 = vst.msk [vmem:[#allocation2 + $0x167] sm:$0x1] %vm209, 0.0
      %222 = vst.msk [vmem:[#allocation2 + $0x187] sm:$0x1] %vm209, 0.0
      %223 = vst.msk [vmem:[#allocation2 + $0x1a7] sm:$0x1] %vm209, 0.0
      %224 = vst.msk [vmem:[#allocation2 + $0x1c7] sm:$0x1] %vm209, 0.0
      %225 = vst.msk [vmem:[#allocation2 + $0x1e7] sm:$0x1] %vm209, 0.0
      %226 = vst.msk [vmem:[#allocation2 + $0x207] sm:$0x1] %vm209, 0.0
      %227 = vst.msk [vmem:[#allocation2 + $0x227] sm:$0x1] %vm209, 0.0
      %228 = vst.msk [vmem:[#allocation2 + $0x18] sm:$0x1] %vm209, 0.0
      %229 = vst.msk [vmem:[#allocation2 + $0x38] sm:$0x1] %vm209, 0.0
      %230 = vst.msk [vmem:[#allocation2 + $0x58] sm:$0x1] %vm209, 0.0
      %231 = vst.msk [vmem:[#allocation2 + $0x78] sm:$0x1] %vm209, 0.0
      %232 = vst.msk [vmem:[#allocation2 + $0x98] sm:$0x1] %vm209, 0.0
      %233 = vst.msk [vmem:[#allocation2 + $0xb8] sm:$0x1] %vm209, 0.0
      %234 = vst.msk [vmem:[#allocation2 + $0xd8] sm:$0x1] %vm209, 0.0
      %235 = vst.msk [vmem:[#allocation2 + $0xf8] sm:$0x1] %vm209, 0.0
      %236 = vst.msk [vmem:[#allocation2 + $0x118] sm:$0x1] %vm209, 0.0
      %237 = vst.msk [vmem:[#allocation2 + $0x138] sm:$0x1] %vm209, 0.0
      %238 = vst.msk [vmem:[#allocation2 + $0x158] sm:$0x1] %vm209, 0.0
      %239 = vst.msk [vmem:[#allocation2 + $0x178] sm:$0x1] %vm209, 0.0
      %240 = vst.msk [vmem:[#allocation2 + $0x198] sm:$0x1] %vm209, 0.0
      %241 = vst.msk [vmem:[#allocation2 + $0x1b8] sm:$0x1] %vm209, 0.0
      %242 = vst.msk [vmem:[#allocation2 + $0x1d8] sm:$0x1] %vm209, 0.0
      %243 = vst.msk [vmem:[#allocation2 + $0x1f8] sm:$0x1] %vm209, 0.0
      %244 = vst.msk [vmem:[#allocation2 + $0x218] sm:$0x1] %vm209, 0.0
      %245 = vst.msk [vmem:[#allocation2 + $0x238] sm:$0x1] %vm209, 0.0
      %v246 = vld [vmem:[%s192] sm:$0xff]
      %v247 = vld [vmem:[%s192 + $0x8] sm:$0xff]
      %v248 = vld [vmem:[%s192 + $0x10] sm:$0xff]
      %v249 = vld [vmem:[%s192 + $0x18] sm:$0xff]
      %v250 = vld [vmem:[%s192 + $0x20] sm:$0xff]
      %v251 = vld [vmem:[%s192 + $0x28] sm:$0xff]
      %v252 = vld [vmem:[%s192 + $0x30] sm:$0xff]
      %v253 = vld [vmem:[%s192 + $0x38] sm:$0xff]
      %v254 = vld [vmem:[%s192 + $0x40] sm:$0xff]
      %v255 = vld [vmem:[%s192 + $0x48] sm:$0xff]
      %v256 = vld [vmem:[%s192 + $0x50] sm:$0xff]
      %v257 = vld [vmem:[%s192 + $0x58] sm:$0xff]
      %v258 = vld [vmem:[%s192 + $0x60] sm:$0xff]
      %v259 = vld [vmem:[%s192 + $0x68] sm:$0xff]
      %v260 = vld [vmem:[%s192 + $0x70] sm:$0xff]
      %v261 = vld [vmem:[%s192 + $0x78] sm:$0xff]
      %v262 = vld [vmem:[%s192 + $0x80] sm:$0xff]
      %v263 = vld [vmem:[%s192 + $0x88] sm:$0xff]
      %v264 = vld [vmem:[%s192 + $0x90] sm:$0xff]
      %v265 = vld [vmem:[%s192 + $0x98] sm:$0xff]
      %v266 = vld [vmem:[%s192 + $0xa0] sm:$0xff]
      %v267 = vld [vmem:[%s192 + $0xa8] sm:$0xff]
      %v268 = vld [vmem:[%s192 + $0xb0] sm:$0xff]
      %v269 = vld [vmem:[%s192 + $0xb8] sm:$0xff]
      %v270 = vld [vmem:[%s192 + $0xc0] sm:$0xff]
      %v271 = vld [vmem:[%s192 + $0xc8] sm:$0xff]
      %v272 = vld [vmem:[%s192 + $0xd0] sm:$0xff]
      %v273 = vld [vmem:[%s192 + $0xd8] sm:$0xff]
      %v274 = vld [vmem:[%s192 + $0xe0] sm:$0xff]
      %v275 = vld [vmem:[%s192 + $0xe8] sm:$0xff]
      %v276 = vld [vmem:[%s192 + $0xf0] sm:$0xff]
      %v277 = vld [vmem:[%s192 + $0xf8] sm:$0xff]
      %v278 = vld [vmem:[%s1] sm:$0x1]
      %v279 = vld [vmem:[%s2] sm:$0x1]
      %v281 = vlaneseq
      %v282 = vshrl.u32 %v281, 7
      %v283 = vsub.s32 0, %v282
      %v284 = vrot.slane %v278, %v283
      %v286 = vmul.f32 %v246, %v284
      %v287 = vmul.f32 %v247, %v284
      %v288 = vmul.f32 %v248, %v284
      %v289 = vmul.f32 %v249, %v284
      %v290 = vmul.f32 %v250, %v284
      %v291 = vmul.f32 %v251, %v284
      %v292 = vmul.f32 %v252, %v284
      %v293 = vmul.f32 %v253, %v284
      %v294 = vmul.f32 %v254, %v284
      %v295 = vmul.f32 %v255, %v284
      %v296 = vmul.f32 %v256, %v284
      %v297 = vmul.f32 %v257, %v284
      %v298 = vmul.f32 %v258, %v284
      %v299 = vmul.f32 %v259, %v284
      %v300 = vmul.f32 %v260, %v284
      %v301 = vmul.f32 %v261, %v284
      %v302 = vmul.f32 %v262, %v284
      %v303 = vmul.f32 %v263, %v284
      %v304 = vmul.f32 %v264, %v284
      %v305 = vmul.f32 %v265, %v284
      %v306 = vmul.f32 %v266, %v284
      %v307 = vmul.f32 %v267, %v284
      %v308 = vmul.f32 %v268, %v284
      %v309 = vmul.f32 %v269, %v284
      %v310 = vmul.f32 %v270, %v284
      %v311 = vmul.f32 %v271, %v284
      %v312 = vmul.f32 %v272, %v284
      %v313 = vmul.f32 %v273, %v284
      %v314 = vmul.f32 %v274, %v284
      %v315 = vmul.f32 %v275, %v284
      %v316 = vmul.f32 %v276, %v284
      %v317 = vmul.f32 %v277, %v284
      %v319 = vlaneseq
      %v320 = vshrl.u32 %v319, 7
      %v321 = vsub.s32 0, %v320
      %v322 = vrot.slane %v279, %v321
      %v324 = vadd.f32 %v286, %v322
      %v325 = vadd.f32 %v287, %v322
      %v326 = vadd.f32 %v288, %v322
      %v327 = vadd.f32 %v289, %v322
      %v328 = vadd.f32 %v290, %v322
      %v329 = vadd.f32 %v291, %v322
      %v330 = vadd.f32 %v292, %v322
      %v331 = vadd.f32 %v293, %v322
      %v332 = vadd.f32 %v294, %v322
      %v333 = vadd.f32 %v295, %v322
      %v334 = vadd.f32 %v296, %v322
      %v335 = vadd.f32 %v297, %v322
      %v336 = vadd.f32 %v298, %v322
      %v337 = vadd.f32 %v299, %v322
      %v338 = vadd.f32 %v300, %v322
      %v339 = vadd.f32 %v301, %v322
      %v340 = vadd.f32 %v302, %v322
      %v341 = vadd.f32 %v303, %v322
      %v342 = vadd.f32 %v304, %v322
      %v343 = vadd.f32 %v305, %v322
      %v344 = vadd.f32 %v306, %v322
      %v345 = vadd.f32 %v307, %v322
      %v346 = vadd.f32 %v308, %v322
      %v347 = vadd.f32 %v309, %v322
      %v348 = vadd.f32 %v310, %v322
      %v349 = vadd.f32 %v311, %v322
      %v350 = vadd.f32 %v312, %v322
      %v351 = vadd.f32 %v313, %v322
      %v352 = vadd.f32 %v314, %v322
      %v353 = vadd.f32 %v315, %v322
      %v354 = vadd.f32 %v316, %v322
      %v355 = vadd.f32 %v317, %v322
      %v356 = vmax.f32 %v324, 0.0
      %v357 = vmax.f32 %v325, 0.0
      %v358 = vmax.f32 %v326, 0.0
      %v359 = vmax.f32 %v327, 0.0
      %v360 = vmax.f32 %v328, 0.0
      %v361 = vmax.f32 %v329, 0.0
      %v362 = vmax.f32 %v330, 0.0
      %v363 = vmax.f32 %v331, 0.0
      %v364 = vmax.f32 %v332, 0.0
      %v365 = vmax.f32 %v333, 0.0
      %v366 = vmax.f32 %v334, 0.0
      %v367 = vmax.f32 %v335, 0.0
      %v368 = vmax.f32 %v336, 0.0
      %v369 = vmax.f32 %v337, 0.0
      %v370 = vmax.f32 %v338, 0.0
      %v371 = vmax.f32 %v339, 0.0
      %v372 = vmax.f32 %v340, 0.0
      %v373 = vmax.f32 %v341, 0.0
      %v374 = vmax.f32 %v342, 0.0
      %v375 = vmax.f32 %v343, 0.0
      %v376 = vmax.f32 %v344, 0.0
      %v377 = vmax.f32 %v345, 0.0
      %v378 = vmax.f32 %v346, 0.0
      %v379 = vmax.f32 %v347, 0.0
      %v380 = vmax.f32 %v348, 0.0
      %v381 = vmax.f32 %v349, 0.0
      %v382 = vmax.f32 %v350, 0.0
      %v383 = vmax.f32 %v351, 0.0
      %v384 = vmax.f32 %v352, 0.0
      %v385 = vmax.f32 %v353, 0.0
      %v386 = vmax.f32 %v354, 0.0
      %v387 = vmax.f32 %v355, 0.0
      %s388 = scalar_lea.vmem [#allocation2], 32
      %389 = vst.msk [vmem:[%s388 + $0x8] sm:$0xff] %vm199, %v356
      %390 = vst.msk [vmem:[%s388 + $0x10] sm:$0xff] %vm199, %v357
      %391 = vst.msk [vmem:[%s388 + $0x28] sm:$0xff] %vm199, %v358
      %392 = vst.msk [vmem:[%s388 + $0x30] sm:$0xff] %vm199, %v359
      %393 = vst.msk [vmem:[%s388 + $0x48] sm:$0xff] %vm199, %v360
      %394 = vst.msk [vmem:[%s388 + $0x50] sm:$0xff] %vm199, %v361
      %395 = vst.msk [vmem:[%s388 + $0x68] sm:$0xff] %vm199, %v362
      %396 = vst.msk [vmem:[%s388 + $0x70] sm:$0xff] %vm199, %v363
      %397 = vst.msk [vmem:[%s388 + $0x88] sm:$0xff] %vm199, %v364
      %398 = vst.msk [vmem:[%s388 + $0x90] sm:$0xff] %vm199, %v365
      %399 = vst.msk [vmem:[%s388 + $0xa8] sm:$0xff] %vm199, %v366
      %400 = vst.msk [vmem:[%s388 + $0xb0] sm:$0xff] %vm199, %v367
      %401 = vst.msk [vmem:[%s388 + $0xc8] sm:$0xff] %vm199, %v368
      %402 = vst.msk [vmem:[%s388 + $0xd0] sm:$0xff] %vm199, %v369
      %403 = vst.msk [vmem:[%s388 + $0xe8] sm:$0xff] %vm199, %v370
      %404 = vst.msk [vmem:[%s388 + $0xf0] sm:$0xff] %vm199, %v371
      %405 = vst.msk [vmem:[%s388 + $0x108] sm:$0xff] %vm199, %v372
      %406 = vst.msk [vmem:[%s388 + $0x110] sm:$0xff] %vm199, %v373
      %407 = vst.msk [vmem:[%s388 + $0x128] sm:$0xff] %vm199, %v374
      %408 = vst.msk [vmem:[%s388 + $0x130] sm:$0xff] %vm199, %v375
      %409 = vst.msk [vmem:[%s388 + $0x148] sm:$0xff] %vm199, %v376
      %410 = vst.msk [vmem:[%s388 + $0x150] sm:$0xff] %vm199, %v377
      %411 = vst.msk [vmem:[%s388 + $0x168] sm:$0xff] %vm199, %v378
      %412 = vst.msk [vmem:[%s388 + $0x170] sm:$0xff] %vm199, %v379
      %413 = vst.msk [vmem:[%s388 + $0x188] sm:$0xff] %vm199, %v380
      %414 = vst.msk [vmem:[%s388 + $0x190] sm:$0xff] %vm199, %v381
      %415 = vst.msk [vmem:[%s388 + $0x1a8] sm:$0xff] %vm199, %v382
      %416 = vst.msk [vmem:[%s388 + $0x1b0] sm:$0xff] %vm199, %v383
      %417 = vst.msk [vmem:[%s388 + $0x1c8] sm:$0xff] %vm199, %v384
      %418 = vst.msk [vmem:[%s388 + $0x1d0] sm:$0xff] %vm199, %v385
      %419 = vst.msk [vmem:[%s388 + $0x1e8] sm:$0xff] %vm199, %v386
      %420 = vst.msk [vmem:[%s388 + $0x1f0] sm:$0xff] %vm199, %v387
      %v421 = vld [vmem:[#allocation2 + $0x7] sm:$0xff]
      %v422 = vld [vmem:[#allocation2 + $0xf] sm:$0xff]
      %v423 = vld [vmem:[#allocation2 + $0x27] sm:$0xff]
      %v424 = vld [vmem:[#allocation2 + $0x2f] sm:$0xff]
      %v425 = vld [vmem:[#allocation2 + $0x47] sm:$0xff]
      %v426 = vld [vmem:[#allocation2 + $0x4f] sm:$0xff]
      %v427 = vld [vmem:[#allocation2 + $0x67] sm:$0xff]
      %v428 = vld [vmem:[#allocation2 + $0x6f] sm:$0xff]
      %v429 = vld [vmem:[#allocation2 + $0x87] sm:$0xff]
      %v430 = vld [vmem:[#allocation2 + $0x8f] sm:$0xff]
      %v431 = vld [vmem:[#allocation2 + $0xa7] sm:$0xff]
      %v432 = vld [vmem:[#allocation2 + $0xaf] sm:$0xff]
      %v433 = vld [vmem:[#allocation2 + $0xc7] sm:$0xff]
      %v434 = vld [vmem:[#allocation2 + $0xcf] sm:$0xff]
      %v435 = vld [vmem:[#allocation2 + $0xe7] sm:$0xff]
      %v436 = vld [vmem:[#allocation2 + $0xef] sm:$0xff]
      %v437 = vld [vmem:[#allocation2 + $0x107] sm:$0xff]
      %v438 = vld [vmem:[#allocation2 + $0x10f] sm:$0xff]
      %v439 = vld [vmem:[#allocation2 + $0x127] sm:$0xff]
      %v440 = vld [vmem:[#allocation2 + $0x12f] sm:$0xff]
      %v441 = vld [vmem:[#allocation2 + $0x147] sm:$0xff]
      %v442 = vld [vmem:[#allocation2 + $0x14f] sm:$0xff]
      %v443 = vld [vmem:[#allocation2 + $0x167] sm:$0xff]
      %v444 = vld [vmem:[#allocation2 + $0x16f] sm:$0xff]
      %v445 = vld [vmem:[#allocation2 + $0x187] sm:$0xff]
      %v446 = vld [vmem:[#allocation2 + $0x18f] sm:$0xff]
      %v447 = vld [vmem:[#allocation2 + $0x1a7] sm:$0xff]
      %v448 = vld [vmem:[#allocation2 + $0x1af] sm:$0xff]
      %v449 = vld [vmem:[#allocation2 + $0x1c7] sm:$0xff]
      %v450 = vld [vmem:[#allocation2 + $0x1cf] sm:$0xff]
      %v451 = vld [vmem:[#allocation2 + $0x1e7] sm:$0xff]
      %v452 = vld [vmem:[#allocation2 + $0x1ef] sm:$0xff]
      %v453 = vld [vmem:[#allocation2 + $0x8] sm:$0xff]
      %v454 = vld [vmem:[#allocation2 + $0x10] sm:$0xff]
      %v455 = vld [vmem:[#allocation2 + $0x28] sm:$0xff]
      %v456 = vld [vmem:[#allocation2 + $0x30] sm:$0xff]
      %v457 = vld [vmem:[#allocation2 + $0x48] sm:$0xff]
      %v458 = vld [vmem:[#allocation2 + $0x50] sm:$0xff]
      %v459 = vld [vmem:[#allocation2 + $0x68] sm:$0xff]
      %v460 = vld [vmem:[#allocation2 + $0x70] sm:$0xff]
      %v461 = vld [vmem:[#allocation2 + $0x88] sm:$0xff]
      %v462 = vld [vmem:[#allocation2 + $0x90] sm:$0xff]
      %v463 = vld [vmem:[#allocation2 + $0xa8] sm:$0xff]
      %v464 = vld [vmem:[#allocation2 + $0xb0] sm:$0xff]
      %v465 = vld [vmem:[#allocation2 + $0xc8] sm:$0xff]
      %v466 = vld [vmem:[#allocation2 + $0xd0] sm:$0xff]
      %v467 = vld [vmem:[#allocation2 + $0xe8] sm:$0xff]
      %v468 = vld [vmem:[#allocation2 + $0xf0] sm:$0xff]
      %v469 = vld [vmem:[#allocation2 + $0x108] sm:$0xff]
      %v470 = vld [vmem:[#allocation2 + $0x110] sm:$0xff]
      %v471 = vld [vmem:[#allocation2 + $0x128] sm:$0xff]
      %v472 = vld [vmem:[#allocation2 + $0x130] sm:$0xff]
      %v473 = vld [vmem:[#allocation2 + $0x148] sm:$0xff]
      %v474 = vld [vmem:[#allocation2 + $0x150] sm:$0xff]
      %v475 = vld [vmem:[#allocation2 + $0x168] sm:$0xff]
      %v476 = vld [vmem:[#allocation2 + $0x170] sm:$0xff]
      %v477 = vld [vmem:[#allocation2 + $0x188] sm:$0xff]
      %v478 = vld [vmem:[#allocation2 + $0x190] sm:$0xff]
      %v479 = vld [vmem:[#allocation2 + $0x1a8] sm:$0xff]
      %v480 = vld [vmem:[#allocation2 + $0x1b0] sm:$0xff]
      %v481 = vld [vmem:[#allocation2 + $0x1c8] sm:$0xff]
      %v482 = vld [vmem:[#allocation2 + $0x1d0] sm:$0xff]
      %v483 = vld [vmem:[#allocation2 + $0x1e8] sm:$0xff]
      %v484 = vld [vmem:[#allocation2 + $0x1f0] sm:$0xff]
      %v485 = vld [vmem:[#allocation2 + $0x9] sm:$0xff]
      %v486 = vld [vmem:[#allocation2 + $0x11] sm:$0xff]
      %v487 = vld [vmem:[#allocation2 + $0x29] sm:$0xff]
      %v488 = vld [vmem:[#allocation2 + $0x31] sm:$0xff]
      %v489 = vld [vmem:[#allocation2 + $0x49] sm:$0xff]
      %v490 = vld [vmem:[#allocation2 + $0x51] sm:$0xff]
      %v491 = vld [vmem:[#allocation2 + $0x69] sm:$0xff]
      %v492 = vld [vmem:[#allocation2 + $0x71] sm:$0xff]
      %v493 = vld [vmem:[#allocation2 + $0x89] sm:$0xff]
      %v494 = vld [vmem:[#allocation2 + $0x91] sm:$0xff]
      %v495 = vld [vmem:[#allocation2 + $0xa9] sm:$0xff]
      %v496 = vld [vmem:[#allocation2 + $0xb1] sm:$0xff]
      %v497 = vld [vmem:[#allocation2 + $0xc9] sm:$0xff]
      %v498 = vld [vmem:[#allocation2 + $0xd1] sm:$0xff]
      %v499 = vld [vmem:[#allocation2 + $0xe9] sm:$0xff]
      %v500 = vld [vmem:[#allocation2 + $0xf1] sm:$0xff]
      %v501 = vld [vmem:[#allocation2 + $0x109] sm:$0xff]
      %v502 = vld [vmem:[#allocation2 + $0x111] sm:$0xff]
      %v503 = vld [vmem:[#allocation2 + $0x129] sm:$0xff]
      %v504 = vld [vmem:[#allocation2 + $0x131] sm:$0xff]
      %v505 = vld [vmem:[#allocation2 + $0x149] sm:$0xff]
      %v506 = vld [vmem:[#allocation2 + $0x151] sm:$0xff]
      %v507 = vld [vmem:[#allocation2 + $0x169] sm:$0xff]
      %v508 = vld [vmem:[#allocation2 + $0x171] sm:$0xff]
      %v509 = vld [vmem:[#allocation2 + $0x189] sm:$0xff]
      %v510 = vld [vmem:[#allocation2 + $0x191] sm:$0xff]
      %v511 = vld [vmem:[#allocation2 + $0x1a9] sm:$0xff]
      %v512 = vld [vmem:[#allocation2 + $0x1b1] sm:$0xff]
      %v513 = vld [vmem:[#allocation2 + $0x1c9] sm:$0xff]
      %v514 = vld [vmem:[#allocation2 + $0x1d1] sm:$0xff]
      %v515 = vld [vmem:[#allocation2 + $0x1e9] sm:$0xff]
      %v516 = vld [vmem:[#allocation2 + $0x1f1] sm:$0xff]
      %549 = vrot.lane.b32.xlu0 %v453, 48
      %v550 = vpop.permute.xlu0 %549
      %551 = vrot.lane.b32.xlu0 %v454, 48
      %v552 = vpop.permute.xlu0 %551
      %553 = vrot.lane.b32.xlu0 %v455, 48
      %v554 = vpop.permute.xlu0 %553
      %555 = vrot.lane.b32.xlu0 %v456, 48
      %v556 = vpop.permute.xlu0 %555
      %557 = vrot.lane.b32.xlu0 %v457, 48
      %v558 = vpop.permute.xlu0 %557
      %559 = vrot.lane.b32.xlu0 %v458, 48
      %v560 = vpop.permute.xlu0 %559
      %561 = vrot.lane.b32.xlu0 %v459, 48
      %v562 = vpop.permute.xlu0 %561
      %563 = vrot.lane.b32.xlu0 %v460, 48
      %v564 = vpop.permute.xlu0 %563
      %565 = vrot.lane.b32.xlu0 %v461, 48
      %v566 = vpop.permute.xlu0 %565
      %567 = vrot.lane.b32.xlu0 %v462, 48
      %v568 = vpop.permute.xlu0 %567
      %569 = vrot.lane.b32.xlu0 %v463, 48
      %v570 = vpop.permute.xlu0 %569
      %571 = vrot.lane.b32.xlu0 %v464, 48
      %v572 = vpop.permute.xlu0 %571
      %573 = vrot.lane.b32.xlu0 %v465, 48
      %v574 = vpop.permute.xlu0 %573
      %575 = vrot.lane.b32.xlu0 %v466, 48
      %v576 = vpop.permute.xlu0 %575
      %577 = vrot.lane.b32.xlu0 %v467, 48
      %v578 = vpop.permute.xlu0 %577
      %579 = vrot.lane.b32.xlu0 %v468, 48
      %v580 = vpop.permute.xlu0 %579
      %581 = vrot.lane.b32.xlu0 %v469, 48
      %v582 = vpop.permute.xlu0 %581
      %583 = vrot.lane.b32.xlu0 %v470, 48
      %v584 = vpop.permute.xlu0 %583
      %585 = vrot.lane.b32.xlu0 %v471, 48
      %v586 = vpop.permute.xlu0 %585
      %587 = vrot.lane.b32.xlu0 %v472, 48
      %v588 = vpop.permute.xlu0 %587
      %589 = vrot.lane.b32.xlu0 %v473, 48
      %v590 = vpop.permute.xlu0 %589
      %591 = vrot.lane.b32.xlu0 %v474, 48
      %v592 = vpop.permute.xlu0 %591
      %593 = vrot.lane.b32.xlu0 %v475, 48
      %v594 = vpop.permute.xlu0 %593
      %595 = vrot.lane.b32.xlu0 %v476, 48
      %v596 = vpop.permute.xlu0 %595
      %597 = vrot.lane.b32.xlu0 %v477, 48
      %v598 = vpop.permute.xlu0 %597
      %599 = vrot.lane.b32.xlu0 %v478, 48
      %v600 = vpop.permute.xlu0 %599
      %601 = vrot.lane.b32.xlu0 %v479, 48
      %v602 = vpop.permute.xlu0 %601
      %603 = vrot.lane.b32.xlu0 %v480, 48
      %v604 = vpop.permute.xlu0 %603
      %605 = vrot.lane.b32.xlu0 %v481, 48
      %v606 = vpop.permute.xlu0 %605
      %607 = vrot.lane.b32.xlu0 %v482, 48
      %v608 = vpop.permute.xlu0 %607
      %609 = vrot.lane.b32.xlu0 %v483, 48
      %v610 = vpop.permute.xlu0 %609
      %611 = vrot.lane.b32.xlu0 %v484, 48
      %v612 = vpop.permute.xlu0 %611
      %677 = vrot.lane.b32.xlu0 %v485, 96
      %v678 = vpop.permute.xlu0 %677
      %679 = vrot.lane.b32.xlu0 %v486, 96
      %v680 = vpop.permute.xlu0 %679
      %681 = vrot.lane.b32.xlu0 %v487, 96
      %v682 = vpop.permute.xlu0 %681
      %683 = vrot.lane.b32.xlu0 %v488, 96
      %v684 = vpop.permute.xlu0 %683
      %685 = vrot.lane.b32.xlu0 %v489, 96
      %v686 = vpop.permute.xlu0 %685
      %687 = vrot.lane.b32.xlu0 %v490, 96
      %v688 = vpop.permute.xlu0 %687
      %689 = vrot.lane.b32.xlu0 %v491, 96
      %v690 = vpop.permute.xlu0 %689
      %691 = vrot.lane.b32.xlu0 %v492, 96
      %v692 = vpop.permute.xlu0 %691
      %693 = vrot.lane.b32.xlu0 %v493, 96
      %v694 = vpop.permute.xlu0 %693
      %695 = vrot.lane.b32.xlu0 %v494, 96
      %v696 = vpop.permute.xlu0 %695
      %697 = vrot.lane.b32.xlu0 %v495, 96
      %v698 = vpop.permute.xlu0 %697
      %699 = vrot.lane.b32.xlu0 %v496, 96
      %v700 = vpop.permute.xlu0 %699
      %701 = vrot.lane.b32.xlu0 %v497, 96
      %v702 = vpop.permute.xlu0 %701
      %703 = vrot.lane.b32.xlu0 %v498, 96
      %v704 = vpop.permute.xlu0 %703
      %705 = vrot.lane.b32.xlu0 %v499, 96
      %v706 = vpop.permute.xlu0 %705
      %707 = vrot.lane.b32.xlu0 %v500, 96
      %v708 = vpop.permute.xlu0 %707
      %709 = vrot.lane.b32.xlu0 %v501, 96
      %v710 = vpop.permute.xlu0 %709
      %711 = vrot.lane.b32.xlu0 %v502, 96
      %v712 = vpop.permute.xlu0 %711
      %713 = vrot.lane.b32.xlu0 %v503, 96
      %v714 = vpop.permute.xlu0 %713
      %715 = vrot.lane.b32.xlu0 %v504, 96
      %v716 = vpop.permute.xlu0 %715
      %717 = vrot.lane.b32.xlu0 %v505, 96
      %v718 = vpop.permute.xlu0 %717
      %719 = vrot.lane.b32.xlu0 %v506, 96
      %v720 = vpop.permute.xlu0 %719
      %721 = vrot.lane.b32.xlu0 %v507, 96
      %v722 = vpop.permute.xlu0 %721
      %723 = vrot.lane.b32.xlu0 %v508, 96
      %v724 = vpop.permute.xlu0 %723
      %725 = vrot.lane.b32.xlu0 %v509, 96
      %v726 = vpop.permute.xlu0 %725
      %727 = vrot.lane.b32.xlu0 %v510, 96
      %v728 = vpop.permute.xlu0 %727
      %729 = vrot.lane.b32.xlu0 %v511, 96
      %v730 = vpop.permute.xlu0 %729
      %731 = vrot.lane.b32.xlu0 %v512, 96
      %v732 = vpop.permute.xlu0 %731
      %733 = vrot.lane.b32.xlu0 %v513, 96
      %v734 = vpop.permute.xlu0 %733
      %735 = vrot.lane.b32.xlu0 %v514, 96
      %v736 = vpop.permute.xlu0 %735
      %737 = vrot.lane.b32.xlu0 %v515, 96
      %v738 = vpop.permute.xlu0 %737
      %739 = vrot.lane.b32.xlu0 %v516, 96
      %v740 = vpop.permute.xlu0 %739
      %v773 = vsel %vm199, %v421, %v550
      %v774 = vsel %vm199, %v422, %v552
      %v775 = vsel %vm199, %v423, %v554
      %v776 = vsel %vm199, %v424, %v556
      %v777 = vsel %vm199, %v425, %v558
      %v778 = vsel %vm199, %v426, %v560
      %v779 = vsel %vm199, %v427, %v562
      %v780 = vsel %vm199, %v428, %v564
      %v781 = vsel %vm199, %v429, %v566
      %v782 = vsel %vm199, %v430, %v568
      %v783 = vsel %vm199, %v431, %v570
      %v784 = vsel %vm199, %v432, %v572
      %v785 = vsel %vm199, %v433, %v574
      %v786 = vsel %vm199, %v434, %v576
      %v787 = vsel %vm199, %v435, %v578
      %v788 = vsel %vm199, %v436, %v580
      %v789 = vsel %vm199, %v437, %v582
      %v790 = vsel %vm199, %v438, %v584
      %v791 = vsel %vm199, %v439, %v586
      %v792 = vsel %vm199, %v440, %v588
      %v793 = vsel %vm199, %v441, %v590
      %v794 = vsel %vm199, %v442, %v592
      %v795 = vsel %vm199, %v443, %v594
      %v796 = vsel %vm199, %v444, %v596
      %v797 = vsel %vm199, %v445, %v598
      %v798 = vsel %vm199, %v446, %v600
      %v799 = vsel %vm199, %v447, %v602
      %v800 = vsel %vm199, %v448, %v604
      %v801 = vsel %vm199, %v449, %v606
      %v802 = vsel %vm199, %v450, %v608
      %v803 = vsel %vm199, %v451, %v610
      %v804 = vsel %vm199, %v452, %v612
      %vm805 = vcmask 785408
      %v806 = vsel %vm805, %v773, %v678
      %v807 = vsel %vm805, %v774, %v680
      %v808 = vsel %vm805, %v775, %v682
      %v809 = vsel %vm805, %v776, %v684
      %v810 = vsel %vm805, %v777, %v686
      %v811 = vsel %vm805, %v778, %v688
      %v812 = vsel %vm805, %v779, %v690
      %v813 = vsel %vm805, %v780, %v692
      %v814 = vsel %vm805, %v781, %v694
      %v815 = vsel %vm805, %v782, %v696
      %v816 = vsel %vm805, %v783, %v698
      %v817 = vsel %vm805, %v784, %v700
      %v818 = vsel %vm805, %v785, %v702
      %v819 = vsel %vm805, %v786, %v704
      %v820 = vsel %vm805, %v787, %v706
      %v821 = vsel %vm805, %v788, %v708
      %v822 = vsel %vm805, %v789, %v710
      %v823 = vsel %vm805, %v790, %v712
      %v824 = vsel %vm805, %v791, %v714
      %v825 = vsel %vm805, %v792, %v716
      %v826 = vsel %vm805, %v793, %v718
      %v827 = vsel %vm805, %v794, %v720
      %v828 = vsel %vm805, %v795, %v722
      %v829 = vsel %vm805, %v796, %v724
      %v830 = vsel %vm805, %v797, %v726
      %v831 = vsel %vm805, %v798, %v728
      %v832 = vsel %vm805, %v799, %v730
      %v833 = vsel %vm805, %v800, %v732
      %v834 = vsel %vm805, %v801, %v734
      %v835 = vsel %vm805, %v802, %v736
      %v836 = vsel %vm805, %v803, %v738
      %v837 = vsel %vm805, %v804, %v740
      %v838 = vpack.c.bf16 %v807, %v806
      %v839 = vpack.c.bf16 %v680, %v678
      %v840 = vpack.c.bf16 %v809, %v808
      %v841 = vpack.c.bf16 %v684, %v682
      %v842 = vpack.c.bf16 %v811, %v810
      %v843 = vpack.c.bf16 %v688, %v686
      %v844 = vpack.c.bf16 %v813, %v812
      %v845 = vpack.c.bf16 %v692, %v690
      %v846 = vpack.c.bf16 %v815, %v814
      %v847 = vpack.c.bf16 %v696, %v694
      %v848 = vpack.c.bf16 %v817, %v816
      %v849 = vpack.c.bf16 %v700, %v698
      %v850 = vpack.c.bf16 %v819, %v818
      %v851 = vpack.c.bf16 %v704, %v702
      %v852 = vpack.c.bf16 %v821, %v820
      %v853 = vpack.c.bf16 %v708, %v706
      %v854 = vpack.c.bf16 %v823, %v822
      %v855 = vpack.c.bf16 %v712, %v710
      %v856 = vpack.c.bf16 %v825, %v824
      %v857 = vpack.c.bf16 %v716, %v714
      %v858 = vpack.c.bf16 %v827, %v826
      %v859 = vpack.c.bf16 %v720, %v718
      %v860 = vpack.c.bf16 %v829, %v828
      %v861 = vpack.c.bf16 %v724, %v722
      %v862 = vpack.c.bf16 %v831, %v830
      %v863 = vpack.c.bf16 %v728, %v726
      %v864 = vpack.c.bf16 %v833, %v832
      %v865 = vpack.c.bf16 %v732, %v730
      %v866 = vpack.c.bf16 %v835, %v834
      %v867 = vpack.c.bf16 %v736, %v734
      %v868 = vpack.c.bf16 %v837, %v836
      %v869 = vpack.c.bf16 %v740, %v738
      %v870 = vld [vmem:[%s3] sm:$0xf]
      %v871 = vld [vmem:[%s3 + $0x4] sm:$0xf]
      %v872 = vld [vmem:[%s3 + $0x8] sm:$0xf]
      %v873 = vld [vmem:[%s3 + $0xc] sm:$0xf]
      %v874 = vld [vmem:[%s3 + $0x10] sm:$0xf]
      %v875 = vld [vmem:[%s3 + $0x14] sm:$0xf]
      %v876 = vld [vmem:[%s3 + $0x18] sm:$0xf]
      %v877 = vld [vmem:[%s3 + $0x1c] sm:$0xf]
      %v878 = vld [vmem:[%s3 + $0x20] sm:$0xf]
      %v879 = vld [vmem:[%s3 + $0x24] sm:$0xf]
      %v880 = vld [vmem:[%s3 + $0x28] sm:$0xf]
      %v881 = vld [vmem:[%s3 + $0x2c] sm:$0xf]
      %v882 = vld [vmem:[%s3 + $0x30] sm:$0xf]
      %v883 = vld [vmem:[%s3 + $0x34] sm:$0xf]
      %v884 = vld [vmem:[%s3 + $0x38] sm:$0xf]
      %v885 = vld [vmem:[%s3 + $0x3c] sm:$0xf]
      %v886 = vld [vmem:[%s3 + $0x40] sm:$0xf]
      %v887 = vld [vmem:[%s3 + $0x44] sm:$0xf]
      %v888 = vld [vmem:[%s388 + $0x7] sm:$0xff]
      %v889 = vld [vmem:[%s388 + $0xf] sm:$0xff]
      %v890 = vld [vmem:[%s388 + $0x27] sm:$0xff]
      %v891 = vld [vmem:[%s388 + $0x2f] sm:$0xff]
      %v892 = vld [vmem:[%s388 + $0x47] sm:$0xff]
      %v893 = vld [vmem:[%s388 + $0x4f] sm:$0xff]
      %v894 = vld [vmem:[%s388 + $0x67] sm:$0xff]
      %v895 = vld [vmem:[%s388 + $0x6f] sm:$0xff]
      %v896 = vld [vmem:[%s388 + $0x87] sm:$0xff]
      %v897 = vld [vmem:[%s388 + $0x8f] sm:$0xff]
      %v898 = vld [vmem:[%s388 + $0xa7] sm:$0xff]
      %v899 = vld [vmem:[%s388 + $0xaf] sm:$0xff]
      %v900 = vld [vmem:[%s388 + $0xc7] sm:$0xff]
      %v901 = vld [vmem:[%s388 + $0xcf] sm:$0xff]
      %v902 = vld [vmem:[%s388 + $0xe7] sm:$0xff]
      %v903 = vld [vmem:[%s388 + $0xef] sm:$0xff]
      %v904 = vld [vmem:[%s388 + $0x107] sm:$0xff]
      %v905 = vld [vmem:[%s388 + $0x10f] sm:$0xff]
      %v906 = vld [vmem:[%s388 + $0x127] sm:$0xff]
      %v907 = vld [vmem:[%s388 + $0x12f] sm:$0xff]
      %v908 = vld [vmem:[%s388 + $0x147] sm:$0xff]
      %v909 = vld [vmem:[%s388 + $0x14f] sm:$0xff]
      %v910 = vld [vmem:[%s388 + $0x167] sm:$0xff]
      %v911 = vld [vmem:[%s388 + $0x16f] sm:$0xff]
      %v912 = vld [vmem:[%s388 + $0x187] sm:$0xff]
      %v913 = vld [vmem:[%s388 + $0x18f] sm:$0xff]
      %v914 = vld [vmem:[%s388 + $0x1a7] sm:$0xff]
      %v915 = vld [vmem:[%s388 + $0x1af] sm:$0xff]
      %v916 = vld [vmem:[%s388 + $0x1c7] sm:$0xff]
      %v917 = vld [vmem:[%s388 + $0x1cf] sm:$0xff]
      %v918 = vld [vmem:[%s388 + $0x1e7] sm:$0xff]
      %v919 = vld [vmem:[%s388 + $0x1ef] sm:$0xff]
      %v920 = vld [vmem:[%s388 + $0x8] sm:$0xff]
      %v921 = vld [vmem:[%s388 + $0x10] sm:$0xff]
      %v922 = vld [vmem:[%s388 + $0x28] sm:$0xff]
      %v923 = vld [vmem:[%s388 + $0x30] sm:$0xff]
      %v924 = vld [vmem:[%s388 + $0x48] sm:$0xff]
      %v925 = vld [vmem:[%s388 + $0x50] sm:$0xff]
      %v926 = vld [vmem:[%s388 + $0x68] sm:$0xff]
      %v927 = vld [vmem:[%s388 + $0x70] sm:$0xff]
      %v928 = vld [vmem:[%s388 + $0x88] sm:$0xff]
      %v929 = vld [vmem:[%s388 + $0x90] sm:$0xff]
      %v930 = vld [vmem:[%s388 + $0xa8] sm:$0xff]
      %v931 = vld [vmem:[%s388 + $0xb0] sm:$0xff]
      %v932 = vld [vmem:[%s388 + $0xc8] sm:$0xff]
      %v933 = vld [vmem:[%s388 + $0xd0] sm:$0xff]
      %v934 = vld [vmem:[%s388 + $0xe8] sm:$0xff]
      %v935 = vld [vmem:[%s388 + $0xf0] sm:$0xff]
      %v936 = vld [vmem:[%s388 + $0x108] sm:$0xff]
      %v937 = vld [vmem:[%s388 + $0x110] sm:$0xff]
      %v938 = vld [vmem:[%s388 + $0x128] sm:$0xff]
      %v939 = vld [vmem:[%s388 + $0x130] sm:$0xff]
      %v940 = vld [vmem:[%s388 + $0x148] sm:$0xff]
      %v941 = vld [vmem:[%s388 + $0x150] sm:$0xff]
      %v942 = vld [vmem:[%s388 + $0x168] sm:$0xff]
      %v943 = vld [vmem:[%s388 + $0x170] sm:$0xff]
      %v944 = vld [vmem:[%s388 + $0x188] sm:$0xff]
      %v945 = vld [vmem:[%s388 + $0x190] sm:$0xff]
      %v946 = vld [vmem:[%s388 + $0x1a8] sm:$0xff]
      %v947 = vld [vmem:[%s388 + $0x1b0] sm:$0xff]
      %v948 = vld [vmem:[%s388 + $0x1c8] sm:$0xff]
      %v949 = vld [vmem:[%s388 + $0x1d0] sm:$0xff]
      %v950 = vld [vmem:[%s388 + $0x1e8] sm:$0xff]
      %v951 = vld [vmem:[%s388 + $0x1f0] sm:$0xff]
      %v952 = vld [vmem:[%s388 + $0x9] sm:$0xff]
      %v953 = vld [vmem:[%s388 + $0x11] sm:$0xff]
      %v954 = vld [vmem:[%s388 + $0x29] sm:$0xff]
      %v955 = vld [vmem:[%s388 + $0x31] sm:$0xff]
      %v956 = vld [vmem:[%s388 + $0x49] sm:$0xff]
      %v957 = vld [vmem:[%s388 + $0x51] sm:$0xff]
      %v958 = vld [vmem:[%s388 + $0x69] sm:$0xff]
      %v959 = vld [vmem:[%s388 + $0x71] sm:$0xff]
      %v960 = vld [vmem:[%s388 + $0x89] sm:$0xff]
      %v961 = vld [vmem:[%s388 + $0x91] sm:$0xff]
      %v962 = vld [vmem:[%s388 + $0xa9] sm:$0xff]
      %v963 = vld [vmem:[%s388 + $0xb1] sm:$0xff]
      %v964 = vld [vmem:[%s388 + $0xc9] sm:$0xff]
      %v965 = vld [vmem:[%s388 + $0xd1] sm:$0xff]
      %v966 = vld [vmem:[%s388 + $0xe9] sm:$0xff]
      %v967 = vld [vmem:[%s388 + $0xf1] sm:$0xff]
      %v968 = vld [vmem:[%s388 + $0x109] sm:$0xff]
      %v969 = vld [vmem:[%s388 + $0x111] sm:$0xff]
      %v970 = vld [vmem:[%s388 + $0x129] sm:$0xff]
      %v971 = vld [vmem:[%s388 + $0x131] sm:$0xff]
      %v972 = vld [vmem:[%s388 + $0x149] sm:$0xff]
      %v973 = vld [vmem:[%s388 + $0x151] sm:$0xff]
      %v974 = vld [vmem:[%s388 + $0x169] sm:$0xff]
      %v975 = vld [vmem:[%s388 + $0x171] sm:$0xff]
      %v976 = vld [vmem:[%s388 + $0x189] sm:$0xff]
      %v977 = vld [vmem:[%s388 + $0x191] sm:$0xff]
      %v978 = vld [vmem:[%s388 + $0x1a9] sm:$0xff]
      %v979 = vld [vmem:[%s388 + $0x1b1] sm:$0xff]
      %v980 = vld [vmem:[%s388 + $0x1c9] sm:$0xff]
      %v981 = vld [vmem:[%s388 + $0x1d1] sm:$0xff]
      %v982 = vld [vmem:[%s388 + $0x1e9] sm:$0xff]
      %v983 = vld [vmem:[%s388 + $0x1f1] sm:$0xff]
      %1016 = vrot.lane.b32.xlu0 %v920, 48
      %v1017 = vpop.permute.xlu0 %1016
      %1018 = vrot.lane.b32.xlu0 %v921, 48
      %v1019 = vpop.permute.xlu0 %1018
      %1020 = vrot.lane.b32.xlu0 %v922, 48
      %v1021 = vpop.permute.xlu0 %1020
      %1022 = vrot.lane.b32.xlu0 %v923, 48
      %v1023 = vpop.permute.xlu0 %1022
      %1024 = vrot.lane.b32.xlu0 %v924, 48
      %v1025 = vpop.permute.xlu0 %1024
      %1026 = vrot.lane.b32.xlu0 %v925, 48
      %v1027 = vpop.permute.xlu0 %1026
      %1028 = vrot.lane.b32.xlu0 %v926, 48
      %v1029 = vpop.permute.xlu0 %1028
      %1030 = vrot.lane.b32.xlu0 %v927, 48
      %v1031 = vpop.permute.xlu0 %1030
      %1032 = vrot.lane.b32.xlu0 %v928, 48
      %v1033 = vpop.permute.xlu0 %1032
      %1034 = vrot.lane.b32.xlu0 %v929, 48
      %v1035 = vpop.permute.xlu0 %1034
      %1036 = vrot.lane.b32.xlu0 %v930, 48
      %v1037 = vpop.permute.xlu0 %1036
      %1038 = vrot.lane.b32.xlu0 %v931, 48
      %v1039 = vpop.permute.xlu0 %1038
      %1040 = vrot.lane.b32.xlu0 %v932, 48
      %v1041 = vpop.permute.xlu0 %1040
      %1042 = vrot.lane.b32.xlu0 %v933, 48
      %v1043 = vpop.permute.xlu0 %1042
      %1044 = vrot.lane.b32.xlu0 %v934, 48
      %v1045 = vpop.permute.xlu0 %1044
      %1046 = vrot.lane.b32.xlu0 %v935, 48
      %v1047 = vpop.permute.xlu0 %1046
      %1048 = vrot.lane.b32.xlu0 %v936, 48
      %v1049 = vpop.permute.xlu0 %1048
      %1050 = vrot.lane.b32.xlu0 %v937, 48
      %v1051 = vpop.permute.xlu0 %1050
      %1052 = vrot.lane.b32.xlu0 %v938, 48
      %v1053 = vpop.permute.xlu0 %1052
      %1054 = vrot.lane.b32.xlu0 %v939, 48
      %v1055 = vpop.permute.xlu0 %1054
      %1056 = vrot.lane.b32.xlu0 %v940, 48
      %v1057 = vpop.permute.xlu0 %1056
      %1058 = vrot.lane.b32.xlu0 %v941, 48
      %v1059 = vpop.permute.xlu0 %1058
      %1060 = vrot.lane.b32.xlu0 %v942, 48
      %v1061 = vpop.permute.xlu0 %1060
      %1062 = vrot.lane.b32.xlu0 %v943, 48
      %v1063 = vpop.permute.xlu0 %1062
      %1064 = vrot.lane.b32.xlu0 %v944, 48
      %v1065 = vpop.permute.xlu0 %1064
      %1066 = vrot.lane.b32.xlu0 %v945, 48
      %v1067 = vpop.permute.xlu0 %1066
      %1068 = vrot.lane.b32.xlu0 %v946, 48
      %v1069 = vpop.permute.xlu0 %1068
      %1070 = vrot.lane.b32.xlu0 %v947, 48
      %v1071 = vpop.permute.xlu0 %1070
      %1072 = vrot.lane.b32.xlu0 %v948, 48
      %v1073 = vpop.permute.xlu0 %1072
      %1074 = vrot.lane.b32.xlu0 %v949, 48
      %v1075 = vpop.permute.xlu0 %1074
      %1076 = vrot.lane.b32.xlu0 %v950, 48
      %v1077 = vpop.permute.xlu0 %1076
      %1078 = vrot.lane.b32.xlu0 %v951, 48
      %v1079 = vpop.permute.xlu0 %1078
      %1144 = vrot.lane.b32.xlu0 %v952, 96
      %v1145 = vpop.permute.xlu0 %1144
      %1146 = vrot.lane.b32.xlu0 %v953, 96
      %v1147 = vpop.permute.xlu0 %1146
      %1148 = vrot.lane.b32.xlu0 %v954, 96
      %v1149 = vpop.permute.xlu0 %1148
      %1150 = vrot.lane.b32.xlu0 %v955, 96
      %v1151 = vpop.permute.xlu0 %1150
      %1152 = vrot.lane.b32.xlu0 %v956, 96
      %v1153 = vpop.permute.xlu0 %1152
      %1154 = vrot.lane.b32.xlu0 %v957, 96
      %v1155 = vpop.permute.xlu0 %1154
      %1156 = vrot.lane.b32.xlu0 %v958, 96
      %v1157 = vpop.permute.xlu0 %1156
      %1158 = vrot.lane.b32.xlu0 %v959, 96
      %v1159 = vpop.permute.xlu0 %1158
      %1160 = vrot.lane.b32.xlu0 %v960, 96
      %v1161 = vpop.permute.xlu0 %1160
      %1162 = vrot.lane.b32.xlu0 %v961, 96
      %v1163 = vpop.permute.xlu0 %1162
      %1164 = vrot.lane.b32.xlu0 %v962, 96
      %v1165 = vpop.permute.xlu0 %1164
      %1166 = vrot.lane.b32.xlu0 %v963, 96
      %v1167 = vpop.permute.xlu0 %1166
      %1168 = vrot.lane.b32.xlu0 %v964, 96
      %v1169 = vpop.permute.xlu0 %1168
      %1170 = vrot.lane.b32.xlu0 %v965, 96
      %v1171 = vpop.permute.xlu0 %1170
      %1172 = vrot.lane.b32.xlu0 %v966, 96
      %v1173 = vpop.permute.xlu0 %1172
      %1174 = vrot.lane.b32.xlu0 %v967, 96
      %v1175 = vpop.permute.xlu0 %1174
      %1176 = vrot.lane.b32.xlu0 %v968, 96
      %v1177 = vpop.permute.xlu0 %1176
      %1178 = vrot.lane.b32.xlu0 %v969, 96
      %v1179 = vpop.permute.xlu0 %1178
      %1180 = vrot.lane.b32.xlu0 %v970, 96
      %v1181 = vpop.permute.xlu0 %1180
      %1182 = vrot.lane.b32.xlu0 %v971, 96
      %v1183 = vpop.permute.xlu0 %1182
      %1184 = vrot.lane.b32.xlu0 %v972, 96
      %v1185 = vpop.permute.xlu0 %1184
      %1186 = vrot.lane.b32.xlu0 %v973, 96
      %v1187 = vpop.permute.xlu0 %1186
      %1188 = vrot.lane.b32.xlu0 %v974, 96
      %v1189 = vpop.permute.xlu0 %1188
      %1190 = vrot.lane.b32.xlu0 %v975, 96
      %v1191 = vpop.permute.xlu0 %1190
      %1192 = vrot.lane.b32.xlu0 %v976, 96
      %v1193 = vpop.permute.xlu0 %1192
      %1194 = vrot.lane.b32.xlu0 %v977, 96
      %v1195 = vpop.permute.xlu0 %1194
      %1196 = vrot.lane.b32.xlu0 %v978, 96
      %v1197 = vpop.permute.xlu0 %1196
      %1198 = vrot.lane.b32.xlu0 %v979, 96
      %v1199 = vpop.permute.xlu0 %1198
      %1200 = vrot.lane.b32.xlu0 %v980, 96
      %v1201 = vpop.permute.xlu0 %1200
      %1202 = vrot.lane.b32.xlu0 %v981, 96
      %v1203 = vpop.permute.xlu0 %1202
      %1204 = vrot.lane.b32.xlu0 %v982, 96
      %v1205 = vpop.permute.xlu0 %1204
      %1206 = vrot.lane.b32.xlu0 %v983, 96
      %v1207 = vpop.permute.xlu0 %1206
      %v1240 = vsel %vm199, %v888, %v1017
      %v1241 = vsel %vm199, %v889, %v1019
      %v1242 = vsel %vm199, %v890, %v1021
      %v1243 = vsel %vm199, %v891, %v1023
      %v1244 = vsel %vm199, %v892, %v1025
      %v1245 = vsel %vm199, %v893, %v1027
      %v1246 = vsel %vm199, %v894, %v1029
      %v1247 = vsel %vm199, %v895, %v1031
      %v1248 = vsel %vm199, %v896, %v1033
      %v1249 = vsel %vm199, %v897, %v1035
      %v1250 = vsel %vm199, %v898, %v1037
      %v1251 = vsel %vm199, %v899, %v1039
      %v1252 = vsel %vm199, %v900, %v1041
      %v1253 = vsel %vm199, %v901, %v1043
      %v1254 = vsel %vm199, %v902, %v1045
      %v1255 = vsel %vm199, %v903, %v1047
      %v1256 = vsel %vm199, %v904, %v1049
      %v1257 = vsel %vm199, %v905, %v1051
      %v1258 = vsel %vm199, %v906, %v1053
      %v1259 = vsel %vm199, %v907, %v1055
      %v1260 = vsel %vm199, %v908, %v1057
      %v1261 = vsel %vm199, %v909, %v1059
      %v1262 = vsel %vm199, %v910, %v1061
      %v1263 = vsel %vm199, %v911, %v1063
      %v1264 = vsel %vm199, %v912, %v1065
      %v1265 = vsel %vm199, %v913, %v1067
      %v1266 = vsel %vm199, %v914, %v1069
      %v1267 = vsel %vm199, %v915, %v1071
      %v1268 = vsel %vm199, %v916, %v1073
      %v1269 = vsel %vm199, %v917, %v1075
      %v1270 = vsel %vm199, %v918, %v1077
      %v1271 = vsel %vm199, %v919, %v1079
      %v1272 = vsel %vm805, %v1240, %v1145
      %v1273 = vsel %vm805, %v1241, %v1147
      %v1274 = vsel %vm805, %v1242, %v1149
      %v1275 = vsel %vm805, %v1243, %v1151
      %v1276 = vsel %vm805, %v1244, %v1153
      %v1277 = vsel %vm805, %v1245, %v1155
      %v1278 = vsel %vm805, %v1246, %v1157
      %v1279 = vsel %vm805, %v1247, %v1159
      %v1280 = vsel %vm805, %v1248, %v1161
      %v1281 = vsel %vm805, %v1249, %v1163
      %v1282 = vsel %vm805, %v1250, %v1165
      %v1283 = vsel %vm805, %v1251, %v1167
      %v1284 = vsel %vm805, %v1252, %v1169
      %v1285 = vsel %vm805, %v1253, %v1171
      %v1286 = vsel %vm805, %v1254, %v1173
      %v1287 = vsel %vm805, %v1255, %v1175
      %v1288 = vsel %vm805, %v1256, %v1177
      %v1289 = vsel %vm805, %v1257, %v1179
      %v1290 = vsel %vm805, %v1258, %v1181
      %v1291 = vsel %vm805, %v1259, %v1183
      %v1292 = vsel %vm805, %v1260, %v1185
      %v1293 = vsel %vm805, %v1261, %v1187
      %v1294 = vsel %vm805, %v1262, %v1189
      %v1295 = vsel %vm805, %v1263, %v1191
      %v1296 = vsel %vm805, %v1264, %v1193
      %v1297 = vsel %vm805, %v1265, %v1195
      %v1298 = vsel %vm805, %v1266, %v1197
      %v1299 = vsel %vm805, %v1267, %v1199
      %v1300 = vsel %vm805, %v1268, %v1201
      %v1301 = vsel %vm805, %v1269, %v1203
      %v1302 = vsel %vm805, %v1270, %v1205
      %v1303 = vsel %vm805, %v1271, %v1207
      %v1304 = vpack.c.bf16 %v1273, %v1272
      %v1305 = vpack.c.bf16 %v1147, %v1145
      %v1306 = vpack.c.bf16 %v1275, %v1274
      %v1307 = vpack.c.bf16 %v1151, %v1149
      %v1308 = vpack.c.bf16 %v1277, %v1276
      %v1309 = vpack.c.bf16 %v1155, %v1153
      %v1310 = vpack.c.bf16 %v1279, %v1278
      %v1311 = vpack.c.bf16 %v1159, %v1157
      %v1312 = vpack.c.bf16 %v1281, %v1280
      %v1313 = vpack.c.bf16 %v1163, %v1161
      %v1314 = vpack.c.bf16 %v1283, %v1282
      %v1315 = vpack.c.bf16 %v1167, %v1165
      %v1316 = vpack.c.bf16 %v1285, %v1284
      %v1317 = vpack.c.bf16 %v1171, %v1169
      %v1318 = vpack.c.bf16 %v1287, %v1286
      %v1319 = vpack.c.bf16 %v1175, %v1173
      %v1320 = vpack.c.bf16 %v1289, %v1288
      %v1321 = vpack.c.bf16 %v1179, %v1177
      %v1322 = vpack.c.bf16 %v1291, %v1290
      %v1323 = vpack.c.bf16 %v1183, %v1181
      %v1324 = vpack.c.bf16 %v1293, %v1292
      %v1325 = vpack.c.bf16 %v1187, %v1185
      %v1326 = vpack.c.bf16 %v1295, %v1294
      %v1327 = vpack.c.bf16 %v1191, %v1189
      %v1328 = vpack.c.bf16 %v1297, %v1296
      %v1329 = vpack.c.bf16 %v1195, %v1193
      %v1330 = vpack.c.bf16 %v1299, %v1298
      %v1331 = vpack.c.bf16 %v1199, %v1197
      %v1332 = vpack.c.bf16 %v1301, %v1300
      %v1333 = vpack.c.bf16 %v1203, %v1201
      %v1334 = vpack.c.bf16 %v1303, %v1302
      %v1335 = vpack.c.bf16 %v1207, %v1205
      %s1336 = scalar_lea.vmem %s3, 72
      %v1337 = vld [vmem:[%s1336] sm:$0xf]
      %v1338 = vld [vmem:[%s1336 + $0x4] sm:$0xf]
      %v1339 = vld [vmem:[%s1336 + $0x8] sm:$0xf]
      %v1340 = vld [vmem:[%s1336 + $0xc] sm:$0xf]
      %v1341 = vld [vmem:[%s1336 + $0x10] sm:$0xf]
      %v1342 = vld [vmem:[%s1336 + $0x14] sm:$0xf]
      %v1343 = vld [vmem:[%s1336 + $0x18] sm:$0xf]
      %v1344 = vld [vmem:[%s1336 + $0x1c] sm:$0xf]
      %v1345 = vld [vmem:[%s1336 + $0x20] sm:$0xf]
      %v1346 = vld [vmem:[%s1336 + $0x24] sm:$0xf]
      %v1347 = vld [vmem:[%s1336 + $0x28] sm:$0xf]
      %v1348 = vld [vmem:[%s1336 + $0x2c] sm:$0xf]
      %v1349 = vld [vmem:[%s1336 + $0x30] sm:$0xf]
      %v1350 = vld [vmem:[%s1336 + $0x34] sm:$0xf]
      %v1351 = vld [vmem:[%s1336 + $0x38] sm:$0xf]
      %v1352 = vld [vmem:[%s1336 + $0x3c] sm:$0xf]
      %v1353 = vld [vmem:[%s1336 + $0x40] sm:$0xf]
      %v1354 = vld [vmem:[%s1336 + $0x44] sm:$0xf]
      %v1373 = vunpack.c.l.b16 %v1337
      %v1374 = vunpack.c.l.b16 %v1338
      %v1375 = vunpack.c.l.b16 %v1339
      %v1376 = vunpack.c.l.b16 %v1340
      %v1377 = vunpack.c.l.b16 %v1341
      %v1378 = vunpack.c.l.b16 %v1342
      %v1379 = vunpack.c.l.b16 %v1343
      %v1380 = vunpack.c.l.b16 %v1344
      %v1381 = vunpack.c.l.b16 %v1345
      %v1382 = vunpack.c.l.b16 %v1346
      %v1383 = vunpack.c.l.b16 %v1347
      %v1384 = vunpack.c.l.b16 %v1348
      %v1385 = vunpack.c.l.b16 %v1349
      %v1386 = vunpack.c.l.b16 %v1350
      %v1387 = vunpack.c.l.b16 %v1351
      %v1388 = vunpack.c.l.b16 %v1352
      %v1389 = vunpack.c.l.b16 %v1353
      %v1390 = vunpack.c.l.b16 %v1354
      %v1391 = vpack.c.b16 %v1374, %v1373
      %v1392 = vpack.c.b16 %v1376, %v1375
      %v1393 = vpack.c.b16 %v1378, %v1377
      %v1394 = vpack.c.b16 %v1380, %v1379
      %v1395 = vpack.c.b16 %v1382, %v1381
      %v1396 = vpack.c.b16 %v1384, %v1383
      %v1397 = vpack.c.b16 %v1386, %v1385
      %v1398 = vpack.c.b16 %v1388, %v1387
      %v1399 = vpack.c.b16 %v1390, %v1389
      %vm1409 = vcmask 130048
      %v1411 = vsel %vm1409, %v1305, 0
      %v1414 = vsel %vm1409, %v1307, 0
      %v1417 = vsel %vm1409, %v1309, 0
      %v1420 = vsel %vm1409, %v1311, 0
      %v1423 = vsel %vm1409, %v1313, 0
      %v1426 = vsel %vm1409, %v1315, 0
      %v1429 = vsel %vm1409, %v1317, 0
      %v1432 = vsel %vm1409, %v1319, 0
      %v1435 = vsel %vm1409, %v1321, 0
      %v1438 = vsel %vm1409, %v1323, 0
      %v1441 = vsel %vm1409, %v1325, 0
      %v1444 = vsel %vm1409, %v1327, 0
      %v1447 = vsel %vm1409, %v1329, 0
      %v1450 = vsel %vm1409, %v1331, 0
      %v1453 = vsel %vm1409, %v1333, 0
      %v1456 = vsel %vm1409, %v1335, 0
      %1458 = vmatprep.subr.bf16.mxu0 0
      %1459 = vmatpush1.bf16.msra.mxu0 %v1391
      %1460 = vmatprep.subr.bf16.mxu0 0
      %1461 = vmatpush1.bf16.msra.mxu0 %v1392
      %1462 = vmatprep.subr.bf16.mxu0 0
      %1463 = vmatpush1.bf16.msra.mxu0 %v1393
      %1464 = vmatprep.subr.bf16.mxu0 0
      %1465 = vmatpush1.bf16.msra.mxu0 %v1394
      %1466 = vmatprep.subr.bf16.mxu0 0
      %1467 = vmatpush1.bf16.msra.mxu0 %v1395
      %1468 = vmatprep.subr.bf16.mxu0 0
      %1469 = vmatpush1.bf16.msra.mxu0 %v1396
      %1470 = vmatprep.subr.bf16.mxu0 0
      %1471 = vmatpush1.bf16.msra.mxu0 %v1397
      %1472 = vmatprep.subr.bf16.mxu0 0
      %1473 = vmatpush1.bf16.msra.mxu0 %v1398
      %1474 = vmatprep.subr.bf16.mxu0 0
      %1475 = vmatpush1.bf16.msra.mxu0 %v1399
      %1476 = vmatprep.subr.bf16.mxu0 0
      %1477 = vmatpush1.bf16.msra.mxu0 0
      %1478 = vmatprep.subr.bf16.mxu0 0
      %1479 = vmatpush1.bf16.msra.mxu0 0
      %1480 = vmatprep.subr.bf16.mxu0 0
      %1481 = vmatpush1.bf16.msra.mxu0 0
      %1482 = vmatprep.subr.bf16.mxu0 0
      %1483 = vmatpush1.bf16.msra.mxu0 0
      %1484 = vmatprep.subr.bf16.mxu0 0
      %1485 = vmatpush1.bf16.msra.mxu0 0
      %1486 = vmatprep.subr.bf16.mxu0 0
      %1487 = vmatpush1.bf16.msra.mxu0 0
      %1488 = vmatprep.subr.bf16.mxu0 0
      %1489 = vmatpush1.bf16.msra.mxu0 0
      %1490 = vmatprep.mubr.bf16.mxu0 %v1411
      %1491 = vmatmul.mubr.bf16.gmra.mrb[0].mxu0 %v1304
      %v1492 = vpop.f32.mrb[0].mxu0
      %v1493 = vadd.f32 0.0, %v1492
      %v1494 = vpop.f32.mrb[0].mxu0
      %v1495 = vpop.f32.mrb[0].mxu0
      %v1496 = vadd.f32 0.0, %v1495
      %v1497 = vpop.f32.mrb[0].mxu0
      %1498 = vmatprep.mubr.bf16.mxu0 %v1414
      %1499 = vmatmul.mubr.bf16.gmra.mrb[0].mxu0 %v1306
      %v1500 = vpop.f32.mrb[0].mxu0
      %v1501 = vadd.f32 0.0, %v1500
      %v1502 = vpop.f32.mrb[0].mxu0
      %v1503 = vpop.f32.mrb[0].mxu0
      %v1504 = vadd.f32 0.0, %v1503
      %v1505 = vpop.f32.mrb[0].mxu0
      %1506 = vmatprep.mubr.bf16.mxu0 %v1417
      %1507 = vmatmul.mubr.bf16.gmra.mrb[0].mxu0 %v1308
      %v1508 = vpop.f32.mrb[0].mxu0
      %v1509 = vadd.f32 0.0, %v1508
      %v1510 = vpop.f32.mrb[0].mxu0
      %v1511 = vpop.f32.mrb[0].mxu0
      %v1512 = vadd.f32 0.0, %v1511
      %v1513 = vpop.f32.mrb[0].mxu0
      %1514 = vmatprep.mubr.bf16.mxu0 %v1420
      %1515 = vmatmul.mubr.bf16.gmra.mrb[0].mxu0 %v1310
      %v1516 = vpop.f32.mrb[0].mxu0
      %v1517 = vadd.f32 0.0, %v1516
      %v1518 = vpop.f32.mrb[0].mxu0
      %v1519 = vpop.f32.mrb[0].mxu0
      %v1520 = vadd.f32 0.0, %v1519
      %v1521 = vpop.f32.mrb[0].mxu0
      %1522 = vmatprep.mubr.bf16.mxu0 %v1423
      %1523 = vmatmul.mubr.bf16.gmra.mrb[0].mxu0 %v1312
      %v1524 = vpop.f32.mrb[0].mxu0
      %v1525 = vadd.f32 0.0, %v1524
      %v1526 = vpop.f32.mrb[0].mxu0
      %v1527 = vpop.f32.mrb[0].mxu0
      %v1528 = vadd.f32 0.0, %v1527
      %v1529 = vpop.f32.mrb[0].mxu0
      %1530 = vmatprep.mubr.bf16.mxu0 %v1426
      %1531 = vmatmul.mubr.bf16.gmra.mrb[0].mxu0 %v1314
      %v1532 = vpop.f32.mrb[0].mxu0
      %v1533 = vadd.f32 0.0, %v1532
      %v1534 = vpop.f32.mrb[0].mxu0
      %v1535 = vpop.f32.mrb[0].mxu0
      %v1536 = vadd.f32 0.0, %v1535
      %v1537 = vpop.f32.mrb[0].mxu0
      %1538 = vmatprep.mubr.bf16.mxu0 %v1429
      %1539 = vmatmul.mubr.bf16.gmra.mrb[0].mxu0 %v1316
      %v1540 = vpop.f32.mrb[0].mxu0
      %v1541 = vadd.f32 0.0, %v1540
      %v1542 = vpop.f32.mrb[0].mxu0
      %v1543 = vpop.f32.mrb[0].mxu0
      %v1544 = vadd.f32 0.0, %v1543
      %v1545 = vpop.f32.mrb[0].mxu0
      %1546 = vmatprep.mubr.bf16.mxu0 %v1432
      %1547 = vmatmul.mubr.bf16.gmra.mrb[0].mxu0 %v1318
      %v1548 = vpop.f32.mrb[0].mxu0
      %v1549 = vadd.f32 0.0, %v1548
      %v1550 = vpop.f32.mrb[0].mxu0
      %v1551 = vpop.f32.mrb[0].mxu0
      %v1552 = vadd.f32 0.0, %v1551
      %v1553 = vpop.f32.mrb[0].mxu0
      %1554 = vmatprep.mubr.bf16.mxu0 %v1435
      %1555 = vmatmul.mubr.bf16.gmra.mrb[0].mxu0 %v1320
      %v1556 = vpop.f32.mrb[0].mxu0
      %v1557 = vadd.f32 0.0, %v1556
      %v1558 = vpop.f32.mrb[0].mxu0
      %v1559 = vpop.f32.mrb[0].mxu0
      %v1560 = vadd.f32 0.0, %v1559
      %v1561 = vpop.f32.mrb[0].mxu0
      %1562 = vmatprep.mubr.bf16.mxu0 %v1438
      %1563 = vmatmul.mubr.bf16.gmra.mrb[0].mxu0 %v1322
      %v1564 = vpop.f32.mrb[0].mxu0
      %v1565 = vadd.f32 0.0, %v1564
      %v1566 = vpop.f32.mrb[0].mxu0
      %v1567 = vpop.f32.mrb[0].mxu0
      %v1568 = vadd.f32 0.0, %v1567
      %v1569 = vpop.f32.mrb[0].mxu0
      %1570 = vmatprep.mubr.bf16.mxu0 %v1441
      %1571 = vmatmul.mubr.bf16.gmra.mrb[0].mxu0 %v1324
      %v1572 = vpop.f32.mrb[0].mxu0
      %v1573 = vadd.f32 0.0, %v1572
      %v1574 = vpop.f32.mrb[0].mxu0
      %v1575 = vpop.f32.mrb[0].mxu0
      %v1576 = vadd.f32 0.0, %v1575
      %v1577 = vpop.f32.mrb[0].mxu0
      %1578 = vmatprep.mubr.bf16.mxu0 %v1444
      %1579 = vmatmul.mubr.bf16.gmra.mrb[0].mxu0 %v1326
      %v1580 = vpop.f32.mrb[0].mxu0
      %v1581 = vadd.f32 0.0, %v1580
      %v1582 = vpop.f32.mrb[0].mxu0
      %v1583 = vpop.f32.mrb[0].mxu0
      %v1584 = vadd.f32 0.0, %v1583
      %v1585 = vpop.f32.mrb[0].mxu0
      %1586 = vmatprep.mubr.bf16.mxu0 %v1447
      %1587 = vmatmul.mubr.bf16.gmra.mrb[0].mxu0 %v1328
      %v1588 = vpop.f32.mrb[0].mxu0
      %v1589 = vadd.f32 0.0, %v1588
      %v1590 = vpop.f32.mrb[0].mxu0
      %v1591 = vpop.f32.mrb[0].mxu0
      %v1592 = vadd.f32 0.0, %v1591
      %v1593 = vpop.f32.mrb[0].mxu0
      %1594 = vmatprep.mubr.bf16.mxu0 %v1450
      %1595 = vmatmul.mubr.bf16.gmra.mrb[0].mxu0 %v1330
      %v1596 = vpop.f32.mrb[0].mxu0
      %v1597 = vadd.f32 0.0, %v1596
      %v1598 = vpop.f32.mrb[0].mxu0
      %v1599 = vpop.f32.mrb[0].mxu0
      %v1600 = vadd.f32 0.0, %v1599
      %v1601 = vpop.f32.mrb[0].mxu0
      %1602 = vmatprep.mubr.bf16.mxu0 %v1453
      %1603 = vmatmul.mubr.bf16.gmra.mrb[0].mxu0 %v1332
      %v1604 = vpop.f32.mrb[0].mxu0
      %v1605 = vadd.f32 0.0, %v1604
      %v1606 = vpop.f32.mrb[0].mxu0
      %v1607 = vpop.f32.mrb[0].mxu0
      %v1608 = vadd.f32 0.0, %v1607
      %v1609 = vpop.f32.mrb[0].mxu0
      %1610 = vmatprep.mubr.bf16.mxu0 %v1456
      %1611 = vmatmul.mubr.bf16.gmra.mrb[0].mxu0 %v1334
      %v1612 = vpop.f32.mrb[0].mxu0
      %v1613 = vadd.f32 0.0, %v1612
      %v1614 = vpop.f32.mrb[0].mxu0
      %v1615 = vpop.f32.mrb[0].mxu0
      %v1616 = vadd.f32 0.0, %v1615
      %v1617 = vpop.f32.mrb[0].mxu0
      %1618 = vdwg.mxu0
      %v1637 = vunpack.c.l.b16 %v870
      %v1638 = vunpack.c.l.b16 %v871
      %v1639 = vunpack.c.l.b16 %v872
      %v1640 = vunpack.c.l.b16 %v873
      %v1641 = vunpack.c.l.b16 %v874
      %v1642 = vunpack.c.l.b16 %v875
      %v1643 = vunpack.c.l.b16 %v876
      %v1644 = vunpack.c.l.b16 %v877
      %v1645 = vunpack.c.l.b16 %v878
      %v1646 = vunpack.c.l.b16 %v879
      %v1647 = vunpack.c.l.b16 %v880
      %v1648 = vunpack.c.l.b16 %v881
      %v1649 = vunpack.c.l.b16 %v882
      %v1650 = vunpack.c.l.b16 %v883
      %v1651 = vunpack.c.l.b16 %v884
      %v1652 = vunpack.c.l.b16 %v885
      %v1653 = vunpack.c.l.b16 %v886
      %v1654 = vunpack.c.l.b16 %v887
      %v1655 = vpack.c.b16 %v1638, %v1637
      %v1656 = vpack.c.b16 %v1640, %v1639
      %v1657 = vpack.c.b16 %v1642, %v1641
      %v1658 = vpack.c.b16 %v1644, %v1643
      %v1659 = vpack.c.b16 %v1646, %v1645
      %v1660 = vpack.c.b16 %v1648, %v1647
      %v1661 = vpack.c.b16 %v1650, %v1649
      %v1662 = vpack.c.b16 %v1652, %v1651
      %v1663 = vpack.c.b16 %v1654, %v1653
      %v1674 = vsel %vm1409, %v839, 0
      %v1677 = vsel %vm1409, %v841, 0
      %v1680 = vsel %vm1409, %v843, 0
      %v1683 = vsel %vm1409, %v845, 0
      %v1686 = vsel %vm1409, %v847, 0
      %v1689 = vsel %vm1409, %v849, 0
      %v1692 = vsel %vm1409, %v851, 0
      %v1695 = vsel %vm1409, %v853, 0
      %v1698 = vsel %vm1409, %v855, 0
      %v1701 = vsel %vm1409, %v857, 0
      %v1704 = vsel %vm1409, %v859, 0
      %v1707 = vsel %vm1409, %v861, 0
      %v1710 = vsel %vm1409, %v863, 0
      %v1713 = vsel %vm1409, %v865, 0
      %v1716 = vsel %vm1409, %v867, 0
      %v1719 = vsel %vm1409, %v869, 0
      %1721 = vmatprep.subr.bf16.mxu0 0
      %1722 = vmatpush1.bf16.msra.mxu0 %v1655
      %1723 = vmatprep.subr.bf16.mxu0 0
      %1724 = vmatpush1.bf16.msra.mxu0 %v1656
      %1725 = vmatprep.subr.bf16.mxu0 0
      %1726 = vmatpush1.bf16.msra.mxu0 %v1657
      %1727 = vmatprep.subr.bf16.mxu0 0
      %1728 = vmatpush1.bf16.msra.mxu0 %v1658
      %1729 = vmatprep.subr.bf16.mxu0 0
      %1730 = vmatpush1.bf16.msra.mxu0 %v1659
      %1731 = vmatprep.subr.bf16.mxu0 0
      %1732 = vmatpush1.bf16.msra.mxu0 %v1660
      %1733 = vmatprep.subr.bf16.mxu0 0
      %1734 = vmatpush1.bf16.msra.mxu0 %v1661
      %1735 = vmatprep.subr.bf16.mxu0 0
      %1736 = vmatpush1.bf16.msra.mxu0 %v1662
      %1737 = vmatprep.subr.bf16.mxu0 0
      %1738 = vmatpush1.bf16.msra.mxu0 %v1663
      %1739 = vmatprep.subr.bf16.mxu0 0
      %1740 = vmatpush1.bf16.msra.mxu0 0
      %1741 = vmatprep.subr.bf16.mxu0 0
      %1742 = vmatpush1.bf16.msra.mxu0 0
      %1743 = vmatprep.subr.bf16.mxu0 0
      %1744 = vmatpush1.bf16.msra.mxu0 0
      %1745 = vmatprep.subr.bf16.mxu0 0
      %1746 = vmatpush1.bf16.msra.mxu0 0
      %1747 = vmatprep.subr.bf16.mxu0 0
      %1748 = vmatpush1.bf16.msra.mxu0 0
      %1749 = vmatprep.subr.bf16.mxu0 0
      %1750 = vmatpush1.bf16.msra.mxu0 0
      %1751 = vmatprep.subr.bf16.mxu0 0
      %1752 = vmatpush1.bf16.msra.mxu0 0
      %1753 = vmatprep.mubr.bf16.mxu0 %v1674
      %1754 = vmatmul.mubr.bf16.gmra.mrb[0].mxu0 %v838
      %v1755 = vpop.f32.mrb[0].mxu0
      %v1756 = vadd.f32 %v1493, %v1755
      %v1757 = vpop.f32.mrb[0].mxu0
      %v1758 = vpop.f32.mrb[0].mxu0
      %v1759 = vadd.f32 %v1496, %v1758
      %v1760 = vpop.f32.mrb[0].mxu0
      %1761 = vmatprep.mubr.bf16.mxu0 %v1677
      %1762 = vmatmul.mubr.bf16.gmra.mrb[0].mxu0 %v840
      %v1763 = vpop.f32.mrb[0].mxu0
      %v1764 = vadd.f32 %v1501, %v1763
      %v1765 = vpop.f32.mrb[0].mxu0
      %v1766 = vpop.f32.mrb[0].mxu0
      %v1767 = vadd.f32 %v1504, %v1766
      %v1768 = vpop.f32.mrb[0].mxu0
      %1769 = vmatprep.mubr.bf16.mxu0 %v1680
      %1770 = vmatmul.mubr.bf16.gmra.mrb[0].mxu0 %v842
      %v1771 = vpop.f32.mrb[0].mxu0
      %v1772 = vadd.f32 %v1509, %v1771
      %v1773 = vpop.f32.mrb[0].mxu0
      %v1774 = vpop.f32.mrb[0].mxu0
      %v1775 = vadd.f32 %v1512, %v1774
      %v1776 = vpop.f32.mrb[0].mxu0
      %1777 = vmatprep.mubr.bf16.mxu0 %v1683
      %1778 = vmatmul.mubr.bf16.gmra.mrb[0].mxu0 %v844
      %v1779 = vpop.f32.mrb[0].mxu0
      %v1780 = vadd.f32 %v1517, %v1779
      %v1781 = vpop.f32.mrb[0].mxu0
      %v1782 = vpop.f32.mrb[0].mxu0
      %v1783 = vadd.f32 %v1520, %v1782
      %v1784 = vpop.f32.mrb[0].mxu0
      %1785 = vmatprep.mubr.bf16.mxu0 %v1686
      %1786 = vmatmul.mubr.bf16.gmra.mrb[0].mxu0 %v846
      %v1787 = vpop.f32.mrb[0].mxu0
      %v1788 = vadd.f32 %v1525, %v1787
      %v1789 = vpop.f32.mrb[0].mxu0
      %v1790 = vpop.f32.mrb[0].mxu0
      %v1791 = vadd.f32 %v1528, %v1790
      %v1792 = vpop.f32.mrb[0].mxu0
      %1793 = vmatprep.mubr.bf16.mxu0 %v1689
      %1794 = vmatmul.mubr.bf16.gmra.mrb[0].mxu0 %v848
      %v1795 = vpop.f32.mrb[0].mxu0
      %v1796 = vadd.f32 %v1533, %v1795
      %v1797 = vpop.f32.mrb[0].mxu0
      %v1798 = vpop.f32.mrb[0].mxu0
      %v1799 = vadd.f32 %v1536, %v1798
      %v1800 = vpop.f32.mrb[0].mxu0
      %1801 = vmatprep.mubr.bf16.mxu0 %v1692
      %1802 = vmatmul.mubr.bf16.gmra.mrb[0].mxu0 %v850
      %v1803 = vpop.f32.mrb[0].mxu0
      %v1804 = vadd.f32 %v1541, %v1803
      %v1805 = vpop.f32.mrb[0].mxu0
      %v1806 = vpop.f32.mrb[0].mxu0
      %v1807 = vadd.f32 %v1544, %v1806
      %v1808 = vpop.f32.mrb[0].mxu0
      %1809 = vmatprep.mubr.bf16.mxu0 %v1695
      %1810 = vmatmul.mubr.bf16.gmra.mrb[0].mxu0 %v852
      %v1811 = vpop.f32.mrb[0].mxu0
      %v1812 = vadd.f32 %v1549, %v1811
      %v1813 = vpop.f32.mrb[0].mxu0
      %v1814 = vpop.f32.mrb[0].mxu0
      %v1815 = vadd.f32 %v1552, %v1814
      %v1816 = vpop.f32.mrb[0].mxu0
      %1817 = vmatprep.mubr.bf16.mxu0 %v1698
      %1818 = vmatmul.mubr.bf16.gmra.mrb[0].mxu0 %v854
      %v1819 = vpop.f32.mrb[0].mxu0
      %v1820 = vadd.f32 %v1557, %v1819
      %v1821 = vpop.f32.mrb[0].mxu0
      %v1822 = vpop.f32.mrb[0].mxu0
      %v1823 = vadd.f32 %v1560, %v1822
      %v1824 = vpop.f32.mrb[0].mxu0
      %1825 = vmatprep.mubr.bf16.mxu0 %v1701
      %1826 = vmatmul.mubr.bf16.gmra.mrb[0].mxu0 %v856
      %v1827 = vpop.f32.mrb[0].mxu0
      %v1828 = vadd.f32 %v1565, %v1827
      %v1829 = vpop.f32.mrb[0].mxu0
      %v1830 = vpop.f32.mrb[0].mxu0
      %v1831 = vadd.f32 %v1568, %v1830
      %v1832 = vpop.f32.mrb[0].mxu0
      %1833 = vmatprep.mubr.bf16.mxu0 %v1704
      %1834 = vmatmul.mubr.bf16.gmra.mrb[0].mxu0 %v858
      %v1835 = vpop.f32.mrb[0].mxu0
      %v1836 = vadd.f32 %v1573, %v1835
      %v1837 = vpop.f32.mrb[0].mxu0
      %v1838 = vpop.f32.mrb[0].mxu0
      %v1839 = vadd.f32 %v1576, %v1838
      %v1840 = vpop.f32.mrb[0].mxu0
      %1841 = vmatprep.mubr.bf16.mxu0 %v1707
      %1842 = vmatmul.mubr.bf16.gmra.mrb[0].mxu0 %v860
      %v1843 = vpop.f32.mrb[0].mxu0
      %v1844 = vadd.f32 %v1581, %v1843
      %v1845 = vpop.f32.mrb[0].mxu0
      %v1846 = vpop.f32.mrb[0].mxu0
      %v1847 = vadd.f32 %v1584, %v1846
      %v1848 = vpop.f32.mrb[0].mxu0
      %1849 = vmatprep.mubr.bf16.mxu0 %v1710
      %1850 = vmatmul.mubr.bf16.gmra.mrb[0].mxu0 %v862
      %v1851 = vpop.f32.mrb[0].mxu0
      %v1852 = vadd.f32 %v1589, %v1851
      %v1853 = vpop.f32.mrb[0].mxu0
      %v1854 = vpop.f32.mrb[0].mxu0
      %v1855 = vadd.f32 %v1592, %v1854
      %v1856 = vpop.f32.mrb[0].mxu0
      %1857 = vmatprep.mubr.bf16.mxu0 %v1713
      %1858 = vmatmul.mubr.bf16.gmra.mrb[0].mxu0 %v864
      %v1859 = vpop.f32.mrb[0].mxu0
      %v1860 = vadd.f32 %v1597, %v1859
      %v1861 = vpop.f32.mrb[0].mxu0
      %v1862 = vpop.f32.mrb[0].mxu0
      %v1863 = vadd.f32 %v1600, %v1862
      %v1864 = vpop.f32.mrb[0].mxu0
      %1865 = vmatprep.mubr.bf16.mxu0 %v1716
      %1866 = vmatmul.mubr.bf16.gmra.mrb[0].mxu0 %v866
      %v1867 = vpop.f32.mrb[0].mxu0
      %v1868 = vadd.f32 %v1605, %v1867
      %v1869 = vpop.f32.mrb[0].mxu0
      %v1870 = vpop.f32.mrb[0].mxu0
      %v1871 = vadd.f32 %v1608, %v1870
      %v1872 = vpop.f32.mrb[0].mxu0
      %1873 = vmatprep.mubr.bf16.mxu0 %v1719
      %1874 = vmatmul.mubr.bf16.gmra.mrb[0].mxu0 %v868
      %v1875 = vpop.f32.mrb[0].mxu0
      %v1876 = vadd.f32 %v1613, %v1875
      %v1877 = vpop.f32.mrb[0].mxu0
      %v1878 = vpop.f32.mrb[0].mxu0
      %v1879 = vadd.f32 %v1616, %v1878
      %v1880 = vpop.f32.mrb[0].mxu0
      %1881 = vdwg.mxu0
      %s1882 = scalar_lea.vmem [#allocation2], 64
      %v1883 = vld [vmem:[%s1882 + $0x7] sm:$0xff]
      %v1884 = vld [vmem:[%s1882 + $0xf] sm:$0xff]
      %v1885 = vld [vmem:[%s1882 + $0x27] sm:$0xff]
      %v1886 = vld [vmem:[%s1882 + $0x2f] sm:$0xff]
      %v1887 = vld [vmem:[%s1882 + $0x47] sm:$0xff]
      %v1888 = vld [vmem:[%s1882 + $0x4f] sm:$0xff]
      %v1889 = vld [vmem:[%s1882 + $0x67] sm:$0xff]
      %v1890 = vld [vmem:[%s1882 + $0x6f] sm:$0xff]
      %v1891 = vld [vmem:[%s1882 + $0x87] sm:$0xff]
      %v1892 = vld [vmem:[%s1882 + $0x8f] sm:$0xff]
      %v1893 = vld [vmem:[%s1882 + $0xa7] sm:$0xff]
      %v1894 = vld [vmem:[%s1882 + $0xaf] sm:$0xff]
      %v1895 = vld [vmem:[%s1882 + $0xc7] sm:$0xff]
      %v1896 = vld [vmem:[%s1882 + $0xcf] sm:$0xff]
      %v1897 = vld [vmem:[%s1882 + $0xe7] sm:$0xff]
      %v1898 = vld [vmem:[%s1882 + $0xef] sm:$0xff]
      %v1899 = vld [vmem:[%s1882 + $0x107] sm:$0xff]
      %v1900 = vld [vmem:[%s1882 + $0x10f] sm:$0xff]
      %v1901 = vld [vmem:[%s1882 + $0x127] sm:$0xff]
      %v1902 = vld [vmem:[%s1882 + $0x12f] sm:$0xff]
      %v1903 = vld [vmem:[%s1882 + $0x147] sm:$0xff]
      %v1904 = vld [vmem:[%s1882 + $0x14f] sm:$0xff]
      %v1905 = vld [vmem:[%s1882 + $0x167] sm:$0xff]
      %v1906 = vld [vmem:[%s1882 + $0x16f] sm:$0xff]
      %v1907 = vld [vmem:[%s1882 + $0x187] sm:$0xff]
      %v1908 = vld [vmem:[%s1882 + $0x18f] sm:$0xff]
      %v1909 = vld [vmem:[%s1882 + $0x1a7] sm:$0xff]
      %v1910 = vld [vmem:[%s1882 + $0x1af] sm:$0xff]
      %v1911 = vld [vmem:[%s1882 + $0x1c7] sm:$0xff]
      %v1912 = vld [vmem:[%s1882 + $0x1cf] sm:$0xff]
      %v1913 = vld [vmem:[%s1882 + $0x1e7] sm:$0xff]
      %v1914 = vld [vmem:[%s1882 + $0x1ef] sm:$0xff]
      %v1915 = vld [vmem:[%s1882 + $0x8] sm:$0xff]
      %v1916 = vld [vmem:[%s1882 + $0x10] sm:$0xff]
      %v1917 = vld [vmem:[%s1882 + $0x28] sm:$0xff]
      %v1918 = vld [vmem:[%s1882 + $0x30] sm:$0xff]
      %v1919 = vld [vmem:[%s1882 + $0x48] sm:$0xff]
      %v1920 = vld [vmem:[%s1882 + $0x50] sm:$0xff]
      %v1921 = vld [vmem:[%s1882 + $0x68] sm:$0xff]
      %v1922 = vld [vmem:[%s1882 + $0x70] sm:$0xff]
      %v1923 = vld [vmem:[%s1882 + $0x88] sm:$0xff]
      %v1924 = vld [vmem:[%s1882 + $0x90] sm:$0xff]
      %v1925 = vld [vmem:[%s1882 + $0xa8] sm:$0xff]
      %v1926 = vld [vmem:[%s1882 + $0xb0] sm:$0xff]
      %v1927 = vld [vmem:[%s1882 + $0xc8] sm:$0xff]
      %v1928 = vld [vmem:[%s1882 + $0xd0] sm:$0xff]
      %v1929 = vld [vmem:[%s1882 + $0xe8] sm:$0xff]
      %v1930 = vld [vmem:[%s1882 + $0xf0] sm:$0xff]
      %v1931 = vld [vmem:[%s1882 + $0x108] sm:$0xff]
      %v1932 = vld [vmem:[%s1882 + $0x110] sm:$0xff]
      %v1933 = vld [vmem:[%s1882 + $0x128] sm:$0xff]
      %v1934 = vld [vmem:[%s1882 + $0x130] sm:$0xff]
      %v1935 = vld [vmem:[%s1882 + $0x148] sm:$0xff]
      %v1936 = vld [vmem:[%s1882 + $0x150] sm:$0xff]
      %v1937 = vld [vmem:[%s1882 + $0x168] sm:$0xff]
      %v1938 = vld [vmem:[%s1882 + $0x170] sm:$0xff]
      %v1939 = vld [vmem:[%s1882 + $0x188] sm:$0xff]
      %v1940 = vld [vmem:[%s1882 + $0x190] sm:$0xff]
      %v1941 = vld [vmem:[%s1882 + $0x1a8] sm:$0xff]
      %v1942 = vld [vmem:[%s1882 + $0x1b0] sm:$0xff]
      %v1943 = vld [vmem:[%s1882 + $0x1c8] sm:$0xff]
      %v1944 = vld [vmem:[%s1882 + $0x1d0] sm:$0xff]
      %v1945 = vld [vmem:[%s1882 + $0x1e8] sm:$0xff]
      %v1946 = vld [vmem:[%s1882 + $0x1f0] sm:$0xff]
      %v1947 = vld [vmem:[%s1882 + $0x9] sm:$0xff]
      %v1948 = vld [vmem:[%s1882 + $0x11] sm:$0xff]
      %v1949 = vld [vmem:[%s1882 + $0x29] sm:$0xff]
      %v1950 = vld [vmem:[%s1882 + $0x31] sm:$0xff]
      %v1951 = vld [vmem:[%s1882 + $0x49] sm:$0xff]
      %v1952 = vld [vmem:[%s1882 + $0x51] sm:$0xff]
      %v1953 = vld [vmem:[%s1882 + $0x69] sm:$0xff]
      %v1954 = vld [vmem:[%s1882 + $0x71] sm:$0xff]
      %v1955 = vld [vmem:[%s1882 + $0x89] sm:$0xff]
      %v1956 = vld [vmem:[%s1882 + $0x91] sm:$0xff]
      %v1957 = vld [vmem:[%s1882 + $0xa9] sm:$0xff]
      %v1958 = vld [vmem:[%s1882 + $0xb1] sm:$0xff]
      %v1959 = vld [vmem:[%s1882 + $0xc9] sm:$0xff]
      %v1960 = vld [vmem:[%s1882 + $0xd1] sm:$0xff]
      %v1961 = vld [vmem:[%s1882 + $0xe9] sm:$0xff]
      %v1962 = vld [vmem:[%s1882 + $0xf1] sm:$0xff]
      %v1963 = vld [vmem:[%s1882 + $0x109] sm:$0xff]
      %v1964 = vld [vmem:[%s1882 + $0x111] sm:$0xff]
      %v1965 = vld [vmem:[%s1882 + $0x129] sm:$0xff]
      %v1966 = vld [vmem:[%s1882 + $0x131] sm:$0xff]
      %v1967 = vld [vmem:[%s1882 + $0x149] sm:$0xff]
      %v1968 = vld [vmem:[%s1882 + $0x151] sm:$0xff]
      %v1969 = vld [vmem:[%s1882 + $0x169] sm:$0xff]
      %v1970 = vld [vmem:[%s1882 + $0x171] sm:$0xff]
      %v1971 = vld [vmem:[%s1882 + $0x189] sm:$0xff]
      %v1972 = vld [vmem:[%s1882 + $0x191] sm:$0xff]
      %v1973 = vld [vmem:[%s1882 + $0x1a9] sm:$0xff]
      %v1974 = vld [vmem:[%s1882 + $0x1b1] sm:$0xff]
      %v1975 = vld [vmem:[%s1882 + $0x1c9] sm:$0xff]
      %v1976 = vld [vmem:[%s1882 + $0x1d1] sm:$0xff]
      %v1977 = vld [vmem:[%s1882 + $0x1e9] sm:$0xff]
      %v1978 = vld [vmem:[%s1882 + $0x1f1] sm:$0xff]
      %2011 = vrot.lane.b32.xlu0 %v1915, 48
      %v2012 = vpop.permute.xlu0 %2011
      %2013 = vrot.lane.b32.xlu0 %v1916, 48
      %v2014 = vpop.permute.xlu0 %2013
      %2015 = vrot.lane.b32.xlu0 %v1917, 48
      %v2016 = vpop.permute.xlu0 %2015
      %2017 = vrot.lane.b32.xlu0 %v1918, 48
      %v2018 = vpop.permute.xlu0 %2017
      %2019 = vrot.lane.b32.xlu0 %v1919, 48
      %v2020 = vpop.permute.xlu0 %2019
      %2021 = vrot.lane.b32.xlu0 %v1920, 48
      %v2022 = vpop.permute.xlu0 %2021
      %2023 = vrot.lane.b32.xlu0 %v1921, 48
      %v2024 = vpop.permute.xlu0 %2023
      %2025 = vrot.lane.b32.xlu0 %v1922, 48
      %v2026 = vpop.permute.xlu0 %2025
      %2027 = vrot.lane.b32.xlu0 %v1923, 48
      %v2028 = vpop.permute.xlu0 %2027
      %2029 = vrot.lane.b32.xlu0 %v1924, 48
      %v2030 = vpop.permute.xlu0 %2029
      %2031 = vrot.lane.b32.xlu0 %v1925, 48
      %v2032 = vpop.permute.xlu0 %2031
      %2033 = vrot.lane.b32.xlu0 %v1926, 48
      %v2034 = vpop.permute.xlu0 %2033
      %2035 = vrot.lane.b32.xlu0 %v1927, 48
      %v2036 = vpop.permute.xlu0 %2035
      %2037 = vrot.lane.b32.xlu0 %v1928, 48
      %v2038 = vpop.permute.xlu0 %2037
      %2039 = vrot.lane.b32.xlu0 %v1929, 48
      %v2040 = vpop.permute.xlu0 %2039
      %2041 = vrot.lane.b32.xlu0 %v1930, 48
      %v2042 = vpop.permute.xlu0 %2041
      %2043 = vrot.lane.b32.xlu0 %v1931, 48
      %v2044 = vpop.permute.xlu0 %2043
      %2045 = vrot.lane.b32.xlu0 %v1932, 48
      %v2046 = vpop.permute.xlu0 %2045
      %2047 = vrot.lane.b32.xlu0 %v1933, 48
      %v2048 = vpop.permute.xlu0 %2047
      %2049 = vrot.lane.b32.xlu0 %v1934, 48
      %v2050 = vpop.permute.xlu0 %2049
      %2051 = vrot.lane.b32.xlu0 %v1935, 48
      %v2052 = vpop.permute.xlu0 %2051
      %2053 = vrot.lane.b32.xlu0 %v1936, 48
      %v2054 = vpop.permute.xlu0 %2053
      %2055 = vrot.lane.b32.xlu0 %v1937, 48
      %v2056 = vpop.permute.xlu0 %2055
      %2057 = vrot.lane.b32.xlu0 %v1938, 48
      %v2058 = vpop.permute.xlu0 %2057
      %2059 = vrot.lane.b32.xlu0 %v1939, 48
      %v2060 = vpop.permute.xlu0 %2059
      %2061 = vrot.lane.b32.xlu0 %v1940, 48
      %v2062 = vpop.permute.xlu0 %2061
      %2063 = vrot.lane.b32.xlu0 %v1941, 48
      %v2064 = vpop.permute.xlu0 %2063
      %2065 = vrot.lane.b32.xlu0 %v1942, 48
      %v2066 = vpop.permute.xlu0 %2065
      %2067 = vrot.lane.b32.xlu0 %v1943, 48
      %v2068 = vpop.permute.xlu0 %2067
      %2069 = vrot.lane.b32.xlu0 %v1944, 48
      %v2070 = vpop.permute.xlu0 %2069
      %2071 = vrot.lane.b32.xlu0 %v1945, 48
      %v2072 = vpop.permute.xlu0 %2071
      %2073 = vrot.lane.b32.xlu0 %v1946, 48
      %v2074 = vpop.permute.xlu0 %2073
      %2139 = vrot.lane.b32.xlu0 %v1947, 96
      %v2140 = vpop.permute.xlu0 %2139
      %2141 = vrot.lane.b32.xlu0 %v1948, 96
      %v2142 = vpop.permute.xlu0 %2141
      %2143 = vrot.lane.b32.xlu0 %v1949, 96
      %v2144 = vpop.permute.xlu0 %2143
      %2145 = vrot.lane.b32.xlu0 %v1950, 96
      %v2146 = vpop.permute.xlu0 %2145
      %2147 = vrot.lane.b32.xlu0 %v1951, 96
      %v2148 = vpop.permute.xlu0 %2147
      %2149 = vrot.lane.b32.xlu0 %v1952, 96
      %v2150 = vpop.permute.xlu0 %2149
      %2151 = vrot.lane.b32.xlu0 %v1953, 96
      %v2152 = vpop.permute.xlu0 %2151
      %2153 = vrot.lane.b32.xlu0 %v1954, 96
      %v2154 = vpop.permute.xlu0 %2153
      %2155 = vrot.lane.b32.xlu0 %v1955, 96
      %v2156 = vpop.permute.xlu0 %2155
      %2157 = vrot.lane.b32.xlu0 %v1956, 96
      %v2158 = vpop.permute.xlu0 %2157
      %2159 = vrot.lane.b32.xlu0 %v1957, 96
      %v2160 = vpop.permute.xlu0 %2159
      %2161 = vrot.lane.b32.xlu0 %v1958, 96
      %v2162 = vpop.permute.xlu0 %2161
      %2163 = vrot.lane.b32.xlu0 %v1959, 96
      %v2164 = vpop.permute.xlu0 %2163
      %2165 = vrot.lane.b32.xlu0 %v1960, 96
      %v2166 = vpop.permute.xlu0 %2165
      %2167 = vrot.lane.b32.xlu0 %v1961, 96
      %v2168 = vpop.permute.xlu0 %2167
      %2169 = vrot.lane.b32.xlu0 %v1962, 96
      %v2170 = vpop.permute.xlu0 %2169
      %2171 = vrot.lane.b32.xlu0 %v1963, 96
      %v2172 = vpop.permute.xlu0 %2171
      %2173 = vrot.lane.b32.xlu0 %v1964, 96
      %v2174 = vpop.permute.xlu0 %2173
      %2175 = vrot.lane.b32.xlu0 %v1965, 96
      %v2176 = vpop.permute.xlu0 %2175
      %2177 = vrot.lane.b32.xlu0 %v1966, 96
      %v2178 = vpop.permute.xlu0 %2177
      %2179 = vrot.lane.b32.xlu0 %v1967, 96
      %v2180 = vpop.permute.xlu0 %2179
      %2181 = vrot.lane.b32.xlu0 %v1968, 96
      %v2182 = vpop.permute.xlu0 %2181
      %2183 = vrot.lane.b32.xlu0 %v1969, 96
      %v2184 = vpop.permute.xlu0 %2183
      %2185 = vrot.lane.b32.xlu0 %v1970, 96
      %v2186 = vpop.permute.xlu0 %2185
      %2187 = vrot.lane.b32.xlu0 %v1971, 96
      %v2188 = vpop.permute.xlu0 %2187
      %2189 = vrot.lane.b32.xlu0 %v1972, 96
      %v2190 = vpop.permute.xlu0 %2189
      %2191 = vrot.lane.b32.xlu0 %v1973, 96
      %v2192 = vpop.permute.xlu0 %2191
      %2193 = vrot.lane.b32.xlu0 %v1974, 96
      %v2194 = vpop.permute.xlu0 %2193
      %2195 = vrot.lane.b32.xlu0 %v1975, 96
      %v2196 = vpop.permute.xlu0 %2195
      %2197 = vrot.lane.b32.xlu0 %v1976, 96
      %v2198 = vpop.permute.xlu0 %2197
      %2199 = vrot.lane.b32.xlu0 %v1977, 96
      %v2200 = vpop.permute.xlu0 %2199
      %2201 = vrot.lane.b32.xlu0 %v1978, 96
      %v2202 = vpop.permute.xlu0 %2201
      %v2235 = vsel %vm199, %v1883, %v2012
      %v2236 = vsel %vm199, %v1884, %v2014
      %v2237 = vsel %vm199, %v1885, %v2016
      %v2238 = vsel %vm199, %v1886, %v2018
      %v2239 = vsel %vm199, %v1887, %v2020
      %v2240 = vsel %vm199, %v1888, %v2022
      %v2241 = vsel %vm199, %v1889, %v2024
      %v2242 = vsel %vm199, %v1890, %v2026
      %v2243 = vsel %vm199, %v1891, %v2028
      %v2244 = vsel %vm199, %v1892, %v2030
      %v2245 = vsel %vm199, %v1893, %v2032
      %v2246 = vsel %vm199, %v1894, %v2034
      %v2247 = vsel %vm199, %v1895, %v2036
      %v2248 = vsel %vm199, %v1896, %v2038
      %v2249 = vsel %vm199, %v1897, %v2040
      %v2250 = vsel %vm199, %v1898, %v2042
      %v2251 = vsel %vm199, %v1899, %v2044
      %v2252 = vsel %vm199, %v1900, %v2046
      %v2253 = vsel %vm199, %v1901, %v2048
      %v2254 = vsel %vm199, %v1902, %v2050
      %v2255 = vsel %vm199, %v1903, %v2052
      %v2256 = vsel %vm199, %v1904, %v2054
      %v2257 = vsel %vm199, %v1905, %v2056
      %v2258 = vsel %vm199, %v1906, %v2058
      %v2259 = vsel %vm199, %v1907, %v2060
      %v2260 = vsel %vm199, %v1908, %v2062
      %v2261 = vsel %vm199, %v1909, %v2064
      %v2262 = vsel %vm199, %v1910, %v2066
      %v2263 = vsel %vm199, %v1911, %v2068
      %v2264 = vsel %vm199, %v1912, %v2070
      %v2265 = vsel %vm199, %v1913, %v2072
      %v2266 = vsel %vm199, %v1914, %v2074
      %v2267 = vsel %vm805, %v2235, %v2140
      %v2268 = vsel %vm805, %v2236, %v2142
      %v2269 = vsel %vm805, %v2237, %v2144
      %v2270 = vsel %vm805, %v2238, %v2146
      %v2271 = vsel %vm805, %v2239, %v2148
      %v2272 = vsel %vm805, %v2240, %v2150
      %v2273 = vsel %vm805, %v2241, %v2152
      %v2274 = vsel %vm805, %v2242, %v2154
      %v2275 = vsel %vm805, %v2243, %v2156
      %v2276 = vsel %vm805, %v2244, %v2158
      %v2277 = vsel %vm805, %v2245, %v2160
      %v2278 = vsel %vm805, %v2246, %v2162
      %v2279 = vsel %vm805, %v2247, %v2164
      %v2280 = vsel %vm805, %v2248, %v2166
      %v2281 = vsel %vm805, %v2249, %v2168
      %v2282 = vsel %vm805, %v2250, %v2170
      %v2283 = vsel %vm805, %v2251, %v2172
      %v2284 = vsel %vm805, %v2252, %v2174
      %v2285 = vsel %vm805, %v2253, %v2176
      %v2286 = vsel %vm805, %v2254, %v2178
      %v2287 = vsel %vm805, %v2255, %v2180
      %v2288 = vsel %vm805, %v2256, %v2182
      %v2289 = vsel %vm805, %v2257, %v2184
      %v2290 = vsel %vm805, %v2258, %v2186
      %v2291 = vsel %vm805, %v2259, %v2188
      %v2292 = vsel %vm805, %v2260, %v2190
      %v2293 = vsel %vm805, %v2261, %v2192
      %v2294 = vsel %vm805, %v2262, %v2194
      %v2295 = vsel %vm805, %v2263, %v2196
      %v2296 = vsel %vm805, %v2264, %v2198
      %v2297 = vsel %vm805, %v2265, %v2200
      %v2298 = vsel %vm805, %v2266, %v2202
      %v2299 = vpack.c.bf16 %v2268, %v2267
      %v2300 = vpack.c.bf16 %v2142, %v2140
      %v2301 = vpack.c.bf16 %v2270, %v2269
      %v2302 = vpack.c.bf16 %v2146, %v2144
      %v2303 = vpack.c.bf16 %v2272, %v2271
      %v2304 = vpack.c.bf16 %v2150, %v2148
      %v2305 = vpack.c.bf16 %v2274, %v2273
      %v2306 = vpack.c.bf16 %v2154, %v2152
      %v2307 = vpack.c.bf16 %v2276, %v2275
      %v2308 = vpack.c.bf16 %v2158, %v2156
      %v2309 = vpack.c.bf16 %v2278, %v2277
      %v2310 = vpack.c.bf16 %v2162, %v2160
      %v2311 = vpack.c.bf16 %v2280, %v2279
      %v2312 = vpack.c.bf16 %v2166, %v2164
      %v2313 = vpack.c.bf16 %v2282, %v2281
      %v2314 = vpack.c.bf16 %v2170, %v2168
      %v2315 = vpack.c.bf16 %v2284, %v2283
      %v2316 = vpack.c.bf16 %v2174, %v2172
      %v2317 = vpack.c.bf16 %v2286, %v2285
      %v2318 = vpack.c.bf16 %v2178, %v2176
      %v2319 = vpack.c.bf16 %v2288, %v2287
      %v2320 = vpack.c.bf16 %v2182, %v2180
      %v2321 = vpack.c.bf16 %v2290, %v2289
      %v2322 = vpack.c.bf16 %v2186, %v2184
      %v2323 = vpack.c.bf16 %v2292, %v2291
      %v2324 = vpack.c.bf16 %v2190, %v2188
      %v2325 = vpack.c.bf16 %v2294, %v2293
      %v2326 = vpack.c.bf16 %v2194, %v2192
      %v2327 = vpack.c.bf16 %v2296, %v2295
      %v2328 = vpack.c.bf16 %v2198, %v2196
      %v2329 = vpack.c.bf16 %v2298, %v2297
      %v2330 = vpack.c.bf16 %v2202, %v2200
      %s2331 = scalar_lea.vmem %s3, 144
      %v2332 = vld [vmem:[%s2331] sm:$0xf]
      %v2333 = vld [vmem:[%s2331 + $0x4] sm:$0xf]
      %v2334 = vld [vmem:[%s2331 + $0x8] sm:$0xf]
      %v2335 = vld [vmem:[%s2331 + $0xc] sm:$0xf]
      %v2336 = vld [vmem:[%s2331 + $0x10] sm:$0xf]
      %v2337 = vld [vmem:[%s2331 + $0x14] sm:$0xf]
      %v2338 = vld [vmem:[%s2331 + $0x18] sm:$0xf]
      %v2339 = vld [vmem:[%s2331 + $0x1c] sm:$0xf]
      %v2340 = vld [vmem:[%s2331 + $0x20] sm:$0xf]
      %v2341 = vld [vmem:[%s2331 + $0x24] sm:$0xf]
      %v2342 = vld [vmem:[%s2331 + $0x28] sm:$0xf]
      %v2343 = vld [vmem:[%s2331 + $0x2c] sm:$0xf]
      %v2344 = vld [vmem:[%s2331 + $0x30] sm:$0xf]
      %v2345 = vld [vmem:[%s2331 + $0x34] sm:$0xf]
      %v2346 = vld [vmem:[%s2331 + $0x38] sm:$0xf]
      %v2347 = vld [vmem:[%s2331 + $0x3c] sm:$0xf]
      %v2348 = vld [vmem:[%s2331 + $0x40] sm:$0xf]
      %v2349 = vld [vmem:[%s2331 + $0x44] sm:$0xf]
      %v2368 = vunpack.c.l.b16 %v2332
      %v2369 = vunpack.c.l.b16 %v2333
      %v2370 = vunpack.c.l.b16 %v2334
      %v2371 = vunpack.c.l.b16 %v2335
      %v2372 = vunpack.c.l.b16 %v2336
      %v2373 = vunpack.c.l.b16 %v2337
      %v2374 = vunpack.c.l.b16 %v2338
      %v2375 = vunpack.c.l.b16 %v2339
      %v2376 = vunpack.c.l.b16 %v2340
      %v2377 = vunpack.c.l.b16 %v2341
      %v2378 = vunpack.c.l.b16 %v2342
      %v2379 = vunpack.c.l.b16 %v2343
      %v2380 = vunpack.c.l.b16 %v2344
      %v2381 = vunpack.c.l.b16 %v2345
      %v2382 = vunpack.c.l.b16 %v2346
      %v2383 = vunpack.c.l.b16 %v2347
      %v2384 = vunpack.c.l.b16 %v2348
      %v2385 = vunpack.c.l.b16 %v2349
      %v2386 = vpack.c.b16 %v2369, %v2368
      %v2387 = vpack.c.b16 %v2371, %v2370
      %v2388 = vpack.c.b16 %v2373, %v2372
      %v2389 = vpack.c.b16 %v2375, %v2374
      %v2390 = vpack.c.b16 %v2377, %v2376
      %v2391 = vpack.c.b16 %v2379, %v2378
      %v2392 = vpack.c.b16 %v2381, %v2380
      %v2393 = vpack.c.b16 %v2383, %v2382
      %v2394 = vpack.c.b16 %v2385, %v2384
      %v2405 = vsel %vm1409, %v2300, 0
      %v2408 = vsel %vm1409, %v2302, 0
      %v2411 = vsel %vm1409, %v2304, 0
      %v2414 = vsel %vm1409, %v2306, 0
      %v2417 = vsel %vm1409, %v2308, 0
      %v2420 = vsel %vm1409, %v2310, 0
      %v2423 = vsel %vm1409, %v2312, 0
      %v2426 = vsel %vm1409, %v2314, 0
      %v2429 = vsel %vm1409, %v2316, 0
      %v2432 = vsel %vm1409, %v2318, 0
      %v2435 = vsel %vm1409, %v2320, 0
      %v2438 = vsel %vm1409, %v2322, 0
      %v2441 = vsel %vm1409, %v2324, 0
      %v2444 = vsel %vm1409, %v2326, 0
      %v2447 = vsel %vm1409, %v2328, 0
      %v2450 = vsel %vm1409, %v2330, 0
      %2452 = vmatprep.subr.bf16.mxu0 0
      %2453 = vmatpush1.bf16.msra.mxu0 %v2386
      %2454 = vmatprep.subr.bf16.mxu0 0
      %2455 = vmatpush1.bf16.msra.mxu0 %v2387
      %2456 = vmatprep.subr.bf16.mxu0 0
      %2457 = vmatpush1.bf16.msra.mxu0 %v2388
      %2458 = vmatprep.subr.bf16.mxu0 0
      %2459 = vmatpush1.bf16.msra.mxu0 %v2389
      %2460 = vmatprep.subr.bf16.mxu0 0
      %2461 = vmatpush1.bf16.msra.mxu0 %v2390
      %2462 = vmatprep.subr.bf16.mxu0 0
      %2463 = vmatpush1.bf16.msra.mxu0 %v2391
      %2464 = vmatprep.subr.bf16.mxu0 0
      %2465 = vmatpush1.bf16.msra.mxu0 %v2392
      %2466 = vmatprep.subr.bf16.mxu0 0
      %2467 = vmatpush1.bf16.msra.mxu0 %v2393
      %2468 = vmatprep.subr.bf16.mxu0 0
      %2469 = vmatpush1.bf16.msra.mxu0 %v2394
      %2470 = vmatprep.subr.bf16.mxu0 0
      %2471 = vmatpush1.bf16.msra.mxu0 0
      %2472 = vmatprep.subr.bf16.mxu0 0
      %2473 = vmatpush1.bf16.msra.mxu0 0
      %2474 = vmatprep.subr.bf16.mxu0 0
      %2475 = vmatpush1.bf16.msra.mxu0 0
      %2476 = vmatprep.subr.bf16.mxu0 0
      %2477 = vmatpush1.bf16.msra.mxu0 0
      %2478 = vmatprep.subr.bf16.mxu0 0
      %2479 = vmatpush1.bf16.msra.mxu0 0
      %2480 = vmatprep.subr.bf16.mxu0 0
      %2481 = vmatpush1.bf16.msra.mxu0 0
      %2482 = vmatprep.subr.bf16.mxu0 0
      %2483 = vmatpush1.bf16.msra.mxu0 0
      %2484 = vmatprep.mubr.bf16.mxu0 %v2405
      %2485 = vmatmul.mubr.bf16.gmra.mrb[0].mxu0 %v2299
      %v2486 = vpop.f32.mrb[0].mxu0
      %v2487 = vadd.f32 0.0, %v2486
      %v2488 = vpop.f32.mrb[0].mxu0
      %v2489 = vpop.f32.mrb[0].mxu0
      %v2490 = vadd.f32 0.0, %v2489
      %v2491 = vpop.f32.mrb[0].mxu0
      %2492 = vmatprep.mubr.bf16.mxu0 %v2408
      %2493 = vmatmul.mubr.bf16.gmra.mrb[0].mxu0 %v2301
      %v2494 = vpop.f32.mrb[0].mxu0
      %v2495 = vadd.f32 0.0, %v2494
      %v2496 = vpop.f32.mrb[0].mxu0
      %v2497 = vpop.f32.mrb[0].mxu0
      %v2498 = vadd.f32 0.0, %v2497
      %v2499 = vpop.f32.mrb[0].mxu0
      %2500 = vmatprep.mubr.bf16.mxu0 %v2411
      %2501 = vmatmul.mubr.bf16.gmra.mrb[0].mxu0 %v2303
      %v2502 = vpop.f32.mrb[0].mxu0
      %v2503 = vadd.f32 0.0, %v2502
      %v2504 = vpop.f32.mrb[0].mxu0
      %v2505 = vpop.f32.mrb[0].mxu0
      %v2506 = vadd.f32 0.0, %v2505
      %v2507 = vpop.f32.mrb[0].mxu0
      %2508 = vmatprep.mubr.bf16.mxu0 %v2414
      %2509 = vmatmul.mubr.bf16.gmra.mrb[0].mxu0 %v2305
      %v2510 = vpop.f32.mrb[0].mxu0
      %v2511 = vadd.f32 0.0, %v2510
      %v2512 = vpop.f32.mrb[0].mxu0
      %v2513 = vpop.f32.mrb[0].mxu0
      %v2514 = vadd.f32 0.0, %v2513
      %v2515 = vpop.f32.mrb[0].mxu0
      %2516 = vmatprep.mubr.bf16.mxu0 %v2417
      %2517 = vmatmul.mubr.bf16.gmra.mrb[0].mxu0 %v2307
      %v2518 = vpop.f32.mrb[0].mxu0
      %v2519 = vadd.f32 0.0, %v2518
      %v2520 = vpop.f32.mrb[0].mxu0
      %v2521 = vpop.f32.mrb[0].mxu0
      %v2522 = vadd.f32 0.0, %v2521
      %v2523 = vpop.f32.mrb[0].mxu0
      %2524 = vmatprep.mubr.bf16.mxu0 %v2420
      %2525 = vmatmul.mubr.bf16.gmra.mrb[0].mxu0 %v2309
      %v2526 = vpop.f32.mrb[0].mxu0
      %v2527 = vadd.f32 0.0, %v2526
      %v2528 = vpop.f32.mrb[0].mxu0
      %v2529 = vpop.f32.mrb[0].mxu0
      %v2530 = vadd.f32 0.0, %v2529
      %v2531 = vpop.f32.mrb[0].mxu0
      %2532 = vmatprep.mubr.bf16.mxu0 %v2423
      %2533 = vmatmul.mubr.bf16.gmra.mrb[0].mxu0 %v2311
      %v2534 = vpop.f32.mrb[0].mxu0
      %v2535 = vadd.f32 0.0, %v2534
      %v2536 = vpop.f32.mrb[0].mxu0
      %v2537 = vpop.f32.mrb[0].mxu0
      %v2538 = vadd.f32 0.0, %v2537
      %v2539 = vpop.f32.mrb[0].mxu0
      %2540 = vmatprep.mubr.bf16.mxu0 %v2426
      %2541 = vmatmul.mubr.bf16.gmra.mrb[0].mxu0 %v2313
      %v2542 = vpop.f32.mrb[0].mxu0
      %v2543 = vadd.f32 0.0, %v2542
      %v2544 = vpop.f32.mrb[0].mxu0
      %v2545 = vpop.f32.mrb[0].mxu0
      %v2546 = vadd.f32 0.0, %v2545
      %v2547 = vpop.f32.mrb[0].mxu0
      %2548 = vmatprep.mubr.bf16.mxu0 %v2429
      %2549 = vmatmul.mubr.bf16.gmra.mrb[0].mxu0 %v2315
      %v2550 = vpop.f32.mrb[0].mxu0
      %v2551 = vadd.f32 0.0, %v2550
      %v2552 = vpop.f32.mrb[0].mxu0
      %v2553 = vpop.f32.mrb[0].mxu0
      %v2554 = vadd.f32 0.0, %v2553
      %v2555 = vpop.f32.mrb[0].mxu0
      %2556 = vmatprep.mubr.bf16.mxu0 %v2432
      %2557 = vmatmul.mubr.bf16.gmra.mrb[0].mxu0 %v2317
      %v2558 = vpop.f32.mrb[0].mxu0
      %v2559 = vadd.f32 0.0, %v2558
      %v2560 = vpop.f32.mrb[0].mxu0
      %v2561 = vpop.f32.mrb[0].mxu0
      %v2562 = vadd.f32 0.0, %v2561
      %v2563 = vpop.f32.mrb[0].mxu0
      %2564 = vmatprep.mubr.bf16.mxu0 %v2435
      %2565 = vmatmul.mubr.bf16.gmra.mrb[0].mxu0 %v2319
      %v2566 = vpop.f32.mrb[0].mxu0
      %v2567 = vadd.f32 0.0, %v2566
      %v2568 = vpop.f32.mrb[0].mxu0
      %v2569 = vpop.f32.mrb[0].mxu0
      %v2570 = vadd.f32 0.0, %v2569
      %v2571 = vpop.f32.mrb[0].mxu0
      %2572 = vmatprep.mubr.bf16.mxu0 %v2438
      %2573 = vmatmul.mubr.bf16.gmra.mrb[0].mxu0 %v2321
      %v2574 = vpop.f32.mrb[0].mxu0
      %v2575 = vadd.f32 0.0, %v2574
      %v2576 = vpop.f32.mrb[0].mxu0
      %v2577 = vpop.f32.mrb[0].mxu0
      %v2578 = vadd.f32 0.0, %v2577
      %v2579 = vpop.f32.mrb[0].mxu0
      %2580 = vmatprep.mubr.bf16.mxu0 %v2441
      %2581 = vmatmul.mubr.bf16.gmra.mrb[0].mxu0 %v2323
      %v2582 = vpop.f32.mrb[0].mxu0
      %v2583 = vadd.f32 0.0, %v2582
      %v2584 = vpop.f32.mrb[0].mxu0
      %v2585 = vpop.f32.mrb[0].mxu0
      %v2586 = vadd.f32 0.0, %v2585
      %v2587 = vpop.f32.mrb[0].mxu0
      %2588 = vmatprep.mubr.bf16.mxu0 %v2444
      %2589 = vmatmul.mubr.bf16.gmra.mrb[0].mxu0 %v2325
      %v2590 = vpop.f32.mrb[0].mxu0
      %v2591 = vadd.f32 0.0, %v2590
      %v2592 = vpop.f32.mrb[0].mxu0
      %v2593 = vpop.f32.mrb[0].mxu0
      %v2594 = vadd.f32 0.0, %v2593
      %v2595 = vpop.f32.mrb[0].mxu0
      %2596 = vmatprep.mubr.bf16.mxu0 %v2447
      %2597 = vmatmul.mubr.bf16.gmra.mrb[0].mxu0 %v2327
      %v2598 = vpop.f32.mrb[0].mxu0
      %v2599 = vadd.f32 0.0, %v2598
      %v2600 = vpop.f32.mrb[0].mxu0
      %v2601 = vpop.f32.mrb[0].mxu0
      %v2602 = vadd.f32 0.0, %v2601
      %v2603 = vpop.f32.mrb[0].mxu0
      %2604 = vmatprep.mubr.bf16.mxu0 %v2450
      %2605 = vmatmul.mubr.bf16.gmra.mrb[0].mxu0 %v2329
      %v2606 = vpop.f32.mrb[0].mxu0
      %v2607 = vadd.f32 0.0, %v2606
      %v2608 = vpop.f32.mrb[0].mxu0
      %v2609 = vpop.f32.mrb[0].mxu0
      %v2610 = vadd.f32 0.0, %v2609
      %v2611 = vpop.f32.mrb[0].mxu0
      %2612 = vdwg.mxu0
      %v2613 = vadd.f32 %v1756, %v2487
      %v2614 = vadd.f32 %v1759, %v2490
      %v2615 = vadd.f32 %v1764, %v2495
      %v2616 = vadd.f32 %v1767, %v2498
      %v2617 = vadd.f32 %v1772, %v2503
      %v2618 = vadd.f32 %v1775, %v2506
      %v2619 = vadd.f32 %v1780, %v2511
      %v2620 = vadd.f32 %v1783, %v2514
      %v2621 = vadd.f32 %v1788, %v2519
      %v2622 = vadd.f32 %v1791, %v2522
      %v2623 = vadd.f32 %v1796, %v2527
      %v2624 = vadd.f32 %v1799, %v2530
      %v2625 = vadd.f32 %v1804, %v2535
      %v2626 = vadd.f32 %v1807, %v2538
      %v2627 = vadd.f32 %v1812, %v2543
      %v2628 = vadd.f32 %v1815, %v2546
      %v2629 = vadd.f32 %v1820, %v2551
      %v2630 = vadd.f32 %v1823, %v2554
      %v2631 = vadd.f32 %v1828, %v2559
      %v2632 = vadd.f32 %v1831, %v2562
      %v2633 = vadd.f32 %v1836, %v2567
      %v2634 = vadd.f32 %v1839, %v2570
      %v2635 = vadd.f32 %v1844, %v2575
      %v2636 = vadd.f32 %v1847, %v2578
      %v2637 = vadd.f32 %v1852, %v2583
      %v2638 = vadd.f32 %v1855, %v2586
      %v2639 = vadd.f32 %v1860, %v2591
      %v2640 = vadd.f32 %v1863, %v2594
      %v2641 = vadd.f32 %v1868, %v2599
      %v2642 = vadd.f32 %v1871, %v2602
      %v2643 = vadd.f32 %v1876, %v2607
      %v2644 = vadd.f32 %v1879, %v2610
      %vm2645 = vcmask 523264
      %2646 = vst.msk [vmem:[%s197] sm:$0xff] %vm2645, %v2613
      %2647 = vst.msk [vmem:[%s197 + $0x8] sm:$0xff] %vm2645, %v2614
      %2648 = vst.msk [vmem:[%s197 + $0x10] sm:$0xff] %vm2645, %v2615
      %2649 = vst.msk [vmem:[%s197 + $0x18] sm:$0xff] %vm2645, %v2616
      %2650 = vst.msk [vmem:[%s197 + $0x20] sm:$0xff] %vm2645, %v2617
      %2651 = vst.msk [vmem:[%s197 + $0x28] sm:$0xff] %vm2645, %v2618
      %2652 = vst.msk [vmem:[%s197 + $0x30] sm:$0xff] %vm2645, %v2619
      %2653 = vst.msk [vmem:[%s197 + $0x38] sm:$0xff] %vm2645, %v2620
      %2654 = vst.msk [vmem:[%s197 + $0x40] sm:$0xff] %vm2645, %v2621
      %2655 = vst.msk [vmem:[%s197 + $0x48] sm:$0xff] %vm2645, %v2622
      %2656 = vst.msk [vmem:[%s197 + $0x50] sm:$0xff] %vm2645, %v2623
      %2657 = vst.msk [vmem:[%s197 + $0x58] sm:$0xff] %vm2645, %v2624
      %2658 = vst.msk [vmem:[%s197 + $0x60] sm:$0xff] %vm2645, %v2625
      %2659 = vst.msk [vmem:[%s197 + $0x68] sm:$0xff] %vm2645, %v2626
      %2660 = vst.msk [vmem:[%s197 + $0x70] sm:$0xff] %vm2645, %v2627
      %2661 = vst.msk [vmem:[%s197 + $0x78] sm:$0xff] %vm2645, %v2628
      %2662 = vst.msk [vmem:[%s197 + $0x80] sm:$0xff] %vm2645, %v2629
      %2663 = vst.msk [vmem:[%s197 + $0x88] sm:$0xff] %vm2645, %v2630
      %2664 = vst.msk [vmem:[%s197 + $0x90] sm:$0xff] %vm2645, %v2631
      %2665 = vst.msk [vmem:[%s197 + $0x98] sm:$0xff] %vm2645, %v2632
      %2666 = vst.msk [vmem:[%s197 + $0xa0] sm:$0xff] %vm2645, %v2633
      %2667 = vst.msk [vmem:[%s197 + $0xa8] sm:$0xff] %vm2645, %v2634
      %2668 = vst.msk [vmem:[%s197 + $0xb0] sm:$0xff] %vm2645, %v2635
      %2669 = vst.msk [vmem:[%s197 + $0xb8] sm:$0xff] %vm2645, %v2636
      %2670 = vst.msk [vmem:[%s197 + $0xc0] sm:$0xff] %vm2645, %v2637
      %2671 = vst.msk [vmem:[%s197 + $0xc8] sm:$0xff] %vm2645, %v2638
      %2672 = vst.msk [vmem:[%s197 + $0xd0] sm:$0xff] %vm2645, %v2639
      %2673 = vst.msk [vmem:[%s197 + $0xd8] sm:$0xff] %vm2645, %v2640
      %2674 = vst.msk [vmem:[%s197 + $0xe0] sm:$0xff] %vm2645, %v2641
      %2675 = vst.msk [vmem:[%s197 + $0xe8] sm:$0xff] %vm2645, %v2642
      %2676 = vst.msk [vmem:[%s197 + $0xf0] sm:$0xff] %vm2645, %v2643
      %2677 = vst.msk [vmem:[%s197 + $0xf8] sm:$0xff] %vm2645, %v2644
      %p2678 = scmp.lt.s32.totalorder %s15, 1
      %s2679 = scalar_select %p2678, %s15, 1
      %s2680 = smul.addr %s2679, 32
      %s2681 = smul.addr %s2680, 8
      %s2682 = scalar_lea.vmem %s4, %s2681
      // Predicated region
      $region37: #{_inception_a_forward.7} parent=35 // pred_check
        %p2683 = pneg %p122
      $region38: #{_inception_a_forward.7} parent=35 // pred_check_branch
        %2685 = sbr.rel (%p2683) target = $region40
      $region39: #{_inception_a_forward.7} parent=35 // pred_region
        _
      $region40: #{_inception_a_forward.7} parent=35 // pred_fallthru
        _
    $region36: #{_inception_a_forward.7} parent=5 // pred_fallthru
      _
    %p2686 = scmp.le.s32.totalorder 2, %s10
    // Predicated region
    $region41: #{_inception_a_forward.7} parent=5 // pred_check
      %p2687 = pneg %p2686
    $region42: #{_inception_a_forward.7} parent=5 // pred_check_branch
      %2689 = sbr.rel (%p2687) target = $region44
    $region43: #{_inception_a_forward.7} parent=5 // pred_region
      %s2690 = ssub.s32 %s10, 2
      // Predicated region
      $region45: #{_inception_a_forward.7} parent=43 // pred_check
        %p2691 = pneg %p128
      $region46: #{_inception_a_forward.7} parent=43 // pred_check_branch
        %2693 = sbr.rel (%p2691) target = $region48
      $region47: #{_inception_a_forward.7} parent=43 // pred_region
        %p2694 = scmp.lt.s32.totalorder %s16, 1
        %s2695 = scalar_select %p2694, %s16, 1
        %s2696 = smul.addr %s2695, 32
        %s2697 = smul.addr %s2696, 8
        %s2698 = scalar_lea.vmem %s4, %s2697
      $region48: #{_inception_a_forward.7} parent=43 // pred_fallthru
        _
    $region44: #{_inception_a_forward.7} parent=5 // pred_fallthru
      _
  $region6: #{_inception_a_forward.7} parent=0 // loop_footer
    %s14 = sadd.s32 1, %s10
  $region7: #{_inception_a_forward.7} parent=0 // loop_footer_branch
    %9 = sbr.rel target = $region3
  $region8: #{_inception_a_forward.7} parent=0 // loop_exit
    _

</llo_original>
